<compile_context>
chip_gen: v5e
topology: v5e:2x2
jax: 0.10.0
libtpu: 0.0.40
codegen_flags: <defaults>
</compile_context>

<pallas_src>
import math

import jax
import jax.numpy as jnp
from jax import lax
from jax.experimental import pallas as pl
from jax.experimental.pallas import tpu as pltpu


_SMALL_K_VPU_THRESHOLD = 16  # channel contraction on the VPU up to here; MXU dot above


def _cdiv(a, b):
    return -(-a // b)


def _num_tensorcores():
    """Best-effort TensorCore count (v7x: 2/chip). Default 1 => no forced grid split."""
    try:
        info = pltpu.get_tpu_info()
    except Exception:
        return 1
    for name in ("num_cores", "core_count", "num_tensorcores", "tensorcore_count"):
        v = getattr(info, name, None)
        if v is None:
            continue
        try:
            v = int(v)
        except (TypeError, ValueError):
            continue
        if v > 0:
            return v
    return 1


def _pick_rows_per_step(batch, H, W, c_in, c_out, in_item, out_item, num_cores):
    """Input rows per grid step (k)."""
    # VMEM tied up per input row: double-buffered x and out blocks + f32 working values.
    per_row = (2 * c_in * W * in_item          # x block rows (double buffered)
               + 2 * 4 * c_out * W * out_item  # out block rows (2 x 2W, double buffered)
               + 4 * c_out * W * 4)            # f32 y planes / interleaved rows
    budget = 8 * 1024 * 1024                   # mem-bound kernels saturate HBM well below this
    k = max(1, budget // per_row)
    k = min(k, H)
    k = min(k, max(1, 4096 // max(W, 1)))      # cap spatial positions per step (review: ~4k)
    k = min(k, 16)                             # bound the static in-kernel unroll
    # Only force >=2 grid steps when the chip actually has >1 TensorCore (v7x).
    if num_cores > 1 and H >= 16 and batch * _cdiv(H, k) < num_cores:
        k = min(k, max(8, (_cdiv(H, 2) // 8) * 8))
    if k < H:
        # Blocked (non-full) second-minor dims must be multiples of 8.
        k = max(8, (k // 8) * 8)
        if k >= H:
            k = H
    return int(k)


def _vmem_limit_bytes(c_in, c_out, k, W, in_item, out_item):
    need = (2 * c_in * k * W * in_item           # x block, double buffered
            + 2 * 4 * c_out * k * W * out_item   # out block, double buffered
            + 8 * c_out * c_in * 4 + 8 * c_out   # resident weight / bias
            + 16 * c_out * W * 4                 # f32 y / row working values
            + 8 * W * W * 4)                     # S0/S1 selection matrices (W x 2W, f32)
    return int(min(100 * 1024 * 1024, max(32 * 1024 * 1024, 2 * need)))


def _resident_spec(shape, index_map):
    # Constant-index operands: single buffering avoids a second, never-refilled VMEM copy.
    try:
        return pl.BlockSpec(shape, index_map, pipeline_mode=pl.Buffered(1))
    except Exception:
        return pl.BlockSpec(shape, index_map)


def _make_fused_kernel(c_in, c_out, k_rows, w_in, use_vpu):
    P = 4 * c_out
    W = w_in

    def kernel(x_ref, w_ref, b_ref, o_ref):
        # x_ref: (C_in, k, W)   w_ref: (P, C_in)   b_ref: (C_out, 1)   o_ref: (C_out, 2k, 2W)
        f32 = jnp.float32
        # dj-selection matrices S_dj[j, 2j+dj] = 1 (cheap iota/compare work, hoisted).
        col = lax.broadcasted_iota(jnp.int32, (W, 2 * W), 1)
        two_row = 2 * lax.broadcasted_iota(jnp.int32, (W, 2 * W), 0)
        s0 = (col == two_row).astype(f32)
        s1 = (col == two_row + 1).astype(f32)
        bias = b_ref[...].astype(f32)                                    # (C_out, 1)

        if use_vpu:
            # Hoisted per-channel weight columns broadcast to (P, W): reused by every row.
            wb = [jnp.broadcast_to(w_ref[:, c:c + 1].astype(f32), (P, W))
                  for c in range(c_in)]
        else:
            w_all = w_ref[...].astype(f32)                               # (P, C_in)

        for ii in range(k_rows):                                         # static unroll
            if use_vpu:
                # C_in unrolled broadcast-FMAs on the VPU (tiny contraction dim).
                y = wb[0] * x_ref[0, ii:ii + 1, :].astype(f32)
                for c in range(1, c_in):
                    y = y + wb[c] * x_ref[c, ii:ii + 1, :].astype(f32)   # (P, W)
            else:
                y = jnp.dot(w_all, x_ref[:, ii, :].astype(f32),
                            preferred_element_type=f32)                  # (P, W)
            for di in range(2):
                y_dj0 = y[(2 * di) * c_out:(2 * di + 1) * c_out, :]      # (C_out, W)
                y_dj1 = y[(2 * di + 1) * c_out:(2 * di + 2) * c_out, :]  # (C_out, W)
                # Width interleave: row[oc, 2j+dj] = y_dj[oc, j]; bias rides in VALU slack.
                row = (jnp.dot(y_dj0, s0, preferred_element_type=f32)
                       + jnp.dot(y_dj1, s1, preferred_element_type=f32)
                       + bias)                                           # (C_out, 2W)
                o_ref[:, 2 * ii + di, :] = row.astype(o_ref.dtype)

    return kernel


def _fused_call(x_nchw, w2, b2, out_dtype, k, use_vpu, single_buffer_consts):
    B, C_in, H, W = x_nchw.shape
    P = w2.shape[0]
    C_out = P // 4
    in_item = jnp.dtype(x_nchw.dtype).itemsize
    out_item = jnp.dtype(out_dtype).itemsize
    grid = (B, pl.cdiv(H, k))

    const_spec = _resident_spec if single_buffer_consts else pl.BlockSpec
    return pl.pallas_call(
        _make_fused_kernel(C_in, C_out, k, W, use_vpu),
        out_shape=jax.ShapeDtypeStruct((B, C_out, 2 * H, 2 * W), out_dtype),
        grid=grid,
        in_specs=[
            pl.BlockSpec((None, C_in, k, W), lambda b, s: (b, 0, s, 0)),   # x rows (native NCHW)
            const_spec((P, C_in), lambda b, s: (0, 0)),                    # resident weight
            const_spec((C_out, 1), lambda b, s: (0, 0)),                   # resident bias
        ],
        out_specs=pl.BlockSpec((None, C_out, 2 * k, 2 * W), lambda b, s: (b, 0, s, 0)),
        compiler_params=pltpu.CompilerParams(
            dimension_semantics=("parallel", "parallel"),
            vmem_limit_bytes=_vmem_limit_bytes(C_in, C_out, k, W, in_item, out_item),
        ),
    )(x_nchw, w2, b2)


# ---------------------------------------------------------------------------
# Known-good fallback (v2 structure): planar (B, 4*C_out, H*W) GEMM + one XLA transpose.
# ---------------------------------------------------------------------------
def _planar_kernel(x_ref, w_ref, b_ref, o_ref):
    acc = jnp.dot(w_ref[...].astype(jnp.float32), x_ref[...].astype(jnp.float32),
                  preferred_element_type=jnp.float32)
    o_ref[...] = (acc + b_ref[...]).astype(o_ref.dtype)


def _upsample_unfused(x_nchw, w2, bias, out_dtype):
    B, C_in, H, W = x_nchw.shape
    P = w2.shape[0]
    C_out = P // 4
    HW = H * W
    x3 = x_nchw.reshape(B, C_in, HW)
    b4 = jnp.tile(bias.astype(jnp.float32), 4).reshape(P, 1)
    ts = HW if HW <= 2048 else 2048
    y = pl.pallas_call(
        _planar_kernel,
        out_shape=jax.ShapeDtypeStruct((B, P, HW), out_dtype),
        grid=(B, pl.cdiv(HW, ts)),
        in_specs=[pl.BlockSpec((None, C_in, ts), lambda b, s: (b, 0, s)),
                  pl.BlockSpec((P, C_in), lambda b, s: (0, 0)),
                  pl.BlockSpec((P, 1), lambda b, s: (0, 0))],
        out_specs=pl.BlockSpec((None, P, ts), lambda b, s: (b, 0, s)),
        compiler_params=pltpu.CompilerParams(
            dimension_semantics=("parallel", "parallel"),
            vmem_limit_bytes=32 * 1024 * 1024),
    )(x3, w2, b4)
    y6 = y.reshape(B, 2, 2, C_out, H, W)
    return jnp.transpose(y6, (0, 3, 4, 1, 5, 2)).reshape(B, C_out, 2 * H, 2 * W)


def upsample_block_transp_conv(x_nchw, weight, bias, *, out_dtype=None):
    """ConvTranspose2d(in_c, out_c, kernel_size=2, stride=2) forward (PyTorch semantics).

    x_nchw: (B, in_c, H, W)
    weight: (in_c, out_c, 2, 2)   (PyTorch ConvTranspose2d weight layout)
    bias:   (out_c,)
    returns (B, out_c, 2H, 2W)
    """
    B, C_in, H, W = x_nchw.shape
    w_cin, C_out, kH, kW = weight.shape
    assert (kH, kW) == (2, 2) and w_cin == C_in
    if out_dtype is None:
        out_dtype = x_nchw.dtype
    P = 4 * C_out

    # Tiny host-side prep only (no pass over x):
    #   W2[(di*2 + dj)*C_out + oc, c] = weight[c, oc, di, dj]
    w2 = jnp.transpose(weight, (2, 3, 1, 0)).reshape(P, C_in).astype(jnp.float32)
    b2 = bias.reshape(C_out, 1).astype(jnp.float32)

    in_item = jnp.dtype(x_nchw.dtype).itemsize
    out_item = jnp.dtype(out_dtype).itemsize
    k = _pick_rows_per_step(B, H, W, C_in, C_out, in_item, out_item, _num_tensorcores())
    use_vpu = C_in <= _SMALL_K_VPU_THRESHOLD

    # Fused path first (with, then without, single-buffered resident operands); the planar
    # fallback only exists as a safety net so the op never hard-fails on an exotic config.
    for single_buf in (True, False):
        try:
            return _fused_call(x_nchw, w2, b2, out_dtype, k, use_vpu, single_buf)
        except Exception:
            continue
    return _upsample_unfused(x_nchw, w2, bias, out_dtype)


def _reference(x_nchw, weight, bias):
    # out[b, oc, 2i+di, 2j+dj] = sum_c x[b, c, i, j] * W[c, oc, di, dj] + bias[oc]
    B, C_in, H, W = x_nchw.shape
    C_out = weight.shape[1]
    y = jnp.einsum("bchw,codk->bohdwk", x_nchw, weight,
                   precision=jax.lax.Precision.HIGHEST)
    return y.reshape(B, C_out, 2 * H, 2 * W) + bias[None, :, None, None]


if __name__ == "__main__":
    key = jax.random.PRNGKey(0)
    ks = jax.random.split(key, 9)

    # Case 1: tiny channel count (VPU FMA path), float32, B=2.
    B, in_c, out_c, H, W = 2, 4, 8, 16, 16
    x = jax.random.normal(ks[0], (B, in_c, H, W), dtype=jnp.float32)
    bound = 1.0 / math.sqrt(in_c * 4)
    weight = jax.random.uniform(ks[1], (in_c, out_c, 2, 2), jnp.float32, -bound, bound)
    bias = jax.random.uniform(ks[2], (out_c,), jnp.float32, -bound, bound)
    out = jax.block_until_ready(upsample_block_transp_conv(x, weight, bias))
    ref = _reference(x, weight, bias)
    assert out.shape == (B, out_c, 2 * H, 2 * W), out.shape
    assert jnp.allclose(out, ref, atol=1e-5, rtol=1e-5), float(jnp.max(jnp.abs(out - ref)))

    # Case 2: wider channels (per-row MXU path), B=1 (row axis only split on multi-TC chips).
    B2, in_c2, out_c2, H2, W2 = 1, 32, 16, 16, 16
    x2 = jax.random.normal(ks[3], (B2, in_c2, H2, W2), dtype=jnp.float32)
    bound2 = 1.0 / math.sqrt(in_c2 * 4)
    weight2 = jax.random.uniform(ks[4], (in_c2, out_c2, 2, 2), jnp.float32, -bound2, bound2)
    bias2 = jax.random.uniform(ks[5], (out_c2,), jnp.float32, -bound2, bound2)
    out2 = jax.block_until_ready(upsample_block_transp_conv(x2, weight2, bias2))
    ref2 = _reference(x2, weight2, bias2)
    assert out2.shape == (B2, out_c2, 2 * H2, 2 * W2), out2.shape
    assert jnp.allclose(out2, ref2, atol=1e-3, rtol=1e-3), float(jnp.max(jnp.abs(out2 - ref2)))

    # Case 3: H not a multiple of the row tile -> ragged last block (write clipping path).
    B3, in_c3, out_c3, H3, W3 = 2, 4, 8, 20, 16
    x3 = jax.random.normal(ks[6], (B3, in_c3, H3, W3), dtype=jnp.float32)
    bound3 = 1.0 / math.sqrt(in_c3 * 4)
    weight3 = jax.random.uniform(ks[7], (in_c3, out_c3, 2, 2), jnp.float32, -bound3, bound3)
    bias3 = jax.random.uniform(ks[8], (out_c3,), jnp.float32, -bound3, bound3)
    out3 = jax.block_until_ready(upsample_block_transp_conv(x3, weight3, bias3))
    ref3 = _reference(x3, weight3, bias3)
    assert out3.shape == (B3, out_c3, 2 * H3, 2 * W3), out3.shape
    assert jnp.allclose(out3, ref3, atol=1e-5, rtol=1e-5), float(jnp.max(jnp.abs(out3 - ref3)))

    print("KERNEL_OK")
</pallas_src>

<mosaic_0001>
module attributes {stable_mosaic.version = 11 : i64} {
  func.func @kernel(%arg0: i32, %arg1: i32, %arg2: memref<1x4x16x16xf32, #tpu.memory_space<vmem>>, %arg3: memref<32x4xf32, #tpu.memory_space<vmem>>, %arg4: memref<8x1xf32, #tpu.memory_space<vmem>>, %arg5: memref<1x8x32x32xf32, #tpu.memory_space<vmem>>) attributes {dimension_semantics = [#tpu.dimension_semantics<parallel>, #tpu.dimension_semantics<parallel>], iteration_bounds = array<i64: 2, 1>, scalar_prefetch = 0 : i64, scratch_operands = 0 : i64, tpu.core_type = #tpu.core_type<tc>, window_params = [{transform_indices = @transform_0, window_bounds = array<i64: 1, 4, 16, 16>}, {pipeline_mode = #tpu.pipeline_mode<synchronous>, transform_indices = @transform_1, window_bounds = array<i64: 32, 4>}, {pipeline_mode = #tpu.pipeline_mode<synchronous>, transform_indices = @transform_2, window_bounds = array<i64: 8, 1>}, {transform_indices = @transform_3, window_bounds = array<i64: 1, 8, 32, 32>}]} {
    %0 = tpu.iota {dimensions = array<i32: 1>} : vector<16x32xi32>
    %1 = tpu.iota {dimensions = array<i32: 0>} : vector<16x32xi32>
    %c2_i32 = arith.constant 2 : i32
    %2 = vector.broadcast %c2_i32 : i32 to vector<16x32xi32>
    %3 = arith.muli %2, %1 : vector<16x32xi32>
    %4 = arith.cmpi eq, %0, %3 : vector<16x32xi32>
    %5 = arith.extui %4 : vector<16x32xi1> to vector<16x32xi32>
    %6 = arith.sitofp %5 : vector<16x32xi32> to vector<16x32xf32>
    %c1_i32 = arith.constant 1 : i32
    %7 = vector.broadcast %c1_i32 : i32 to vector<16x32xi32>
    %8 = arith.addi %3, %7 : vector<16x32xi32>
    %9 = arith.cmpi eq, %0, %8 : vector<16x32xi32>
    %10 = arith.extui %9 : vector<16x32xi1> to vector<16x32xi32>
    %11 = arith.sitofp %10 : vector<16x32xi32> to vector<16x32xf32>
    %c0 = arith.constant 0 : index
    %c0_0 = arith.constant 0 : index
    %12 = vector.load %arg4[%c0, %c0_0] : memref<8x1xf32, #tpu.memory_space<vmem>>, vector<8x1xf32>
    %c0_1 = arith.constant 0 : index
    %c0_2 = arith.constant 0 : index
    %13 = vector.load %arg3[%c0_1, %c0_2] : memref<32x4xf32, #tpu.memory_space<vmem>>, vector<32x1xf32>
    %14 = vector.shape_cast %13 : vector<32x1xf32> to vector<32x1xf32>
    %15 = vector.broadcast %14 : vector<32x1xf32> to vector<32x16xf32>
    %c0_3 = arith.constant 0 : index
    %c1 = arith.constant 1 : index
    %16 = vector.load %arg3[%c0_3, %c1] : memref<32x4xf32, #tpu.memory_space<vmem>>, vector<32x1xf32>
    %17 = vector.shape_cast %16 : vector<32x1xf32> to vector<32x1xf32>
    %18 = vector.broadcast %17 : vector<32x1xf32> to vector<32x16xf32>
    %c0_4 = arith.constant 0 : index
    %c2 = arith.constant 2 : index
    %19 = vector.load %arg3[%c0_4, %c2] : memref<32x4xf32, #tpu.memory_space<vmem>>, vector<32x1xf32>
    %20 = vector.shape_cast %19 : vector<32x1xf32> to vector<32x1xf32>
    %21 = vector.broadcast %20 : vector<32x1xf32> to vector<32x16xf32>
    %c0_5 = arith.constant 0 : index
    %c3 = arith.constant 3 : index
    %22 = vector.load %arg3[%c0_5, %c3] : memref<32x4xf32, #tpu.memory_space<vmem>>, vector<32x1xf32>
    %23 = vector.shape_cast %22 : vector<32x1xf32> to vector<32x1xf32>
    %24 = vector.broadcast %23 : vector<32x1xf32> to vector<32x16xf32>
    %c0_6 = arith.constant 0 : index
    %c0_7 = arith.constant 0 : index
    %c0_8 = arith.constant 0 : index
    %c0_9 = arith.constant 0 : index
    %25 = vector.load %arg2[%c0_6, %c0_7, %c0_8, %c0_9] : memref<1x4x16x16xf32, #tpu.memory_space<vmem>>, vector<1x1x1x16xf32>
    %26 = vector.shape_cast %25 : vector<1x1x1x16xf32> to vector<1x16xf32>
    %27 = vector.broadcast %26 : vector<1x16xf32> to vector<32x16xf32>
    %28 = arith.mulf %15, %27 : vector<32x16xf32>
    %c0_10 = arith.constant 0 : index
    %c1_11 = arith.constant 1 : index
    %c0_12 = arith.constant 0 : index
    %c0_13 = arith.constant 0 : index
    %29 = vector.load %arg2[%c0_10, %c1_11, %c0_12, %c0_13] : memref<1x4x16x16xf32, #tpu.memory_space<vmem>>, vector<1x1x1x16xf32>
    %30 = vector.shape_cast %29 : vector<1x1x1x16xf32> to vector<1x16xf32>
    %31 = vector.broadcast %30 : vector<1x16xf32> to vector<32x16xf32>
    %32 = arith.mulf %18, %31 : vector<32x16xf32>
    %33 = arith.addf %28, %32 : vector<32x16xf32>
    %c0_14 = arith.constant 0 : index
    %c2_15 = arith.constant 2 : index
    %c0_16 = arith.constant 0 : index
    %c0_17 = arith.constant 0 : index
    %34 = vector.load %arg2[%c0_14, %c2_15, %c0_16, %c0_17] : memref<1x4x16x16xf32, #tpu.memory_space<vmem>>, vector<1x1x1x16xf32>
    %35 = vector.shape_cast %34 : vector<1x1x1x16xf32> to vector<1x16xf32>
    %36 = vector.broadcast %35 : vector<1x16xf32> to vector<32x16xf32>
    %37 = arith.mulf %21, %36 : vector<32x16xf32>
    %38 = arith.addf %33, %37 : vector<32x16xf32>
    %c0_18 = arith.constant 0 : index
    %c3_19 = arith.constant 3 : index
    %c0_20 = arith.constant 0 : index
    %c0_21 = arith.constant 0 : index
    %39 = vector.load %arg2[%c0_18, %c3_19, %c0_20, %c0_21] : memref<1x4x16x16xf32, #tpu.memory_space<vmem>>, vector<1x1x1x16xf32>
    %40 = vector.shape_cast %39 : vector<1x1x1x16xf32> to vector<1x16xf32>
    %41 = vector.broadcast %40 : vector<1x16xf32> to vector<32x16xf32>
    %42 = arith.mulf %24, %41 : vector<32x16xf32>
    %43 = arith.addf %38, %42 : vector<32x16xf32>
    %44 = vector.extract_strided_slice %43 {offsets = [0, 0], sizes = [8, 16], strides = [1, 1]} : vector<32x16xf32> to vector<8x16xf32>
    %45 = vector.extract_strided_slice %43 {offsets = [8, 0], sizes = [8, 16], strides = [1, 1]} : vector<32x16xf32> to vector<8x16xf32>
    %cst = arith.constant dense<0.000000e+00> : vector<8x32xf32>
    %46 = tpu.matmul %44, %6, %cst {dimension_numbers = #tpu.dot_dimension_numbers<[1], [0], [0], [1], [0, 0, 1, 1], [], []>} : vector<8x16xf32>, vector<16x32xf32>, vector<8x32xf32> -> vector<8x32xf32>
    %cst_22 = arith.constant dense<0.000000e+00> : vector<8x32xf32>
    %47 = tpu.matmul %45, %11, %cst_22 {dimension_numbers = #tpu.dot_dimension_numbers<[1], [0], [0], [1], [0, 0, 1, 1], [], []>} : vector<8x16xf32>, vector<16x32xf32>, vector<8x32xf32> -> vector<8x32xf32>
    %48 = arith.addf %46, %47 : vector<8x32xf32>
    %49 = vector.broadcast %12 : vector<8x1xf32> to vector<8x32xf32>
    %50 = arith.addf %48, %49 : vector<8x32xf32>
    %c0_23 = arith.constant 0 : index
    %c0_24 = arith.constant 0 : index
    %c0_25 = arith.constant 0 : index
    %c0_26 = arith.constant 0 : index
    %51 = vector.load %arg5[%c0_23, %c0_24, %c0_25, %c0_26] : memref<1x8x32x32xf32, #tpu.memory_space<vmem>>, vector<1x8x1x32xf32>
    %52 = vector.shape_cast %51 : vector<1x8x1x32xf32> to vector<8x32xf32>
    %53 = vector.shape_cast %50 : vector<8x32xf32> to vector<1x8x1x32xf32>
    tpu.vector_store %arg5[%c0_23, %c0_24, %c0_25, %c0_26], %53 {strides = array<i32>} : memref<1x8x32x32xf32, #tpu.memory_space<vmem>>, vector<1x8x1x32xf32>,
    %54 = vector.extract_strided_slice %43 {offsets = [16, 0], sizes = [8, 16], strides = [1, 1]} : vector<32x16xf32> to vector<8x16xf32>
    %55 = vector.extract_strided_slice %43 {offsets = [24, 0], sizes = [8, 16], strides = [1, 1]} : vector<32x16xf32> to vector<8x16xf32>
    %cst_27 = arith.constant dense<0.000000e+00> : vector<8x32xf32>
    %56 = tpu.matmul %54, %6, %cst_27 {dimension_numbers = #tpu.dot_dimension_numbers<[1], [0], [0], [1], [0, 0, 1, 1], [], []>} : vector<8x16xf32>, vector<16x32xf32>, vector<8x32xf32> -> vector<8x32xf32>
    %cst_28 = arith.constant dense<0.000000e+00> : vector<8x32xf32>
    %57 = tpu.matmul %55, %11, %cst_28 {dimension_numbers = #tpu.dot_dimension_numbers<[1], [0], [0], [1], [0, 0, 1, 1], [], []>} : vector<8x16xf32>, vector<16x32xf32>, vector<8x32xf32> -> vector<8x32xf32>
    %58 = arith.addf %56, %57 : vector<8x32xf32>
    %59 = vector.broadcast %12 : vector<8x1xf32> to vector<8x32xf32>
    %60 = arith.addf %58, %59 : vector<8x32xf32>
    %c0_29 = arith.constant 0 : index
    %c0_30 = arith.constant 0 : index
    %c1_31 = arith.constant 1 : index
    %c0_32 = arith.constant 0 : index
    %61 = vector.load %arg5[%c0_29, %c0_30, %c1_31, %c0_32] : memref<1x8x32x32xf32, #tpu.memory_space<vmem>>, vector<1x8x1x32xf32>
    %62 = vector.shape_cast %61 : vector<1x8x1x32xf32> to vector<8x32xf32>
    %63 = vector.shape_cast %60 : vector<8x32xf32> to vector<1x8x1x32xf32>
    tpu.vector_store %arg5[%c0_29, %c0_30, %c1_31, %c0_32], %63 {strides = array<i32>} : memref<1x8x32x32xf32, #tpu.memory_space<vmem>>, vector<1x8x1x32xf32>,
    %c0_33 = arith.constant 0 : index
    %c0_34 = arith.constant 0 : index
    %c1_35 = arith.constant 1 : index
    %c0_36 = arith.constant 0 : index
    %64 = vector.load %arg2[%c0_33, %c0_34, %c1_35, %c0_36] : memref<1x4x16x16xf32, #tpu.memory_space<vmem>>, vector<1x1x1x16xf32>
    %65 = vector.shape_cast %64 : vector<1x1x1x16xf32> to vector<1x16xf32>
    %66 = vector.broadcast %65 : vector<1x16xf32> to vector<32x16xf32>
    %67 = arith.mulf %15, %66 : vector<32x16xf32>
    %c0_37 = arith.constant 0 : index
    %c1_38 = arith.constant 1 : index
    %c1_39 = arith.constant 1 : index
    %c0_40 = arith.constant 0 : index
    %68 = vector.load %arg2[%c0_37, %c1_38, %c1_39, %c0_40] : memref<1x4x16x16xf32, #tpu.memory_space<vmem>>, vector<1x1x1x16xf32>
    %69 = vector.shape_cast %68 : vector<1x1x1x16xf32> to vector<1x16xf32>
    %70 = vector.broadcast %69 : vector<1x16xf32> to vector<32x16xf32>
    %71 = arith.mulf %18, %70 : vector<32x16xf32>
    %72 = arith.addf %67, %71 : vector<32x16xf32>
    %c0_41 = arith.constant 0 : index
    %c2_42 = arith.constant 2 : index
    %c1_43 = arith.constant 1 : index
    %c0_44 = arith.constant 0 : index
    %73 = vector.load %arg2[%c0_41, %c2_42, %c1_43, %c0_44] : memref<1x4x16x16xf32, #tpu.memory_space<vmem>>, vector<1x1x1x16xf32>
    %74 = vector.shape_cast %73 : vector<1x1x1x16xf32> to vector<1x16xf32>
    %75 = vector.broadcast %74 : vector<1x16xf32> to vector<32x16xf32>
    %76 = arith.mulf %21, %75 : vector<32x16xf32>
    %77 = arith.addf %72, %76 : vector<32x16xf32>
    %c0_45 = arith.constant 0 : index
    %c3_46 = arith.constant 3 : index
    %c1_47 = arith.constant 1 : index
    %c0_48 = arith.constant 0 : index
    %78 = vector.load %arg2[%c0_45, %c3_46, %c1_47, %c0_48] : memref<1x4x16x16xf32, #tpu.memory_space<vmem>>, vector<1x1x1x16xf32>
    %79 = vector.shape_cast %78 : vector<1x1x1x16xf32> to vector<1x16xf32>
    %80 = vector.broadcast %79 : vector<1x16xf32> to vector<32x16xf32>
    %81 = arith.mulf %24, %80 : vector<32x16xf32>
    %82 = arith.addf %77, %81 : vector<32x16xf32>
    %83 = vector.extract_strided_slice %82 {offsets = [0, 0], sizes = [8, 16], strides = [1, 1]} : vector<32x16xf32> to vector<8x16xf32>
    %84 = vector.extract_strided_slice %82 {offsets = [8, 0], sizes = [8, 16], strides = [1, 1]} : vector<32x16xf32> to vector<8x16xf32>
    %cst_49 = arith.constant dense<0.000000e+00> : vector<8x32xf32>
    %85 = tpu.matmul %83, %6, %cst_49 {dimension_numbers = #tpu.dot_dimension_numbers<[1], [0], [0], [1], [0, 0, 1, 1], [], []>} : vector<8x16xf32>, vector<16x32xf32>, vector<8x32xf32> -> vector<8x32xf32>
    %cst_50 = arith.constant dense<0.000000e+00> : vector<8x32xf32>
    %86 = tpu.matmul %84, %11, %cst_50 {dimension_numbers = #tpu.dot_dimension_numbers<[1], [0], [0], [1], [0, 0, 1, 1], [], []>} : vector<8x16xf32>, vector<16x32xf32>, vector<8x32xf32> -> vector<8x32xf32>
    %87 = arith.addf %85, %86 : vector<8x32xf32>
    %88 = vector.broadcast %12 : vector<8x1xf32> to vector<8x32xf32>
    %89 = arith.addf %87, %88 : vector<8x32xf32>
    %c0_51 = arith.constant 0 : index
    %c0_52 = arith.constant 0 : index
    %c2_53 = arith.constant 2 : index
    %c0_54 = arith.constant 0 : index
    %90 = vector.load %arg5[%c0_51, %c0_52, %c2_53, %c0_54] : memref<1x8x32x32xf32, #tpu.memory_space<vmem>>, vector<1x8x1x32xf32>
    %91 = vector.shape_cast %90 : vector<1x8x1x32xf32> to vector<8x32xf32>
    %92 = vector.shape_cast %89 : vector<8x32xf32> to vector<1x8x1x32xf32>
    tpu.vector_store %arg5[%c0_51, %c0_52, %c2_53, %c0_54], %92 {strides = array<i32>} : memref<1x8x32x32xf32, #tpu.memory_space<vmem>>, vector<1x8x1x32xf32>,
    %93 = vector.extract_strided_slice %82 {offsets = [16, 0], sizes = [8, 16], strides = [1, 1]} : vector<32x16xf32> to vector<8x16xf32>
    %94 = vector.extract_strided_slice %82 {offsets = [24, 0], sizes = [8, 16], strides = [1, 1]} : vector<32x16xf32> to vector<8x16xf32>
    %cst_55 = arith.constant dense<0.000000e+00> : vector<8x32xf32>
    %95 = tpu.matmul %93, %6, %cst_55 {dimension_numbers = #tpu.dot_dimension_numbers<[1], [0], [0], [1], [0, 0, 1, 1], [], []>} : vector<8x16xf32>, vector<16x32xf32>, vector<8x32xf32> -> vector<8x32xf32>
    %cst_56 = arith.constant dense<0.000000e+00> : vector<8x32xf32>
    %96 = tpu.matmul %94, %11, %cst_56 {dimension_numbers = #tpu.dot_dimension_numbers<[1], [0], [0], [1], [0, 0, 1, 1], [], []>} : vector<8x16xf32>, vector<16x32xf32>, vector<8x32xf32> -> vector<8x32xf32>
    %97 = arith.addf %95, %96 : vector<8x32xf32>
    %98 = vector.broadcast %12 : vector<8x1xf32> to vector<8x32xf32>
    %99 = arith.addf %97, %98 : vector<8x32xf32>
    %c0_57 = arith.constant 0 : index
    %c0_58 = arith.constant 0 : index
    %c3_59 = arith.constant 3 : index
    %c0_60 = arith.constant 0 : index
    %100 = vector.load %arg5[%c0_57, %c0_58, %c3_59, %c0_60] : memref<1x8x32x32xf32, #tpu.memory_space<vmem>>, vector<1x8x1x32xf32>
    %101 = vector.shape_cast %100 : vector<1x8x1x32xf32> to vector<8x32xf32>
    %102 = vector.shape_cast %99 : vector<8x32xf32> to vector<1x8x1x32xf32>
    tpu.vector_store %arg5[%c0_57, %c0_58, %c3_59, %c0_60], %102 {strides = array<i32>} : memref<1x8x32x32xf32, #tpu.memory_space<vmem>>, vector<1x8x1x32xf32>,
    %c0_61 = arith.constant 0 : index
    %c0_62 = arith.constant 0 : index
    %c2_63 = arith.constant 2 : index
    %c0_64 = arith.constant 0 : index
    %103 = vector.load %arg2[%c0_61, %c0_62, %c2_63, %c0_64] : memref<1x4x16x16xf32, #tpu.memory_space<vmem>>, vector<1x1x1x16xf32>
    %104 = vector.shape_cast %103 : vector<1x1x1x16xf32> to vector<1x16xf32>
    %105 = vector.broadcast %104 : vector<1x16xf32> to vector<32x16xf32>
    %106 = arith.mulf %15, %105 : vector<32x16xf32>
    %c0_65 = arith.constant 0 : index
    %c1_66 = arith.constant 1 : index
    %c2_67 = arith.constant 2 : index
    %c0_68 = arith.constant 0 : index
    %107 = vector.load %arg2[%c0_65, %c1_66, %c2_67, %c0_68] : memref<1x4x16x16xf32, #tpu.memory_space<vmem>>, vector<1x1x1x16xf32>
    %108 = vector.shape_cast %107 : vector<1x1x1x16xf32> to vector<1x16xf32>
    %109 = vector.broadcast %108 : vector<1x16xf32> to vector<32x16xf32>
    %110 = arith.mulf %18, %109 : vector<32x16xf32>
    %111 = arith.addf %106, %110 : vector<32x16xf32>
    %c0_69 = arith.constant 0 : index
    %c2_70 = arith.constant 2 : index
    %c2_71 = arith.constant 2 : index
    %c0_72 = arith.constant 0 : index
    %112 = vector.load %arg2[%c0_69, %c2_70, %c2_71, %c0_72] : memref<1x4x16x16xf32, #tpu.memory_space<vmem>>, vector<1x1x1x16xf32>
    %113 = vector.shape_cast %112 : vector<1x1x1x16xf32> to vector<1x16xf32>
    %114 = vector.broadcast %113 : vector<1x16xf32> to vector<32x16xf32>
    %115 = arith.mulf %21, %114 : vector<32x16xf32>
    %116 = arith.addf %111, %115 : vector<32x16xf32>
    %c0_73 = arith.constant 0 : index
    %c3_74 = arith.constant 3 : index
    %c2_75 = arith.constant 2 : index
    %c0_76 = arith.constant 0 : index
    %117 = vector.load %arg2[%c0_73, %c3_74, %c2_75, %c0_76] : memref<1x4x16x16xf32, #tpu.memory_space<vmem>>, vector<1x1x1x16xf32>
    %118 = vector.shape_cast %117 : vector<1x1x1x16xf32> to vector<1x16xf32>
    %119 = vector.broadcast %118 : vector<1x16xf32> to vector<32x16xf32>
    %120 = arith.mulf %24, %119 : vector<32x16xf32>
    %121 = arith.addf %116, %120 : vector<32x16xf32>
    %122 = vector.extract_strided_slice %121 {offsets = [0, 0], sizes = [8, 16], strides = [1, 1]} : vector<32x16xf32> to vector<8x16xf32>
    %123 = vector.extract_strided_slice %121 {offsets = [8, 0], sizes = [8, 16], strides = [1, 1]} : vector<32x16xf32> to vector<8x16xf32>
    %cst_77 = arith.constant dense<0.000000e+00> : vector<8x32xf32>
    %124 = tpu.matmul %122, %6, %cst_77 {dimension_numbers = #tpu.dot_dimension_numbers<[1], [0], [0], [1], [0, 0, 1, 1], [], []>} : vector<8x16xf32>, vector<16x32xf32>, vector<8x32xf32> -> vector<8x32xf32>
    %cst_78 = arith.constant dense<0.000000e+00> : vector<8x32xf32>
    %125 = tpu.matmul %123, %11, %cst_78 {dimension_numbers = #tpu.dot_dimension_numbers<[1], [0], [0], [1], [0, 0, 1, 1], [], []>} : vector<8x16xf32>, vector<16x32xf32>, vector<8x32xf32> -> vector<8x32xf32>
    %126 = arith.addf %124, %125 : vector<8x32xf32>
    %127 = vector.broadcast %12 : vector<8x1xf32> to vector<8x32xf32>
    %128 = arith.addf %126, %127 : vector<8x32xf32>
    %c0_79 = arith.constant 0 : index
    %c0_80 = arith.constant 0 : index
    %c4 = arith.constant 4 : index
    %c0_81 = arith.constant 0 : index
    %129 = vector.load %arg5[%c0_79, %c0_80, %c4, %c0_81] : memref<1x8x32x32xf32, #tpu.memory_space<vmem>>, vector<1x8x1x32xf32>
    %130 = vector.shape_cast %129 : vector<1x8x1x32xf32> to vector<8x32xf32>
    %131 = vector.shape_cast %128 : vector<8x32xf32> to vector<1x8x1x32xf32>
    tpu.vector_store %arg5[%c0_79, %c0_80, %c4, %c0_81], %131 {strides = array<i32>} : memref<1x8x32x32xf32, #tpu.memory_space<vmem>>, vector<1x8x1x32xf32>,
    %132 = vector.extract_strided_slice %121 {offsets = [16, 0], sizes = [8, 16], strides = [1, 1]} : vector<32x16xf32> to vector<8x16xf32>
    %133 = vector.extract_strided_slice %121 {offsets = [24, 0], sizes = [8, 16], strides = [1, 1]} : vector<32x16xf32> to vector<8x16xf32>
    %cst_82 = arith.constant dense<0.000000e+00> : vector<8x32xf32>
    %134 = tpu.matmul %132, %6, %cst_82 {dimension_numbers = #tpu.dot_dimension_numbers<[1], [0], [0], [1], [0, 0, 1, 1], [], []>} : vector<8x16xf32>, vector<16x32xf32>, vector<8x32xf32> -> vector<8x32xf32>
    %cst_83 = arith.constant dense<0.000000e+00> : vector<8x32xf32>
    %135 = tpu.matmul %133, %11, %cst_83 {dimension_numbers = #tpu.dot_dimension_numbers<[1], [0], [0], [1], [0, 0, 1, 1], [], []>} : vector<8x16xf32>, vector<16x32xf32>, vector<8x32xf32> -> vector<8x32xf32>
    %136 = arith.addf %134, %135 : vector<8x32xf32>
    %137 = vector.broadcast %12 : vector<8x1xf32> to vector<8x32xf32>
    %138 = arith.addf %136, %137 : vector<8x32xf32>
    %c0_84 = arith.constant 0 : index
    %c0_85 = arith.constant 0 : index
    %c5 = arith.constant 5 : index
    %c0_86 = arith.constant 0 : index
    %139 = vector.load %arg5[%c0_84, %c0_85, %c5, %c0_86] : memref<1x8x32x32xf32, #tpu.memory_space<vmem>>, vector<1x8x1x32xf32>
    %140 = vector.shape_cast %139 : vector<1x8x1x32xf32> to vector<8x32xf32>
    %141 = vector.shape_cast %138 : vector<8x32xf32> to vector<1x8x1x32xf32>
    tpu.vector_store %arg5[%c0_84, %c0_85, %c5, %c0_86], %141 {strides = array<i32>} : memref<1x8x32x32xf32, #tpu.memory_space<vmem>>, vector<1x8x1x32xf32>,
    %c0_87 = arith.constant 0 : index
    %c0_88 = arith.constant 0 : index
    %c3_89 = arith.constant 3 : index
    %c0_90 = arith.constant 0 : index
    %142 = vector.load %arg2[%c0_87, %c0_88, %c3_89, %c0_90] : memref<1x4x16x16xf32, #tpu.memory_space<vmem>>, vector<1x1x1x16xf32>
    %143 = vector.shape_cast %142 : vector<1x1x1x16xf32> to vector<1x16xf32>
    %144 = vector.broadcast %143 : vector<1x16xf32> to vector<32x16xf32>
    %145 = arith.mulf %15, %144 : vector<32x16xf32>
    %c0_91 = arith.constant 0 : index
    %c1_92 = arith.constant 1 : index
    %c3_93 = arith.constant 3 : index
    %c0_94 = arith.constant 0 : index
    %146 = vector.load %arg2[%c0_91, %c1_92, %c3_93, %c0_94] : memref<1x4x16x16xf32, #tpu.memory_space<vmem>>, vector<1x1x1x16xf32>
    %147 = vector.shape_cast %146 : vector<1x1x1x16xf32> to vector<1x16xf32>
    %148 = vector.broadcast %147 : vector<1x16xf32> to vector<32x16xf32>
    %149 = arith.mulf %18, %148 : vector<32x16xf32>
    %150 = arith.addf %145, %149 : vector<32x16xf32>
    %c0_95 = arith.constant 0 : index
    %c2_96 = arith.constant 2 : index
    %c3_97 = arith.constant 3 : index
    %c0_98 = arith.constant 0 : index
    %151 = vector.load %arg2[%c0_95, %c2_96, %c3_97, %c0_98] : memref<1x4x16x16xf32, #tpu.memory_space<vmem>>, vector<1x1x1x16xf32>
    %152 = vector.shape_cast %151 : vector<1x1x1x16xf32> to vector<1x16xf32>
    %153 = vector.broadcast %152 : vector<1x16xf32> to vector<32x16xf32>
    %154 = arith.mulf %21, %153 : vector<32x16xf32>
    %155 = arith.addf %150, %154 : vector<32x16xf32>
    %c0_99 = arith.constant 0 : index
    %c3_100 = arith.constant 3 : index
    %c3_101 = arith.constant 3 : index
    %c0_102 = arith.constant 0 : index
    %156 = vector.load %arg2[%c0_99, %c3_100, %c3_101, %c0_102] : memref<1x4x16x16xf32, #tpu.memory_space<vmem>>, vector<1x1x1x16xf32>
    %157 = vector.shape_cast %156 : vector<1x1x1x16xf32> to vector<1x16xf32>
    %158 = vector.broadcast %157 : vector<1x16xf32> to vector<32x16xf32>
    %159 = arith.mulf %24, %158 : vector<32x16xf32>
    %160 = arith.addf %155, %159 : vector<32x16xf32>
    %161 = vector.extract_strided_slice %160 {offsets = [0, 0], sizes = [8, 16], strides = [1, 1]} : vector<32x16xf32> to vector<8x16xf32>
    %162 = vector.extract_strided_slice %160 {offsets = [8, 0], sizes = [8, 16], strides = [1, 1]} : vector<32x16xf32> to vector<8x16xf32>
    %cst_103 = arith.constant dense<0.000000e+00> : vector<8x32xf32>
    %163 = tpu.matmul %161, %6, %cst_103 {dimension_numbers = #tpu.dot_dimension_numbers<[1], [0], [0], [1], [0, 0, 1, 1], [], []>} : vector<8x16xf32>, vector<16x32xf32>, vector<8x32xf32> -> vector<8x32xf32>
    %cst_104 = arith.constant dense<0.000000e+00> : vector<8x32xf32>
    %164 = tpu.matmul %162, %11, %cst_104 {dimension_numbers = #tpu.dot_dimension_numbers<[1], [0], [0], [1], [0, 0, 1, 1], [], []>} : vector<8x16xf32>, vector<16x32xf32>, vector<8x32xf32> -> vector<8x32xf32>
    %165 = arith.addf %163, %164 : vector<8x32xf32>
    %166 = vector.broadcast %12 : vector<8x1xf32> to vector<8x32xf32>
    %167 = arith.addf %165, %166 : vector<8x32xf32>
    %c0_105 = arith.constant 0 : index
    %c0_106 = arith.constant 0 : index
    %c6 = arith.constant 6 : index
    %c0_107 = arith.constant 0 : index
    %168 = vector.load %arg5[%c0_105, %c0_106, %c6, %c0_107] : memref<1x8x32x32xf32, #tpu.memory_space<vmem>>, vector<1x8x1x32xf32>
    %169 = vector.shape_cast %168 : vector<1x8x1x32xf32> to vector<8x32xf32>
    %170 = vector.shape_cast %167 : vector<8x32xf32> to vector<1x8x1x32xf32>
    tpu.vector_store %arg5[%c0_105, %c0_106, %c6, %c0_107], %170 {strides = array<i32>} : memref<1x8x32x32xf32, #tpu.memory_space<vmem>>, vector<1x8x1x32xf32>,
    %171 = vector.extract_strided_slice %160 {offsets = [16, 0], sizes = [8, 16], strides = [1, 1]} : vector<32x16xf32> to vector<8x16xf32>
    %172 = vector.extract_strided_slice %160 {offsets = [24, 0], sizes = [8, 16], strides = [1, 1]} : vector<32x16xf32> to vector<8x16xf32>
    %cst_108 = arith.constant dense<0.000000e+00> : vector<8x32xf32>
    %173 = tpu.matmul %171, %6, %cst_108 {dimension_numbers = #tpu.dot_dimension_numbers<[1], [0], [0], [1], [0, 0, 1, 1], [], []>} : vector<8x16xf32>, vector<16x32xf32>, vector<8x32xf32> -> vector<8x32xf32>
    %cst_109 = arith.constant dense<0.000000e+00> : vector<8x32xf32>
    %174 = tpu.matmul %172, %11, %cst_109 {dimension_numbers = #tpu.dot_dimension_numbers<[1], [0], [0], [1], [0, 0, 1, 1], [], []>} : vector<8x16xf32>, vector<16x32xf32>, vector<8x32xf32> -> vector<8x32xf32>
    %175 = arith.addf %173, %174 : vector<8x32xf32>
    %176 = vector.broadcast %12 : vector<8x1xf32> to vector<8x32xf32>
    %177 = arith.addf %175, %176 : vector<8x32xf32>
    %c0_110 = arith.constant 0 : index
    %c0_111 = arith.constant 0 : index
    %c7 = arith.constant 7 : index
    %c0_112 = arith.constant 0 : index
    %178 = vector.load %arg5[%c0_110, %c0_111, %c7, %c0_112] : memref<1x8x32x32xf32, #tpu.memory_space<vmem>>, vector<1x8x1x32xf32>
    %179 = vector.shape_cast %178 : vector<1x8x1x32xf32> to vector<8x32xf32>
    %180 = vector.shape_cast %177 : vector<8x32xf32> to vector<1x8x1x32xf32>
    tpu.vector_store %arg5[%c0_110, %c0_111, %c7, %c0_112], %180 {strides = array<i32>} : memref<1x8x32x32xf32, #tpu.memory_space<vmem>>, vector<1x8x1x32xf32>,
    %c0_113 = arith.constant 0 : index
    %c0_114 = arith.constant 0 : index
    %c4_115 = arith.constant 4 : index
    %c0_116 = arith.constant 0 : index
    %181 = vector.load %arg2[%c0_113, %c0_114, %c4_115, %c0_116] : memref<1x4x16x16xf32, #tpu.memory_space<vmem>>, vector<1x1x1x16xf32>
    %182 = vector.shape_cast %181 : vector<1x1x1x16xf32> to vector<1x16xf32>
    %183 = vector.broadcast %182 : vector<1x16xf32> to vector<32x16xf32>
    %184 = arith.mulf %15, %183 : vector<32x16xf32>
    %c0_117 = arith.constant 0 : index
    %c1_118 = arith.constant 1 : index
    %c4_119 = arith.constant 4 : index
    %c0_120 = arith.constant 0 : index
    %185 = vector.load %arg2[%c0_117, %c1_118, %c4_119, %c0_120] : memref<1x4x16x16xf32, #tpu.memory_space<vmem>>, vector<1x1x1x16xf32>
    %186 = vector.shape_cast %185 : vector<1x1x1x16xf32> to vector<1x16xf32>
    %187 = vector.broadcast %186 : vector<1x16xf32> to vector<32x16xf32>
    %188 = arith.mulf %18, %187 : vector<32x16xf32>
    %189 = arith.addf %184, %188 : vector<32x16xf32>
    %c0_121 = arith.constant 0 : index
    %c2_122 = arith.constant 2 : index
    %c4_123 = arith.constant 4 : index
    %c0_124 = arith.constant 0 : index
    %190 = vector.load %arg2[%c0_121, %c2_122, %c4_123, %c0_124] : memref<1x4x16x16xf32, #tpu.memory_space<vmem>>, vector<1x1x1x16xf32>
    %191 = vector.shape_cast %190 : vector<1x1x1x16xf32> to vector<1x16xf32>
    %192 = vector.broadcast %191 : vector<1x16xf32> to vector<32x16xf32>
    %193 = arith.mulf %21, %192 : vector<32x16xf32>
    %194 = arith.addf %189, %193 : vector<32x16xf32>
    %c0_125 = arith.constant 0 : index
    %c3_126 = arith.constant 3 : index
    %c4_127 = arith.constant 4 : index
    %c0_128 = arith.constant 0 : index
    %195 = vector.load %arg2[%c0_125, %c3_126, %c4_127, %c0_128] : memref<1x4x16x16xf32, #tpu.memory_space<vmem>>, vector<1x1x1x16xf32>
    %196 = vector.shape_cast %195 : vector<1x1x1x16xf32> to vector<1x16xf32>
    %197 = vector.broadcast %196 : vector<1x16xf32> to vector<32x16xf32>
    %198 = arith.mulf %24, %197 : vector<32x16xf32>
    %199 = arith.addf %194, %198 : vector<32x16xf32>
    %200 = vector.extract_strided_slice %199 {offsets = [0, 0], sizes = [8, 16], strides = [1, 1]} : vector<32x16xf32> to vector<8x16xf32>
    %201 = vector.extract_strided_slice %199 {offsets = [8, 0], sizes = [8, 16], strides = [1, 1]} : vector<32x16xf32> to vector<8x16xf32>
    %cst_129 = arith.constant dense<0.000000e+00> : vector<8x32xf32>
    %202 = tpu.matmul %200, %6, %cst_129 {dimension_numbers = #tpu.dot_dimension_numbers<[1], [0], [0], [1], [0, 0, 1, 1], [], []>} : vector<8x16xf32>, vector<16x32xf32>, vector<8x32xf32> -> vector<8x32xf32>
    %cst_130 = arith.constant dense<0.000000e+00> : vector<8x32xf32>
    %203 = tpu.matmul %201, %11, %cst_130 {dimension_numbers = #tpu.dot_dimension_numbers<[1], [0], [0], [1], [0, 0, 1, 1], [], []>} : vector<8x16xf32>, vector<16x32xf32>, vector<8x32xf32> -> vector<8x32xf32>
    %204 = arith.addf %202, %203 : vector<8x32xf32>
    %205 = vector.broadcast %12 : vector<8x1xf32> to vector<8x32xf32>
    %206 = arith.addf %204, %205 : vector<8x32xf32>
    %c0_131 = arith.constant 0 : index
    %c0_132 = arith.constant 0 : index
    %c8 = arith.constant 8 : index
    %c0_133 = arith.constant 0 : index
    %207 = vector.load %arg5[%c0_131, %c0_132, %c8, %c0_133] : memref<1x8x32x32xf32, #tpu.memory_space<vmem>>, vector<1x8x1x32xf32>
    %208 = vector.shape_cast %207 : vector<1x8x1x32xf32> to vector<8x32xf32>
    %209 = vector.shape_cast %206 : vector<8x32xf32> to vector<1x8x1x32xf32>
    tpu.vector_store %arg5[%c0_131, %c0_132, %c8, %c0_133], %209 {strides = array<i32>} : memref<1x8x32x32xf32, #tpu.memory_space<vmem>>, vector<1x8x1x32xf32>,
    %210 = vector.extract_strided_slice %199 {offsets = [16, 0], sizes = [8, 16], strides = [1, 1]} : vector<32x16xf32> to vector<8x16xf32>
    %211 = vector.extract_strided_slice %199 {offsets = [24, 0], sizes = [8, 16], strides = [1, 1]} : vector<32x16xf32> to vector<8x16xf32>
    %cst_134 = arith.constant dense<0.000000e+00> : vector<8x32xf32>
    %212 = tpu.matmul %210, %6, %cst_134 {dimension_numbers = #tpu.dot_dimension_numbers<[1], [0], [0], [1], [0, 0, 1, 1], [], []>} : vector<8x16xf32>, vector<16x32xf32>, vector<8x32xf32> -> vector<8x32xf32>
    %cst_135 = arith.constant dense<0.000000e+00> : vector<8x32xf32>
    %213 = tpu.matmul %211, %11, %cst_135 {dimension_numbers = #tpu.dot_dimension_numbers<[1], [0], [0], [1], [0, 0, 1, 1], [], []>} : vector<8x16xf32>, vector<16x32xf32>, vector<8x32xf32> -> vector<8x32xf32>
    %214 = arith.addf %212, %213 : vector<8x32xf32>
    %215 = vector.broadcast %12 : vector<8x1xf32> to vector<8x32xf32>
    %216 = arith.addf %214, %215 : vector<8x32xf32>
    %c0_136 = arith.constant 0 : index
    %c0_137 = arith.constant 0 : index
    %c9 = arith.constant 9 : index
    %c0_138 = arith.constant 0 : index
    %217 = vector.load %arg5[%c0_136, %c0_137, %c9, %c0_138] : memref<1x8x32x32xf32, #tpu.memory_space<vmem>>, vector<1x8x1x32xf32>
    %218 = vector.shape_cast %217 : vector<1x8x1x32xf32> to vector<8x32xf32>
    %219 = vector.shape_cast %216 : vector<8x32xf32> to vector<1x8x1x32xf32>
    tpu.vector_store %arg5[%c0_136, %c0_137, %c9, %c0_138], %219 {strides = array<i32>} : memref<1x8x32x32xf32, #tpu.memory_space<vmem>>, vector<1x8x1x32xf32>,
    %c0_139 = arith.constant 0 : index
    %c0_140 = arith.constant 0 : index
    %c5_141 = arith.constant 5 : index
    %c0_142 = arith.constant 0 : index
    %220 = vector.load %arg2[%c0_139, %c0_140, %c5_141, %c0_142] : memref<1x4x16x16xf32, #tpu.memory_space<vmem>>, vector<1x1x1x16xf32>
    %221 = vector.shape_cast %220 : vector<1x1x1x16xf32> to vector<1x16xf32>
    %222 = vector.broadcast %221 : vector<1x16xf32> to vector<32x16xf32>
    %223 = arith.mulf %15, %222 : vector<32x16xf32>
    %c0_143 = arith.constant 0 : index
    %c1_144 = arith.constant 1 : index
    %c5_145 = arith.constant 5 : index
    %c0_146 = arith.constant 0 : index
    %224 = vector.load %arg2[%c0_143, %c1_144, %c5_145, %c0_146] : memref<1x4x16x16xf32, #tpu.memory_space<vmem>>, vector<1x1x1x16xf32>
    %225 = vector.shape_cast %224 : vector<1x1x1x16xf32> to vector<1x16xf32>
    %226 = vector.broadcast %225 : vector<1x16xf32> to vector<32x16xf32>
    %227 = arith.mulf %18, %226 : vector<32x16xf32>
    %228 = arith.addf %223, %227 : vector<32x16xf32>
    %c0_147 = arith.constant 0 : index
    %c2_148 = arith.constant 2 : index
    %c5_149 = arith.constant 5 : index
    %c0_150 = arith.constant 0 : index
    %229 = vector.load %arg2[%c0_147, %c2_148, %c5_149, %c0_150] : memref<1x4x16x16xf32, #tpu.memory_space<vmem>>, vector<1x1x1x16xf32>
    %230 = vector.shape_cast %229 : vector<1x1x1x16xf32> to vector<1x16xf32>
    %231 = vector.broadcast %230 : vector<1x16xf32> to vector<32x16xf32>
    %232 = arith.mulf %21, %231 : vector<32x16xf32>
    %233 = arith.addf %228, %232 : vector<32x16xf32>
    %c0_151 = arith.constant 0 : index
    %c3_152 = arith.constant 3 : index
    %c5_153 = arith.constant 5 : index
    %c0_154 = arith.constant 0 : index
    %234 = vector.load %arg2[%c0_151, %c3_152, %c5_153, %c0_154] : memref<1x4x16x16xf32, #tpu.memory_space<vmem>>, vector<1x1x1x16xf32>
    %235 = vector.shape_cast %234 : vector<1x1x1x16xf32> to vector<1x16xf32>
    %236 = vector.broadcast %235 : vector<1x16xf32> to vector<32x16xf32>
    %237 = arith.mulf %24, %236 : vector<32x16xf32>
    %238 = arith.addf %233, %237 : vector<32x16xf32>
    %239 = vector.extract_strided_slice %238 {offsets = [0, 0], sizes = [8, 16], strides = [1, 1]} : vector<32x16xf32> to vector<8x16xf32>
    %240 = vector.extract_strided_slice %238 {offsets = [8, 0], sizes = [8, 16], strides = [1, 1]} : vector<32x16xf32> to vector<8x16xf32>
    %cst_155 = arith.constant dense<0.000000e+00> : vector<8x32xf32>
    %241 = tpu.matmul %239, %6, %cst_155 {dimension_numbers = #tpu.dot_dimension_numbers<[1], [0], [0], [1], [0, 0, 1, 1], [], []>} : vector<8x16xf32>, vector<16x32xf32>, vector<8x32xf32> -> vector<8x32xf32>
    %cst_156 = arith.constant dense<0.000000e+00> : vector<8x32xf32>
    %242 = tpu.matmul %240, %11, %cst_156 {dimension_numbers = #tpu.dot_dimension_numbers<[1], [0], [0], [1], [0, 0, 1, 1], [], []>} : vector<8x16xf32>, vector<16x32xf32>, vector<8x32xf32> -> vector<8x32xf32>
    %243 = arith.addf %241, %242 : vector<8x32xf32>
    %244 = vector.broadcast %12 : vector<8x1xf32> to vector<8x32xf32>
    %245 = arith.addf %243, %244 : vector<8x32xf32>
    %c0_157 = arith.constant 0 : index
    %c0_158 = arith.constant 0 : index
    %c10 = arith.constant 10 : index
    %c0_159 = arith.constant 0 : index
    %246 = vector.load %arg5[%c0_157, %c0_158, %c10, %c0_159] : memref<1x8x32x32xf32, #tpu.memory_space<vmem>>, vector<1x8x1x32xf32>
    %247 = vector.shape_cast %246 : vector<1x8x1x32xf32> to vector<8x32xf32>
    %248 = vector.shape_cast %245 : vector<8x32xf32> to vector<1x8x1x32xf32>
    tpu.vector_store %arg5[%c0_157, %c0_158, %c10, %c0_159], %248 {strides = array<i32>} : memref<1x8x32x32xf32, #tpu.memory_space<vmem>>, vector<1x8x1x32xf32>,
    %249 = vector.extract_strided_slice %238 {offsets = [16, 0], sizes = [8, 16], strides = [1, 1]} : vector<32x16xf32> to vector<8x16xf32>
    %250 = vector.extract_strided_slice %238 {offsets = [24, 0], sizes = [8, 16], strides = [1, 1]} : vector<32x16xf32> to vector<8x16xf32>
    %cst_160 = arith.constant dense<0.000000e+00> : vector<8x32xf32>
    %251 = tpu.matmul %249, %6, %cst_160 {dimension_numbers = #tpu.dot_dimension_numbers<[1], [0], [0], [1], [0, 0, 1, 1], [], []>} : vector<8x16xf32>, vector<16x32xf32>, vector<8x32xf32> -> vector<8x32xf32>
    %cst_161 = arith.constant dense<0.000000e+00> : vector<8x32xf32>
    %252 = tpu.matmul %250, %11, %cst_161 {dimension_numbers = #tpu.dot_dimension_numbers<[1], [0], [0], [1], [0, 0, 1, 1], [], []>} : vector<8x16xf32>, vector<16x32xf32>, vector<8x32xf32> -> vector<8x32xf32>
    %253 = arith.addf %251, %252 : vector<8x32xf32>
    %254 = vector.broadcast %12 : vector<8x1xf32> to vector<8x32xf32>
    %255 = arith.addf %253, %254 : vector<8x32xf32>
    %c0_162 = arith.constant 0 : index
    %c0_163 = arith.constant 0 : index
    %c11 = arith.constant 11 : index
    %c0_164 = arith.constant 0 : index
    %256 = vector.load %arg5[%c0_162, %c0_163, %c11, %c0_164] : memref<1x8x32x32xf32, #tpu.memory_space<vmem>>, vector<1x8x1x32xf32>
    %257 = vector.shape_cast %256 : vector<1x8x1x32xf32> to vector<8x32xf32>
    %258 = vector.shape_cast %255 : vector<8x32xf32> to vector<1x8x1x32xf32>
    tpu.vector_store %arg5[%c0_162, %c0_163, %c11, %c0_164], %258 {strides = array<i32>} : memref<1x8x32x32xf32, #tpu.memory_space<vmem>>, vector<1x8x1x32xf32>,
    %c0_165 = arith.constant 0 : index
    %c0_166 = arith.constant 0 : index
    %c6_167 = arith.constant 6 : index
    %c0_168 = arith.constant 0 : index
    %259 = vector.load %arg2[%c0_165, %c0_166, %c6_167, %c0_168] : memref<1x4x16x16xf32, #tpu.memory_space<vmem>>, vector<1x1x1x16xf32>
    %260 = vector.shape_cast %259 : vector<1x1x1x16xf32> to vector<1x16xf32>
    %261 = vector.broadcast %260 : vector<1x16xf32> to vector<32x16xf32>
    %262 = arith.mulf %15, %261 : vector<32x16xf32>
    %c0_169 = arith.constant 0 : index
    %c1_170 = arith.constant 1 : index
    %c6_171 = arith.constant 6 : index
    %c0_172 = arith.constant 0 : index
    %263 = vector.load %arg2[%c0_169, %c1_170, %c6_171, %c0_172] : memref<1x4x16x16xf32, #tpu.memory_space<vmem>>, vector<1x1x1x16xf32>
    %264 = vector.shape_cast %263 : vector<1x1x1x16xf32> to vector<1x16xf32>
    %265 = vector.broadcast %264 : vector<1x16xf32> to vector<32x16xf32>
    %266 = arith.mulf %18, %265 : vector<32x16xf32>
    %267 = arith.addf %262, %266 : vector<32x16xf32>
    %c0_173 = arith.constant 0 : index
    %c2_174 = arith.constant 2 : index
    %c6_175 = arith.constant 6 : index
    %c0_176 = arith.constant 0 : index
    %268 = vector.load %arg2[%c0_173, %c2_174, %c6_175, %c0_176] : memref<1x4x16x16xf32, #tpu.memory_space<vmem>>, vector<1x1x1x16xf32>
    %269 = vector.shape_cast %268 : vector<1x1x1x16xf32> to vector<1x16xf32>
    %270 = vector.broadcast %269 : vector<1x16xf32> to vector<32x16xf32>
    %271 = arith.mulf %21, %270 : vector<32x16xf32>
    %272 = arith.addf %267, %271 : vector<32x16xf32>
    %c0_177 = arith.constant 0 : index
    %c3_178 = arith.constant 3 : index
    %c6_179 = arith.constant 6 : index
    %c0_180 = arith.constant 0 : index
    %273 = vector.load %arg2[%c0_177, %c3_178, %c6_179, %c0_180] : memref<1x4x16x16xf32, #tpu.memory_space<vmem>>, vector<1x1x1x16xf32>
    %274 = vector.shape_cast %273 : vector<1x1x1x16xf32> to vector<1x16xf32>
    %275 = vector.broadcast %274 : vector<1x16xf32> to vector<32x16xf32>
    %276 = arith.mulf %24, %275 : vector<32x16xf32>
    %277 = arith.addf %272, %276 : vector<32x16xf32>
    %278 = vector.extract_strided_slice %277 {offsets = [0, 0], sizes = [8, 16], strides = [1, 1]} : vector<32x16xf32> to vector<8x16xf32>
    %279 = vector.extract_strided_slice %277 {offsets = [8, 0], sizes = [8, 16], strides = [1, 1]} : vector<32x16xf32> to vector<8x16xf32>
    %cst_181 = arith.constant dense<0.000000e+00> : vector<8x32xf32>
    %280 = tpu.matmul %278, %6, %cst_181 {dimension_numbers = #tpu.dot_dimension_numbers<[1], [0], [0], [1], [0, 0, 1, 1], [], []>} : vector<8x16xf32>, vector<16x32xf32>, vector<8x32xf32> -> vector<8x32xf32>
    %cst_182 = arith.constant dense<0.000000e+00> : vector<8x32xf32>
    %281 = tpu.matmul %279, %11, %cst_182 {dimension_numbers = #tpu.dot_dimension_numbers<[1], [0], [0], [1], [0, 0, 1, 1], [], []>} : vector<8x16xf32>, vector<16x32xf32>, vector<8x32xf32> -> vector<8x32xf32>
    %282 = arith.addf %280, %281 : vector<8x32xf32>
    %283 = vector.broadcast %12 : vector<8x1xf32> to vector<8x32xf32>
    %284 = arith.addf %282, %283 : vector<8x32xf32>
    %c0_183 = arith.constant 0 : index
    %c0_184 = arith.constant 0 : index
    %c12 = arith.constant 12 : index
    %c0_185 = arith.constant 0 : index
    %285 = vector.load %arg5[%c0_183, %c0_184, %c12, %c0_185] : memref<1x8x32x32xf32, #tpu.memory_space<vmem>>, vector<1x8x1x32xf32>
    %286 = vector.shape_cast %285 : vector<1x8x1x32xf32> to vector<8x32xf32>
    %287 = vector.shape_cast %284 : vector<8x32xf32> to vector<1x8x1x32xf32>
    tpu.vector_store %arg5[%c0_183, %c0_184, %c12, %c0_185], %287 {strides = array<i32>} : memref<1x8x32x32xf32, #tpu.memory_space<vmem>>, vector<1x8x1x32xf32>,
    %288 = vector.extract_strided_slice %277 {offsets = [16, 0], sizes = [8, 16], strides = [1, 1]} : vector<32x16xf32> to vector<8x16xf32>
    %289 = vector.extract_strided_slice %277 {offsets = [24, 0], sizes = [8, 16], strides = [1, 1]} : vector<32x16xf32> to vector<8x16xf32>
    %cst_186 = arith.constant dense<0.000000e+00> : vector<8x32xf32>
    %290 = tpu.matmul %288, %6, %cst_186 {dimension_numbers = #tpu.dot_dimension_numbers<[1], [0], [0], [1], [0, 0, 1, 1], [], []>} : vector<8x16xf32>, vector<16x32xf32>, vector<8x32xf32> -> vector<8x32xf32>
    %cst_187 = arith.constant dense<0.000000e+00> : vector<8x32xf32>
    %291 = tpu.matmul %289, %11, %cst_187 {dimension_numbers = #tpu.dot_dimension_numbers<[1], [0], [0], [1], [0, 0, 1, 1], [], []>} : vector<8x16xf32>, vector<16x32xf32>, vector<8x32xf32> -> vector<8x32xf32>
    %292 = arith.addf %290, %291 : vector<8x32xf32>
    %293 = vector.broadcast %12 : vector<8x1xf32> to vector<8x32xf32>
    %294 = arith.addf %292, %293 : vector<8x32xf32>
    %c0_188 = arith.constant 0 : index
    %c0_189 = arith.constant 0 : index
    %c13 = arith.constant 13 : index
    %c0_190 = arith.constant 0 : index
    %295 = vector.load %arg5[%c0_188, %c0_189, %c13, %c0_190] : memref<1x8x32x32xf32, #tpu.memory_space<vmem>>, vector<1x8x1x32xf32>
    %296 = vector.shape_cast %295 : vector<1x8x1x32xf32> to vector<8x32xf32>
    %297 = vector.shape_cast %294 : vector<8x32xf32> to vector<1x8x1x32xf32>
    tpu.vector_store %arg5[%c0_188, %c0_189, %c13, %c0_190], %297 {strides = array<i32>} : memref<1x8x32x32xf32, #tpu.memory_space<vmem>>, vector<1x8x1x32xf32>,
    %c0_191 = arith.constant 0 : index
    %c0_192 = arith.constant 0 : index
    %c7_193 = arith.constant 7 : index
    %c0_194 = arith.constant 0 : index
    %298 = vector.load %arg2[%c0_191, %c0_192, %c7_193, %c0_194] : memref<1x4x16x16xf32, #tpu.memory_space<vmem>>, vector<1x1x1x16xf32>
    %299 = vector.shape_cast %298 : vector<1x1x1x16xf32> to vector<1x16xf32>
    %300 = vector.broadcast %299 : vector<1x16xf32> to vector<32x16xf32>
    %301 = arith.mulf %15, %300 : vector<32x16xf32>
    %c0_195 = arith.constant 0 : index
    %c1_196 = arith.constant 1 : index
    %c7_197 = arith.constant 7 : index
    %c0_198 = arith.constant 0 : index
    %302 = vector.load %arg2[%c0_195, %c1_196, %c7_197, %c0_198] : memref<1x4x16x16xf32, #tpu.memory_space<vmem>>, vector<1x1x1x16xf32>
    %303 = vector.shape_cast %302 : vector<1x1x1x16xf32> to vector<1x16xf32>
    %304 = vector.broadcast %303 : vector<1x16xf32> to vector<32x16xf32>
    %305 = arith.mulf %18, %304 : vector<32x16xf32>
    %306 = arith.addf %301, %305 : vector<32x16xf32>
    %c0_199 = arith.constant 0 : index
    %c2_200 = arith.constant 2 : index
    %c7_201 = arith.constant 7 : index
    %c0_202 = arith.constant 0 : index
    %307 = vector.load %arg2[%c0_199, %c2_200, %c7_201, %c0_202] : memref<1x4x16x16xf32, #tpu.memory_space<vmem>>, vector<1x1x1x16xf32>
    %308 = vector.shape_cast %307 : vector<1x1x1x16xf32> to vector<1x16xf32>
    %309 = vector.broadcast %308 : vector<1x16xf32> to vector<32x16xf32>
    %310 = arith.mulf %21, %309 : vector<32x16xf32>
    %311 = arith.addf %306, %310 : vector<32x16xf32>
    %c0_203 = arith.constant 0 : index
    %c3_204 = arith.constant 3 : index
    %c7_205 = arith.constant 7 : index
    %c0_206 = arith.constant 0 : index
    %312 = vector.load %arg2[%c0_203, %c3_204, %c7_205, %c0_206] : memref<1x4x16x16xf32, #tpu.memory_space<vmem>>, vector<1x1x1x16xf32>
    %313 = vector.shape_cast %312 : vector<1x1x1x16xf32> to vector<1x16xf32>
    %314 = vector.broadcast %313 : vector<1x16xf32> to vector<32x16xf32>
    %315 = arith.mulf %24, %314 : vector<32x16xf32>
    %316 = arith.addf %311, %315 : vector<32x16xf32>
    %317 = vector.extract_strided_slice %316 {offsets = [0, 0], sizes = [8, 16], strides = [1, 1]} : vector<32x16xf32> to vector<8x16xf32>
    %318 = vector.extract_strided_slice %316 {offsets = [8, 0], sizes = [8, 16], strides = [1, 1]} : vector<32x16xf32> to vector<8x16xf32>
    %cst_207 = arith.constant dense<0.000000e+00> : vector<8x32xf32>
    %319 = tpu.matmul %317, %6, %cst_207 {dimension_numbers = #tpu.dot_dimension_numbers<[1], [0], [0], [1], [0, 0, 1, 1], [], []>} : vector<8x16xf32>, vector<16x32xf32>, vector<8x32xf32> -> vector<8x32xf32>
    %cst_208 = arith.constant dense<0.000000e+00> : vector<8x32xf32>
    %320 = tpu.matmul %318, %11, %cst_208 {dimension_numbers = #tpu.dot_dimension_numbers<[1], [0], [0], [1], [0, 0, 1, 1], [], []>} : vector<8x16xf32>, vector<16x32xf32>, vector<8x32xf32> -> vector<8x32xf32>
    %321 = arith.addf %319, %320 : vector<8x32xf32>
    %322 = vector.broadcast %12 : vector<8x1xf32> to vector<8x32xf32>
    %323 = arith.addf %321, %322 : vector<8x32xf32>
    %c0_209 = arith.constant 0 : index
    %c0_210 = arith.constant 0 : index
    %c14 = arith.constant 14 : index
    %c0_211 = arith.constant 0 : index
    %324 = vector.load %arg5[%c0_209, %c0_210, %c14, %c0_211] : memref<1x8x32x32xf32, #tpu.memory_space<vmem>>, vector<1x8x1x32xf32>
    %325 = vector.shape_cast %324 : vector<1x8x1x32xf32> to vector<8x32xf32>
    %326 = vector.shape_cast %323 : vector<8x32xf32> to vector<1x8x1x32xf32>
    tpu.vector_store %arg5[%c0_209, %c0_210, %c14, %c0_211], %326 {strides = array<i32>} : memref<1x8x32x32xf32, #tpu.memory_space<vmem>>, vector<1x8x1x32xf32>,
    %327 = vector.extract_strided_slice %316 {offsets = [16, 0], sizes = [8, 16], strides = [1, 1]} : vector<32x16xf32> to vector<8x16xf32>
    %328 = vector.extract_strided_slice %316 {offsets = [24, 0], sizes = [8, 16], strides = [1, 1]} : vector<32x16xf32> to vector<8x16xf32>
    %cst_212 = arith.constant dense<0.000000e+00> : vector<8x32xf32>
    %329 = tpu.matmul %327, %6, %cst_212 {dimension_numbers = #tpu.dot_dimension_numbers<[1], [0], [0], [1], [0, 0, 1, 1], [], []>} : vector<8x16xf32>, vector<16x32xf32>, vector<8x32xf32> -> vector<8x32xf32>
    %cst_213 = arith.constant dense<0.000000e+00> : vector<8x32xf32>
    %330 = tpu.matmul %328, %11, %cst_213 {dimension_numbers = #tpu.dot_dimension_numbers<[1], [0], [0], [1], [0, 0, 1, 1], [], []>} : vector<8x16xf32>, vector<16x32xf32>, vector<8x32xf32> -> vector<8x32xf32>
    %331 = arith.addf %329, %330 : vector<8x32xf32>
    %332 = vector.broadcast %12 : vector<8x1xf32> to vector<8x32xf32>
    %333 = arith.addf %331, %332 : vector<8x32xf32>
    %c0_214 = arith.constant 0 : index
    %c0_215 = arith.constant 0 : index
    %c15 = arith.constant 15 : index
    %c0_216 = arith.constant 0 : index
    %334 = vector.load %arg5[%c0_214, %c0_215, %c15, %c0_216] : memref<1x8x32x32xf32, #tpu.memory_space<vmem>>, vector<1x8x1x32xf32>
    %335 = vector.shape_cast %334 : vector<1x8x1x32xf32> to vector<8x32xf32>
    %336 = vector.shape_cast %333 : vector<8x32xf32> to vector<1x8x1x32xf32>
    tpu.vector_store %arg5[%c0_214, %c0_215, %c15, %c0_216], %336 {strides = array<i32>} : memref<1x8x32x32xf32, #tpu.memory_space<vmem>>, vector<1x8x1x32xf32>,
    %c0_217 = arith.constant 0 : index
    %c0_218 = arith.constant 0 : index
    %c8_219 = arith.constant 8 : index
    %c0_220 = arith.constant 0 : index
    %337 = vector.load %arg2[%c0_217, %c0_218, %c8_219, %c0_220] : memref<1x4x16x16xf32, #tpu.memory_space<vmem>>, vector<1x1x1x16xf32>
    %338 = vector.shape_cast %337 : vector<1x1x1x16xf32> to vector<1x16xf32>
    %339 = vector.broadcast %338 : vector<1x16xf32> to vector<32x16xf32>
    %340 = arith.mulf %15, %339 : vector<32x16xf32>
    %c0_221 = arith.constant 0 : index
    %c1_222 = arith.constant 1 : index
    %c8_223 = arith.constant 8 : index
    %c0_224 = arith.constant 0 : index
    %341 = vector.load %arg2[%c0_221, %c1_222, %c8_223, %c0_224] : memref<1x4x16x16xf32, #tpu.memory_space<vmem>>, vector<1x1x1x16xf32>
    %342 = vector.shape_cast %341 : vector<1x1x1x16xf32> to vector<1x16xf32>
    %343 = vector.broadcast %342 : vector<1x16xf32> to vector<32x16xf32>
    %344 = arith.mulf %18, %343 : vector<32x16xf32>
    %345 = arith.addf %340, %344 : vector<32x16xf32>
    %c0_225 = arith.constant 0 : index
    %c2_226 = arith.constant 2 : index
    %c8_227 = arith.constant 8 : index
    %c0_228 = arith.constant 0 : index
    %346 = vector.load %arg2[%c0_225, %c2_226, %c8_227, %c0_228] : memref<1x4x16x16xf32, #tpu.memory_space<vmem>>, vector<1x1x1x16xf32>
    %347 = vector.shape_cast %346 : vector<1x1x1x16xf32> to vector<1x16xf32>
    %348 = vector.broadcast %347 : vector<1x16xf32> to vector<32x16xf32>
    %349 = arith.mulf %21, %348 : vector<32x16xf32>
    %350 = arith.addf %345, %349 : vector<32x16xf32>
    %c0_229 = arith.constant 0 : index
    %c3_230 = arith.constant 3 : index
    %c8_231 = arith.constant 8 : index
    %c0_232 = arith.constant 0 : index
    %351 = vector.load %arg2[%c0_229, %c3_230, %c8_231, %c0_232] : memref<1x4x16x16xf32, #tpu.memory_space<vmem>>, vector<1x1x1x16xf32>
    %352 = vector.shape_cast %351 : vector<1x1x1x16xf32> to vector<1x16xf32>
    %353 = vector.broadcast %352 : vector<1x16xf32> to vector<32x16xf32>
    %354 = arith.mulf %24, %353 : vector<32x16xf32>
    %355 = arith.addf %350, %354 : vector<32x16xf32>
    %356 = vector.extract_strided_slice %355 {offsets = [0, 0], sizes = [8, 16], strides = [1, 1]} : vector<32x16xf32> to vector<8x16xf32>
    %357 = vector.extract_strided_slice %355 {offsets = [8, 0], sizes = [8, 16], strides = [1, 1]} : vector<32x16xf32> to vector<8x16xf32>
    %cst_233 = arith.constant dense<0.000000e+00> : vector<8x32xf32>
    %358 = tpu.matmul %356, %6, %cst_233 {dimension_numbers = #tpu.dot_dimension_numbers<[1], [0], [0], [1], [0, 0, 1, 1], [], []>} : vector<8x16xf32>, vector<16x32xf32>, vector<8x32xf32> -> vector<8x32xf32>
    %cst_234 = arith.constant dense<0.000000e+00> : vector<8x32xf32>
    %359 = tpu.matmul %357, %11, %cst_234 {dimension_numbers = #tpu.dot_dimension_numbers<[1], [0], [0], [1], [0, 0, 1, 1], [], []>} : vector<8x16xf32>, vector<16x32xf32>, vector<8x32xf32> -> vector<8x32xf32>
    %360 = arith.addf %358, %359 : vector<8x32xf32>
    %361 = vector.broadcast %12 : vector<8x1xf32> to vector<8x32xf32>
    %362 = arith.addf %360, %361 : vector<8x32xf32>
    %c0_235 = arith.constant 0 : index
    %c0_236 = arith.constant 0 : index
    %c16 = arith.constant 16 : index
    %c0_237 = arith.constant 0 : index
    %363 = vector.load %arg5[%c0_235, %c0_236, %c16, %c0_237] : memref<1x8x32x32xf32, #tpu.memory_space<vmem>>, vector<1x8x1x32xf32>
    %364 = vector.shape_cast %363 : vector<1x8x1x32xf32> to vector<8x32xf32>
    %365 = vector.shape_cast %362 : vector<8x32xf32> to vector<1x8x1x32xf32>
    tpu.vector_store %arg5[%c0_235, %c0_236, %c16, %c0_237], %365 {strides = array<i32>} : memref<1x8x32x32xf32, #tpu.memory_space<vmem>>, vector<1x8x1x32xf32>,
    %366 = vector.extract_strided_slice %355 {offsets = [16, 0], sizes = [8, 16], strides = [1, 1]} : vector<32x16xf32> to vector<8x16xf32>
    %367 = vector.extract_strided_slice %355 {offsets = [24, 0], sizes = [8, 16], strides = [1, 1]} : vector<32x16xf32> to vector<8x16xf32>
    %cst_238 = arith.constant dense<0.000000e+00> : vector<8x32xf32>
    %368 = tpu.matmul %366, %6, %cst_238 {dimension_numbers = #tpu.dot_dimension_numbers<[1], [0], [0], [1], [0, 0, 1, 1], [], []>} : vector<8x16xf32>, vector<16x32xf32>, vector<8x32xf32> -> vector<8x32xf32>
    %cst_239 = arith.constant dense<0.000000e+00> : vector<8x32xf32>
    %369 = tpu.matmul %367, %11, %cst_239 {dimension_numbers = #tpu.dot_dimension_numbers<[1], [0], [0], [1], [0, 0, 1, 1], [], []>} : vector<8x16xf32>, vector<16x32xf32>, vector<8x32xf32> -> vector<8x32xf32>
    %370 = arith.addf %368, %369 : vector<8x32xf32>
    %371 = vector.broadcast %12 : vector<8x1xf32> to vector<8x32xf32>
    %372 = arith.addf %370, %371 : vector<8x32xf32>
    %c0_240 = arith.constant 0 : index
    %c0_241 = arith.constant 0 : index
    %c17 = arith.constant 17 : index
    %c0_242 = arith.constant 0 : index
    %373 = vector.load %arg5[%c0_240, %c0_241, %c17, %c0_242] : memref<1x8x32x32xf32, #tpu.memory_space<vmem>>, vector<1x8x1x32xf32>
    %374 = vector.shape_cast %373 : vector<1x8x1x32xf32> to vector<8x32xf32>
    %375 = vector.shape_cast %372 : vector<8x32xf32> to vector<1x8x1x32xf32>
    tpu.vector_store %arg5[%c0_240, %c0_241, %c17, %c0_242], %375 {strides = array<i32>} : memref<1x8x32x32xf32, #tpu.memory_space<vmem>>, vector<1x8x1x32xf32>,
    %c0_243 = arith.constant 0 : index
    %c0_244 = arith.constant 0 : index
    %c9_245 = arith.constant 9 : index
    %c0_246 = arith.constant 0 : index
    %376 = vector.load %arg2[%c0_243, %c0_244, %c9_245, %c0_246] : memref<1x4x16x16xf32, #tpu.memory_space<vmem>>, vector<1x1x1x16xf32>
    %377 = vector.shape_cast %376 : vector<1x1x1x16xf32> to vector<1x16xf32>
    %378 = vector.broadcast %377 : vector<1x16xf32> to vector<32x16xf32>
    %379 = arith.mulf %15, %378 : vector<32x16xf32>
    %c0_247 = arith.constant 0 : index
    %c1_248 = arith.constant 1 : index
    %c9_249 = arith.constant 9 : index
    %c0_250 = arith.constant 0 : index
    %380 = vector.load %arg2[%c0_247, %c1_248, %c9_249, %c0_250] : memref<1x4x16x16xf32, #tpu.memory_space<vmem>>, vector<1x1x1x16xf32>
    %381 = vector.shape_cast %380 : vector<1x1x1x16xf32> to vector<1x16xf32>
    %382 = vector.broadcast %381 : vector<1x16xf32> to vector<32x16xf32>
    %383 = arith.mulf %18, %382 : vector<32x16xf32>
    %384 = arith.addf %379, %383 : vector<32x16xf32>
    %c0_251 = arith.constant 0 : index
    %c2_252 = arith.constant 2 : index
    %c9_253 = arith.constant 9 : index
    %c0_254 = arith.constant 0 : index
    %385 = vector.load %arg2[%c0_251, %c2_252, %c9_253, %c0_254] : memref<1x4x16x16xf32, #tpu.memory_space<vmem>>, vector<1x1x1x16xf32>
    %386 = vector.shape_cast %385 : vector<1x1x1x16xf32> to vector<1x16xf32>
    %387 = vector.broadcast %386 : vector<1x16xf32> to vector<32x16xf32>
    %388 = arith.mulf %21, %387 : vector<32x16xf32>
    %389 = arith.addf %384, %388 : vector<32x16xf32>
    %c0_255 = arith.constant 0 : index
    %c3_256 = arith.constant 3 : index
    %c9_257 = arith.constant 9 : index
    %c0_258 = arith.constant 0 : index
    %390 = vector.load %arg2[%c0_255, %c3_256, %c9_257, %c0_258] : memref<1x4x16x16xf32, #tpu.memory_space<vmem>>, vector<1x1x1x16xf32>
    %391 = vector.shape_cast %390 : vector<1x1x1x16xf32> to vector<1x16xf32>
    %392 = vector.broadcast %391 : vector<1x16xf32> to vector<32x16xf32>
    %393 = arith.mulf %24, %392 : vector<32x16xf32>
    %394 = arith.addf %389, %393 : vector<32x16xf32>
    %395 = vector.extract_strided_slice %394 {offsets = [0, 0], sizes = [8, 16], strides = [1, 1]} : vector<32x16xf32> to vector<8x16xf32>
    %396 = vector.extract_strided_slice %394 {offsets = [8, 0], sizes = [8, 16], strides = [1, 1]} : vector<32x16xf32> to vector<8x16xf32>
    %cst_259 = arith.constant dense<0.000000e+00> : vector<8x32xf32>
    %397 = tpu.matmul %395, %6, %cst_259 {dimension_numbers = #tpu.dot_dimension_numbers<[1], [0], [0], [1], [0, 0, 1, 1], [], []>} : vector<8x16xf32>, vector<16x32xf32>, vector<8x32xf32> -> vector<8x32xf32>
    %cst_260 = arith.constant dense<0.000000e+00> : vector<8x32xf32>
    %398 = tpu.matmul %396, %11, %cst_260 {dimension_numbers = #tpu.dot_dimension_numbers<[1], [0], [0], [1], [0, 0, 1, 1], [], []>} : vector<8x16xf32>, vector<16x32xf32>, vector<8x32xf32> -> vector<8x32xf32>
    %399 = arith.addf %397, %398 : vector<8x32xf32>
    %400 = vector.broadcast %12 : vector<8x1xf32> to vector<8x32xf32>
    %401 = arith.addf %399, %400 : vector<8x32xf32>
    %c0_261 = arith.constant 0 : index
    %c0_262 = arith.constant 0 : index
    %c18 = arith.constant 18 : index
    %c0_263 = arith.constant 0 : index
    %402 = vector.load %arg5[%c0_261, %c0_262, %c18, %c0_263] : memref<1x8x32x32xf32, #tpu.memory_space<vmem>>, vector<1x8x1x32xf32>
    %403 = vector.shape_cast %402 : vector<1x8x1x32xf32> to vector<8x32xf32>
    %404 = vector.shape_cast %401 : vector<8x32xf32> to vector<1x8x1x32xf32>
    tpu.vector_store %arg5[%c0_261, %c0_262, %c18, %c0_263], %404 {strides = array<i32>} : memref<1x8x32x32xf32, #tpu.memory_space<vmem>>, vector<1x8x1x32xf32>,
    %405 = vector.extract_strided_slice %394 {offsets = [16, 0], sizes = [8, 16], strides = [1, 1]} : vector<32x16xf32> to vector<8x16xf32>
    %406 = vector.extract_strided_slice %394 {offsets = [24, 0], sizes = [8, 16], strides = [1, 1]} : vector<32x16xf32> to vector<8x16xf32>
    %cst_264 = arith.constant dense<0.000000e+00> : vector<8x32xf32>
    %407 = tpu.matmul %405, %6, %cst_264 {dimension_numbers = #tpu.dot_dimension_numbers<[1], [0], [0], [1], [0, 0, 1, 1], [], []>} : vector<8x16xf32>, vector<16x32xf32>, vector<8x32xf32> -> vector<8x32xf32>
    %cst_265 = arith.constant dense<0.000000e+00> : vector<8x32xf32>
    %408 = tpu.matmul %406, %11, %cst_265 {dimension_numbers = #tpu.dot_dimension_numbers<[1], [0], [0], [1], [0, 0, 1, 1], [], []>} : vector<8x16xf32>, vector<16x32xf32>, vector<8x32xf32> -> vector<8x32xf32>
    %409 = arith.addf %407, %408 : vector<8x32xf32>
    %410 = vector.broadcast %12 : vector<8x1xf32> to vector<8x32xf32>
    %411 = arith.addf %409, %410 : vector<8x32xf32>
    %c0_266 = arith.constant 0 : index
    %c0_267 = arith.constant 0 : index
    %c19 = arith.constant 19 : index
    %c0_268 = arith.constant 0 : index
    %412 = vector.load %arg5[%c0_266, %c0_267, %c19, %c0_268] : memref<1x8x32x32xf32, #tpu.memory_space<vmem>>, vector<1x8x1x32xf32>
    %413 = vector.shape_cast %412 : vector<1x8x1x32xf32> to vector<8x32xf32>
    %414 = vector.shape_cast %411 : vector<8x32xf32> to vector<1x8x1x32xf32>
    tpu.vector_store %arg5[%c0_266, %c0_267, %c19, %c0_268], %414 {strides = array<i32>} : memref<1x8x32x32xf32, #tpu.memory_space<vmem>>, vector<1x8x1x32xf32>,
    %c0_269 = arith.constant 0 : index
    %c0_270 = arith.constant 0 : index
    %c10_271 = arith.constant 10 : index
    %c0_272 = arith.constant 0 : index
    %415 = vector.load %arg2[%c0_269, %c0_270, %c10_271, %c0_272] : memref<1x4x16x16xf32, #tpu.memory_space<vmem>>, vector<1x1x1x16xf32>
    %416 = vector.shape_cast %415 : vector<1x1x1x16xf32> to vector<1x16xf32>
    %417 = vector.broadcast %416 : vector<1x16xf32> to vector<32x16xf32>
    %418 = arith.mulf %15, %417 : vector<32x16xf32>
    %c0_273 = arith.constant 0 : index
    %c1_274 = arith.constant 1 : index
    %c10_275 = arith.constant 10 : index
    %c0_276 = arith.constant 0 : index
    %419 = vector.load %arg2[%c0_273, %c1_274, %c10_275, %c0_276] : memref<1x4x16x16xf32, #tpu.memory_space<vmem>>, vector<1x1x1x16xf32>
    %420 = vector.shape_cast %419 : vector<1x1x1x16xf32> to vector<1x16xf32>
    %421 = vector.broadcast %420 : vector<1x16xf32> to vector<32x16xf32>
    %422 = arith.mulf %18, %421 : vector<32x16xf32>
    %423 = arith.addf %418, %422 : vector<32x16xf32>
    %c0_277 = arith.constant 0 : index
    %c2_278 = arith.constant 2 : index
    %c10_279 = arith.constant 10 : index
    %c0_280 = arith.constant 0 : index
    %424 = vector.load %arg2[%c0_277, %c2_278, %c10_279, %c0_280] : memref<1x4x16x16xf32, #tpu.memory_space<vmem>>, vector<1x1x1x16xf32>
    %425 = vector.shape_cast %424 : vector<1x1x1x16xf32> to vector<1x16xf32>
    %426 = vector.broadcast %425 : vector<1x16xf32> to vector<32x16xf32>
    %427 = arith.mulf %21, %426 : vector<32x16xf32>
    %428 = arith.addf %423, %427 : vector<32x16xf32>
    %c0_281 = arith.constant 0 : index
    %c3_282 = arith.constant 3 : index
    %c10_283 = arith.constant 10 : index
    %c0_284 = arith.constant 0 : index
    %429 = vector.load %arg2[%c0_281, %c3_282, %c10_283, %c0_284] : memref<1x4x16x16xf32, #tpu.memory_space<vmem>>, vector<1x1x1x16xf32>
    %430 = vector.shape_cast %429 : vector<1x1x1x16xf32> to vector<1x16xf32>
    %431 = vector.broadcast %430 : vector<1x16xf32> to vector<32x16xf32>
    %432 = arith.mulf %24, %431 : vector<32x16xf32>
    %433 = arith.addf %428, %432 : vector<32x16xf32>
    %434 = vector.extract_strided_slice %433 {offsets = [0, 0], sizes = [8, 16], strides = [1, 1]} : vector<32x16xf32> to vector<8x16xf32>
    %435 = vector.extract_strided_slice %433 {offsets = [8, 0], sizes = [8, 16], strides = [1, 1]} : vector<32x16xf32> to vector<8x16xf32>
    %cst_285 = arith.constant dense<0.000000e+00> : vector<8x32xf32>
    %436 = tpu.matmul %434, %6, %cst_285 {dimension_numbers = #tpu.dot_dimension_numbers<[1], [0], [0], [1], [0, 0, 1, 1], [], []>} : vector<8x16xf32>, vector<16x32xf32>, vector<8x32xf32> -> vector<8x32xf32>
    %cst_286 = arith.constant dense<0.000000e+00> : vector<8x32xf32>
    %437 = tpu.matmul %435, %11, %cst_286 {dimension_numbers = #tpu.dot_dimension_numbers<[1], [0], [0], [1], [0, 0, 1, 1], [], []>} : vector<8x16xf32>, vector<16x32xf32>, vector<8x32xf32> -> vector<8x32xf32>
    %438 = arith.addf %436, %437 : vector<8x32xf32>
    %439 = vector.broadcast %12 : vector<8x1xf32> to vector<8x32xf32>
    %440 = arith.addf %438, %439 : vector<8x32xf32>
    %c0_287 = arith.constant 0 : index
    %c0_288 = arith.constant 0 : index
    %c20 = arith.constant 20 : index
    %c0_289 = arith.constant 0 : index
    %441 = vector.load %arg5[%c0_287, %c0_288, %c20, %c0_289] : memref<1x8x32x32xf32, #tpu.memory_space<vmem>>, vector<1x8x1x32xf32>
    %442 = vector.shape_cast %441 : vector<1x8x1x32xf32> to vector<8x32xf32>
    %443 = vector.shape_cast %440 : vector<8x32xf32> to vector<1x8x1x32xf32>
    tpu.vector_store %arg5[%c0_287, %c0_288, %c20, %c0_289], %443 {strides = array<i32>} : memref<1x8x32x32xf32, #tpu.memory_space<vmem>>, vector<1x8x1x32xf32>,
    %444 = vector.extract_strided_slice %433 {offsets = [16, 0], sizes = [8, 16], strides = [1, 1]} : vector<32x16xf32> to vector<8x16xf32>
    %445 = vector.extract_strided_slice %433 {offsets = [24, 0], sizes = [8, 16], strides = [1, 1]} : vector<32x16xf32> to vector<8x16xf32>
    %cst_290 = arith.constant dense<0.000000e+00> : vector<8x32xf32>
    %446 = tpu.matmul %444, %6, %cst_290 {dimension_numbers = #tpu.dot_dimension_numbers<[1], [0], [0], [1], [0, 0, 1, 1], [], []>} : vector<8x16xf32>, vector<16x32xf32>, vector<8x32xf32> -> vector<8x32xf32>
    %cst_291 = arith.constant dense<0.000000e+00> : vector<8x32xf32>
    %447 = tpu.matmul %445, %11, %cst_291 {dimension_numbers = #tpu.dot_dimension_numbers<[1], [0], [0], [1], [0, 0, 1, 1], [], []>} : vector<8x16xf32>, vector<16x32xf32>, vector<8x32xf32> -> vector<8x32xf32>
    %448 = arith.addf %446, %447 : vector<8x32xf32>
    %449 = vector.broadcast %12 : vector<8x1xf32> to vector<8x32xf32>
    %450 = arith.addf %448, %449 : vector<8x32xf32>
    %c0_292 = arith.constant 0 : index
    %c0_293 = arith.constant 0 : index
    %c21 = arith.constant 21 : index
    %c0_294 = arith.constant 0 : index
    %451 = vector.load %arg5[%c0_292, %c0_293, %c21, %c0_294] : memref<1x8x32x32xf32, #tpu.memory_space<vmem>>, vector<1x8x1x32xf32>
    %452 = vector.shape_cast %451 : vector<1x8x1x32xf32> to vector<8x32xf32>
    %453 = vector.shape_cast %450 : vector<8x32xf32> to vector<1x8x1x32xf32>
    tpu.vector_store %arg5[%c0_292, %c0_293, %c21, %c0_294], %453 {strides = array<i32>} : memref<1x8x32x32xf32, #tpu.memory_space<vmem>>, vector<1x8x1x32xf32>,
    %c0_295 = arith.constant 0 : index
    %c0_296 = arith.constant 0 : index
    %c11_297 = arith.constant 11 : index
    %c0_298 = arith.constant 0 : index
    %454 = vector.load %arg2[%c0_295, %c0_296, %c11_297, %c0_298] : memref<1x4x16x16xf32, #tpu.memory_space<vmem>>, vector<1x1x1x16xf32>
    %455 = vector.shape_cast %454 : vector<1x1x1x16xf32> to vector<1x16xf32>
    %456 = vector.broadcast %455 : vector<1x16xf32> to vector<32x16xf32>
    %457 = arith.mulf %15, %456 : vector<32x16xf32>
    %c0_299 = arith.constant 0 : index
    %c1_300 = arith.constant 1 : index
    %c11_301 = arith.constant 11 : index
    %c0_302 = arith.constant 0 : index
    %458 = vector.load %arg2[%c0_299, %c1_300, %c11_301, %c0_302] : memref<1x4x16x16xf32, #tpu.memory_space<vmem>>, vector<1x1x1x16xf32>
    %459 = vector.shape_cast %458 : vector<1x1x1x16xf32> to vector<1x16xf32>
    %460 = vector.broadcast %459 : vector<1x16xf32> to vector<32x16xf32>
    %461 = arith.mulf %18, %460 : vector<32x16xf32>
    %462 = arith.addf %457, %461 : vector<32x16xf32>
    %c0_303 = arith.constant 0 : index
    %c2_304 = arith.constant 2 : index
    %c11_305 = arith.constant 11 : index
    %c0_306 = arith.constant 0 : index
    %463 = vector.load %arg2[%c0_303, %c2_304, %c11_305, %c0_306] : memref<1x4x16x16xf32, #tpu.memory_space<vmem>>, vector<1x1x1x16xf32>
    %464 = vector.shape_cast %463 : vector<1x1x1x16xf32> to vector<1x16xf32>
    %465 = vector.broadcast %464 : vector<1x16xf32> to vector<32x16xf32>
    %466 = arith.mulf %21, %465 : vector<32x16xf32>
    %467 = arith.addf %462, %466 : vector<32x16xf32>
    %c0_307 = arith.constant 0 : index
    %c3_308 = arith.constant 3 : index
    %c11_309 = arith.constant 11 : index
    %c0_310 = arith.constant 0 : index
    %468 = vector.load %arg2[%c0_307, %c3_308, %c11_309, %c0_310] : memref<1x4x16x16xf32, #tpu.memory_space<vmem>>, vector<1x1x1x16xf32>
    %469 = vector.shape_cast %468 : vector<1x1x1x16xf32> to vector<1x16xf32>
    %470 = vector.broadcast %469 : vector<1x16xf32> to vector<32x16xf32>
    %471 = arith.mulf %24, %470 : vector<32x16xf32>
    %472 = arith.addf %467, %471 : vector<32x16xf32>
    %473 = vector.extract_strided_slice %472 {offsets = [0, 0], sizes = [8, 16], strides = [1, 1]} : vector<32x16xf32> to vector<8x16xf32>
    %474 = vector.extract_strided_slice %472 {offsets = [8, 0], sizes = [8, 16], strides = [1, 1]} : vector<32x16xf32> to vector<8x16xf32>
    %cst_311 = arith.constant dense<0.000000e+00> : vector<8x32xf32>
    %475 = tpu.matmul %473, %6, %cst_311 {dimension_numbers = #tpu.dot_dimension_numbers<[1], [0], [0], [1], [0, 0, 1, 1], [], []>} : vector<8x16xf32>, vector<16x32xf32>, vector<8x32xf32> -> vector<8x32xf32>
    %cst_312 = arith.constant dense<0.000000e+00> : vector<8x32xf32>
    %476 = tpu.matmul %474, %11, %cst_312 {dimension_numbers = #tpu.dot_dimension_numbers<[1], [0], [0], [1], [0, 0, 1, 1], [], []>} : vector<8x16xf32>, vector<16x32xf32>, vector<8x32xf32> -> vector<8x32xf32>
    %477 = arith.addf %475, %476 : vector<8x32xf32>
    %478 = vector.broadcast %12 : vector<8x1xf32> to vector<8x32xf32>
    %479 = arith.addf %477, %478 : vector<8x32xf32>
    %c0_313 = arith.constant 0 : index
    %c0_314 = arith.constant 0 : index
    %c22 = arith.constant 22 : index
    %c0_315 = arith.constant 0 : index
    %480 = vector.load %arg5[%c0_313, %c0_314, %c22, %c0_315] : memref<1x8x32x32xf32, #tpu.memory_space<vmem>>, vector<1x8x1x32xf32>
    %481 = vector.shape_cast %480 : vector<1x8x1x32xf32> to vector<8x32xf32>
    %482 = vector.shape_cast %479 : vector<8x32xf32> to vector<1x8x1x32xf32>
    tpu.vector_store %arg5[%c0_313, %c0_314, %c22, %c0_315], %482 {strides = array<i32>} : memref<1x8x32x32xf32, #tpu.memory_space<vmem>>, vector<1x8x1x32xf32>,
    %483 = vector.extract_strided_slice %472 {offsets = [16, 0], sizes = [8, 16], strides = [1, 1]} : vector<32x16xf32> to vector<8x16xf32>
    %484 = vector.extract_strided_slice %472 {offsets = [24, 0], sizes = [8, 16], strides = [1, 1]} : vector<32x16xf32> to vector<8x16xf32>
    %cst_316 = arith.constant dense<0.000000e+00> : vector<8x32xf32>
    %485 = tpu.matmul %483, %6, %cst_316 {dimension_numbers = #tpu.dot_dimension_numbers<[1], [0], [0], [1], [0, 0, 1, 1], [], []>} : vector<8x16xf32>, vector<16x32xf32>, vector<8x32xf32> -> vector<8x32xf32>
    %cst_317 = arith.constant dense<0.000000e+00> : vector<8x32xf32>
    %486 = tpu.matmul %484, %11, %cst_317 {dimension_numbers = #tpu.dot_dimension_numbers<[1], [0], [0], [1], [0, 0, 1, 1], [], []>} : vector<8x16xf32>, vector<16x32xf32>, vector<8x32xf32> -> vector<8x32xf32>
    %487 = arith.addf %485, %486 : vector<8x32xf32>
    %488 = vector.broadcast %12 : vector<8x1xf32> to vector<8x32xf32>
    %489 = arith.addf %487, %488 : vector<8x32xf32>
    %c0_318 = arith.constant 0 : index
    %c0_319 = arith.constant 0 : index
    %c23 = arith.constant 23 : index
    %c0_320 = arith.constant 0 : index
    %490 = vector.load %arg5[%c0_318, %c0_319, %c23, %c0_320] : memref<1x8x32x32xf32, #tpu.memory_space<vmem>>, vector<1x8x1x32xf32>
    %491 = vector.shape_cast %490 : vector<1x8x1x32xf32> to vector<8x32xf32>
    %492 = vector.shape_cast %489 : vector<8x32xf32> to vector<1x8x1x32xf32>
    tpu.vector_store %arg5[%c0_318, %c0_319, %c23, %c0_320], %492 {strides = array<i32>} : memref<1x8x32x32xf32, #tpu.memory_space<vmem>>, vector<1x8x1x32xf32>,
    %c0_321 = arith.constant 0 : index
    %c0_322 = arith.constant 0 : index
    %c12_323 = arith.constant 12 : index
    %c0_324 = arith.constant 0 : index
    %493 = vector.load %arg2[%c0_321, %c0_322, %c12_323, %c0_324] : memref<1x4x16x16xf32, #tpu.memory_space<vmem>>, vector<1x1x1x16xf32>
    %494 = vector.shape_cast %493 : vector<1x1x1x16xf32> to vector<1x16xf32>
    %495 = vector.broadcast %494 : vector<1x16xf32> to vector<32x16xf32>
    %496 = arith.mulf %15, %495 : vector<32x16xf32>
    %c0_325 = arith.constant 0 : index
    %c1_326 = arith.constant 1 : index
    %c12_327 = arith.constant 12 : index
    %c0_328 = arith.constant 0 : index
    %497 = vector.load %arg2[%c0_325, %c1_326, %c12_327, %c0_328] : memref<1x4x16x16xf32, #tpu.memory_space<vmem>>, vector<1x1x1x16xf32>
    %498 = vector.shape_cast %497 : vector<1x1x1x16xf32> to vector<1x16xf32>
    %499 = vector.broadcast %498 : vector<1x16xf32> to vector<32x16xf32>
    %500 = arith.mulf %18, %499 : vector<32x16xf32>
    %501 = arith.addf %496, %500 : vector<32x16xf32>
    %c0_329 = arith.constant 0 : index
    %c2_330 = arith.constant 2 : index
    %c12_331 = arith.constant 12 : index
    %c0_332 = arith.constant 0 : index
    %502 = vector.load %arg2[%c0_329, %c2_330, %c12_331, %c0_332] : memref<1x4x16x16xf32, #tpu.memory_space<vmem>>, vector<1x1x1x16xf32>
    %503 = vector.shape_cast %502 : vector<1x1x1x16xf32> to vector<1x16xf32>
    %504 = vector.broadcast %503 : vector<1x16xf32> to vector<32x16xf32>
    %505 = arith.mulf %21, %504 : vector<32x16xf32>
    %506 = arith.addf %501, %505 : vector<32x16xf32>
    %c0_333 = arith.constant 0 : index
    %c3_334 = arith.constant 3 : index
    %c12_335 = arith.constant 12 : index
    %c0_336 = arith.constant 0 : index
    %507 = vector.load %arg2[%c0_333, %c3_334, %c12_335, %c0_336] : memref<1x4x16x16xf32, #tpu.memory_space<vmem>>, vector<1x1x1x16xf32>
    %508 = vector.shape_cast %507 : vector<1x1x1x16xf32> to vector<1x16xf32>
    %509 = vector.broadcast %508 : vector<1x16xf32> to vector<32x16xf32>
    %510 = arith.mulf %24, %509 : vector<32x16xf32>
    %511 = arith.addf %506, %510 : vector<32x16xf32>
    %512 = vector.extract_strided_slice %511 {offsets = [0, 0], sizes = [8, 16], strides = [1, 1]} : vector<32x16xf32> to vector<8x16xf32>
    %513 = vector.extract_strided_slice %511 {offsets = [8, 0], sizes = [8, 16], strides = [1, 1]} : vector<32x16xf32> to vector<8x16xf32>
    %cst_337 = arith.constant dense<0.000000e+00> : vector<8x32xf32>
    %514 = tpu.matmul %512, %6, %cst_337 {dimension_numbers = #tpu.dot_dimension_numbers<[1], [0], [0], [1], [0, 0, 1, 1], [], []>} : vector<8x16xf32>, vector<16x32xf32>, vector<8x32xf32> -> vector<8x32xf32>
    %cst_338 = arith.constant dense<0.000000e+00> : vector<8x32xf32>
    %515 = tpu.matmul %513, %11, %cst_338 {dimension_numbers = #tpu.dot_dimension_numbers<[1], [0], [0], [1], [0, 0, 1, 1], [], []>} : vector<8x16xf32>, vector<16x32xf32>, vector<8x32xf32> -> vector<8x32xf32>
    %516 = arith.addf %514, %515 : vector<8x32xf32>
    %517 = vector.broadcast %12 : vector<8x1xf32> to vector<8x32xf32>
    %518 = arith.addf %516, %517 : vector<8x32xf32>
    %c0_339 = arith.constant 0 : index
    %c0_340 = arith.constant 0 : index
    %c24 = arith.constant 24 : index
    %c0_341 = arith.constant 0 : index
    %519 = vector.load %arg5[%c0_339, %c0_340, %c24, %c0_341] : memref<1x8x32x32xf32, #tpu.memory_space<vmem>>, vector<1x8x1x32xf32>
    %520 = vector.shape_cast %519 : vector<1x8x1x32xf32> to vector<8x32xf32>
    %521 = vector.shape_cast %518 : vector<8x32xf32> to vector<1x8x1x32xf32>
    tpu.vector_store %arg5[%c0_339, %c0_340, %c24, %c0_341], %521 {strides = array<i32>} : memref<1x8x32x32xf32, #tpu.memory_space<vmem>>, vector<1x8x1x32xf32>,
    %522 = vector.extract_strided_slice %511 {offsets = [16, 0], sizes = [8, 16], strides = [1, 1]} : vector<32x16xf32> to vector<8x16xf32>
    %523 = vector.extract_strided_slice %511 {offsets = [24, 0], sizes = [8, 16], strides = [1, 1]} : vector<32x16xf32> to vector<8x16xf32>
    %cst_342 = arith.constant dense<0.000000e+00> : vector<8x32xf32>
    %524 = tpu.matmul %522, %6, %cst_342 {dimension_numbers = #tpu.dot_dimension_numbers<[1], [0], [0], [1], [0, 0, 1, 1], [], []>} : vector<8x16xf32>, vector<16x32xf32>, vector<8x32xf32> -> vector<8x32xf32>
    %cst_343 = arith.constant dense<0.000000e+00> : vector<8x32xf32>
    %525 = tpu.matmul %523, %11, %cst_343 {dimension_numbers = #tpu.dot_dimension_numbers<[1], [0], [0], [1], [0, 0, 1, 1], [], []>} : vector<8x16xf32>, vector<16x32xf32>, vector<8x32xf32> -> vector<8x32xf32>
    %526 = arith.addf %524, %525 : vector<8x32xf32>
    %527 = vector.broadcast %12 : vector<8x1xf32> to vector<8x32xf32>
    %528 = arith.addf %526, %527 : vector<8x32xf32>
    %c0_344 = arith.constant 0 : index
    %c0_345 = arith.constant 0 : index
    %c25 = arith.constant 25 : index
    %c0_346 = arith.constant 0 : index
    %529 = vector.load %arg5[%c0_344, %c0_345, %c25, %c0_346] : memref<1x8x32x32xf32, #tpu.memory_space<vmem>>, vector<1x8x1x32xf32>
    %530 = vector.shape_cast %529 : vector<1x8x1x32xf32> to vector<8x32xf32>
    %531 = vector.shape_cast %528 : vector<8x32xf32> to vector<1x8x1x32xf32>
    tpu.vector_store %arg5[%c0_344, %c0_345, %c25, %c0_346], %531 {strides = array<i32>} : memref<1x8x32x32xf32, #tpu.memory_space<vmem>>, vector<1x8x1x32xf32>,
    %c0_347 = arith.constant 0 : index
    %c0_348 = arith.constant 0 : index
    %c13_349 = arith.constant 13 : index
    %c0_350 = arith.constant 0 : index
    %532 = vector.load %arg2[%c0_347, %c0_348, %c13_349, %c0_350] : memref<1x4x16x16xf32, #tpu.memory_space<vmem>>, vector<1x1x1x16xf32>
    %533 = vector.shape_cast %532 : vector<1x1x1x16xf32> to vector<1x16xf32>
    %534 = vector.broadcast %533 : vector<1x16xf32> to vector<32x16xf32>
    %535 = arith.mulf %15, %534 : vector<32x16xf32>
    %c0_351 = arith.constant 0 : index
    %c1_352 = arith.constant 1 : index
    %c13_353 = arith.constant 13 : index
    %c0_354 = arith.constant 0 : index
    %536 = vector.load %arg2[%c0_351, %c1_352, %c13_353, %c0_354] : memref<1x4x16x16xf32, #tpu.memory_space<vmem>>, vector<1x1x1x16xf32>
    %537 = vector.shape_cast %536 : vector<1x1x1x16xf32> to vector<1x16xf32>
    %538 = vector.broadcast %537 : vector<1x16xf32> to vector<32x16xf32>
    %539 = arith.mulf %18, %538 : vector<32x16xf32>
    %540 = arith.addf %535, %539 : vector<32x16xf32>
    %c0_355 = arith.constant 0 : index
    %c2_356 = arith.constant 2 : index
    %c13_357 = arith.constant 13 : index
    %c0_358 = arith.constant 0 : index
    %541 = vector.load %arg2[%c0_355, %c2_356, %c13_357, %c0_358] : memref<1x4x16x16xf32, #tpu.memory_space<vmem>>, vector<1x1x1x16xf32>
    %542 = vector.shape_cast %541 : vector<1x1x1x16xf32> to vector<1x16xf32>
    %543 = vector.broadcast %542 : vector<1x16xf32> to vector<32x16xf32>
    %544 = arith.mulf %21, %543 : vector<32x16xf32>
    %545 = arith.addf %540, %544 : vector<32x16xf32>
    %c0_359 = arith.constant 0 : index
    %c3_360 = arith.constant 3 : index
    %c13_361 = arith.constant 13 : index
    %c0_362 = arith.constant 0 : index
    %546 = vector.load %arg2[%c0_359, %c3_360, %c13_361, %c0_362] : memref<1x4x16x16xf32, #tpu.memory_space<vmem>>, vector<1x1x1x16xf32>
    %547 = vector.shape_cast %546 : vector<1x1x1x16xf32> to vector<1x16xf32>
    %548 = vector.broadcast %547 : vector<1x16xf32> to vector<32x16xf32>
    %549 = arith.mulf %24, %548 : vector<32x16xf32>
    %550 = arith.addf %545, %549 : vector<32x16xf32>
    %551 = vector.extract_strided_slice %550 {offsets = [0, 0], sizes = [8, 16], strides = [1, 1]} : vector<32x16xf32> to vector<8x16xf32>
    %552 = vector.extract_strided_slice %550 {offsets = [8, 0], sizes = [8, 16], strides = [1, 1]} : vector<32x16xf32> to vector<8x16xf32>
    %cst_363 = arith.constant dense<0.000000e+00> : vector<8x32xf32>
    %553 = tpu.matmul %551, %6, %cst_363 {dimension_numbers = #tpu.dot_dimension_numbers<[1], [0], [0], [1], [0, 0, 1, 1], [], []>} : vector<8x16xf32>, vector<16x32xf32>, vector<8x32xf32> -> vector<8x32xf32>
    %cst_364 = arith.constant dense<0.000000e+00> : vector<8x32xf32>
    %554 = tpu.matmul %552, %11, %cst_364 {dimension_numbers = #tpu.dot_dimension_numbers<[1], [0], [0], [1], [0, 0, 1, 1], [], []>} : vector<8x16xf32>, vector<16x32xf32>, vector<8x32xf32> -> vector<8x32xf32>
    %555 = arith.addf %553, %554 : vector<8x32xf32>
    %556 = vector.broadcast %12 : vector<8x1xf32> to vector<8x32xf32>
    %557 = arith.addf %555, %556 : vector<8x32xf32>
    %c0_365 = arith.constant 0 : index
    %c0_366 = arith.constant 0 : index
    %c26 = arith.constant 26 : index
    %c0_367 = arith.constant 0 : index
    %558 = vector.load %arg5[%c0_365, %c0_366, %c26, %c0_367] : memref<1x8x32x32xf32, #tpu.memory_space<vmem>>, vector<1x8x1x32xf32>
    %559 = vector.shape_cast %558 : vector<1x8x1x32xf32> to vector<8x32xf32>
    %560 = vector.shape_cast %557 : vector<8x32xf32> to vector<1x8x1x32xf32>
    tpu.vector_store %arg5[%c0_365, %c0_366, %c26, %c0_367], %560 {strides = array<i32>} : memref<1x8x32x32xf32, #tpu.memory_space<vmem>>, vector<1x8x1x32xf32>,
    %561 = vector.extract_strided_slice %550 {offsets = [16, 0], sizes = [8, 16], strides = [1, 1]} : vector<32x16xf32> to vector<8x16xf32>
    %562 = vector.extract_strided_slice %550 {offsets = [24, 0], sizes = [8, 16], strides = [1, 1]} : vector<32x16xf32> to vector<8x16xf32>
    %cst_368 = arith.constant dense<0.000000e+00> : vector<8x32xf32>
    %563 = tpu.matmul %561, %6, %cst_368 {dimension_numbers = #tpu.dot_dimension_numbers<[1], [0], [0], [1], [0, 0, 1, 1], [], []>} : vector<8x16xf32>, vector<16x32xf32>, vector<8x32xf32> -> vector<8x32xf32>
    %cst_369 = arith.constant dense<0.000000e+00> : vector<8x32xf32>
    %564 = tpu.matmul %562, %11, %cst_369 {dimension_numbers = #tpu.dot_dimension_numbers<[1], [0], [0], [1], [0, 0, 1, 1], [], []>} : vector<8x16xf32>, vector<16x32xf32>, vector<8x32xf32> -> vector<8x32xf32>
    %565 = arith.addf %563, %564 : vector<8x32xf32>
    %566 = vector.broadcast %12 : vector<8x1xf32> to vector<8x32xf32>
    %567 = arith.addf %565, %566 : vector<8x32xf32>
    %c0_370 = arith.constant 0 : index
    %c0_371 = arith.constant 0 : index
    %c27 = arith.constant 27 : index
    %c0_372 = arith.constant 0 : index
    %568 = vector.load %arg5[%c0_370, %c0_371, %c27, %c0_372] : memref<1x8x32x32xf32, #tpu.memory_space<vmem>>, vector<1x8x1x32xf32>
    %569 = vector.shape_cast %568 : vector<1x8x1x32xf32> to vector<8x32xf32>
    %570 = vector.shape_cast %567 : vector<8x32xf32> to vector<1x8x1x32xf32>
    tpu.vector_store %arg5[%c0_370, %c0_371, %c27, %c0_372], %570 {strides = array<i32>} : memref<1x8x32x32xf32, #tpu.memory_space<vmem>>, vector<1x8x1x32xf32>,
    %c0_373 = arith.constant 0 : index
    %c0_374 = arith.constant 0 : index
    %c14_375 = arith.constant 14 : index
    %c0_376 = arith.constant 0 : index
    %571 = vector.load %arg2[%c0_373, %c0_374, %c14_375, %c0_376] : memref<1x4x16x16xf32, #tpu.memory_space<vmem>>, vector<1x1x1x16xf32>
    %572 = vector.shape_cast %571 : vector<1x1x1x16xf32> to vector<1x16xf32>
    %573 = vector.broadcast %572 : vector<1x16xf32> to vector<32x16xf32>
    %574 = arith.mulf %15, %573 : vector<32x16xf32>
    %c0_377 = arith.constant 0 : index
    %c1_378 = arith.constant 1 : index
    %c14_379 = arith.constant 14 : index
    %c0_380 = arith.constant 0 : index
    %575 = vector.load %arg2[%c0_377, %c1_378, %c14_379, %c0_380] : memref<1x4x16x16xf32, #tpu.memory_space<vmem>>, vector<1x1x1x16xf32>
    %576 = vector.shape_cast %575 : vector<1x1x1x16xf32> to vector<1x16xf32>
    %577 = vector.broadcast %576 : vector<1x16xf32> to vector<32x16xf32>
    %578 = arith.mulf %18, %577 : vector<32x16xf32>
    %579 = arith.addf %574, %578 : vector<32x16xf32>
    %c0_381 = arith.constant 0 : index
    %c2_382 = arith.constant 2 : index
    %c14_383 = arith.constant 14 : index
    %c0_384 = arith.constant 0 : index
    %580 = vector.load %arg2[%c0_381, %c2_382, %c14_383, %c0_384] : memref<1x4x16x16xf32, #tpu.memory_space<vmem>>, vector<1x1x1x16xf32>
    %581 = vector.shape_cast %580 : vector<1x1x1x16xf32> to vector<1x16xf32>
    %582 = vector.broadcast %581 : vector<1x16xf32> to vector<32x16xf32>
    %583 = arith.mulf %21, %582 : vector<32x16xf32>
    %584 = arith.addf %579, %583 : vector<32x16xf32>
    %c0_385 = arith.constant 0 : index
    %c3_386 = arith.constant 3 : index
    %c14_387 = arith.constant 14 : index
    %c0_388 = arith.constant 0 : index
    %585 = vector.load %arg2[%c0_385, %c3_386, %c14_387, %c0_388] : memref<1x4x16x16xf32, #tpu.memory_space<vmem>>, vector<1x1x1x16xf32>
    %586 = vector.shape_cast %585 : vector<1x1x1x16xf32> to vector<1x16xf32>
    %587 = vector.broadcast %586 : vector<1x16xf32> to vector<32x16xf32>
    %588 = arith.mulf %24, %587 : vector<32x16xf32>
    %589 = arith.addf %584, %588 : vector<32x16xf32>
    %590 = vector.extract_strided_slice %589 {offsets = [0, 0], sizes = [8, 16], strides = [1, 1]} : vector<32x16xf32> to vector<8x16xf32>
    %591 = vector.extract_strided_slice %589 {offsets = [8, 0], sizes = [8, 16], strides = [1, 1]} : vector<32x16xf32> to vector<8x16xf32>
    %cst_389 = arith.constant dense<0.000000e+00> : vector<8x32xf32>
    %592 = tpu.matmul %590, %6, %cst_389 {dimension_numbers = #tpu.dot_dimension_numbers<[1], [0], [0], [1], [0, 0, 1, 1], [], []>} : vector<8x16xf32>, vector<16x32xf32>, vector<8x32xf32> -> vector<8x32xf32>
    %cst_390 = arith.constant dense<0.000000e+00> : vector<8x32xf32>
    %593 = tpu.matmul %591, %11, %cst_390 {dimension_numbers = #tpu.dot_dimension_numbers<[1], [0], [0], [1], [0, 0, 1, 1], [], []>} : vector<8x16xf32>, vector<16x32xf32>, vector<8x32xf32> -> vector<8x32xf32>
    %594 = arith.addf %592, %593 : vector<8x32xf32>
    %595 = vector.broadcast %12 : vector<8x1xf32> to vector<8x32xf32>
    %596 = arith.addf %594, %595 : vector<8x32xf32>
    %c0_391 = arith.constant 0 : index
    %c0_392 = arith.constant 0 : index
    %c28 = arith.constant 28 : index
    %c0_393 = arith.constant 0 : index
    %597 = vector.load %arg5[%c0_391, %c0_392, %c28, %c0_393] : memref<1x8x32x32xf32, #tpu.memory_space<vmem>>, vector<1x8x1x32xf32>
    %598 = vector.shape_cast %597 : vector<1x8x1x32xf32> to vector<8x32xf32>
    %599 = vector.shape_cast %596 : vector<8x32xf32> to vector<1x8x1x32xf32>
    tpu.vector_store %arg5[%c0_391, %c0_392, %c28, %c0_393], %599 {strides = array<i32>} : memref<1x8x32x32xf32, #tpu.memory_space<vmem>>, vector<1x8x1x32xf32>,
    %600 = vector.extract_strided_slice %589 {offsets = [16, 0], sizes = [8, 16], strides = [1, 1]} : vector<32x16xf32> to vector<8x16xf32>
    %601 = vector.extract_strided_slice %589 {offsets = [24, 0], sizes = [8, 16], strides = [1, 1]} : vector<32x16xf32> to vector<8x16xf32>
    %cst_394 = arith.constant dense<0.000000e+00> : vector<8x32xf32>
    %602 = tpu.matmul %600, %6, %cst_394 {dimension_numbers = #tpu.dot_dimension_numbers<[1], [0], [0], [1], [0, 0, 1, 1], [], []>} : vector<8x16xf32>, vector<16x32xf32>, vector<8x32xf32> -> vector<8x32xf32>
    %cst_395 = arith.constant dense<0.000000e+00> : vector<8x32xf32>
    %603 = tpu.matmul %601, %11, %cst_395 {dimension_numbers = #tpu.dot_dimension_numbers<[1], [0], [0], [1], [0, 0, 1, 1], [], []>} : vector<8x16xf32>, vector<16x32xf32>, vector<8x32xf32> -> vector<8x32xf32>
    %604 = arith.addf %602, %603 : vector<8x32xf32>
    %605 = vector.broadcast %12 : vector<8x1xf32> to vector<8x32xf32>
    %606 = arith.addf %604, %605 : vector<8x32xf32>
    %c0_396 = arith.constant 0 : index
    %c0_397 = arith.constant 0 : index
    %c29 = arith.constant 29 : index
    %c0_398 = arith.constant 0 : index
    %607 = vector.load %arg5[%c0_396, %c0_397, %c29, %c0_398] : memref<1x8x32x32xf32, #tpu.memory_space<vmem>>, vector<1x8x1x32xf32>
    %608 = vector.shape_cast %607 : vector<1x8x1x32xf32> to vector<8x32xf32>
    %609 = vector.shape_cast %606 : vector<8x32xf32> to vector<1x8x1x32xf32>
    tpu.vector_store %arg5[%c0_396, %c0_397, %c29, %c0_398], %609 {strides = array<i32>} : memref<1x8x32x32xf32, #tpu.memory_space<vmem>>, vector<1x8x1x32xf32>,
    %c0_399 = arith.constant 0 : index
    %c0_400 = arith.constant 0 : index
    %c15_401 = arith.constant 15 : index
    %c0_402 = arith.constant 0 : index
    %610 = vector.load %arg2[%c0_399, %c0_400, %c15_401, %c0_402] : memref<1x4x16x16xf32, #tpu.memory_space<vmem>>, vector<1x1x1x16xf32>
    %611 = vector.shape_cast %610 : vector<1x1x1x16xf32> to vector<1x16xf32>
    %612 = vector.broadcast %611 : vector<1x16xf32> to vector<32x16xf32>
    %613 = arith.mulf %15, %612 : vector<32x16xf32>
    %c0_403 = arith.constant 0 : index
    %c1_404 = arith.constant 1 : index
    %c15_405 = arith.constant 15 : index
    %c0_406 = arith.constant 0 : index
    %614 = vector.load %arg2[%c0_403, %c1_404, %c15_405, %c0_406] : memref<1x4x16x16xf32, #tpu.memory_space<vmem>>, vector<1x1x1x16xf32>
    %615 = vector.shape_cast %614 : vector<1x1x1x16xf32> to vector<1x16xf32>
    %616 = vector.broadcast %615 : vector<1x16xf32> to vector<32x16xf32>
    %617 = arith.mulf %18, %616 : vector<32x16xf32>
    %618 = arith.addf %613, %617 : vector<32x16xf32>
    %c0_407 = arith.constant 0 : index
    %c2_408 = arith.constant 2 : index
    %c15_409 = arith.constant 15 : index
    %c0_410 = arith.constant 0 : index
    %619 = vector.load %arg2[%c0_407, %c2_408, %c15_409, %c0_410] : memref<1x4x16x16xf32, #tpu.memory_space<vmem>>, vector<1x1x1x16xf32>
    %620 = vector.shape_cast %619 : vector<1x1x1x16xf32> to vector<1x16xf32>
    %621 = vector.broadcast %620 : vector<1x16xf32> to vector<32x16xf32>
    %622 = arith.mulf %21, %621 : vector<32x16xf32>
    %623 = arith.addf %618, %622 : vector<32x16xf32>
    %c0_411 = arith.constant 0 : index
    %c3_412 = arith.constant 3 : index
    %c15_413 = arith.constant 15 : index
    %c0_414 = arith.constant 0 : index
    %624 = vector.load %arg2[%c0_411, %c3_412, %c15_413, %c0_414] : memref<1x4x16x16xf32, #tpu.memory_space<vmem>>, vector<1x1x1x16xf32>
    %625 = vector.shape_cast %624 : vector<1x1x1x16xf32> to vector<1x16xf32>
    %626 = vector.broadcast %625 : vector<1x16xf32> to vector<32x16xf32>
    %627 = arith.mulf %24, %626 : vector<32x16xf32>
    %628 = arith.addf %623, %627 : vector<32x16xf32>
    %629 = vector.extract_strided_slice %628 {offsets = [0, 0], sizes = [8, 16], strides = [1, 1]} : vector<32x16xf32> to vector<8x16xf32>
    %630 = vector.extract_strided_slice %628 {offsets = [8, 0], sizes = [8, 16], strides = [1, 1]} : vector<32x16xf32> to vector<8x16xf32>
    %cst_415 = arith.constant dense<0.000000e+00> : vector<8x32xf32>
    %631 = tpu.matmul %629, %6, %cst_415 {dimension_numbers = #tpu.dot_dimension_numbers<[1], [0], [0], [1], [0, 0, 1, 1], [], []>} : vector<8x16xf32>, vector<16x32xf32>, vector<8x32xf32> -> vector<8x32xf32>
    %cst_416 = arith.constant dense<0.000000e+00> : vector<8x32xf32>
    %632 = tpu.matmul %630, %11, %cst_416 {dimension_numbers = #tpu.dot_dimension_numbers<[1], [0], [0], [1], [0, 0, 1, 1], [], []>} : vector<8x16xf32>, vector<16x32xf32>, vector<8x32xf32> -> vector<8x32xf32>
    %633 = arith.addf %631, %632 : vector<8x32xf32>
    %634 = vector.broadcast %12 : vector<8x1xf32> to vector<8x32xf32>
    %635 = arith.addf %633, %634 : vector<8x32xf32>
    %c0_417 = arith.constant 0 : index
    %c0_418 = arith.constant 0 : index
    %c30 = arith.constant 30 : index
    %c0_419 = arith.constant 0 : index
    %636 = vector.load %arg5[%c0_417, %c0_418, %c30, %c0_419] : memref<1x8x32x32xf32, #tpu.memory_space<vmem>>, vector<1x8x1x32xf32>
    %637 = vector.shape_cast %636 : vector<1x8x1x32xf32> to vector<8x32xf32>
    %638 = vector.shape_cast %635 : vector<8x32xf32> to vector<1x8x1x32xf32>
    tpu.vector_store %arg5[%c0_417, %c0_418, %c30, %c0_419], %638 {strides = array<i32>} : memref<1x8x32x32xf32, #tpu.memory_space<vmem>>, vector<1x8x1x32xf32>,
    %639 = vector.extract_strided_slice %628 {offsets = [16, 0], sizes = [8, 16], strides = [1, 1]} : vector<32x16xf32> to vector<8x16xf32>
    %640 = vector.extract_strided_slice %628 {offsets = [24, 0], sizes = [8, 16], strides = [1, 1]} : vector<32x16xf32> to vector<8x16xf32>
    %cst_420 = arith.constant dense<0.000000e+00> : vector<8x32xf32>
    %641 = tpu.matmul %639, %6, %cst_420 {dimension_numbers = #tpu.dot_dimension_numbers<[1], [0], [0], [1], [0, 0, 1, 1], [], []>} : vector<8x16xf32>, vector<16x32xf32>, vector<8x32xf32> -> vector<8x32xf32>
    %cst_421 = arith.constant dense<0.000000e+00> : vector<8x32xf32>
    %642 = tpu.matmul %640, %11, %cst_421 {dimension_numbers = #tpu.dot_dimension_numbers<[1], [0], [0], [1], [0, 0, 1, 1], [], []>} : vector<8x16xf32>, vector<16x32xf32>, vector<8x32xf32> -> vector<8x32xf32>
    %643 = arith.addf %641, %642 : vector<8x32xf32>
    %644 = vector.broadcast %12 : vector<8x1xf32> to vector<8x32xf32>
    %645 = arith.addf %643, %644 : vector<8x32xf32>
    %c0_422 = arith.constant 0 : index
    %c0_423 = arith.constant 0 : index
    %c31 = arith.constant 31 : index
    %c0_424 = arith.constant 0 : index
    %646 = vector.load %arg5[%c0_422, %c0_423, %c31, %c0_424] : memref<1x8x32x32xf32, #tpu.memory_space<vmem>>, vector<1x8x1x32xf32>
    %647 = vector.shape_cast %646 : vector<1x8x1x32xf32> to vector<8x32xf32>
    %648 = vector.shape_cast %645 : vector<8x32xf32> to vector<1x8x1x32xf32>
    tpu.vector_store %arg5[%c0_422, %c0_423, %c31, %c0_424], %648 {strides = array<i32>} : memref<1x8x32x32xf32, #tpu.memory_space<vmem>>, vector<1x8x1x32xf32>,
    return
  }
  func.func @transform_0(%arg0: i32, %arg1: i32) -> (i32, i32, i32, i32) {
    %c0_i32 = arith.constant 0 : i32
    %c0_i32_0 = arith.constant 0 : i32
    %c0_i32_1 = arith.constant 0 : i32
    return %arg0, %c0_i32, %arg1, %c0_i32_0 : i32, i32, i32, i32
  }
  func.func @transform_1(%arg0: i32, %arg1: i32) -> (i32, i32) {
    %c0_i32 = arith.constant 0 : i32
    %c0_i32_0 = arith.constant 0 : i32
    %c0_i32_1 = arith.constant 0 : i32
    return %c0_i32, %c0_i32_0 : i32, i32
  }
  func.func @transform_2(%arg0: i32, %arg1: i32) -> (i32, i32) {
    %c0_i32 = arith.constant 0 : i32
    %c0_i32_0 = arith.constant 0 : i32
    %c0_i32_1 = arith.constant 0 : i32
    return %c0_i32, %c0_i32_0 : i32, i32
  }
  func.func @transform_3(%arg0: i32, %arg1: i32) -> (i32, i32, i32, i32) {
    %c0_i32 = arith.constant 0 : i32
    %c0_i32_0 = arith.constant 0 : i32
    %c0_i32_1 = arith.constant 0 : i32
    return %arg0, %c0_i32, %arg1, %c0_i32_0 : i32, i32, i32, i32
  }
}

module attributes {stable_mosaic.version = 11 : i64} {
  func.func @kernel(%arg0: i32, %arg1: i32, %arg2: memref<1x4x16x16xf32, #tpu.memory_space<vmem>>, %arg3: memref<32x4xf32, #tpu.memory_space<vmem>>, %arg4: memref<8x1xf32, #tpu.memory_space<vmem>>, %arg5: memref<1x8x32x32xf32, #tpu.memory_space<vmem>>) attributes {dimension_semantics = [#tpu.dimension_semantics<parallel>, #tpu.dimension_semantics<parallel>], iteration_bounds = array<i64: 2, 1>, scalar_prefetch = 0 : i64, scratch_operands = 0 : i64, tpu.core_type = #tpu.core_type<tc>, window_params = [{transform_indices = @transform_0, window_bounds = array<i64: 1, 4, 16, 16>}, {pipeline_mode = #tpu.pipeline_mode<synchronous>, transform_indices = @transform_1, window_bounds = array<i64: 32, 4>}, {pipeline_mode = #tpu.pipeline_mode<synchronous>, transform_indices = @transform_2, window_bounds = array<i64: 8, 1>}, {transform_indices = @transform_3, window_bounds = array<i64: 1, 8, 32, 32>}]} {
    %0 = tpu.iota {dimensions = array<i32: 1>} : vector<16x32xi32>
    %1 = tpu.iota {dimensions = array<i32: 0>} : vector<16x32xi32>
    %c2_i32 = arith.constant 2 : i32
    %2 = vector.broadcast %c2_i32 : i32 to vector<16x32xi32>
    %3 = arith.muli %2, %1 : vector<16x32xi32>
    %4 = arith.cmpi eq, %0, %3 : vector<16x32xi32>
    %5 = arith.extui %4 : vector<16x32xi1> to vector<16x32xi32>
    %6 = arith.sitofp %5 : vector<16x32xi32> to vector<16x32xf32>
    %c1_i32 = arith.constant 1 : i32
    %7 = vector.broadcast %c1_i32 : i32 to vector<16x32xi32>
    %8 = arith.addi %3, %7 : vector<16x32xi32>
    %9 = arith.cmpi eq, %0, %8 : vector<16x32xi32>
    %10 = arith.extui %9 : vector<16x32xi1> to vector<16x32xi32>
    %11 = arith.sitofp %10 : vector<16x32xi32> to vector<16x32xf32>
    %c0 = arith.constant 0 : index
    %c0_0 = arith.constant 0 : index
    %12 = vector.load %arg4[%c0, %c0_0] : memref<8x1xf32, #tpu.memory_space<vmem>>, vector<8x1xf32>
    %c0_1 = arith.constant 0 : index
    %c0_2 = arith.constant 0 : index
    %13 = vector.load %arg3[%c0_1, %c0_2] : memref<32x4xf32, #tpu.memory_space<vmem>>, vector<32x1xf32>
    %14 = vector.shape_cast %13 : vector<32x1xf32> to vector<32x1xf32>
    %15 = vector.broadcast %14 : vector<32x1xf32> to vector<32x16xf32>
    %c0_3 = arith.constant 0 : index
    %c1 = arith.constant 1 : index
    %16 = vector.load %arg3[%c0_3, %c1] : memref<32x4xf32, #tpu.memory_space<vmem>>, vector<32x1xf32>
    %17 = vector.shape_cast %16 : vector<32x1xf32> to vector<32x1xf32>
    %18 = vector.broadcast %17 : vector<32x1xf32> to vector<32x16xf32>
    %c0_4 = arith.constant 0 : index
    %c2 = arith.constant 2 : index
    %19 = vector.load %arg3[%c0_4, %c2] : memref<32x4xf32, #tpu.memory_space<vmem>>, vector<32x1xf32>
    %20 = vector.shape_cast %19 : vector<32x1xf32> to vector<32x1xf32>
    %21 = vector.broadcast %20 : vector<32x1xf32> to vector<32x16xf32>
    %c0_5 = arith.constant 0 : index
    %c3 = arith.constant 3 : index
    %22 = vector.load %arg3[%c0_5, %c3] : memref<32x4xf32, #tpu.memory_space<vmem>>, vector<32x1xf32>
    %23 = vector.shape_cast %22 : vector<32x1xf32> to vector<32x1xf32>
    %24 = vector.broadcast %23 : vector<32x1xf32> to vector<32x16xf32>
    %c0_6 = arith.constant 0 : index
    %c0_7 = arith.constant 0 : index
    %c0_8 = arith.constant 0 : index
    %c0_9 = arith.constant 0 : index
    %25 = vector.load %arg2[%c0_6, %c0_7, %c0_8, %c0_9] : memref<1x4x16x16xf32, #tpu.memory_space<vmem>>, vector<1x1x1x16xf32>
    %26 = vector.shape_cast %25 : vector<1x1x1x16xf32> to vector<1x16xf32>
    %27 = vector.broadcast %26 : vector<1x16xf32> to vector<32x16xf32>
    %28 = arith.mulf %15, %27 : vector<32x16xf32>
    %c0_10 = arith.constant 0 : index
    %c1_11 = arith.constant 1 : index
    %c0_12 = arith.constant 0 : index
    %c0_13 = arith.constant 0 : index
    %29 = vector.load %arg2[%c0_10, %c1_11, %c0_12, %c0_13] : memref<1x4x16x16xf32, #tpu.memory_space<vmem>>, vector<1x1x1x16xf32>
    %30 = vector.shape_cast %29 : vector<1x1x1x16xf32> to vector<1x16xf32>
    %31 = vector.broadcast %30 : vector<1x16xf32> to vector<32x16xf32>
    %32 = arith.mulf %18, %31 : vector<32x16xf32>
    %33 = arith.addf %28, %32 : vector<32x16xf32>
    %c0_14 = arith.constant 0 : index
    %c2_15 = arith.constant 2 : index
    %c0_16 = arith.constant 0 : index
    %c0_17 = arith.constant 0 : index
    %34 = vector.load %arg2[%c0_14, %c2_15, %c0_16, %c0_17] : memref<1x4x16x16xf32, #tpu.memory_space<vmem>>, vector<1x1x1x16xf32>
    %35 = vector.shape_cast %34 : vector<1x1x1x16xf32> to vector<1x16xf32>
    %36 = vector.broadcast %35 : vector<1x16xf32> to vector<32x16xf32>
    %37 = arith.mulf %21, %36 : vector<32x16xf32>
    %38 = arith.addf %33, %37 : vector<32x16xf32>
    %c0_18 = arith.constant 0 : index
    %c3_19 = arith.constant 3 : index
    %c0_20 = arith.constant 0 : index
    %c0_21 = arith.constant 0 : index
    %39 = vector.load %arg2[%c0_18, %c3_19, %c0_20, %c0_21] : memref<1x4x16x16xf32, #tpu.memory_space<vmem>>, vector<1x1x1x16xf32>
    %40 = vector.shape_cast %39 : vector<1x1x1x16xf32> to vector<1x16xf32>
    %41 = vector.broadcast %40 : vector<1x16xf32> to vector<32x16xf32>
    %42 = arith.mulf %24, %41 : vector<32x16xf32>
    %43 = arith.addf %38, %42 : vector<32x16xf32>
    %44 = vector.extract_strided_slice %43 {offsets = [0, 0], sizes = [8, 16], strides = [1, 1]} : vector<32x16xf32> to vector<8x16xf32>
    %45 = vector.extract_strided_slice %43 {offsets = [8, 0], sizes = [8, 16], strides = [1, 1]} : vector<32x16xf32> to vector<8x16xf32>
    %cst = arith.constant dense<0.000000e+00> : vector<8x32xf32>
    %46 = tpu.matmul %44, %6, %cst {dimension_numbers = #tpu.dot_dimension_numbers<[1], [0], [0], [1], [0, 0, 1, 1], [], []>} : vector<8x16xf32>, vector<16x32xf32>, vector<8x32xf32> -> vector<8x32xf32>
    %cst_22 = arith.constant dense<0.000000e+00> : vector<8x32xf32>
    %47 = tpu.matmul %45, %11, %cst_22 {dimension_numbers = #tpu.dot_dimension_numbers<[1], [0], [0], [1], [0, 0, 1, 1], [], []>} : vector<8x16xf32>, vector<16x32xf32>, vector<8x32xf32> -> vector<8x32xf32>
    %48 = arith.addf %46, %47 : vector<8x32xf32>
    %49 = vector.broadcast %12 : vector<8x1xf32> to vector<8x32xf32>
    %50 = arith.addf %48, %49 : vector<8x32xf32>
    %c0_23 = arith.constant 0 : index
    %c0_24 = arith.constant 0 : index
    %c0_25 = arith.constant 0 : index
    %c0_26 = arith.constant 0 : index
    %51 = vector.load %arg5[%c0_23, %c0_24, %c0_25, %c0_26] : memref<1x8x32x32xf32, #tpu.memory_space<vmem>>, vector<1x8x1x32xf32>
    %52 = vector.shape_cast %51 : vector<1x8x1x32xf32> to vector<8x32xf32>
    %53 = vector.shape_cast %50 : vector<8x32xf32> to vector<1x8x1x32xf32>
    tpu.vector_store %arg5[%c0_23, %c0_24, %c0_25, %c0_26], %53 {strides = array<i32>} : memref<1x8x32x32xf32, #tpu.memory_space<vmem>>, vector<1x8x1x32xf32>,
    %54 = vector.extract_strided_slice %43 {offsets = [16, 0], sizes = [8, 16], strides = [1, 1]} : vector<32x16xf32> to vector<8x16xf32>
    %55 = vector.extract_strided_slice %43 {offsets = [24, 0], sizes = [8, 16], strides = [1, 1]} : vector<32x16xf32> to vector<8x16xf32>
    %cst_27 = arith.constant dense<0.000000e+00> : vector<8x32xf32>
    %56 = tpu.matmul %54, %6, %cst_27 {dimension_numbers = #tpu.dot_dimension_numbers<[1], [0], [0], [1], [0, 0, 1, 1], [], []>} : vector<8x16xf32>, vector<16x32xf32>, vector<8x32xf32> -> vector<8x32xf32>
    %cst_28 = arith.constant dense<0.000000e+00> : vector<8x32xf32>
    %57 = tpu.matmul %55, %11, %cst_28 {dimension_numbers = #tpu.dot_dimension_numbers<[1], [0], [0], [1], [0, 0, 1, 1], [], []>} : vector<8x16xf32>, vector<16x32xf32>, vector<8x32xf32> -> vector<8x32xf32>
    %58 = arith.addf %56, %57 : vector<8x32xf32>
    %59 = vector.broadcast %12 : vector<8x1xf32> to vector<8x32xf32>
    %60 = arith.addf %58, %59 : vector<8x32xf32>
    %c0_29 = arith.constant 0 : index
    %c0_30 = arith.constant 0 : index
    %c1_31 = arith.constant 1 : index
    %c0_32 = arith.constant 0 : index
    %61 = vector.load %arg5[%c0_29, %c0_30, %c1_31, %c0_32] : memref<1x8x32x32xf32, #tpu.memory_space<vmem>>, vector<1x8x1x32xf32>
    %62 = vector.shape_cast %61 : vector<1x8x1x32xf32> to vector<8x32xf32>
    %63 = vector.shape_cast %60 : vector<8x32xf32> to vector<1x8x1x32xf32>
    tpu.vector_store %arg5[%c0_29, %c0_30, %c1_31, %c0_32], %63 {strides = array<i32>} : memref<1x8x32x32xf32, #tpu.memory_space<vmem>>, vector<1x8x1x32xf32>,
    %c0_33 = arith.constant 0 : index
    %c0_34 = arith.constant 0 : index
    %c1_35 = arith.constant 1 : index
    %c0_36 = arith.constant 0 : index
    %64 = vector.load %arg2[%c0_33, %c0_34, %c1_35, %c0_36] : memref<1x4x16x16xf32, #tpu.memory_space<vmem>>, vector<1x1x1x16xf32>
    %65 = vector.shape_cast %64 : vector<1x1x1x16xf32> to vector<1x16xf32>
    %66 = vector.broadcast %65 : vector<1x16xf32> to vector<32x16xf32>
    %67 = arith.mulf %15, %66 : vector<32x16xf32>
    %c0_37 = arith.constant 0 : index
    %c1_38 = arith.constant 1 : index
    %c1_39 = arith.constant 1 : index
    %c0_40 = arith.constant 0 : index
    %68 = vector.load %arg2[%c0_37, %c1_38, %c1_39, %c0_40] : memref<1x4x16x16xf32, #tpu.memory_space<vmem>>, vector<1x1x1x16xf32>
    %69 = vector.shape_cast %68 : vector<1x1x1x16xf32> to vector<1x16xf32>
    %70 = vector.broadcast %69 : vector<1x16xf32> to vector<32x16xf32>
    %71 = arith.mulf %18, %70 : vector<32x16xf32>
    %72 = arith.addf %67, %71 : vector<32x16xf32>
    %c0_41 = arith.constant 0 : index
    %c2_42 = arith.constant 2 : index
    %c1_43 = arith.constant 1 : index
    %c0_44 = arith.constant 0 : index
    %73 = vector.load %arg2[%c0_41, %c2_42, %c1_43, %c0_44] : memref<1x4x16x16xf32, #tpu.memory_space<vmem>>, vector<1x1x1x16xf32>
    %74 = vector.shape_cast %73 : vector<1x1x1x16xf32> to vector<1x16xf32>
    %75 = vector.broadcast %74 : vector<1x16xf32> to vector<32x16xf32>
    %76 = arith.mulf %21, %75 : vector<32x16xf32>
    %77 = arith.addf %72, %76 : vector<32x16xf32>
    %c0_45 = arith.constant 0 : index
    %c3_46 = arith.constant 3 : index
    %c1_47 = arith.constant 1 : index
    %c0_48 = arith.constant 0 : index
    %78 = vector.load %arg2[%c0_45, %c3_46, %c1_47, %c0_48] : memref<1x4x16x16xf32, #tpu.memory_space<vmem>>, vector<1x1x1x16xf32>
    %79 = vector.shape_cast %78 : vector<1x1x1x16xf32> to vector<1x16xf32>
    %80 = vector.broadcast %79 : vector<1x16xf32> to vector<32x16xf32>
    %81 = arith.mulf %24, %80 : vector<32x16xf32>
    %82 = arith.addf %77, %81 : vector<32x16xf32>
    %83 = vector.extract_strided_slice %82 {offsets = [0, 0], sizes = [8, 16], strides = [1, 1]} : vector<32x16xf32> to vector<8x16xf32>
    %84 = vector.extract_strided_slice %82 {offsets = [8, 0], sizes = [8, 16], strides = [1, 1]} : vector<32x16xf32> to vector<8x16xf32>
    %cst_49 = arith.constant dense<0.000000e+00> : vector<8x32xf32>
    %85 = tpu.matmul %83, %6, %cst_49 {dimension_numbers = #tpu.dot_dimension_numbers<[1], [0], [0], [1], [0, 0, 1, 1], [], []>} : vector<8x16xf32>, vector<16x32xf32>, vector<8x32xf32> -> vector<8x32xf32>
    %cst_50 = arith.constant dense<0.000000e+00> : vector<8x32xf32>
    %86 = tpu.matmul %84, %11, %cst_50 {dimension_numbers = #tpu.dot_dimension_numbers<[1], [0], [0], [1], [0, 0, 1, 1], [], []>} : vector<8x16xf32>, vector<16x32xf32>, vector<8x32xf32> -> vector<8x32xf32>
    %87 = arith.addf %85, %86 : vector<8x32xf32>
    %88 = vector.broadcast %12 : vector<8x1xf32> to vector<8x32xf32>
    %89 = arith.addf %87, %88 : vector<8x32xf32>
    %c0_51 = arith.constant 0 : index
    %c0_52 = arith.constant 0 : index
    %c2_53 = arith.constant 2 : index
    %c0_54 = arith.constant 0 : index
    %90 = vector.load %arg5[%c0_51, %c0_52, %c2_53, %c0_54] : memref<1x8x32x32xf32, #tpu.memory_space<vmem>>, vector<1x8x1x32xf32>
    %91 = vector.shape_cast %90 : vector<1x8x1x32xf32> to vector<8x32xf32>
    %92 = vector.shape_cast %89 : vector<8x32xf32> to vector<1x8x1x32xf32>
    tpu.vector_store %arg5[%c0_51, %c0_52, %c2_53, %c0_54], %92 {strides = array<i32>} : memref<1x8x32x32xf32, #tpu.memory_space<vmem>>, vector<1x8x1x32xf32>,
    %93 = vector.extract_strided_slice %82 {offsets = [16, 0], sizes = [8, 16], strides = [1, 1]} : vector<32x16xf32> to vector<8x16xf32>
    %94 = vector.extract_strided_slice %82 {offsets = [24, 0], sizes = [8, 16], strides = [1, 1]} : vector<32x16xf32> to vector<8x16xf32>
    %cst_55 = arith.constant dense<0.000000e+00> : vector<8x32xf32>
    %95 = tpu.matmul %93, %6, %cst_55 {dimension_numbers = #tpu.dot_dimension_numbers<[1], [0], [0], [1], [0, 0, 1, 1], [], []>} : vector<8x16xf32>, vector<16x32xf32>, vector<8x32xf32> -> vector<8x32xf32>
    %cst_56 = arith.constant dense<0.000000e+00> : vector<8x32xf32>
    %96 = tpu.matmul %94, %11, %cst_56 {dimension_numbers = #tpu.dot_dimension_numbers<[1], [0], [0], [1], [0, 0, 1, 1], [], []>} : vector<8x16xf32>, vector<16x32xf32>, vector<8x32xf32> -> vector<8x32xf32>
    %97 = arith.addf %95, %96 : vector<8x32xf32>
    %98 = vector.broadcast %12 : vector<8x1xf32> to vector<8x32xf32>
    %99 = arith.addf %97, %98 : vector<8x32xf32>
    %c0_57 = arith.constant 0 : index
    %c0_58 = arith.constant 0 : index
    %c3_59 = arith.constant 3 : index
    %c0_60 = arith.constant 0 : index
    %100 = vector.load %arg5[%c0_57, %c0_58, %c3_59, %c0_60] : memref<1x8x32x32xf32, #tpu.memory_space<vmem>>, vector<1x8x1x32xf32>
    %101 = vector.shape_cast %100 : vector<1x8x1x32xf32> to vector<8x32xf32>
    %102 = vector.shape_cast %99 : vector<8x32xf32> to vector<1x8x1x32xf32>
    tpu.vector_store %arg5[%c0_57, %c0_58, %c3_59, %c0_60], %102 {strides = array<i32>} : memref<1x8x32x32xf32, #tpu.memory_space<vmem>>, vector<1x8x1x32xf32>,
    %c0_61 = arith.constant 0 : index
    %c0_62 = arith.constant 0 : index
    %c2_63 = arith.constant 2 : index
    %c0_64 = arith.constant 0 : index
    %103 = vector.load %arg2[%c0_61, %c0_62, %c2_63, %c0_64] : memref<1x4x16x16xf32, #tpu.memory_space<vmem>>, vector<1x1x1x16xf32>
    %104 = vector.shape_cast %103 : vector<1x1x1x16xf32> to vector<1x16xf32>
    %105 = vector.broadcast %104 : vector<1x16xf32> to vector<32x16xf32>
    %106 = arith.mulf %15, %105 : vector<32x16xf32>
    %c0_65 = arith.constant 0 : index
    %c1_66 = arith.constant 1 : index
    %c2_67 = arith.constant 2 : index
    %c0_68 = arith.constant 0 : index
    %107 = vector.load %arg2[%c0_65, %c1_66, %c2_67, %c0_68] : memref<1x4x16x16xf32, #tpu.memory_space<vmem>>, vector<1x1x1x16xf32>
    %108 = vector.shape_cast %107 : vector<1x1x1x16xf32> to vector<1x16xf32>
    %109 = vector.broadcast %108 : vector<1x16xf32> to vector<32x16xf32>
    %110 = arith.mulf %18, %109 : vector<32x16xf32>
    %111 = arith.addf %106, %110 : vector<32x16xf32>
    %c0_69 = arith.constant 0 : index
    %c2_70 = arith.constant 2 : index
    %c2_71 = arith.constant 2 : index
    %c0_72 = arith.constant 0 : index
    %112 = vector.load %arg2[%c0_69, %c2_70, %c2_71, %c0_72] : memref<1x4x16x16xf32, #tpu.memory_space<vmem>>, vector<1x1x1x16xf32>
    %113 = vector.shape_cast %112 : vector<1x1x1x16xf32> to vector<1x16xf32>
    %114 = vector.broadcast %113 : vector<1x16xf32> to vector<32x16xf32>
    %115 = arith.mulf %21, %114 : vector<32x16xf32>
    %116 = arith.addf %111, %115 : vector<32x16xf32>
    %c0_73 = arith.constant 0 : index
    %c3_74 = arith.constant 3 : index
    %c2_75 = arith.constant 2 : index
    %c0_76 = arith.constant 0 : index
    %117 = vector.load %arg2[%c0_73, %c3_74, %c2_75, %c0_76] : memref<1x4x16x16xf32, #tpu.memory_space<vmem>>, vector<1x1x1x16xf32>
    %118 = vector.shape_cast %117 : vector<1x1x1x16xf32> to vector<1x16xf32>
    %119 = vector.broadcast %118 : vector<1x16xf32> to vector<32x16xf32>
    %120 = arith.mulf %24, %119 : vector<32x16xf32>
    %121 = arith.addf %116, %120 : vector<32x16xf32>
    %122 = vector.extract_strided_slice %121 {offsets = [0, 0], sizes = [8, 16], strides = [1, 1]} : vector<32x16xf32> to vector<8x16xf32>
    %123 = vector.extract_strided_slice %121 {offsets = [8, 0], sizes = [8, 16], strides = [1, 1]} : vector<32x16xf32> to vector<8x16xf32>
    %cst_77 = arith.constant dense<0.000000e+00> : vector<8x32xf32>
    %124 = tpu.matmul %122, %6, %cst_77 {dimension_numbers = #tpu.dot_dimension_numbers<[1], [0], [0], [1], [0, 0, 1, 1], [], []>} : vector<8x16xf32>, vector<16x32xf32>, vector<8x32xf32> -> vector<8x32xf32>
    %cst_78 = arith.constant dense<0.000000e+00> : vector<8x32xf32>
    %125 = tpu.matmul %123, %11, %cst_78 {dimension_numbers = #tpu.dot_dimension_numbers<[1], [0], [0], [1], [0, 0, 1, 1], [], []>} : vector<8x16xf32>, vector<16x32xf32>, vector<8x32xf32> -> vector<8x32xf32>
    %126 = arith.addf %124, %125 : vector<8x32xf32>
    %127 = vector.broadcast %12 : vector<8x1xf32> to vector<8x32xf32>
    %128 = arith.addf %126, %127 : vector<8x32xf32>
    %c0_79 = arith.constant 0 : index
    %c0_80 = arith.constant 0 : index
    %c4 = arith.constant 4 : index
    %c0_81 = arith.constant 0 : index
    %129 = vector.load %arg5[%c0_79, %c0_80, %c4, %c0_81] : memref<1x8x32x32xf32, #tpu.memory_space<vmem>>, vector<1x8x1x32xf32>
    %130 = vector.shape_cast %129 : vector<1x8x1x32xf32> to vector<8x32xf32>
    %131 = vector.shape_cast %128 : vector<8x32xf32> to vector<1x8x1x32xf32>
    tpu.vector_store %arg5[%c0_79, %c0_80, %c4, %c0_81], %131 {strides = array<i32>} : memref<1x8x32x32xf32, #tpu.memory_space<vmem>>, vector<1x8x1x32xf32>,
    %132 = vector.extract_strided_slice %121 {offsets = [16, 0], sizes = [8, 16], strides = [1, 1]} : vector<32x16xf32> to vector<8x16xf32>
    %133 = vector.extract_strided_slice %121 {offsets = [24, 0], sizes = [8, 16], strides = [1, 1]} : vector<32x16xf32> to vector<8x16xf32>
    %cst_82 = arith.constant dense<0.000000e+00> : vector<8x32xf32>
    %134 = tpu.matmul %132, %6, %cst_82 {dimension_numbers = #tpu.dot_dimension_numbers<[1], [0], [0], [1], [0, 0, 1, 1], [], []>} : vector<8x16xf32>, vector<16x32xf32>, vector<8x32xf32> -> vector<8x32xf32>
    %cst_83 = arith.constant dense<0.000000e+00> : vector<8x32xf32>
    %135 = tpu.matmul %133, %11, %cst_83 {dimension_numbers = #tpu.dot_dimension_numbers<[1], [0], [0], [1], [0, 0, 1, 1], [], []>} : vector<8x16xf32>, vector<16x32xf32>, vector<8x32xf32> -> vector<8x32xf32>
    %136 = arith.addf %134, %135 : vector<8x32xf32>
    %137 = vector.broadcast %12 : vector<8x1xf32> to vector<8x32xf32>
    %138 = arith.addf %136, %137 : vector<8x32xf32>
    %c0_84 = arith.constant 0 : index
    %c0_85 = arith.constant 0 : index
    %c5 = arith.constant 5 : index
    %c0_86 = arith.constant 0 : index
    %139 = vector.load %arg5[%c0_84, %c0_85, %c5, %c0_86] : memref<1x8x32x32xf32, #tpu.memory_space<vmem>>, vector<1x8x1x32xf32>
    %140 = vector.shape_cast %139 : vector<1x8x1x32xf32> to vector<8x32xf32>
    %141 = vector.shape_cast %138 : vector<8x32xf32> to vector<1x8x1x32xf32>
    tpu.vector_store %arg5[%c0_84, %c0_85, %c5, %c0_86], %141 {strides = array<i32>} : memref<1x8x32x32xf32, #tpu.memory_space<vmem>>, vector<1x8x1x32xf32>,
    %c0_87 = arith.constant 0 : index
    %c0_88 = arith.constant 0 : index
    %c3_89 = arith.constant 3 : index
    %c0_90 = arith.constant 0 : index
    %142 = vector.load %arg2[%c0_87, %c0_88, %c3_89, %c0_90] : memref<1x4x16x16xf32, #tpu.memory_space<vmem>>, vector<1x1x1x16xf32>
    %143 = vector.shape_cast %142 : vector<1x1x1x16xf32> to vector<1x16xf32>
    %144 = vector.broadcast %143 : vector<1x16xf32> to vector<32x16xf32>
    %145 = arith.mulf %15, %144 : vector<32x16xf32>
    %c0_91 = arith.constant 0 : index
    %c1_92 = arith.constant 1 : index
    %c3_93 = arith.constant 3 : index
    %c0_94 = arith.constant 0 : index
    %146 = vector.load %arg2[%c0_91, %c1_92, %c3_93, %c0_94] : memref<1x4x16x16xf32, #tpu.memory_space<vmem>>, vector<1x1x1x16xf32>
    %147 = vector.shape_cast %146 : vector<1x1x1x16xf32> to vector<1x16xf32>
    %148 = vector.broadcast %147 : vector<1x16xf32> to vector<32x16xf32>
    %149 = arith.mulf %18, %148 : vector<32x16xf32>
    %150 = arith.addf %145, %149 : vector<32x16xf32>
    %c0_95 = arith.constant 0 : index
    %c2_96 = arith.constant 2 : index
    %c3_97 = arith.constant 3 : index
    %c0_98 = arith.constant 0 : index
    %151 = vector.load %arg2[%c0_95, %c2_96, %c3_97, %c0_98] : memref<1x4x16x16xf32, #tpu.memory_space<vmem>>, vector<1x1x1x16xf32>
    %152 = vector.shape_cast %151 : vector<1x1x1x16xf32> to vector<1x16xf32>
    %153 = vector.broadcast %152 : vector<1x16xf32> to vector<32x16xf32>
    %154 = arith.mulf %21, %153 : vector<32x16xf32>
    %155 = arith.addf %150, %154 : vector<32x16xf32>
    %c0_99 = arith.constant 0 : index
    %c3_100 = arith.constant 3 : index
    %c3_101 = arith.constant 3 : index
    %c0_102 = arith.constant 0 : index
    %156 = vector.load %arg2[%c0_99, %c3_100, %c3_101, %c0_102] : memref<1x4x16x16xf32, #tpu.memory_space<vmem>>, vector<1x1x1x16xf32>
    %157 = vector.shape_cast %156 : vector<1x1x1x16xf32> to vector<1x16xf32>
    %158 = vector.broadcast %157 : vector<1x16xf32> to vector<32x16xf32>
    %159 = arith.mulf %24, %158 : vector<32x16xf32>
    %160 = arith.addf %155, %159 : vector<32x16xf32>
    %161 = vector.extract_strided_slice %160 {offsets = [0, 0], sizes = [8, 16], strides = [1, 1]} : vector<32x16xf32> to vector<8x16xf32>
    %162 = vector.extract_strided_slice %160 {offsets = [8, 0], sizes = [8, 16], strides = [1, 1]} : vector<32x16xf32> to vector<8x16xf32>
    %cst_103 = arith.constant dense<0.000000e+00> : vector<8x32xf32>
    %163 = tpu.matmul %161, %6, %cst_103 {dimension_numbers = #tpu.dot_dimension_numbers<[1], [0], [0], [1], [0, 0, 1, 1], [], []>} : vector<8x16xf32>, vector<16x32xf32>, vector<8x32xf32> -> vector<8x32xf32>
    %cst_104 = arith.constant dense<0.000000e+00> : vector<8x32xf32>
    %164 = tpu.matmul %162, %11, %cst_104 {dimension_numbers = #tpu.dot_dimension_numbers<[1], [0], [0], [1], [0, 0, 1, 1], [], []>} : vector<8x16xf32>, vector<16x32xf32>, vector<8x32xf32> -> vector<8x32xf32>
    %165 = arith.addf %163, %164 : vector<8x32xf32>
    %166 = vector.broadcast %12 : vector<8x1xf32> to vector<8x32xf32>
    %167 = arith.addf %165, %166 : vector<8x32xf32>
    %c0_105 = arith.constant 0 : index
    %c0_106 = arith.constant 0 : index
    %c6 = arith.constant 6 : index
    %c0_107 = arith.constant 0 : index
    %168 = vector.load %arg5[%c0_105, %c0_106, %c6, %c0_107] : memref<1x8x32x32xf32, #tpu.memory_space<vmem>>, vector<1x8x1x32xf32>
    %169 = vector.shape_cast %168 : vector<1x8x1x32xf32> to vector<8x32xf32>
    %170 = vector.shape_cast %167 : vector<8x32xf32> to vector<1x8x1x32xf32>
    tpu.vector_store %arg5[%c0_105, %c0_106, %c6, %c0_107], %170 {strides = array<i32>} : memref<1x8x32x32xf32, #tpu.memory_space<vmem>>, vector<1x8x1x32xf32>,
    %171 = vector.extract_strided_slice %160 {offsets = [16, 0], sizes = [8, 16], strides = [1, 1]} : vector<32x16xf32> to vector<8x16xf32>
    %172 = vector.extract_strided_slice %160 {offsets = [24, 0], sizes = [8, 16], strides = [1, 1]} : vector<32x16xf32> to vector<8x16xf32>
    %cst_108 = arith.constant dense<0.000000e+00> : vector<8x32xf32>
    %173 = tpu.matmul %171, %6, %cst_108 {dimension_numbers = #tpu.dot_dimension_numbers<[1], [0], [0], [1], [0, 0, 1, 1], [], []>} : vector<8x16xf32>, vector<16x32xf32>, vector<8x32xf32> -> vector<8x32xf32>
    %cst_109 = arith.constant dense<0.000000e+00> : vector<8x32xf32>
    %174 = tpu.matmul %172, %11, %cst_109 {dimension_numbers = #tpu.dot_dimension_numbers<[1], [0], [0], [1], [0, 0, 1, 1], [], []>} : vector<8x16xf32>, vector<16x32xf32>, vector<8x32xf32> -> vector<8x32xf32>
    %175 = arith.addf %173, %174 : vector<8x32xf32>
    %176 = vector.broadcast %12 : vector<8x1xf32> to vector<8x32xf32>
    %177 = arith.addf %175, %176 : vector<8x32xf32>
    %c0_110 = arith.constant 0 : index
    %c0_111 = arith.constant 0 : index
    %c7 = arith.constant 7 : index
    %c0_112 = arith.constant 0 : index
    %178 = vector.load %arg5[%c0_110, %c0_111, %c7, %c0_112] : memref<1x8x32x32xf32, #tpu.memory_space<vmem>>, vector<1x8x1x32xf32>
    %179 = vector.shape_cast %178 : vector<1x8x1x32xf32> to vector<8x32xf32>
    %180 = vector.shape_cast %177 : vector<8x32xf32> to vector<1x8x1x32xf32>
    tpu.vector_store %arg5[%c0_110, %c0_111, %c7, %c0_112], %180 {strides = array<i32>} : memref<1x8x32x32xf32, #tpu.memory_space<vmem>>, vector<1x8x1x32xf32>,
    %c0_113 = arith.constant 0 : index
    %c0_114 = arith.constant 0 : index
    %c4_115 = arith.constant 4 : index
    %c0_116 = arith.constant 0 : index
    %181 = vector.load %arg2[%c0_113, %c0_114, %c4_115, %c0_116] : memref<1x4x16x16xf32, #tpu.memory_space<vmem>>, vector<1x1x1x16xf32>
    %182 = vector.shape_cast %181 : vector<1x1x1x16xf32> to vector<1x16xf32>
    %183 = vector.broadcast %182 : vector<1x16xf32> to vector<32x16xf32>
    %184 = arith.mulf %15, %183 : vector<32x16xf32>
    %c0_117 = arith.constant 0 : index
    %c1_118 = arith.constant 1 : index
    %c4_119 = arith.constant 4 : index
    %c0_120 = arith.constant 0 : index
    %185 = vector.load %arg2[%c0_117, %c1_118, %c4_119, %c0_120] : memref<1x4x16x16xf32, #tpu.memory_space<vmem>>, vector<1x1x1x16xf32>
    %186 = vector.shape_cast %185 : vector<1x1x1x16xf32> to vector<1x16xf32>
    %187 = vector.broadcast %186 : vector<1x16xf32> to vector<32x16xf32>
    %188 = arith.mulf %18, %187 : vector<32x16xf32>
    %189 = arith.addf %184, %188 : vector<32x16xf32>
    %c0_121 = arith.constant 0 : index
    %c2_122 = arith.constant 2 : index
    %c4_123 = arith.constant 4 : index
    %c0_124 = arith.constant 0 : index
    %190 = vector.load %arg2[%c0_121, %c2_122, %c4_123, %c0_124] : memref<1x4x16x16xf32, #tpu.memory_space<vmem>>, vector<1x1x1x16xf32>
    %191 = vector.shape_cast %190 : vector<1x1x1x16xf32> to vector<1x16xf32>
    %192 = vector.broadcast %191 : vector<1x16xf32> to vector<32x16xf32>
    %193 = arith.mulf %21, %192 : vector<32x16xf32>
    %194 = arith.addf %189, %193 : vector<32x16xf32>
    %c0_125 = arith.constant 0 : index
    %c3_126 = arith.constant 3 : index
    %c4_127 = arith.constant 4 : index
    %c0_128 = arith.constant 0 : index
    %195 = vector.load %arg2[%c0_125, %c3_126, %c4_127, %c0_128] : memref<1x4x16x16xf32, #tpu.memory_space<vmem>>, vector<1x1x1x16xf32>
    %196 = vector.shape_cast %195 : vector<1x1x1x16xf32> to vector<1x16xf32>
    %197 = vector.broadcast %196 : vector<1x16xf32> to vector<32x16xf32>
    %198 = arith.mulf %24, %197 : vector<32x16xf32>
    %199 = arith.addf %194, %198 : vector<32x16xf32>
    %200 = vector.extract_strided_slice %199 {offsets = [0, 0], sizes = [8, 16], strides = [1, 1]} : vector<32x16xf32> to vector<8x16xf32>
    %201 = vector.extract_strided_slice %199 {offsets = [8, 0], sizes = [8, 16], strides = [1, 1]} : vector<32x16xf32> to vector<8x16xf32>
    %cst_129 = arith.constant dense<0.000000e+00> : vector<8x32xf32>
    %202 = tpu.matmul %200, %6, %cst_129 {dimension_numbers = #tpu.dot_dimension_numbers<[1], [0], [0], [1], [0, 0, 1, 1], [], []>} : vector<8x16xf32>, vector<16x32xf32>, vector<8x32xf32> -> vector<8x32xf32>
    %cst_130 = arith.constant dense<0.000000e+00> : vector<8x32xf32>
    %203 = tpu.matmul %201, %11, %cst_130 {dimension_numbers = #tpu.dot_dimension_numbers<[1], [0], [0], [1], [0, 0, 1, 1], [], []>} : vector<8x16xf32>, vector<16x32xf32>, vector<8x32xf32> -> vector<8x32xf32>
    %204 = arith.addf %202, %203 : vector<8x32xf32>
    %205 = vector.broadcast %12 : vector<8x1xf32> to vector<8x32xf32>
    %206 = arith.addf %204, %205 : vector<8x32xf32>
    %c0_131 = arith.constant 0 : index
    %c0_132 = arith.constant 0 : index
    %c8 = arith.constant 8 : index
    %c0_133 = arith.constant 0 : index
    %207 = vector.load %arg5[%c0_131, %c0_132, %c8, %c0_133] : memref<1x8x32x32xf32, #tpu.memory_space<vmem>>, vector<1x8x1x32xf32>
    %208 = vector.shape_cast %207 : vector<1x8x1x32xf32> to vector<8x32xf32>
    %209 = vector.shape_cast %206 : vector<8x32xf32> to vector<1x8x1x32xf32>
    tpu.vector_store %arg5[%c0_131, %c0_132, %c8, %c0_133], %209 {strides = array<i32>} : memref<1x8x32x32xf32, #tpu.memory_space<vmem>>, vector<1x8x1x32xf32>,
    %210 = vector.extract_strided_slice %199 {offsets = [16, 0], sizes = [8, 16], strides = [1, 1]} : vector<32x16xf32> to vector<8x16xf32>
    %211 = vector.extract_strided_slice %199 {offsets = [24, 0], sizes = [8, 16], strides = [1, 1]} : vector<32x16xf32> to vector<8x16xf32>
    %cst_134 = arith.constant dense<0.000000e+00> : vector<8x32xf32>
    %212 = tpu.matmul %210, %6, %cst_134 {dimension_numbers = #tpu.dot_dimension_numbers<[1], [0], [0], [1], [0, 0, 1, 1], [], []>} : vector<8x16xf32>, vector<16x32xf32>, vector<8x32xf32> -> vector<8x32xf32>
    %cst_135 = arith.constant dense<0.000000e+00> : vector<8x32xf32>
    %213 = tpu.matmul %211, %11, %cst_135 {dimension_numbers = #tpu.dot_dimension_numbers<[1], [0], [0], [1], [0, 0, 1, 1], [], []>} : vector<8x16xf32>, vector<16x32xf32>, vector<8x32xf32> -> vector<8x32xf32>
    %214 = arith.addf %212, %213 : vector<8x32xf32>
    %215 = vector.broadcast %12 : vector<8x1xf32> to vector<8x32xf32>
    %216 = arith.addf %214, %215 : vector<8x32xf32>
    %c0_136 = arith.constant 0 : index
    %c0_137 = arith.constant 0 : index
    %c9 = arith.constant 9 : index
    %c0_138 = arith.constant 0 : index
    %217 = vector.load %arg5[%c0_136, %c0_137, %c9, %c0_138] : memref<1x8x32x32xf32, #tpu.memory_space<vmem>>, vector<1x8x1x32xf32>
    %218 = vector.shape_cast %217 : vector<1x8x1x32xf32> to vector<8x32xf32>
    %219 = vector.shape_cast %216 : vector<8x32xf32> to vector<1x8x1x32xf32>
    tpu.vector_store %arg5[%c0_136, %c0_137, %c9, %c0_138], %219 {strides = array<i32>} : memref<1x8x32x32xf32, #tpu.memory_space<vmem>>, vector<1x8x1x32xf32>,
    %c0_139 = arith.constant 0 : index
    %c0_140 = arith.constant 0 : index
    %c5_141 = arith.constant 5 : index
    %c0_142 = arith.constant 0 : index
    %220 = vector.load %arg2[%c0_139, %c0_140, %c5_141, %c0_142] : memref<1x4x16x16xf32, #tpu.memory_space<vmem>>, vector<1x1x1x16xf32>
    %221 = vector.shape_cast %220 : vector<1x1x1x16xf32> to vector<1x16xf32>
    %222 = vector.broadcast %221 : vector<1x16xf32> to vector<32x16xf32>
    %223 = arith.mulf %15, %222 : vector<32x16xf32>
    %c0_143 = arith.constant 0 : index
    %c1_144 = arith.constant 1 : index
    %c5_145 = arith.constant 5 : index
    %c0_146 = arith.constant 0 : index
    %224 = vector.load %arg2[%c0_143, %c1_144, %c5_145, %c0_146] : memref<1x4x16x16xf32, #tpu.memory_space<vmem>>, vector<1x1x1x16xf32>
    %225 = vector.shape_cast %224 : vector<1x1x1x16xf32> to vector<1x16xf32>
    %226 = vector.broadcast %225 : vector<1x16xf32> to vector<32x16xf32>
    %227 = arith.mulf %18, %226 : vector<32x16xf32>
    %228 = arith.addf %223, %227 : vector<32x16xf32>
    %c0_147 = arith.constant 0 : index
    %c2_148 = arith.constant 2 : index
    %c5_149 = arith.constant 5 : index
    %c0_150 = arith.constant 0 : index
    %229 = vector.load %arg2[%c0_147, %c2_148, %c5_149, %c0_150] : memref<1x4x16x16xf32, #tpu.memory_space<vmem>>, vector<1x1x1x16xf32>
    %230 = vector.shape_cast %229 : vector<1x1x1x16xf32> to vector<1x16xf32>
    %231 = vector.broadcast %230 : vector<1x16xf32> to vector<32x16xf32>
    %232 = arith.mulf %21, %231 : vector<32x16xf32>
    %233 = arith.addf %228, %232 : vector<32x16xf32>
    %c0_151 = arith.constant 0 : index
    %c3_152 = arith.constant 3 : index
    %c5_153 = arith.constant 5 : index
    %c0_154 = arith.constant 0 : index
    %234 = vector.load %arg2[%c0_151, %c3_152, %c5_153, %c0_154] : memref<1x4x16x16xf32, #tpu.memory_space<vmem>>, vector<1x1x1x16xf32>
    %235 = vector.shape_cast %234 : vector<1x1x1x16xf32> to vector<1x16xf32>
    %236 = vector.broadcast %235 : vector<1x16xf32> to vector<32x16xf32>
    %237 = arith.mulf %24, %236 : vector<32x16xf32>
    %238 = arith.addf %233, %237 : vector<32x16xf32>
    %239 = vector.extract_strided_slice %238 {offsets = [0, 0], sizes = [8, 16], strides = [1, 1]} : vector<32x16xf32> to vector<8x16xf32>
    %240 = vector.extract_strided_slice %238 {offsets = [8, 0], sizes = [8, 16], strides = [1, 1]} : vector<32x16xf32> to vector<8x16xf32>
    %cst_155 = arith.constant dense<0.000000e+00> : vector<8x32xf32>
    %241 = tpu.matmul %239, %6, %cst_155 {dimension_numbers = #tpu.dot_dimension_numbers<[1], [0], [0], [1], [0, 0, 1, 1], [], []>} : vector<8x16xf32>, vector<16x32xf32>, vector<8x32xf32> -> vector<8x32xf32>
    %cst_156 = arith.constant dense<0.000000e+00> : vector<8x32xf32>
    %242 = tpu.matmul %240, %11, %cst_156 {dimension_numbers = #tpu.dot_dimension_numbers<[1], [0], [0], [1], [0, 0, 1, 1], [], []>} : vector<8x16xf32>, vector<16x32xf32>, vector<8x32xf32> -> vector<8x32xf32>
    %243 = arith.addf %241, %242 : vector<8x32xf32>
    %244 = vector.broadcast %12 : vector<8x1xf32> to vector<8x32xf32>
    %245 = arith.addf %243, %244 : vector<8x32xf32>
    %c0_157 = arith.constant 0 : index
    %c0_158 = arith.constant 0 : index
    %c10 = arith.constant 10 : index
    %c0_159 = arith.constant 0 : index
    %246 = vector.load %arg5[%c0_157, %c0_158, %c10, %c0_159] : memref<1x8x32x32xf32, #tpu.memory_space<vmem>>, vector<1x8x1x32xf32>
    %247 = vector.shape_cast %246 : vector<1x8x1x32xf32> to vector<8x32xf32>
    %248 = vector.shape_cast %245 : vector<8x32xf32> to vector<1x8x1x32xf32>
    tpu.vector_store %arg5[%c0_157, %c0_158, %c10, %c0_159], %248 {strides = array<i32>} : memref<1x8x32x32xf32, #tpu.memory_space<vmem>>, vector<1x8x1x32xf32>,
    %249 = vector.extract_strided_slice %238 {offsets = [16, 0], sizes = [8, 16], strides = [1, 1]} : vector<32x16xf32> to vector<8x16xf32>
    %250 = vector.extract_strided_slice %238 {offsets = [24, 0], sizes = [8, 16], strides = [1, 1]} : vector<32x16xf32> to vector<8x16xf32>
    %cst_160 = arith.constant dense<0.000000e+00> : vector<8x32xf32>
    %251 = tpu.matmul %249, %6, %cst_160 {dimension_numbers = #tpu.dot_dimension_numbers<[1], [0], [0], [1], [0, 0, 1, 1], [], []>} : vector<8x16xf32>, vector<16x32xf32>, vector<8x32xf32> -> vector<8x32xf32>
    %cst_161 = arith.constant dense<0.000000e+00> : vector<8x32xf32>
    %252 = tpu.matmul %250, %11, %cst_161 {dimension_numbers = #tpu.dot_dimension_numbers<[1], [0], [0], [1], [0, 0, 1, 1], [], []>} : vector<8x16xf32>, vector<16x32xf32>, vector<8x32xf32> -> vector<8x32xf32>
    %253 = arith.addf %251, %252 : vector<8x32xf32>
    %254 = vector.broadcast %12 : vector<8x1xf32> to vector<8x32xf32>
    %255 = arith.addf %253, %254 : vector<8x32xf32>
    %c0_162 = arith.constant 0 : index
    %c0_163 = arith.constant 0 : index
    %c11 = arith.constant 11 : index
    %c0_164 = arith.constant 0 : index
    %256 = vector.load %arg5[%c0_162, %c0_163, %c11, %c0_164] : memref<1x8x32x32xf32, #tpu.memory_space<vmem>>, vector<1x8x1x32xf32>
    %257 = vector.shape_cast %256 : vector<1x8x1x32xf32> to vector<8x32xf32>
    %258 = vector.shape_cast %255 : vector<8x32xf32> to vector<1x8x1x32xf32>
    tpu.vector_store %arg5[%c0_162, %c0_163, %c11, %c0_164], %258 {strides = array<i32>} : memref<1x8x32x32xf32, #tpu.memory_space<vmem>>, vector<1x8x1x32xf32>,
    %c0_165 = arith.constant 0 : index
    %c0_166 = arith.constant 0 : index
    %c6_167 = arith.constant 6 : index
    %c0_168 = arith.constant 0 : index
    %259 = vector.load %arg2[%c0_165, %c0_166, %c6_167, %c0_168] : memref<1x4x16x16xf32, #tpu.memory_space<vmem>>, vector<1x1x1x16xf32>
    %260 = vector.shape_cast %259 : vector<1x1x1x16xf32> to vector<1x16xf32>
    %261 = vector.broadcast %260 : vector<1x16xf32> to vector<32x16xf32>
    %262 = arith.mulf %15, %261 : vector<32x16xf32>
    %c0_169 = arith.constant 0 : index
    %c1_170 = arith.constant 1 : index
    %c6_171 = arith.constant 6 : index
    %c0_172 = arith.constant 0 : index
    %263 = vector.load %arg2[%c0_169, %c1_170, %c6_171, %c0_172] : memref<1x4x16x16xf32, #tpu.memory_space<vmem>>, vector<1x1x1x16xf32>
    %264 = vector.shape_cast %263 : vector<1x1x1x16xf32> to vector<1x16xf32>
    %265 = vector.broadcast %264 : vector<1x16xf32> to vector<32x16xf32>
    %266 = arith.mulf %18, %265 : vector<32x16xf32>
    %267 = arith.addf %262, %266 : vector<32x16xf32>
    %c0_173 = arith.constant 0 : index
    %c2_174 = arith.constant 2 : index
    %c6_175 = arith.constant 6 : index
    %c0_176 = arith.constant 0 : index
    %268 = vector.load %arg2[%c0_173, %c2_174, %c6_175, %c0_176] : memref<1x4x16x16xf32, #tpu.memory_space<vmem>>, vector<1x1x1x16xf32>
    %269 = vector.shape_cast %268 : vector<1x1x1x16xf32> to vector<1x16xf32>
    %270 = vector.broadcast %269 : vector<1x16xf32> to vector<32x16xf32>
    %271 = arith.mulf %21, %270 : vector<32x16xf32>
    %272 = arith.addf %267, %271 : vector<32x16xf32>
    %c0_177 = arith.constant 0 : index
    %c3_178 = arith.constant 3 : index
    %c6_179 = arith.constant 6 : index
    %c0_180 = arith.constant 0 : index
    %273 = vector.load %arg2[%c0_177, %c3_178, %c6_179, %c0_180] : memref<1x4x16x16xf32, #tpu.memory_space<vmem>>, vector<1x1x1x16xf32>
    %274 = vector.shape_cast %273 : vector<1x1x1x16xf32> to vector<1x16xf32>
    %275 = vector.broadcast %274 : vector<1x16xf32> to vector<32x16xf32>
    %276 = arith.mulf %24, %275 : vector<32x16xf32>
    %277 = arith.addf %272, %276 : vector<32x16xf32>
    %278 = vector.extract_strided_slice %277 {offsets = [0, 0], sizes = [8, 16], strides = [1, 1]} : vector<32x16xf32> to vector<8x16xf32>
    %279 = vector.extract_strided_slice %277 {offsets = [8, 0], sizes = [8, 16], strides = [1, 1]} : vector<32x16xf32> to vector<8x16xf32>
    %cst_181 = arith.constant dense<0.000000e+00> : vector<8x32xf32>
    %280 = tpu.matmul %278, %6, %cst_181 {dimension_numbers = #tpu.dot_dimension_numbers<[1], [0], [0], [1], [0, 0, 1, 1], [], []>} : vector<8x16xf32>, vector<16x32xf32>, vector<8x32xf32> -> vector<8x32xf32>
    %cst_182 = arith.constant dense<0.000000e+00> : vector<8x32xf32>
    %281 = tpu.matmul %279, %11, %cst_182 {dimension_numbers = #tpu.dot_dimension_numbers<[1], [0], [0], [1], [0, 0, 1, 1], [], []>} : vector<8x16xf32>, vector<16x32xf32>, vector<8x32xf32> -> vector<8x32xf32>
    %282 = arith.addf %280, %281 : vector<8x32xf32>
    %283 = vector.broadcast %12 : vector<8x1xf32> to vector<8x32xf32>
    %284 = arith.addf %282, %283 : vector<8x32xf32>
    %c0_183 = arith.constant 0 : index
    %c0_184 = arith.constant 0 : index
    %c12 = arith.constant 12 : index
    %c0_185 = arith.constant 0 : index
    %285 = vector.load %arg5[%c0_183, %c0_184, %c12, %c0_185] : memref<1x8x32x32xf32, #tpu.memory_space<vmem>>, vector<1x8x1x32xf32>
    %286 = vector.shape_cast %285 : vector<1x8x1x32xf32> to vector<8x32xf32>
    %287 = vector.shape_cast %284 : vector<8x32xf32> to vector<1x8x1x32xf32>
    tpu.vector_store %arg5[%c0_183, %c0_184, %c12, %c0_185], %287 {strides = array<i32>} : memref<1x8x32x32xf32, #tpu.memory_space<vmem>>, vector<1x8x1x32xf32>,
    %288 = vector.extract_strided_slice %277 {offsets = [16, 0], sizes = [8, 16], strides = [1, 1]} : vector<32x16xf32> to vector<8x16xf32>
    %289 = vector.extract_strided_slice %277 {offsets = [24, 0], sizes = [8, 16], strides = [1, 1]} : vector<32x16xf32> to vector<8x16xf32>
    %cst_186 = arith.constant dense<0.000000e+00> : vector<8x32xf32>
    %290 = tpu.matmul %288, %6, %cst_186 {dimension_numbers = #tpu.dot_dimension_numbers<[1], [0], [0], [1], [0, 0, 1, 1], [], []>} : vector<8x16xf32>, vector<16x32xf32>, vector<8x32xf32> -> vector<8x32xf32>
    %cst_187 = arith.constant dense<0.000000e+00> : vector<8x32xf32>
    %291 = tpu.matmul %289, %11, %cst_187 {dimension_numbers = #tpu.dot_dimension_numbers<[1], [0], [0], [1], [0, 0, 1, 1], [], []>} : vector<8x16xf32>, vector<16x32xf32>, vector<8x32xf32> -> vector<8x32xf32>
    %292 = arith.addf %290, %291 : vector<8x32xf32>
    %293 = vector.broadcast %12 : vector<8x1xf32> to vector<8x32xf32>
    %294 = arith.addf %292, %293 : vector<8x32xf32>
    %c0_188 = arith.constant 0 : index
    %c0_189 = arith.constant 0 : index
    %c13 = arith.constant 13 : index
    %c0_190 = arith.constant 0 : index
    %295 = vector.load %arg5[%c0_188, %c0_189, %c13, %c0_190] : memref<1x8x32x32xf32, #tpu.memory_space<vmem>>, vector<1x8x1x32xf32>
    %296 = vector.shape_cast %295 : vector<1x8x1x32xf32> to vector<8x32xf32>
    %297 = vector.shape_cast %294 : vector<8x32xf32> to vector<1x8x1x32xf32>
    tpu.vector_store %arg5[%c0_188, %c0_189, %c13, %c0_190], %297 {strides = array<i32>} : memref<1x8x32x32xf32, #tpu.memory_space<vmem>>, vector<1x8x1x32xf32>,
    %c0_191 = arith.constant 0 : index
    %c0_192 = arith.constant 0 : index
    %c7_193 = arith.constant 7 : index
    %c0_194 = arith.constant 0 : index
    %298 = vector.load %arg2[%c0_191, %c0_192, %c7_193, %c0_194] : memref<1x4x16x16xf32, #tpu.memory_space<vmem>>, vector<1x1x1x16xf32>
    %299 = vector.shape_cast %298 : vector<1x1x1x16xf32> to vector<1x16xf32>
    %300 = vector.broadcast %299 : vector<1x16xf32> to vector<32x16xf32>
    %301 = arith.mulf %15, %300 : vector<32x16xf32>
    %c0_195 = arith.constant 0 : index
    %c1_196 = arith.constant 1 : index
    %c7_197 = arith.constant 7 : index
    %c0_198 = arith.constant 0 : index
    %302 = vector.load %arg2[%c0_195, %c1_196, %c7_197, %c0_198] : memref<1x4x16x16xf32, #tpu.memory_space<vmem>>, vector<1x1x1x16xf32>
    %303 = vector.shape_cast %302 : vector<1x1x1x16xf32> to vector<1x16xf32>
    %304 = vector.broadcast %303 : vector<1x16xf32> to vector<32x16xf32>
    %305 = arith.mulf %18, %304 : vector<32x16xf32>
    %306 = arith.addf %301, %305 : vector<32x16xf32>
    %c0_199 = arith.constant 0 : index
    %c2_200 = arith.constant 2 : index
    %c7_201 = arith.constant 7 : index
    %c0_202 = arith.constant 0 : index
    %307 = vector.load %arg2[%c0_199, %c2_200, %c7_201, %c0_202] : memref<1x4x16x16xf32, #tpu.memory_space<vmem>>, vector<1x1x1x16xf32>
    %308 = vector.shape_cast %307 : vector<1x1x1x16xf32> to vector<1x16xf32>
    %309 = vector.broadcast %308 : vector<1x16xf32> to vector<32x16xf32>
    %310 = arith.mulf %21, %309 : vector<32x16xf32>
    %311 = arith.addf %306, %310 : vector<32x16xf32>
    %c0_203 = arith.constant 0 : index
    %c3_204 = arith.constant 3 : index
    %c7_205 = arith.constant 7 : index
    %c0_206 = arith.constant 0 : index
    %312 = vector.load %arg2[%c0_203, %c3_204, %c7_205, %c0_206] : memref<1x4x16x16xf32, #tpu.memory_space<vmem>>, vector<1x1x1x16xf32>
    %313 = vector.shape_cast %312 : vector<1x1x1x16xf32> to vector<1x16xf32>
    %314 = vector.broadcast %313 : vector<1x16xf32> to vector<32x16xf32>
    %315 = arith.mulf %24, %314 : vector<32x16xf32>
    %316 = arith.addf %311, %315 : vector<32x16xf32>
    %317 = vector.extract_strided_slice %316 {offsets = [0, 0], sizes = [8, 16], strides = [1, 1]} : vector<32x16xf32> to vector<8x16xf32>
    %318 = vector.extract_strided_slice %316 {offsets = [8, 0], sizes = [8, 16], strides = [1, 1]} : vector<32x16xf32> to vector<8x16xf32>
    %cst_207 = arith.constant dense<0.000000e+00> : vector<8x32xf32>
    %319 = tpu.matmul %317, %6, %cst_207 {dimension_numbers = #tpu.dot_dimension_numbers<[1], [0], [0], [1], [0, 0, 1, 1], [], []>} : vector<8x16xf32>, vector<16x32xf32>, vector<8x32xf32> -> vector<8x32xf32>
    %cst_208 = arith.constant dense<0.000000e+00> : vector<8x32xf32>
    %320 = tpu.matmul %318, %11, %cst_208 {dimension_numbers = #tpu.dot_dimension_numbers<[1], [0], [0], [1], [0, 0, 1, 1], [], []>} : vector<8x16xf32>, vector<16x32xf32>, vector<8x32xf32> -> vector<8x32xf32>
    %321 = arith.addf %319, %320 : vector<8x32xf32>
    %322 = vector.broadcast %12 : vector<8x1xf32> to vector<8x32xf32>
    %323 = arith.addf %321, %322 : vector<8x32xf32>
    %c0_209 = arith.constant 0 : index
    %c0_210 = arith.constant 0 : index
    %c14 = arith.constant 14 : index
    %c0_211 = arith.constant 0 : index
    %324 = vector.load %arg5[%c0_209, %c0_210, %c14, %c0_211] : memref<1x8x32x32xf32, #tpu.memory_space<vmem>>, vector<1x8x1x32xf32>
    %325 = vector.shape_cast %324 : vector<1x8x1x32xf32> to vector<8x32xf32>
    %326 = vector.shape_cast %323 : vector<8x32xf32> to vector<1x8x1x32xf32>
    tpu.vector_store %arg5[%c0_209, %c0_210, %c14, %c0_211], %326 {strides = array<i32>} : memref<1x8x32x32xf32, #tpu.memory_space<vmem>>, vector<1x8x1x32xf32>,
    %327 = vector.extract_strided_slice %316 {offsets = [16, 0], sizes = [8, 16], strides = [1, 1]} : vector<32x16xf32> to vector<8x16xf32>
    %328 = vector.extract_strided_slice %316 {offsets = [24, 0], sizes = [8, 16], strides = [1, 1]} : vector<32x16xf32> to vector<8x16xf32>
    %cst_212 = arith.constant dense<0.000000e+00> : vector<8x32xf32>
    %329 = tpu.matmul %327, %6, %cst_212 {dimension_numbers = #tpu.dot_dimension_numbers<[1], [0], [0], [1], [0, 0, 1, 1], [], []>} : vector<8x16xf32>, vector<16x32xf32>, vector<8x32xf32> -> vector<8x32xf32>
    %cst_213 = arith.constant dense<0.000000e+00> : vector<8x32xf32>
    %330 = tpu.matmul %328, %11, %cst_213 {dimension_numbers = #tpu.dot_dimension_numbers<[1], [0], [0], [1], [0, 0, 1, 1], [], []>} : vector<8x16xf32>, vector<16x32xf32>, vector<8x32xf32> -> vector<8x32xf32>
    %331 = arith.addf %329, %330 : vector<8x32xf32>
    %332 = vector.broadcast %12 : vector<8x1xf32> to vector<8x32xf32>
    %333 = arith.addf %331, %332 : vector<8x32xf32>
    %c0_214 = arith.constant 0 : index
    %c0_215 = arith.constant 0 : index
    %c15 = arith.constant 15 : index
    %c0_216 = arith.constant 0 : index
    %334 = vector.load %arg5[%c0_214, %c0_215, %c15, %c0_216] : memref<1x8x32x32xf32, #tpu.memory_space<vmem>>, vector<1x8x1x32xf32>
    %335 = vector.shape_cast %334 : vector<1x8x1x32xf32> to vector<8x32xf32>
    %336 = vector.shape_cast %333 : vector<8x32xf32> to vector<1x8x1x32xf32>
    tpu.vector_store %arg5[%c0_214, %c0_215, %c15, %c0_216], %336 {strides = array<i32>} : memref<1x8x32x32xf32, #tpu.memory_space<vmem>>, vector<1x8x1x32xf32>,
    %c0_217 = arith.constant 0 : index
    %c0_218 = arith.constant 0 : index
    %c8_219 = arith.constant 8 : index
    %c0_220 = arith.constant 0 : index
    %337 = vector.load %arg2[%c0_217, %c0_218, %c8_219, %c0_220] : memref<1x4x16x16xf32, #tpu.memory_space<vmem>>, vector<1x1x1x16xf32>
    %338 = vector.shape_cast %337 : vector<1x1x1x16xf32> to vector<1x16xf32>
    %339 = vector.broadcast %338 : vector<1x16xf32> to vector<32x16xf32>
    %340 = arith.mulf %15, %339 : vector<32x16xf32>
    %c0_221 = arith.constant 0 : index
    %c1_222 = arith.constant 1 : index
    %c8_223 = arith.constant 8 : index
    %c0_224 = arith.constant 0 : index
    %341 = vector.load %arg2[%c0_221, %c1_222, %c8_223, %c0_224] : memref<1x4x16x16xf32, #tpu.memory_space<vmem>>, vector<1x1x1x16xf32>
    %342 = vector.shape_cast %341 : vector<1x1x1x16xf32> to vector<1x16xf32>
    %343 = vector.broadcast %342 : vector<1x16xf32> to vector<32x16xf32>
    %344 = arith.mulf %18, %343 : vector<32x16xf32>
    %345 = arith.addf %340, %344 : vector<32x16xf32>
    %c0_225 = arith.constant 0 : index
    %c2_226 = arith.constant 2 : index
    %c8_227 = arith.constant 8 : index
    %c0_228 = arith.constant 0 : index
    %346 = vector.load %arg2[%c0_225, %c2_226, %c8_227, %c0_228] : memref<1x4x16x16xf32, #tpu.memory_space<vmem>>, vector<1x1x1x16xf32>
    %347 = vector.shape_cast %346 : vector<1x1x1x16xf32> to vector<1x16xf32>
    %348 = vector.broadcast %347 : vector<1x16xf32> to vector<32x16xf32>
    %349 = arith.mulf %21, %348 : vector<32x16xf32>
    %350 = arith.addf %345, %349 : vector<32x16xf32>
    %c0_229 = arith.constant 0 : index
    %c3_230 = arith.constant 3 : index
    %c8_231 = arith.constant 8 : index
    %c0_232 = arith.constant 0 : index
    %351 = vector.load %arg2[%c0_229, %c3_230, %c8_231, %c0_232] : memref<1x4x16x16xf32, #tpu.memory_space<vmem>>, vector<1x1x1x16xf32>
    %352 = vector.shape_cast %351 : vector<1x1x1x16xf32> to vector<1x16xf32>
    %353 = vector.broadcast %352 : vector<1x16xf32> to vector<32x16xf32>
    %354 = arith.mulf %24, %353 : vector<32x16xf32>
    %355 = arith.addf %350, %354 : vector<32x16xf32>
    %356 = vector.extract_strided_slice %355 {offsets = [0, 0], sizes = [8, 16], strides = [1, 1]} : vector<32x16xf32> to vector<8x16xf32>
    %357 = vector.extract_strided_slice %355 {offsets = [8, 0], sizes = [8, 16], strides = [1, 1]} : vector<32x16xf32> to vector<8x16xf32>
    %cst_233 = arith.constant dense<0.000000e+00> : vector<8x32xf32>
    %358 = tpu.matmul %356, %6, %cst_233 {dimension_numbers = #tpu.dot_dimension_numbers<[1], [0], [0], [1], [0, 0, 1, 1], [], []>} : vector<8x16xf32>, vector<16x32xf32>, vector<8x32xf32> -> vector<8x32xf32>
    %cst_234 = arith.constant dense<0.000000e+00> : vector<8x32xf32>
    %359 = tpu.matmul %357, %11, %cst_234 {dimension_numbers = #tpu.dot_dimension_numbers<[1], [0], [0], [1], [0, 0, 1, 1], [], []>} : vector<8x16xf32>, vector<16x32xf32>, vector<8x32xf32> -> vector<8x32xf32>
    %360 = arith.addf %358, %359 : vector<8x32xf32>
    %361 = vector.broadcast %12 : vector<8x1xf32> to vector<8x32xf32>
    %362 = arith.addf %360, %361 : vector<8x32xf32>
    %c0_235 = arith.constant 0 : index
    %c0_236 = arith.constant 0 : index
    %c16 = arith.constant 16 : index
    %c0_237 = arith.constant 0 : index
    %363 = vector.load %arg5[%c0_235, %c0_236, %c16, %c0_237] : memref<1x8x32x32xf32, #tpu.memory_space<vmem>>, vector<1x8x1x32xf32>
    %364 = vector.shape_cast %363 : vector<1x8x1x32xf32> to vector<8x32xf32>
    %365 = vector.shape_cast %362 : vector<8x32xf32> to vector<1x8x1x32xf32>
    tpu.vector_store %arg5[%c0_235, %c0_236, %c16, %c0_237], %365 {strides = array<i32>} : memref<1x8x32x32xf32, #tpu.memory_space<vmem>>, vector<1x8x1x32xf32>,
    %366 = vector.extract_strided_slice %355 {offsets = [16, 0], sizes = [8, 16], strides = [1, 1]} : vector<32x16xf32> to vector<8x16xf32>
    %367 = vector.extract_strided_slice %355 {offsets = [24, 0], sizes = [8, 16], strides = [1, 1]} : vector<32x16xf32> to vector<8x16xf32>
    %cst_238 = arith.constant dense<0.000000e+00> : vector<8x32xf32>
    %368 = tpu.matmul %366, %6, %cst_238 {dimension_numbers = #tpu.dot_dimension_numbers<[1], [0], [0], [1], [0, 0, 1, 1], [], []>} : vector<8x16xf32>, vector<16x32xf32>, vector<8x32xf32> -> vector<8x32xf32>
    %cst_239 = arith.constant dense<0.000000e+00> : vector<8x32xf32>
    %369 = tpu.matmul %367, %11, %cst_239 {dimension_numbers = #tpu.dot_dimension_numbers<[1], [0], [0], [1], [0, 0, 1, 1], [], []>} : vector<8x16xf32>, vector<16x32xf32>, vector<8x32xf32> -> vector<8x32xf32>
    %370 = arith.addf %368, %369 : vector<8x32xf32>
    %371 = vector.broadcast %12 : vector<8x1xf32> to vector<8x32xf32>
    %372 = arith.addf %370, %371 : vector<8x32xf32>
    %c0_240 = arith.constant 0 : index
    %c0_241 = arith.constant 0 : index
    %c17 = arith.constant 17 : index
    %c0_242 = arith.constant 0 : index
    %373 = vector.load %arg5[%c0_240, %c0_241, %c17, %c0_242] : memref<1x8x32x32xf32, #tpu.memory_space<vmem>>, vector<1x8x1x32xf32>
    %374 = vector.shape_cast %373 : vector<1x8x1x32xf32> to vector<8x32xf32>
    %375 = vector.shape_cast %372 : vector<8x32xf32> to vector<1x8x1x32xf32>
    tpu.vector_store %arg5[%c0_240, %c0_241, %c17, %c0_242], %375 {strides = array<i32>} : memref<1x8x32x32xf32, #tpu.memory_space<vmem>>, vector<1x8x1x32xf32>,
    %c0_243 = arith.constant 0 : index
    %c0_244 = arith.constant 0 : index
    %c9_245 = arith.constant 9 : index
    %c0_246 = arith.constant 0 : index
    %376 = vector.load %arg2[%c0_243, %c0_244, %c9_245, %c0_246] : memref<1x4x16x16xf32, #tpu.memory_space<vmem>>, vector<1x1x1x16xf32>
    %377 = vector.shape_cast %376 : vector<1x1x1x16xf32> to vector<1x16xf32>
    %378 = vector.broadcast %377 : vector<1x16xf32> to vector<32x16xf32>
    %379 = arith.mulf %15, %378 : vector<32x16xf32>
    %c0_247 = arith.constant 0 : index
    %c1_248 = arith.constant 1 : index
    %c9_249 = arith.constant 9 : index
    %c0_250 = arith.constant 0 : index
    %380 = vector.load %arg2[%c0_247, %c1_248, %c9_249, %c0_250] : memref<1x4x16x16xf32, #tpu.memory_space<vmem>>, vector<1x1x1x16xf32>
    %381 = vector.shape_cast %380 : vector<1x1x1x16xf32> to vector<1x16xf32>
    %382 = vector.broadcast %381 : vector<1x16xf32> to vector<32x16xf32>
    %383 = arith.mulf %18, %382 : vector<32x16xf32>
    %384 = arith.addf %379, %383 : vector<32x16xf32>
    %c0_251 = arith.constant 0 : index
    %c2_252 = arith.constant 2 : index
    %c9_253 = arith.constant 9 : index
    %c0_254 = arith.constant 0 : index
    %385 = vector.load %arg2[%c0_251, %c2_252, %c9_253, %c0_254] : memref<1x4x16x16xf32, #tpu.memory_space<vmem>>, vector<1x1x1x16xf32>
    %386 = vector.shape_cast %385 : vector<1x1x1x16xf32> to vector<1x16xf32>
    %387 = vector.broadcast %386 : vector<1x16xf32> to vector<32x16xf32>
    %388 = arith.mulf %21, %387 : vector<32x16xf32>
    %389 = arith.addf %384, %388 : vector<32x16xf32>
    %c0_255 = arith.constant 0 : index
    %c3_256 = arith.constant 3 : index
    %c9_257 = arith.constant 9 : index
    %c0_258 = arith.constant 0 : index
    %390 = vector.load %arg2[%c0_255, %c3_256, %c9_257, %c0_258] : memref<1x4x16x16xf32, #tpu.memory_space<vmem>>, vector<1x1x1x16xf32>
    %391 = vector.shape_cast %390 : vector<1x1x1x16xf32> to vector<1x16xf32>
    %392 = vector.broadcast %391 : vector<1x16xf32> to vector<32x16xf32>
    %393 = arith.mulf %24, %392 : vector<32x16xf32>
    %394 = arith.addf %389, %393 : vector<32x16xf32>
    %395 = vector.extract_strided_slice %394 {offsets = [0, 0], sizes = [8, 16], strides = [1, 1]} : vector<32x16xf32> to vector<8x16xf32>
    %396 = vector.extract_strided_slice %394 {offsets = [8, 0], sizes = [8, 16], strides = [1, 1]} : vector<32x16xf32> to vector<8x16xf32>
    %cst_259 = arith.constant dense<0.000000e+00> : vector<8x32xf32>
    %397 = tpu.matmul %395, %6, %cst_259 {dimension_numbers = #tpu.dot_dimension_numbers<[1], [0], [0], [1], [0, 0, 1, 1], [], []>} : vector<8x16xf32>, vector<16x32xf32>, vector<8x32xf32> -> vector<8x32xf32>
    %cst_260 = arith.constant dense<0.000000e+00> : vector<8x32xf32>
    %398 = tpu.matmul %396, %11, %cst_260 {dimension_numbers = #tpu.dot_dimension_numbers<[1], [0], [0], [1], [0, 0, 1, 1], [], []>} : vector<8x16xf32>, vector<16x32xf32>, vector<8x32xf32> -> vector<8x32xf32>
    %399 = arith.addf %397, %398 : vector<8x32xf32>
    %400 = vector.broadcast %12 : vector<8x1xf32> to vector<8x32xf32>
    %401 = arith.addf %399, %400 : vector<8x32xf32>
    %c0_261 = arith.constant 0 : index
    %c0_262 = arith.constant 0 : index
    %c18 = arith.constant 18 : index
    %c0_263 = arith.constant 0 : index
    %402 = vector.load %arg5[%c0_261, %c0_262, %c18, %c0_263] : memref<1x8x32x32xf32, #tpu.memory_space<vmem>>, vector<1x8x1x32xf32>
    %403 = vector.shape_cast %402 : vector<1x8x1x32xf32> to vector<8x32xf32>
    %404 = vector.shape_cast %401 : vector<8x32xf32> to vector<1x8x1x32xf32>
    tpu.vector_store %arg5[%c0_261, %c0_262, %c18, %c0_263], %404 {strides = array<i32>} : memref<1x8x32x32xf32, #tpu.memory_space<vmem>>, vector<1x8x1x32xf32>,
    %405 = vector.extract_strided_slice %394 {offsets = [16, 0], sizes = [8, 16], strides = [1, 1]} : vector<32x16xf32> to vector<8x16xf32>
    %406 = vector.extract_strided_slice %394 {offsets = [24, 0], sizes = [8, 16], strides = [1, 1]} : vector<32x16xf32> to vector<8x16xf32>
    %cst_264 = arith.constant dense<0.000000e+00> : vector<8x32xf32>
    %407 = tpu.matmul %405, %6, %cst_264 {dimension_numbers = #tpu.dot_dimension_numbers<[1], [0], [0], [1], [0, 0, 1, 1], [], []>} : vector<8x16xf32>, vector<16x32xf32>, vector<8x32xf32> -> vector<8x32xf32>
    %cst_265 = arith.constant dense<0.000000e+00> : vector<8x32xf32>
    %408 = tpu.matmul %406, %11, %cst_265 {dimension_numbers = #tpu.dot_dimension_numbers<[1], [0], [0], [1], [0, 0, 1, 1], [], []>} : vector<8x16xf32>, vector<16x32xf32>, vector<8x32xf32> -> vector<8x32xf32>
    %409 = arith.addf %407, %408 : vector<8x32xf32>
    %410 = vector.broadcast %12 : vector<8x1xf32> to vector<8x32xf32>
    %411 = arith.addf %409, %410 : vector<8x32xf32>
    %c0_266 = arith.constant 0 : index
    %c0_267 = arith.constant 0 : index
    %c19 = arith.constant 19 : index
    %c0_268 = arith.constant 0 : index
    %412 = vector.load %arg5[%c0_266, %c0_267, %c19, %c0_268] : memref<1x8x32x32xf32, #tpu.memory_space<vmem>>, vector<1x8x1x32xf32>
    %413 = vector.shape_cast %412 : vector<1x8x1x32xf32> to vector<8x32xf32>
    %414 = vector.shape_cast %411 : vector<8x32xf32> to vector<1x8x1x32xf32>
    tpu.vector_store %arg5[%c0_266, %c0_267, %c19, %c0_268], %414 {strides = array<i32>} : memref<1x8x32x32xf32, #tpu.memory_space<vmem>>, vector<1x8x1x32xf32>,
    %c0_269 = arith.constant 0 : index
    %c0_270 = arith.constant 0 : index
    %c10_271 = arith.constant 10 : index
    %c0_272 = arith.constant 0 : index
    %415 = vector.load %arg2[%c0_269, %c0_270, %c10_271, %c0_272] : memref<1x4x16x16xf32, #tpu.memory_space<vmem>>, vector<1x1x1x16xf32>
    %416 = vector.shape_cast %415 : vector<1x1x1x16xf32> to vector<1x16xf32>
    %417 = vector.broadcast %416 : vector<1x16xf32> to vector<32x16xf32>
    %418 = arith.mulf %15, %417 : vector<32x16xf32>
    %c0_273 = arith.constant 0 : index
    %c1_274 = arith.constant 1 : index
    %c10_275 = arith.constant 10 : index
    %c0_276 = arith.constant 0 : index
    %419 = vector.load %arg2[%c0_273, %c1_274, %c10_275, %c0_276] : memref<1x4x16x16xf32, #tpu.memory_space<vmem>>, vector<1x1x1x16xf32>
    %420 = vector.shape_cast %419 : vector<1x1x1x16xf32> to vector<1x16xf32>
    %421 = vector.broadcast %420 : vector<1x16xf32> to vector<32x16xf32>
    %422 = arith.mulf %18, %421 : vector<32x16xf32>
    %423 = arith.addf %418, %422 : vector<32x16xf32>
    %c0_277 = arith.constant 0 : index
    %c2_278 = arith.constant 2 : index
    %c10_279 = arith.constant 10 : index
    %c0_280 = arith.constant 0 : index
    %424 = vector.load %arg2[%c0_277, %c2_278, %c10_279, %c0_280] : memref<1x4x16x16xf32, #tpu.memory_space<vmem>>, vector<1x1x1x16xf32>
    %425 = vector.shape_cast %424 : vector<1x1x1x16xf32> to vector<1x16xf32>
    %426 = vector.broadcast %425 : vector<1x16xf32> to vector<32x16xf32>
    %427 = arith.mulf %21, %426 : vector<32x16xf32>
    %428 = arith.addf %423, %427 : vector<32x16xf32>
    %c0_281 = arith.constant 0 : index
    %c3_282 = arith.constant 3 : index
    %c10_283 = arith.constant 10 : index
    %c0_284 = arith.constant 0 : index
    %429 = vector.load %arg2[%c0_281, %c3_282, %c10_283, %c0_284] : memref<1x4x16x16xf32, #tpu.memory_space<vmem>>, vector<1x1x1x16xf32>
    %430 = vector.shape_cast %429 : vector<1x1x1x16xf32> to vector<1x16xf32>
    %431 = vector.broadcast %430 : vector<1x16xf32> to vector<32x16xf32>
    %432 = arith.mulf %24, %431 : vector<32x16xf32>
    %433 = arith.addf %428, %432 : vector<32x16xf32>
    %434 = vector.extract_strided_slice %433 {offsets = [0, 0], sizes = [8, 16], strides = [1, 1]} : vector<32x16xf32> to vector<8x16xf32>
    %435 = vector.extract_strided_slice %433 {offsets = [8, 0], sizes = [8, 16], strides = [1, 1]} : vector<32x16xf32> to vector<8x16xf32>
    %cst_285 = arith.constant dense<0.000000e+00> : vector<8x32xf32>
    %436 = tpu.matmul %434, %6, %cst_285 {dimension_numbers = #tpu.dot_dimension_numbers<[1], [0], [0], [1], [0, 0, 1, 1], [], []>} : vector<8x16xf32>, vector<16x32xf32>, vector<8x32xf32> -> vector<8x32xf32>
    %cst_286 = arith.constant dense<0.000000e+00> : vector<8x32xf32>
    %437 = tpu.matmul %435, %11, %cst_286 {dimension_numbers = #tpu.dot_dimension_numbers<[1], [0], [0], [1], [0, 0, 1, 1], [], []>} : vector<8x16xf32>, vector<16x32xf32>, vector<8x32xf32> -> vector<8x32xf32>
    %438 = arith.addf %436, %437 : vector<8x32xf32>
    %439 = vector.broadcast %12 : vector<8x1xf32> to vector<8x32xf32>
    %440 = arith.addf %438, %439 : vector<8x32xf32>
    %c0_287 = arith.constant 0 : index
    %c0_288 = arith.constant 0 : index
    %c20 = arith.constant 20 : index
    %c0_289 = arith.constant 0 : index
    %441 = vector.load %arg5[%c0_287, %c0_288, %c20, %c0_289] : memref<1x8x32x32xf32, #tpu.memory_space<vmem>>, vector<1x8x1x32xf32>
    %442 = vector.shape_cast %441 : vector<1x8x1x32xf32> to vector<8x32xf32>
    %443 = vector.shape_cast %440 : vector<8x32xf32> to vector<1x8x1x32xf32>
    tpu.vector_store %arg5[%c0_287, %c0_288, %c20, %c0_289], %443 {strides = array<i32>} : memref<1x8x32x32xf32, #tpu.memory_space<vmem>>, vector<1x8x1x32xf32>,
    %444 = vector.extract_strided_slice %433 {offsets = [16, 0], sizes = [8, 16], strides = [1, 1]} : vector<32x16xf32> to vector<8x16xf32>
    %445 = vector.extract_strided_slice %433 {offsets = [24, 0], sizes = [8, 16], strides = [1, 1]} : vector<32x16xf32> to vector<8x16xf32>
    %cst_290 = arith.constant dense<0.000000e+00> : vector<8x32xf32>
    %446 = tpu.matmul %444, %6, %cst_290 {dimension_numbers = #tpu.dot_dimension_numbers<[1], [0], [0], [1], [0, 0, 1, 1], [], []>} : vector<8x16xf32>, vector<16x32xf32>, vector<8x32xf32> -> vector<8x32xf32>
    %cst_291 = arith.constant dense<0.000000e+00> : vector<8x32xf32>
    %447 = tpu.matmul %445, %11, %cst_291 {dimension_numbers = #tpu.dot_dimension_numbers<[1], [0], [0], [1], [0, 0, 1, 1], [], []>} : vector<8x16xf32>, vector<16x32xf32>, vector<8x32xf32> -> vector<8x32xf32>
    %448 = arith.addf %446, %447 : vector<8x32xf32>
    %449 = vector.broadcast %12 : vector<8x1xf32> to vector<8x32xf32>
    %450 = arith.addf %448, %449 : vector<8x32xf32>
    %c0_292 = arith.constant 0 : index
    %c0_293 = arith.constant 0 : index
    %c21 = arith.constant 21 : index
    %c0_294 = arith.constant 0 : index
    %451 = vector.load %arg5[%c0_292, %c0_293, %c21, %c0_294] : memref<1x8x32x32xf32, #tpu.memory_space<vmem>>, vector<1x8x1x32xf32>
    %452 = vector.shape_cast %451 : vector<1x8x1x32xf32> to vector<8x32xf32>
    %453 = vector.shape_cast %450 : vector<8x32xf32> to vector<1x8x1x32xf32>
    tpu.vector_store %arg5[%c0_292, %c0_293, %c21, %c0_294], %453 {strides = array<i32>} : memref<1x8x32x32xf32, #tpu.memory_space<vmem>>, vector<1x8x1x32xf32>,
    %c0_295 = arith.constant 0 : index
    %c0_296 = arith.constant 0 : index
    %c11_297 = arith.constant 11 : index
    %c0_298 = arith.constant 0 : index
    %454 = vector.load %arg2[%c0_295, %c0_296, %c11_297, %c0_298] : memref<1x4x16x16xf32, #tpu.memory_space<vmem>>, vector<1x1x1x16xf32>
    %455 = vector.shape_cast %454 : vector<1x1x1x16xf32> to vector<1x16xf32>
    %456 = vector.broadcast %455 : vector<1x16xf32> to vector<32x16xf32>
    %457 = arith.mulf %15, %456 : vector<32x16xf32>
    %c0_299 = arith.constant 0 : index
    %c1_300 = arith.constant 1 : index
    %c11_301 = arith.constant 11 : index
    %c0_302 = arith.constant 0 : index
    %458 = vector.load %arg2[%c0_299, %c1_300, %c11_301, %c0_302] : memref<1x4x16x16xf32, #tpu.memory_space<vmem>>, vector<1x1x1x16xf32>
    %459 = vector.shape_cast %458 : vector<1x1x1x16xf32> to vector<1x16xf32>
    %460 = vector.broadcast %459 : vector<1x16xf32> to vector<32x16xf32>
    %461 = arith.mulf %18, %460 : vector<32x16xf32>
    %462 = arith.addf %457, %461 : vector<32x16xf32>
    %c0_303 = arith.constant 0 : index
    %c2_304 = arith.constant 2 : index
    %c11_305 = arith.constant 11 : index
    %c0_306 = arith.constant 0 : index
    %463 = vector.load %arg2[%c0_303, %c2_304, %c11_305, %c0_306] : memref<1x4x16x16xf32, #tpu.memory_space<vmem>>, vector<1x1x1x16xf32>
    %464 = vector.shape_cast %463 : vector<1x1x1x16xf32> to vector<1x16xf32>
    %465 = vector.broadcast %464 : vector<1x16xf32> to vector<32x16xf32>
    %466 = arith.mulf %21, %465 : vector<32x16xf32>
    %467 = arith.addf %462, %466 : vector<32x16xf32>
    %c0_307 = arith.constant 0 : index
    %c3_308 = arith.constant 3 : index
    %c11_309 = arith.constant 11 : index
    %c0_310 = arith.constant 0 : index
    %468 = vector.load %arg2[%c0_307, %c3_308, %c11_309, %c0_310] : memref<1x4x16x16xf32, #tpu.memory_space<vmem>>, vector<1x1x1x16xf32>
    %469 = vector.shape_cast %468 : vector<1x1x1x16xf32> to vector<1x16xf32>
    %470 = vector.broadcast %469 : vector<1x16xf32> to vector<32x16xf32>
    %471 = arith.mulf %24, %470 : vector<32x16xf32>
    %472 = arith.addf %467, %471 : vector<32x16xf32>
    %473 = vector.extract_strided_slice %472 {offsets = [0, 0], sizes = [8, 16], strides = [1, 1]} : vector<32x16xf32> to vector<8x16xf32>
    %474 = vector.extract_strided_slice %472 {offsets = [8, 0], sizes = [8, 16], strides = [1, 1]} : vector<32x16xf32> to vector<8x16xf32>
    %cst_311 = arith.constant dense<0.000000e+00> : vector<8x32xf32>
    %475 = tpu.matmul %473, %6, %cst_311 {dimension_numbers = #tpu.dot_dimension_numbers<[1], [0], [0], [1], [0, 0, 1, 1], [], []>} : vector<8x16xf32>, vector<16x32xf32>, vector<8x32xf32> -> vector<8x32xf32>
    %cst_312 = arith.constant dense<0.000000e+00> : vector<8x32xf32>
    %476 = tpu.matmul %474, %11, %cst_312 {dimension_numbers = #tpu.dot_dimension_numbers<[1], [0], [0], [1], [0, 0, 1, 1], [], []>} : vector<8x16xf32>, vector<16x32xf32>, vector<8x32xf32> -> vector<8x32xf32>
    %477 = arith.addf %475, %476 : vector<8x32xf32>
    %478 = vector.broadcast %12 : vector<8x1xf32> to vector<8x32xf32>
    %479 = arith.addf %477, %478 : vector<8x32xf32>
    %c0_313 = arith.constant 0 : index
    %c0_314 = arith.constant 0 : index
    %c22 = arith.constant 22 : index
    %c0_315 = arith.constant 0 : index
    %480 = vector.load %arg5[%c0_313, %c0_314, %c22, %c0_315] : memref<1x8x32x32xf32, #tpu.memory_space<vmem>>, vector<1x8x1x32xf32>
    %481 = vector.shape_cast %480 : vector<1x8x1x32xf32> to vector<8x32xf32>
    %482 = vector.shape_cast %479 : vector<8x32xf32> to vector<1x8x1x32xf32>
    tpu.vector_store %arg5[%c0_313, %c0_314, %c22, %c0_315], %482 {strides = array<i32>} : memref<1x8x32x32xf32, #tpu.memory_space<vmem>>, vector<1x8x1x32xf32>,
    %483 = vector.extract_strided_slice %472 {offsets = [16, 0], sizes = [8, 16], strides = [1, 1]} : vector<32x16xf32> to vector<8x16xf32>
    %484 = vector.extract_strided_slice %472 {offsets = [24, 0], sizes = [8, 16], strides = [1, 1]} : vector<32x16xf32> to vector<8x16xf32>
    %cst_316 = arith.constant dense<0.000000e+00> : vector<8x32xf32>
    %485 = tpu.matmul %483, %6, %cst_316 {dimension_numbers = #tpu.dot_dimension_numbers<[1], [0], [0], [1], [0, 0, 1, 1], [], []>} : vector<8x16xf32>, vector<16x32xf32>, vector<8x32xf32> -> vector<8x32xf32>
    %cst_317 = arith.constant dense<0.000000e+00> : vector<8x32xf32>
    %486 = tpu.matmul %484, %11, %cst_317 {dimension_numbers = #tpu.dot_dimension_numbers<[1], [0], [0], [1], [0, 0, 1, 1], [], []>} : vector<8x16xf32>, vector<16x32xf32>, vector<8x32xf32> -> vector<8x32xf32>
    %487 = arith.addf %485, %486 : vector<8x32xf32>
    %488 = vector.broadcast %12 : vector<8x1xf32> to vector<8x32xf32>
    %489 = arith.addf %487, %488 : vector<8x32xf32>
    %c0_318 = arith.constant 0 : index
    %c0_319 = arith.constant 0 : index
    %c23 = arith.constant 23 : index
    %c0_320 = arith.constant 0 : index
    %490 = vector.load %arg5[%c0_318, %c0_319, %c23, %c0_320] : memref<1x8x32x32xf32, #tpu.memory_space<vmem>>, vector<1x8x1x32xf32>
    %491 = vector.shape_cast %490 : vector<1x8x1x32xf32> to vector<8x32xf32>
    %492 = vector.shape_cast %489 : vector<8x32xf32> to vector<1x8x1x32xf32>
    tpu.vector_store %arg5[%c0_318, %c0_319, %c23, %c0_320], %492 {strides = array<i32>} : memref<1x8x32x32xf32, #tpu.memory_space<vmem>>, vector<1x8x1x32xf32>,
    %c0_321 = arith.constant 0 : index
    %c0_322 = arith.constant 0 : index
    %c12_323 = arith.constant 12 : index
    %c0_324 = arith.constant 0 : index
    %493 = vector.load %arg2[%c0_321, %c0_322, %c12_323, %c0_324] : memref<1x4x16x16xf32, #tpu.memory_space<vmem>>, vector<1x1x1x16xf32>
    %494 = vector.shape_cast %493 : vector<1x1x1x16xf32> to vector<1x16xf32>
    %495 = vector.broadcast %494 : vector<1x16xf32> to vector<32x16xf32>
    %496 = arith.mulf %15, %495 : vector<32x16xf32>
    %c0_325 = arith.constant 0 : index
    %c1_326 = arith.constant 1 : index
    %c12_327 = arith.constant 12 : index
    %c0_328 = arith.constant 0 : index
    %497 = vector.load %arg2[%c0_325, %c1_326, %c12_327, %c0_328] : memref<1x4x16x16xf32, #tpu.memory_space<vmem>>, vector<1x1x1x16xf32>
    %498 = vector.shape_cast %497 : vector<1x1x1x16xf32> to vector<1x16xf32>
    %499 = vector.broadcast %498 : vector<1x16xf32> to vector<32x16xf32>
    %500 = arith.mulf %18, %499 : vector<32x16xf32>
    %501 = arith.addf %496, %500 : vector<32x16xf32>
    %c0_329 = arith.constant 0 : index
    %c2_330 = arith.constant 2 : index
    %c12_331 = arith.constant 12 : index
    %c0_332 = arith.constant 0 : index
    %502 = vector.load %arg2[%c0_329, %c2_330, %c12_331, %c0_332] : memref<1x4x16x16xf32, #tpu.memory_space<vmem>>, vector<1x1x1x16xf32>
    %503 = vector.shape_cast %502 : vector<1x1x1x16xf32> to vector<1x16xf32>
    %504 = vector.broadcast %503 : vector<1x16xf32> to vector<32x16xf32>
    %505 = arith.mulf %21, %504 : vector<32x16xf32>
    %506 = arith.addf %501, %505 : vector<32x16xf32>
    %c0_333 = arith.constant 0 : index
    %c3_334 = arith.constant 3 : index
    %c12_335 = arith.constant 12 : index
    %c0_336 = arith.constant 0 : index
    %507 = vector.load %arg2[%c0_333, %c3_334, %c12_335, %c0_336] : memref<1x4x16x16xf32, #tpu.memory_space<vmem>>, vector<1x1x1x16xf32>
    %508 = vector.shape_cast %507 : vector<1x1x1x16xf32> to vector<1x16xf32>
    %509 = vector.broadcast %508 : vector<1x16xf32> to vector<32x16xf32>
    %510 = arith.mulf %24, %509 : vector<32x16xf32>
    %511 = arith.addf %506, %510 : vector<32x16xf32>
    %512 = vector.extract_strided_slice %511 {offsets = [0, 0], sizes = [8, 16], strides = [1, 1]} : vector<32x16xf32> to vector<8x16xf32>
    %513 = vector.extract_strided_slice %511 {offsets = [8, 0], sizes = [8, 16], strides = [1, 1]} : vector<32x16xf32> to vector<8x16xf32>
    %cst_337 = arith.constant dense<0.000000e+00> : vector<8x32xf32>
    %514 = tpu.matmul %512, %6, %cst_337 {dimension_numbers = #tpu.dot_dimension_numbers<[1], [0], [0], [1], [0, 0, 1, 1], [], []>} : vector<8x16xf32>, vector<16x32xf32>, vector<8x32xf32> -> vector<8x32xf32>
    %cst_338 = arith.constant dense<0.000000e+00> : vector<8x32xf32>
    %515 = tpu.matmul %513, %11, %cst_338 {dimension_numbers = #tpu.dot_dimension_numbers<[1], [0], [0], [1], [0, 0, 1, 1], [], []>} : vector<8x16xf32>, vector<16x32xf32>, vector<8x32xf32> -> vector<8x32xf32>
    %516 = arith.addf %514, %515 : vector<8x32xf32>
    %517 = vector.broadcast %12 : vector<8x1xf32> to vector<8x32xf32>
    %518 = arith.addf %516, %517 : vector<8x32xf32>
    %c0_339 = arith.constant 0 : index
    %c0_340 = arith.constant 0 : index
    %c24 = arith.constant 24 : index
    %c0_341 = arith.constant 0 : index
    %519 = vector.load %arg5[%c0_339, %c0_340, %c24, %c0_341] : memref<1x8x32x32xf32, #tpu.memory_space<vmem>>, vector<1x8x1x32xf32>
    %520 = vector.shape_cast %519 : vector<1x8x1x32xf32> to vector<8x32xf32>
    %521 = vector.shape_cast %518 : vector<8x32xf32> to vector<1x8x1x32xf32>
    tpu.vector_store %arg5[%c0_339, %c0_340, %c24, %c0_341], %521 {strides = array<i32>} : memref<1x8x32x32xf32, #tpu.memory_space<vmem>>, vector<1x8x1x32xf32>,
    %522 = vector.extract_strided_slice %511 {offsets = [16, 0], sizes = [8, 16], strides = [1, 1]} : vector<32x16xf32> to vector<8x16xf32>
    %523 = vector.extract_strided_slice %511 {offsets = [24, 0], sizes = [8, 16], strides = [1, 1]} : vector<32x16xf32> to vector<8x16xf32>
    %cst_342 = arith.constant dense<0.000000e+00> : vector<8x32xf32>
    %524 = tpu.matmul %522, %6, %cst_342 {dimension_numbers = #tpu.dot_dimension_numbers<[1], [0], [0], [1], [0, 0, 1, 1], [], []>} : vector<8x16xf32>, vector<16x32xf32>, vector<8x32xf32> -> vector<8x32xf32>
    %cst_343 = arith.constant dense<0.000000e+00> : vector<8x32xf32>
    %525 = tpu.matmul %523, %11, %cst_343 {dimension_numbers = #tpu.dot_dimension_numbers<[1], [0], [0], [1], [0, 0, 1, 1], [], []>} : vector<8x16xf32>, vector<16x32xf32>, vector<8x32xf32> -> vector<8x32xf32>
    %526 = arith.addf %524, %525 : vector<8x32xf32>
    %527 = vector.broadcast %12 : vector<8x1xf32> to vector<8x32xf32>
    %528 = arith.addf %526, %527 : vector<8x32xf32>
    %c0_344 = arith.constant 0 : index
    %c0_345 = arith.constant 0 : index
    %c25 = arith.constant 25 : index
    %c0_346 = arith.constant 0 : index
    %529 = vector.load %arg5[%c0_344, %c0_345, %c25, %c0_346] : memref<1x8x32x32xf32, #tpu.memory_space<vmem>>, vector<1x8x1x32xf32>
    %530 = vector.shape_cast %529 : vector<1x8x1x32xf32> to vector<8x32xf32>
    %531 = vector.shape_cast %528 : vector<8x32xf32> to vector<1x8x1x32xf32>
    tpu.vector_store %arg5[%c0_344, %c0_345, %c25, %c0_346], %531 {strides = array<i32>} : memref<1x8x32x32xf32, #tpu.memory_space<vmem>>, vector<1x8x1x32xf32>,
    %c0_347 = arith.constant 0 : index
    %c0_348 = arith.constant 0 : index
    %c13_349 = arith.constant 13 : index
    %c0_350 = arith.constant 0 : index
    %532 = vector.load %arg2[%c0_347, %c0_348, %c13_349, %c0_350] : memref<1x4x16x16xf32, #tpu.memory_space<vmem>>, vector<1x1x1x16xf32>
    %533 = vector.shape_cast %532 : vector<1x1x1x16xf32> to vector<1x16xf32>
    %534 = vector.broadcast %533 : vector<1x16xf32> to vector<32x16xf32>
    %535 = arith.mulf %15, %534 : vector<32x16xf32>
    %c0_351 = arith.constant 0 : index
    %c1_352 = arith.constant 1 : index
    %c13_353 = arith.constant 13 : index
    %c0_354 = arith.constant 0 : index
    %536 = vector.load %arg2[%c0_351, %c1_352, %c13_353, %c0_354] : memref<1x4x16x16xf32, #tpu.memory_space<vmem>>, vector<1x1x1x16xf32>
    %537 = vector.shape_cast %536 : vector<1x1x1x16xf32> to vector<1x16xf32>
    %538 = vector.broadcast %537 : vector<1x16xf32> to vector<32x16xf32>
    %539 = arith.mulf %18, %538 : vector<32x16xf32>
    %540 = arith.addf %535, %539 : vector<32x16xf32>
    %c0_355 = arith.constant 0 : index
    %c2_356 = arith.constant 2 : index
    %c13_357 = arith.constant 13 : index
    %c0_358 = arith.constant 0 : index
    %541 = vector.load %arg2[%c0_355, %c2_356, %c13_357, %c0_358] : memref<1x4x16x16xf32, #tpu.memory_space<vmem>>, vector<1x1x1x16xf32>
    %542 = vector.shape_cast %541 : vector<1x1x1x16xf32> to vector<1x16xf32>
    %543 = vector.broadcast %542 : vector<1x16xf32> to vector<32x16xf32>
    %544 = arith.mulf %21, %543 : vector<32x16xf32>
    %545 = arith.addf %540, %544 : vector<32x16xf32>
    %c0_359 = arith.constant 0 : index
    %c3_360 = arith.constant 3 : index
    %c13_361 = arith.constant 13 : index
    %c0_362 = arith.constant 0 : index
    %546 = vector.load %arg2[%c0_359, %c3_360, %c13_361, %c0_362] : memref<1x4x16x16xf32, #tpu.memory_space<vmem>>, vector<1x1x1x16xf32>
    %547 = vector.shape_cast %546 : vector<1x1x1x16xf32> to vector<1x16xf32>
    %548 = vector.broadcast %547 : vector<1x16xf32> to vector<32x16xf32>
    %549 = arith.mulf %24, %548 : vector<32x16xf32>
    %550 = arith.addf %545, %549 : vector<32x16xf32>
    %551 = vector.extract_strided_slice %550 {offsets = [0, 0], sizes = [8, 16], strides = [1, 1]} : vector<32x16xf32> to vector<8x16xf32>
    %552 = vector.extract_strided_slice %550 {offsets = [8, 0], sizes = [8, 16], strides = [1, 1]} : vector<32x16xf32> to vector<8x16xf32>
    %cst_363 = arith.constant dense<0.000000e+00> : vector<8x32xf32>
    %553 = tpu.matmul %551, %6, %cst_363 {dimension_numbers = #tpu.dot_dimension_numbers<[1], [0], [0], [1], [0, 0, 1, 1], [], []>} : vector<8x16xf32>, vector<16x32xf32>, vector<8x32xf32> -> vector<8x32xf32>
    %cst_364 = arith.constant dense<0.000000e+00> : vector<8x32xf32>
    %554 = tpu.matmul %552, %11, %cst_364 {dimension_numbers = #tpu.dot_dimension_numbers<[1], [0], [0], [1], [0, 0, 1, 1], [], []>} : vector<8x16xf32>, vector<16x32xf32>, vector<8x32xf32> -> vector<8x32xf32>
    %555 = arith.addf %553, %554 : vector<8x32xf32>
    %556 = vector.broadcast %12 : vector<8x1xf32> to vector<8x32xf32>
    %557 = arith.addf %555, %556 : vector<8x32xf32>
    %c0_365 = arith.constant 0 : index
    %c0_366 = arith.constant 0 : index
    %c26 = arith.constant 26 : index
    %c0_367 = arith.constant 0 : index
    %558 = vector.load %arg5[%c0_365, %c0_366, %c26, %c0_367] : memref<1x8x32x32xf32, #tpu.memory_space<vmem>>, vector<1x8x1x32xf32>
    %559 = vector.shape_cast %558 : vector<1x8x1x32xf32> to vector<8x32xf32>
    %560 = vector.shape_cast %557 : vector<8x32xf32> to vector<1x8x1x32xf32>
    tpu.vector_store %arg5[%c0_365, %c0_366, %c26, %c0_367], %560 {strides = array<i32>} : memref<1x8x32x32xf32, #tpu.memory_space<vmem>>, vector<1x8x1x32xf32>,
    %561 = vector.extract_strided_slice %550 {offsets = [16, 0], sizes = [8, 16], strides = [1, 1]} : vector<32x16xf32> to vector<8x16xf32>
    %562 = vector.extract_strided_slice %550 {offsets = [24, 0], sizes = [8, 16], strides = [1, 1]} : vector<32x16xf32> to vector<8x16xf32>
    %cst_368 = arith.constant dense<0.000000e+00> : vector<8x32xf32>
    %563 = tpu.matmul %561, %6, %cst_368 {dimension_numbers = #tpu.dot_dimension_numbers<[1], [0], [0], [1], [0, 0, 1, 1], [], []>} : vector<8x16xf32>, vector<16x32xf32>, vector<8x32xf32> -> vector<8x32xf32>
    %cst_369 = arith.constant dense<0.000000e+00> : vector<8x32xf32>
    %564 = tpu.matmul %562, %11, %cst_369 {dimension_numbers = #tpu.dot_dimension_numbers<[1], [0], [0], [1], [0, 0, 1, 1], [], []>} : vector<8x16xf32>, vector<16x32xf32>, vector<8x32xf32> -> vector<8x32xf32>
    %565 = arith.addf %563, %564 : vector<8x32xf32>
    %566 = vector.broadcast %12 : vector<8x1xf32> to vector<8x32xf32>
    %567 = arith.addf %565, %566 : vector<8x32xf32>
    %c0_370 = arith.constant 0 : index
    %c0_371 = arith.constant 0 : index
    %c27 = arith.constant 27 : index
    %c0_372 = arith.constant 0 : index
    %568 = vector.load %arg5[%c0_370, %c0_371, %c27, %c0_372] : memref<1x8x32x32xf32, #tpu.memory_space<vmem>>, vector<1x8x1x32xf32>
    %569 = vector.shape_cast %568 : vector<1x8x1x32xf32> to vector<8x32xf32>
    %570 = vector.shape_cast %567 : vector<8x32xf32> to vector<1x8x1x32xf32>
    tpu.vector_store %arg5[%c0_370, %c0_371, %c27, %c0_372], %570 {strides = array<i32>} : memref<1x8x32x32xf32, #tpu.memory_space<vmem>>, vector<1x8x1x32xf32>,
    %c0_373 = arith.constant 0 : index
    %c0_374 = arith.constant 0 : index
    %c14_375 = arith.constant 14 : index
    %c0_376 = arith.constant 0 : index
    %571 = vector.load %arg2[%c0_373, %c0_374, %c14_375, %c0_376] : memref<1x4x16x16xf32, #tpu.memory_space<vmem>>, vector<1x1x1x16xf32>
    %572 = vector.shape_cast %571 : vector<1x1x1x16xf32> to vector<1x16xf32>
    %573 = vector.broadcast %572 : vector<1x16xf32> to vector<32x16xf32>
    %574 = arith.mulf %15, %573 : vector<32x16xf32>
    %c0_377 = arith.constant 0 : index
    %c1_378 = arith.constant 1 : index
    %c14_379 = arith.constant 14 : index
    %c0_380 = arith.constant 0 : index
    %575 = vector.load %arg2[%c0_377, %c1_378, %c14_379, %c0_380] : memref<1x4x16x16xf32, #tpu.memory_space<vmem>>, vector<1x1x1x16xf32>
    %576 = vector.shape_cast %575 : vector<1x1x1x16xf32> to vector<1x16xf32>
    %577 = vector.broadcast %576 : vector<1x16xf32> to vector<32x16xf32>
    %578 = arith.mulf %18, %577 : vector<32x16xf32>
    %579 = arith.addf %574, %578 : vector<32x16xf32>
    %c0_381 = arith.constant 0 : index
    %c2_382 = arith.constant 2 : index
    %c14_383 = arith.constant 14 : index
    %c0_384 = arith.constant 0 : index
    %580 = vector.load %arg2[%c0_381, %c2_382, %c14_383, %c0_384] : memref<1x4x16x16xf32, #tpu.memory_space<vmem>>, vector<1x1x1x16xf32>
    %581 = vector.shape_cast %580 : vector<1x1x1x16xf32> to vector<1x16xf32>
    %582 = vector.broadcast %581 : vector<1x16xf32> to vector<32x16xf32>
    %583 = arith.mulf %21, %582 : vector<32x16xf32>
    %584 = arith.addf %579, %583 : vector<32x16xf32>
    %c0_385 = arith.constant 0 : index
    %c3_386 = arith.constant 3 : index
    %c14_387 = arith.constant 14 : index
    %c0_388 = arith.constant 0 : index
    %585 = vector.load %arg2[%c0_385, %c3_386, %c14_387, %c0_388] : memref<1x4x16x16xf32, #tpu.memory_space<vmem>>, vector<1x1x1x16xf32>
    %586 = vector.shape_cast %585 : vector<1x1x1x16xf32> to vector<1x16xf32>
    %587 = vector.broadcast %586 : vector<1x16xf32> to vector<32x16xf32>
    %588 = arith.mulf %24, %587 : vector<32x16xf32>
    %589 = arith.addf %584, %588 : vector<32x16xf32>
    %590 = vector.extract_strided_slice %589 {offsets = [0, 0], sizes = [8, 16], strides = [1, 1]} : vector<32x16xf32> to vector<8x16xf32>
    %591 = vector.extract_strided_slice %589 {offsets = [8, 0], sizes = [8, 16], strides = [1, 1]} : vector<32x16xf32> to vector<8x16xf32>
    %cst_389 = arith.constant dense<0.000000e+00> : vector<8x32xf32>
    %592 = tpu.matmul %590, %6, %cst_389 {dimension_numbers = #tpu.dot_dimension_numbers<[1], [0], [0], [1], [0, 0, 1, 1], [], []>} : vector<8x16xf32>, vector<16x32xf32>, vector<8x32xf32> -> vector<8x32xf32>
    %cst_390 = arith.constant dense<0.000000e+00> : vector<8x32xf32>
    %593 = tpu.matmul %591, %11, %cst_390 {dimension_numbers = #tpu.dot_dimension_numbers<[1], [0], [0], [1], [0, 0, 1, 1], [], []>} : vector<8x16xf32>, vector<16x32xf32>, vector<8x32xf32> -> vector<8x32xf32>
    %594 = arith.addf %592, %593 : vector<8x32xf32>
    %595 = vector.broadcast %12 : vector<8x1xf32> to vector<8x32xf32>
    %596 = arith.addf %594, %595 : vector<8x32xf32>
    %c0_391 = arith.constant 0 : index
    %c0_392 = arith.constant 0 : index
    %c28 = arith.constant 28 : index
    %c0_393 = arith.constant 0 : index
    %597 = vector.load %arg5[%c0_391, %c0_392, %c28, %c0_393] : memref<1x8x32x32xf32, #tpu.memory_space<vmem>>, vector<1x8x1x32xf32>
    %598 = vector.shape_cast %597 : vector<1x8x1x32xf32> to vector<8x32xf32>
    %599 = vector.shape_cast %596 : vector<8x32xf32> to vector<1x8x1x32xf32>
    tpu.vector_store %arg5[%c0_391, %c0_392, %c28, %c0_393], %599 {strides = array<i32>} : memref<1x8x32x32xf32, #tpu.memory_space<vmem>>, vector<1x8x1x32xf32>,
    %600 = vector.extract_strided_slice %589 {offsets = [16, 0], sizes = [8, 16], strides = [1, 1]} : vector<32x16xf32> to vector<8x16xf32>
    %601 = vector.extract_strided_slice %589 {offsets = [24, 0], sizes = [8, 16], strides = [1, 1]} : vector<32x16xf32> to vector<8x16xf32>
    %cst_394 = arith.constant dense<0.000000e+00> : vector<8x32xf32>
    %602 = tpu.matmul %600, %6, %cst_394 {dimension_numbers = #tpu.dot_dimension_numbers<[1], [0], [0], [1], [0, 0, 1, 1], [], []>} : vector<8x16xf32>, vector<16x32xf32>, vector<8x32xf32> -> vector<8x32xf32>
    %cst_395 = arith.constant dense<0.000000e+00> : vector<8x32xf32>
    %603 = tpu.matmul %601, %11, %cst_395 {dimension_numbers = #tpu.dot_dimension_numbers<[1], [0], [0], [1], [0, 0, 1, 1], [], []>} : vector<8x16xf32>, vector<16x32xf32>, vector<8x32xf32> -> vector<8x32xf32>
    %604 = arith.addf %602, %603 : vector<8x32xf32>
    %605 = vector.broadcast %12 : vector<8x1xf32> to vector<8x32xf32>
    %606 = arith.addf %604, %605 : vector<8x32xf32>
    %c0_396 = arith.constant 0 : index
    %c0_397 = arith.constant 0 : index
    %c29 = arith.constant 29 : index
    %c0_398 = arith.constant 0 : index
    %607 = vector.load %arg5[%c0_396, %c0_397, %c29, %c0_398] : memref<1x8x32x32xf32, #tpu.memory_space<vmem>>, vector<1x8x1x32xf32>
    %608 = vector.shape_cast %607 : vector<1x8x1x32xf32> to vector<8x32xf32>
    %609 = vector.shape_cast %606 : vector<8x32xf32> to vector<1x8x1x32xf32>
    tpu.vector_store %arg5[%c0_396, %c0_397, %c29, %c0_398], %609 {strides = array<i32>} : memref<1x8x32x32xf32, #tpu.memory_space<vmem>>, vector<1x8x1x32xf32>,
    %c0_399 = arith.constant 0 : index
    %c0_400 = arith.constant 0 : index
    %c15_401 = arith.constant 15 : index
    %c0_402 = arith.constant 0 : index
    %610 = vector.load %arg2[%c0_399, %c0_400, %c15_401, %c0_402] : memref<1x4x16x16xf32, #tpu.memory_space<vmem>>, vector<1x1x1x16xf32>
    %611 = vector.shape_cast %610 : vector<1x1x1x16xf32> to vector<1x16xf32>
    %612 = vector.broadcast %611 : vector<1x16xf32> to vector<32x16xf32>
    %613 = arith.mulf %15, %612 : vector<32x16xf32>
    %c0_403 = arith.constant 0 : index
    %c1_404 = arith.constant 1 : index
    %c15_405 = arith.constant 15 : index
    %c0_406 = arith.constant 0 : index
    %614 = vector.load %arg2[%c0_403, %c1_404, %c15_405, %c0_406] : memref<1x4x16x16xf32, #tpu.memory_space<vmem>>, vector<1x1x1x16xf32>
    %615 = vector.shape_cast %614 : vector<1x1x1x16xf32> to vector<1x16xf32>
    %616 = vector.broadcast %615 : vector<1x16xf32> to vector<32x16xf32>
    %617 = arith.mulf %18, %616 : vector<32x16xf32>
    %618 = arith.addf %613, %617 : vector<32x16xf32>
    %c0_407 = arith.constant 0 : index
    %c2_408 = arith.constant 2 : index
    %c15_409 = arith.constant 15 : index
    %c0_410 = arith.constant 0 : index
    %619 = vector.load %arg2[%c0_407, %c2_408, %c15_409, %c0_410] : memref<1x4x16x16xf32, #tpu.memory_space<vmem>>, vector<1x1x1x16xf32>
    %620 = vector.shape_cast %619 : vector<1x1x1x16xf32> to vector<1x16xf32>
    %621 = vector.broadcast %620 : vector<1x16xf32> to vector<32x16xf32>
    %622 = arith.mulf %21, %621 : vector<32x16xf32>
    %623 = arith.addf %618, %622 : vector<32x16xf32>
    %c0_411 = arith.constant 0 : index
    %c3_412 = arith.constant 3 : index
    %c15_413 = arith.constant 15 : index
    %c0_414 = arith.constant 0 : index
    %624 = vector.load %arg2[%c0_411, %c3_412, %c15_413, %c0_414] : memref<1x4x16x16xf32, #tpu.memory_space<vmem>>, vector<1x1x1x16xf32>
    %625 = vector.shape_cast %624 : vector<1x1x1x16xf32> to vector<1x16xf32>
    %626 = vector.broadcast %625 : vector<1x16xf32> to vector<32x16xf32>
    %627 = arith.mulf %24, %626 : vector<32x16xf32>
    %628 = arith.addf %623, %627 : vector<32x16xf32>
    %629 = vector.extract_strided_slice %628 {offsets = [0, 0], sizes = [8, 16], strides = [1, 1]} : vector<32x16xf32> to vector<8x16xf32>
    %630 = vector.extract_strided_slice %628 {offsets = [8, 0], sizes = [8, 16], strides = [1, 1]} : vector<32x16xf32> to vector<8x16xf32>
    %cst_415 = arith.constant dense<0.000000e+00> : vector<8x32xf32>
    %631 = tpu.matmul %629, %6, %cst_415 {dimension_numbers = #tpu.dot_dimension_numbers<[1], [0], [0], [1], [0, 0, 1, 1], [], []>} : vector<8x16xf32>, vector<16x32xf32>, vector<8x32xf32> -> vector<8x32xf32>
    %cst_416 = arith.constant dense<0.000000e+00> : vector<8x32xf32>
    %632 = tpu.matmul %630, %11, %cst_416 {dimension_numbers = #tpu.dot_dimension_numbers<[1], [0], [0], [1], [0, 0, 1, 1], [], []>} : vector<8x16xf32>, vector<16x32xf32>, vector<8x32xf32> -> vector<8x32xf32>
    %633 = arith.addf %631, %632 : vector<8x32xf32>
    %634 = vector.broadcast %12 : vector<8x1xf32> to vector<8x32xf32>
    %635 = arith.addf %633, %634 : vector<8x32xf32>
    %c0_417 = arith.constant 0 : index
    %c0_418 = arith.constant 0 : index
    %c30 = arith.constant 30 : index
    %c0_419 = arith.constant 0 : index
    %636 = vector.load %arg5[%c0_417, %c0_418, %c30, %c0_419] : memref<1x8x32x32xf32, #tpu.memory_space<vmem>>, vector<1x8x1x32xf32>
    %637 = vector.shape_cast %636 : vector<1x8x1x32xf32> to vector<8x32xf32>
    %638 = vector.shape_cast %635 : vector<8x32xf32> to vector<1x8x1x32xf32>
    tpu.vector_store %arg5[%c0_417, %c0_418, %c30, %c0_419], %638 {strides = array<i32>} : memref<1x8x32x32xf32, #tpu.memory_space<vmem>>, vector<1x8x1x32xf32>,
    %639 = vector.extract_strided_slice %628 {offsets = [16, 0], sizes = [8, 16], strides = [1, 1]} : vector<32x16xf32> to vector<8x16xf32>
    %640 = vector.extract_strided_slice %628 {offsets = [24, 0], sizes = [8, 16], strides = [1, 1]} : vector<32x16xf32> to vector<8x16xf32>
    %cst_420 = arith.constant dense<0.000000e+00> : vector<8x32xf32>
    %641 = tpu.matmul %639, %6, %cst_420 {dimension_numbers = #tpu.dot_dimension_numbers<[1], [0], [0], [1], [0, 0, 1, 1], [], []>} : vector<8x16xf32>, vector<16x32xf32>, vector<8x32xf32> -> vector<8x32xf32>
    %cst_421 = arith.constant dense<0.000000e+00> : vector<8x32xf32>
    %642 = tpu.matmul %640, %11, %cst_421 {dimension_numbers = #tpu.dot_dimension_numbers<[1], [0], [0], [1], [0, 0, 1, 1], [], []>} : vector<8x16xf32>, vector<16x32xf32>, vector<8x32xf32> -> vector<8x32xf32>
    %643 = arith.addf %641, %642 : vector<8x32xf32>
    %644 = vector.broadcast %12 : vector<8x1xf32> to vector<8x32xf32>
    %645 = arith.addf %643, %644 : vector<8x32xf32>
    %c0_422 = arith.constant 0 : index
    %c0_423 = arith.constant 0 : index
    %c31 = arith.constant 31 : index
    %c0_424 = arith.constant 0 : index
    %646 = vector.load %arg5[%c0_422, %c0_423, %c31, %c0_424] : memref<1x8x32x32xf32, #tpu.memory_space<vmem>>, vector<1x8x1x32xf32>
    %647 = vector.shape_cast %646 : vector<1x8x1x32xf32> to vector<8x32xf32>
    %648 = vector.shape_cast %645 : vector<8x32xf32> to vector<1x8x1x32xf32>
    tpu.vector_store %arg5[%c0_422, %c0_423, %c31, %c0_424], %648 {strides = array<i32>} : memref<1x8x32x32xf32, #tpu.memory_space<vmem>>, vector<1x8x1x32xf32>,
    return
  }
  func.func @transform_0(%arg0: i32, %arg1: i32) -> (i32, i32, i32, i32) {
    %c0_i32 = arith.constant 0 : i32
    %c0_i32_0 = arith.constant 0 : i32
    %c0_i32_1 = arith.constant 0 : i32
    return %arg0, %c0_i32, %arg1, %c0_i32_0 : i32, i32, i32, i32
  }
  func.func @transform_1(%arg0: i32, %arg1: i32) -> (i32, i32) {
    %c0_i32 = arith.constant 0 : i32
    %c0_i32_0 = arith.constant 0 : i32
    %c0_i32_1 = arith.constant 0 : i32
    return %c0_i32, %c0_i32_0 : i32, i32
  }
  func.func @transform_2(%arg0: i32, %arg1: i32) -> (i32, i32) {
    %c0_i32 = arith.constant 0 : i32
    %c0_i32_0 = arith.constant 0 : i32
    %c0_i32_1 = arith.constant 0 : i32
    return %c0_i32, %c0_i32_0 : i32, i32
  }
  func.func @transform_3(%arg0: i32, %arg1: i32) -> (i32, i32, i32, i32) {
    %c0_i32 = arith.constant 0 : i32
    %c0_i32_0 = arith.constant 0 : i32
    %c0_i32_1 = arith.constant 0 : i32
    return %arg0, %c0_i32, %arg1, %c0_i32_0 : i32, i32, i32, i32
  }
}

module attributes {stable_mosaic.version = 11 : i64} {
  func.func @_planar_kernel(%arg0: i32, %arg1: i32, %arg2: memref<1x4x256xf32, #tpu.memory_space<vmem>>, %arg3: memref<32x4xf32, #tpu.memory_space<vmem>>, %arg4: memref<32x1xf32, #tpu.memory_space<vmem>>, %arg5: memref<1x32x256xf32, #tpu.memory_space<vmem>>) attributes {dimension_semantics = [#tpu.dimension_semantics<parallel>, #tpu.dimension_semantics<parallel>], iteration_bounds = array<i64: 2, 1>, scalar_prefetch = 0 : i64, scratch_operands = 0 : i64, tpu.core_type = #tpu.core_type<tc>, window_params = [{transform_indices = @transform_0, window_bounds = array<i64: 1, 4, 256>}, {pipeline_mode = #tpu.pipeline_mode<synchronous>, transform_indices = @transform_1, window_bounds = array<i64: 32, 4>}, {pipeline_mode = #tpu.pipeline_mode<synchronous>, transform_indices = @transform_2, window_bounds = array<i64: 32, 1>}, {transform_indices = @transform_3, window_bounds = array<i64: 1, 32, 256>}]} {
    %c0 = arith.constant 0 : index
    %c0_0 = arith.constant 0 : index
    %0 = vector.load %arg3[%c0, %c0_0] : memref<32x4xf32, #tpu.memory_space<vmem>>, vector<32x4xf32>
    %c0_1 = arith.constant 0 : index
    %c0_2 = arith.constant 0 : index
    %c0_3 = arith.constant 0 : index
    %1 = vector.load %arg2[%c0_1, %c0_2, %c0_3] : memref<1x4x256xf32, #tpu.memory_space<vmem>>, vector<1x4x256xf32>
    %2 = vector.shape_cast %1 : vector<1x4x256xf32> to vector<4x256xf32>
    %cst = arith.constant dense<0.000000e+00> : vector<32x256xf32>
    %3 = tpu.matmul %0, %2, %cst {dimension_numbers = #tpu.dot_dimension_numbers<[1], [0], [0], [1], [0, 0, 1, 1], [], []>} : vector<32x4xf32>, vector<4x256xf32>, vector<32x256xf32> -> vector<32x256xf32>
    %c0_4 = arith.constant 0 : index
    %c0_5 = arith.constant 0 : index
    %4 = vector.load %arg4[%c0_4, %c0_5] : memref<32x1xf32, #tpu.memory_space<vmem>>, vector<32x1xf32>
    %5 = vector.broadcast %4 : vector<32x1xf32> to vector<32x256xf32>
    %6 = arith.addf %3, %5 : vector<32x256xf32>
    %c0_6 = arith.constant 0 : index
    %c0_7 = arith.constant 0 : index
    %c0_8 = arith.constant 0 : index
    %7 = vector.load %arg5[%c0_6, %c0_7, %c0_8] : memref<1x32x256xf32, #tpu.memory_space<vmem>>, vector<1x32x256xf32>
    %8 = vector.shape_cast %7 : vector<1x32x256xf32> to vector<32x256xf32>
    %9 = vector.shape_cast %6 : vector<32x256xf32> to vector<1x32x256xf32>
    tpu.vector_store %arg5[%c0_6, %c0_7, %c0_8], %9 {strides = array<i32>} : memref<1x32x256xf32, #tpu.memory_space<vmem>>, vector<1x32x256xf32>,
    return
  }
  func.func @transform_0(%arg0: i32, %arg1: i32) -> (i32, i32, i32) {
    %c0_i32 = arith.constant 0 : i32
    %c0_i32_0 = arith.constant 0 : i32
    return %arg0, %c0_i32, %arg1 : i32, i32, i32
  }
  func.func @transform_1(%arg0: i32, %arg1: i32) -> (i32, i32) {
    %c0_i32 = arith.constant 0 : i32
    %c0_i32_0 = arith.constant 0 : i32
    %c0_i32_1 = arith.constant 0 : i32
    return %c0_i32, %c0_i32_0 : i32, i32
  }
  func.func @transform_2(%arg0: i32, %arg1: i32) -> (i32, i32) {
    %c0_i32 = arith.constant 0 : i32
    %c0_i32_0 = arith.constant 0 : i32
    %c0_i32_1 = arith.constant 0 : i32
    return %c0_i32, %c0_i32_0 : i32, i32
  }
  func.func @transform_3(%arg0: i32, %arg1: i32) -> (i32, i32, i32) {
    %c0_i32 = arith.constant 0 : i32
    %c0_i32_0 = arith.constant 0 : i32
    return %arg0, %c0_i32, %arg1 : i32, i32, i32
  }
}

</mosaic_0001>

<llo_original>
// kernel: tpu_custom_call.1
$region0: #{tpu_custom_call.1}
  #allocation0 [shape = 'u32[]', space=smem, size = 0x4, offset = 0x4, fixed_abs, tag = 'smem constant byte address 0x4 - core index']
  #allocation1 [shape = 'u32[72,128]{1,0:T(1,128)}', space=vmem, size = 0x9000, scoped, tag = 'internal scratch']
  %s0 = inlined_call_operand.hbm [shape: f32[2,4,16,16], index: 0, kind: input, shape index: {}]
  %s1 = inlined_call_operand.vmem [shape: f32[32,4], index: 1, kind: input, shape index: {}]
  %s2 = inlined_call_operand.vmem [shape: f32[8,1], index: 2, kind: input, shape index: {}]
  %s3 = inlined_call_operand.hbm [shape: f32[2,8,32,32], index: 3, kind: output, shape index: {}]
  %s4 = sld [smem:[#allocation0]]
  $region49: #{tpu_custom_call.1} parent=0
    _
  %s6 = ssub.s32 1, %s4
  %s7 = scalar_select 0, %s6, %s4
  $region1: #{tpu_custom_call.1} parent=0
    #allocation2 [shape = 'u8[65536]{0}', space=vmem, size = 0x10000, scoped, tag = 'input window, operand 0']
    #allocation3 [shape = 's32[2]{0}', space=sflag, size = 0x8, scoped, tag = 'scoped memory for tpu_custom_call.1']
    #allocation4 [shape = 's32[2]{0}', space=sflag, size = 0x8, scoped, tag = 'scoped memory for tpu_custom_call.1']
    #allocation5 [shape = 'u8[262144]{0}', space=vmem, size = 0x40000, scoped, tag = 'output window, operand 0']
    %8 = vsyncpa [#allocation3], 0
    %s9 = scalar_lea.sflag [#allocation3], 1
    %10 = vsyncpa %s9, 0
    %11 = vsyncpa [#allocation4], 0
    %s12 = scalar_lea.sflag [#allocation4], 1
    %13 = vsyncpa %s12, 0
    loop: start=0, step=1, limit=4
    $region2: #{tpu_custom_call.1} parent=1 // loop_pre_header
      _
    $region3: #{tpu_custom_call.1} parent=1 // loop_header
      %s15 = sphi 0, %s19
      %p16 = scmp.ge.s32.totalorder %s15, 4
      %s22 = sphi 0, %s34
      %s23 = sphi 0, %s30
      %s24 = sphi 0, %s22
      %s25 = sphi 0, %s23
      %s26 = sphi 0, %s24
      %s27 = sphi 0, %s25
      %s39 = sphi 0, %s41
      %s42 = sphi 0, %s39
      %s43 = sphi 0, %s42
      %s59 = sphi 0, %s43
      %s63 = sphi 0, %s63
      %s65 = sphi 0, %s63
      %s66 = sphi 0, %s65
      %s80 = sphi 0, %s66
      %s84 = sphi 0, %s84
      %s86 = sphi 0, %s84
      %s87 = sphi 0, %s86
      %s101 = sphi 0, %s87
      %s109 = sphi 0, %s111
      %s112 = sphi 0, %s109
      %s113 = sphi 0, %s112
      %s129 = sphi 0, %s113
    $region4: #{tpu_custom_call.1} parent=1 // loop_header_branch
      %18 = sbr.rel (%p16) target = $region8
    $region5: #{tpu_custom_call.1} parent=1 // loop_body
      %s20 = ssub.s32 %s15, 1
      %s21 = ssub.s32 %s15, 2
      %s28 = sadd.s32 1, %s23
      %p29 = scmp.ge.s32.totalorder %s28, 1
      %s30 = scalar_select %p29, 0, %s28
      %s31 = sadd.s32 1, %s22
      %s32 = scalar_select %p29, %s31, %s22
      %p33 = scmp.ge.s32.totalorder %s32, 2
      %s34 = scalar_select %p33, 0, %s32
      %s35 = ssub.s32 %s22, %s34
      %s36 = ssub.s32 %s23, %s30
      %s37 = sor.u32 %s35, %s36
      %p38 = scmp.eq.s32.totalorder %s37, 0
      %s40 = sadd.s32 %s39, 1
      %s41 = scalar_select %p38, %s39, %s40
      %p44 = pneg %p38
      %p45 = scmp.eq.s32.totalorder %s15, 1
      %p46 = por %p44, %p45
      %p47 = scmp.ne.s32.totalorder %s39, %s42
      %p48 = scmp.eq.s32.totalorder %s15, 0
      %p49 = por %p47, %p48
      %p50 = scmp.ne.s32.totalorder %s39, %s42
      %p51 = scmp.eq.s32.totalorder %s20, 1
      %p52 = por %p50, %p51
      %p53 = scmp.ne.s32.totalorder %s42, %s43
      %p54 = scmp.eq.s32.totalorder %s20, 0
      %p55 = por %p53, %p54
      %p56 = scmp.ne.s32.totalorder %s42, %s43
      %p57 = scmp.eq.s32.totalorder %s21, 1
      %p58 = por %p56, %p57
      %p60 = scmp.ne.s32.totalorder %s43, %s59
      %p61 = scmp.eq.s32.totalorder %s21, 0
      %p62 = por %p60, %p61
      %s64 = sadd.s32 %s63, 1
      %p67 = scmp.eq.s32.totalorder %s15, 1
      %p68 = scmp.ne.s32.totalorder %s63, %s65
      %p69 = scmp.eq.s32.totalorder %s15, 0
      %p70 = por %p68, %p69
      %p71 = scmp.ne.s32.totalorder %s63, %s65
      %p72 = scmp.eq.s32.totalorder %s20, 1
      %p73 = por %p71, %p72
      %p74 = scmp.ne.s32.totalorder %s65, %s66
      %p75 = scmp.eq.s32.totalorder %s20, 0
      %p76 = por %p74, %p75
      %p77 = scmp.ne.s32.totalorder %s65, %s66
      %p78 = scmp.eq.s32.totalorder %s21, 1
      %p79 = por %p77, %p78
      %p81 = scmp.ne.s32.totalorder %s66, %s80
      %p82 = scmp.eq.s32.totalorder %s21, 0
      %p83 = por %p81, %p82
      %s85 = sadd.s32 %s84, 1
      %p88 = scmp.eq.s32.totalorder %s15, 1
      %p89 = scmp.ne.s32.totalorder %s84, %s86
      %p90 = scmp.eq.s32.totalorder %s15, 0
      %p91 = por %p89, %p90
      %p92 = scmp.ne.s32.totalorder %s84, %s86
      %p93 = scmp.eq.s32.totalorder %s20, 1
      %p94 = por %p92, %p93
      %p95 = scmp.ne.s32.totalorder %s86, %s87
      %p96 = scmp.eq.s32.totalorder %s20, 0
      %p97 = por %p95, %p96
      %p98 = scmp.ne.s32.totalorder %s86, %s87
      %p99 = scmp.eq.s32.totalorder %s21, 1
      %p100 = por %p98, %p99
      %p102 = scmp.ne.s32.totalorder %s87, %s101
      %p103 = scmp.eq.s32.totalorder %s21, 0
      %p104 = por %p102, %p103
      %s105 = ssub.s32 %s22, %s34
      %s106 = ssub.s32 %s23, %s30
      %s107 = sor.u32 %s105, %s106
      %p108 = scmp.eq.s32.totalorder %s107, 0
      %s110 = sadd.s32 %s109, 1
      %s111 = scalar_select %p108, %s109, %s110
      %p114 = pneg %p108
      %p115 = scmp.eq.s32.totalorder %s15, 1
      %p116 = por %p114, %p115
      %p117 = scmp.ne.s32.totalorder %s109, %s112
      %p118 = scmp.eq.s32.totalorder %s15, 0
      %p119 = por %p117, %p118
      %p120 = scmp.ne.s32.totalorder %s109, %s112
      %p121 = scmp.eq.s32.totalorder %s20, 1
      %p122 = por %p120, %p121
      %p123 = scmp.ne.s32.totalorder %s112, %s113
      %p124 = scmp.eq.s32.totalorder %s20, 0
      %p125 = por %p123, %p124
      %p126 = scmp.ne.s32.totalorder %s112, %s113
      %p127 = scmp.eq.s32.totalorder %s21, 1
      %p128 = por %p126, %p127
      %p130 = scmp.ne.s32.totalorder %s113, %s129
      %p131 = scmp.eq.s32.totalorder %s21, 0
      %p132 = por %p130, %p131
      %p133 = scmp.le.s32.totalorder 1, %s15
      %p134 = scmp.lt.s32.totalorder %s15, 3
      %p135 = pnand %p133, %p134
      %p136 = pneg %p135
      // Predicated region
      $region9: #{tpu_custom_call.1} parent=5 // pred_check
        _
      $region10: #{tpu_custom_call.1} parent=5 // pred_check_branch
        %138 = sbr.rel (%p135) target = $region12
      $region11: #{tpu_custom_call.1} parent=5 // pred_region
        %s139 = ssub.s32 %s15, 1
        // Predicated region
        $region13: #{tpu_custom_call.1} parent=11 // pred_check
          %p140 = pneg %p76
        $region14: #{tpu_custom_call.1} parent=11 // pred_check_branch
          %142 = sbr.rel (%p140) target = $region16
        $region15: #{tpu_custom_call.1} parent=11 // pred_region
          _
        $region16: #{tpu_custom_call.1} parent=11 // pred_fallthru
          _
        // Predicated region
        $region17: #{tpu_custom_call.1} parent=11 // pred_check
          %p143 = pneg %p97
        $region18: #{tpu_custom_call.1} parent=11 // pred_check_branch
          %145 = sbr.rel (%p143) target = $region20
        $region19: #{tpu_custom_call.1} parent=11 // pred_region
          _
        $region20: #{tpu_custom_call.1} parent=11 // pred_fallthru
          _
      $region12: #{tpu_custom_call.1} parent=5 // pred_fallthru
        _
      %p146 = scmp.lt.s32.totalorder %s15, 2
      // Predicated region
      $region21: #{tpu_custom_call.1} parent=5 // pred_check
        %p147 = pneg %p146
      $region22: #{tpu_custom_call.1} parent=5 // pred_check_branch
        %149 = sbr.rel (%p147) target = $region24
      $region23: #{tpu_custom_call.1} parent=5 // pred_region
        // Predicated region
        $region25: #{tpu_custom_call.1} parent=23 // pred_check
          %p150 = pneg %p49
        $region26: #{tpu_custom_call.1} parent=23 // pred_check_branch
          %152 = sbr.rel (%p150) target = $region28
        $region27: #{tpu_custom_call.1} parent=23 // pred_region
          %s153 = sand.u32 %s39, 1
          %s154 = scalar_lea.sflag [#allocation3], %s153
          %s155 = sand.u32 %s39, 1
          %s156 = smul.addr %s155, 64
          %s157 = scalar_lea.vmem [#allocation2], %s156
          %s158 = smul.u32 2, %s23
          %160 = vsyncadd %s154, 0
          %s161 = smul.addr %s22, 8
          %s162 = sadd.s32 %s158, %s161
          %s163 = smul.addr %s162, 8
          %s164 = scalar_lea.hbm %s0, %s163
          %s165 = sshll.u32 %s164, 4
          %s166 = int_to_ptr.hbm [resolvable:$true] %s165
          %s167 = sshll.u32 %s157, 4
          %s168 = int_to_ptr.vmem [resolvable:$true] %s167
          %173 = dma.hbm_to_vmem [thread:$0]  %s166, 1024, %s168, %s154, 128, 128, 8
        $region28: #{tpu_custom_call.1} parent=23 // pred_fallthru
          _
      $region24: #{tpu_custom_call.1} parent=5 // pred_fallthru
        _
      %p174 = scmp.le.s32.totalorder 1, %s15
      %p175 = scmp.lt.s32.totalorder %s15, 3
      %p176 = pnand %p174, %p175
      %p177 = pneg %p176
      // Predicated region
      $region29: #{tpu_custom_call.1} parent=5 // pred_check
        _
      $region30: #{tpu_custom_call.1} parent=5 // pred_check_branch
        %179 = sbr.rel (%p176) target = $region32
      $region31: #{tpu_custom_call.1} parent=5 // pred_region
        %s180 = ssub.s32 %s15, 1
        %s181 = sand.u32 %s42, 1
        %s182 = scalar_lea.sflag [#allocation3], %s181
        %s183 = sand.u32 %s42, 1
        %s184 = smul.addr %s183, 64
        %s185 = scalar_lea.vmem [#allocation2], %s184
        // Predicated region
        $region33: #{tpu_custom_call.1} parent=31 // pred_check
          %p186 = pneg %p55
        $region34: #{tpu_custom_call.1} parent=31 // pred_check_branch
          %188 = sbr.rel (%p186) target = $region36
        $region35: #{tpu_custom_call.1} parent=31 // pred_region
          %190 = dma.done %s182, 1024
        $region36: #{tpu_custom_call.1} parent=31 // pred_fallthru
          _
        %s191 = sand.u32 %s42, 1
        %s192 = scalar_lea.sflag [#allocation3], %s191
        %s193 = sand.u32 %s42, 1
        %s194 = smul.addr %s193, 64
        %s195 = scalar_lea.vmem [#allocation2], %s194
        %p196 = pneg %p55
        %p197 = pneg %p52
        %p198 = pneg %p76
        %p199 = pneg %p73
        %p200 = pneg %p97
        %p201 = pneg %p94
        %p202 = pneg %p125
        %p203 = pneg %p122
        %s204 = sand.u32 %s112, 1
        %s205 = scalar_lea.sflag [#allocation4], %s204
        %s206 = sand.u32 %s112, 1
        %s207 = smul.addr %s206, 256
        %s208 = scalar_lea.vmem [#allocation5], %s207
        %s209 = smul.u32 2, %s25
        %s210 = smul.u32 4, %s25
        %v211 = vlaneseq
        %v212 = vand.u32 %v211, 127
        %v213 = vlaneseq
        %v214 = vshrl.u32 %v213, 7
        %v215 = vadd.s32 %v214, 8
        %v216 = vmul.u32 %v214, 2
        %v217 = vmul.u32 %v215, 2
        %vm218 = vcmp.eq.s32.totalorder %v212, %v216
        %vm219 = vcmp.eq.s32.totalorder %v212, %v217
        %v220 = vsel %vm218, 1, 0
        %v221 = vsel %vm219, 1, 0
        %v222 = vcvt.s32.f32 %v220
        %v223 = vcvt.s32.f32 %v221
        %v224 = vadd.s32 %v216, 1
        %v225 = vadd.s32 %v217, 1
        %vm226 = vcmp.eq.s32.totalorder %v212, %v224
        %vm227 = vcmp.eq.s32.totalorder %v212, %v225
        %v228 = vsel %vm226, 1, 0
        %v229 = vsel %vm227, 1, 0
        %v230 = vcvt.s32.f32 %v228
        %v231 = vcvt.s32.f32 %v229
        %v232 = vld [vmem:[%s2] sm:$0xff]
        %v233 = vld [vmem:[%s1] sm:$0xff]
        %v234 = vld [vmem:[%s1 + $0x8] sm:$0xff]
        %v235 = vld [vmem:[%s1 + $0x10] sm:$0xff]
        %v236 = vld [vmem:[%s1 + $0x18] sm:$0xff]
        %238 = vset.pattern.permute.xlu0 0
        %239 = vperm.xlu0 %238, %v233
        %v240 = vpop.permute.xlu0 %239
        %243 = vset.pattern.permute.xlu0 0
        %244 = vperm.xlu0 %243, %v234
        %v245 = vpop.permute.xlu0 %244
        %248 = vset.pattern.permute.xlu0 0
        %249 = vperm.xlu0 %248, %v235
        %v250 = vpop.permute.xlu0 %249
        %253 = vset.pattern.permute.xlu0 0
        %254 = vperm.xlu0 %253, %v236
        %v255 = vpop.permute.xlu0 %254
        %257 = vset.pattern.permute.xlu0 1
        %258 = vperm.xlu0 %257, %v233
        %v259 = vpop.permute.xlu0 %258
        %261 = vset.pattern.permute.xlu0 1
        %262 = vperm.xlu0 %261, %v234
        %v263 = vpop.permute.xlu0 %262
        %265 = vset.pattern.permute.xlu0 1
        %266 = vperm.xlu0 %265, %v235
        %v267 = vpop.permute.xlu0 %266
        %269 = vset.pattern.permute.xlu0 1
        %270 = vperm.xlu0 %269, %v236
        %v271 = vpop.permute.xlu0 %270
        %273 = vset.pattern.permute.xlu0 2
        %274 = vperm.xlu0 %273, %v233
        %v275 = vpop.permute.xlu0 %274
        %277 = vset.pattern.permute.xlu0 2
        %278 = vperm.xlu0 %277, %v234
        %v279 = vpop.permute.xlu0 %278
        %281 = vset.pattern.permute.xlu0 2
        %282 = vperm.xlu0 %281, %v235
        %v283 = vpop.permute.xlu0 %282
        %285 = vset.pattern.permute.xlu0 2
        %286 = vperm.xlu0 %285, %v236
        %v287 = vpop.permute.xlu0 %286
        %289 = vset.pattern.permute.xlu0 3
        %290 = vperm.xlu0 %289, %v233
        %v291 = vpop.permute.xlu0 %290
        %293 = vset.pattern.permute.xlu0 3
        %294 = vperm.xlu0 %293, %v234
        %v295 = vpop.permute.xlu0 %294
        %297 = vset.pattern.permute.xlu0 3
        %298 = vperm.xlu0 %297, %v235
        %v299 = vpop.permute.xlu0 %298
        %301 = vset.pattern.permute.xlu0 3
        %302 = vperm.xlu0 %301, %v236
        %v303 = vpop.permute.xlu0 %302
        %v305 = vld [vmem:[%s185] sm:$0x1]
        %v306 = vperm.slane %v305, 0
        %v307 = vmul.f32 %v240, %v306
        %v308 = vmul.f32 %v245, %v306
        %v309 = vmul.f32 %v250, %v306
        %v310 = vmul.f32 %v255, %v306
        %s311 = scalar_lea.vmem %s185, 16 [#allocation2]
        %v312 = vld [vmem:[%s311] sm:$0x1]
        %v313 = vperm.slane %v312, 0
        %v314 = vmul.f32 %v259, %v313
        %v315 = vmul.f32 %v263, %v313
        %v316 = vmul.f32 %v267, %v313
        %v317 = vmul.f32 %v271, %v313
        %v318 = vadd.f32 %v307, %v314
        %v319 = vadd.f32 %v308, %v315
        %v320 = vadd.f32 %v309, %v316
        %v321 = vadd.f32 %v310, %v317
        %s322 = scalar_lea.vmem %s185, 32 [#allocation2]
        %v323 = vld [vmem:[%s322] sm:$0x1]
        %v324 = vperm.slane %v323, 0
        %v325 = vmul.f32 %v275, %v324
        %v326 = vmul.f32 %v279, %v324
        %v327 = vmul.f32 %v283, %v324
        %v328 = vmul.f32 %v287, %v324
        %v329 = vadd.f32 %v318, %v325
        %v330 = vadd.f32 %v319, %v326
        %v331 = vadd.f32 %v320, %v327
        %v332 = vadd.f32 %v321, %v328
        %s333 = scalar_lea.vmem %s185, 48 [#allocation2]
        %v334 = vld [vmem:[%s333] sm:$0x1]
        %v335 = vperm.slane %v334, 0
        %v336 = vmul.f32 %v291, %v335
        %v337 = vmul.f32 %v295, %v335
        %v338 = vmul.f32 %v299, %v335
        %v339 = vmul.f32 %v303, %v335
        %v340 = vadd.f32 %v329, %v336
        %v341 = vadd.f32 %v330, %v337
        %v342 = vadd.f32 %v331, %v338
        %v343 = vadd.f32 %v332, %v339
        %vm344 = vcmask 130048
        %v346 = vsel %vm344, %v341, 0
        %348 = vmatpush.msra.mxu0 0.0
        %349 = vmatpush.msra.mxu0 0.0
        %350 = vmatpush.msra.mxu0 0.0
        %351 = vmatpush.msra.mxu0 0.0
        %352 = vmatpush.msra.mxu0 0.0
        %353 = vmatpush.msra.mxu0 0.0
        %354 = vmatpush.msra.mxu0 0.0
        %355 = vmatpush.msra.mxu0 0.0
        %356 = vmatpush.msra.mxu0 0.0
        %357 = vmatpush.msra.mxu0 0.0
        %358 = vmatpush.msra.mxu0 0.0
        %359 = vmatpush.msra.mxu0 0.0
        %360 = vmatpush.msra.mxu0 0.0
        %361 = vmatpush.msra.mxu0 0.0
        %362 = vmatpush.msra.mxu0 %v231
        %363 = vmatpush.msra.mxu0 %v230
        %364 = vmatmul.f32.gmra.mxu0 %v346
        %v365 = vpop.f32.mrf.mxu0
        %v366 = vadd.f32 0.0, %v365
        %367 = vdwg.mxu0
        %v369 = vsel %vm344, %v340, 0
        %371 = vmatpush.msra.mxu0 0.0
        %372 = vmatpush.msra.mxu0 0.0
        %373 = vmatpush.msra.mxu0 0.0
        %374 = vmatpush.msra.mxu0 0.0
        %375 = vmatpush.msra.mxu0 0.0
        %376 = vmatpush.msra.mxu0 0.0
        %377 = vmatpush.msra.mxu0 0.0
        %378 = vmatpush.msra.mxu0 0.0
        %379 = vmatpush.msra.mxu0 0.0
        %380 = vmatpush.msra.mxu0 0.0
        %381 = vmatpush.msra.mxu0 0.0
        %382 = vmatpush.msra.mxu0 0.0
        %383 = vmatpush.msra.mxu0 0.0
        %384 = vmatpush.msra.mxu0 0.0
        %385 = vmatpush.msra.mxu0 %v223
        %386 = vmatpush.msra.mxu0 %v222
        %387 = vmatmul.f32.gmra.mxu0 %v369
        %v388 = vpop.f32.mrf.mxu0
        %v389 = vadd.f32 %v366, %v388
        %390 = vdwg.mxu0
        %392 = vset.pattern.permute.xlu0 0
        %393 = vperm.xlu0 %392, %v232
        %v394 = vpop.permute.xlu0 %393
        %v396 = vadd.f32 %v389, %v394
        %v398 = vrot.slane %v396, 1
        %v399 = vrot.slane %v396, 2
        %v400 = vrot.slane %v396, 3
        %v401 = vrot.slane %v396, 4
        %v402 = vrot.slane %v396, 5
        %v403 = vrot.slane %v396, 6
        %v404 = vrot.slane %v396, 7
        %vm412 = vcmask 253952
        %413 = vst.msk [vmem:[%s208] sm:$0x1] %vm412, %v396
        %414 = vst.msk [vmem:[%s208 + $0x20] sm:$0x1] %vm412, %v398
        %415 = vst.msk [vmem:[%s208 + $0x40] sm:$0x1] %vm412, %v399
        %416 = vst.msk [vmem:[%s208 + $0x60] sm:$0x1] %vm412, %v400
        %417 = vst.msk [vmem:[%s208 + $0x80] sm:$0x1] %vm412, %v401
        %418 = vst.msk [vmem:[%s208 + $0xa0] sm:$0x1] %vm412, %v402
        %419 = vst.msk [vmem:[%s208 + $0xc0] sm:$0x1] %vm412, %v403
        %420 = vst.msk [vmem:[%s208 + $0xe0] sm:$0x1] %vm412, %v404
        %v422 = vsel %vm344, %v343, 0
        %424 = vmatpush.msra.mxu0 0.0
        %425 = vmatpush.msra.mxu0 0.0
        %426 = vmatpush.msra.mxu0 0.0
        %427 = vmatpush.msra.mxu0 0.0
        %428 = vmatpush.msra.mxu0 0.0
        %429 = vmatpush.msra.mxu0 0.0
        %430 = vmatpush.msra.mxu0 0.0
        %431 = vmatpush.msra.mxu0 0.0
        %432 = vmatpush.msra.mxu0 0.0
        %433 = vmatpush.msra.mxu0 0.0
        %434 = vmatpush.msra.mxu0 0.0
        %435 = vmatpush.msra.mxu0 0.0
        %436 = vmatpush.msra.mxu0 0.0
        %437 = vmatpush.msra.mxu0 0.0
        %438 = vmatpush.msra.mxu0 %v231
        %439 = vmatpush.msra.mxu0 %v230
        %440 = vmatmul.f32.gmra.mxu0 %v422
        %v441 = vpop.f32.mrf.mxu0
        %v442 = vadd.f32 0.0, %v441
        %443 = vdwg.mxu0
        %v445 = vsel %vm344, %v342, 0
        %447 = vmatpush.msra.mxu0 0.0
        %448 = vmatpush.msra.mxu0 0.0
        %449 = vmatpush.msra.mxu0 0.0
        %450 = vmatpush.msra.mxu0 0.0
        %451 = vmatpush.msra.mxu0 0.0
        %452 = vmatpush.msra.mxu0 0.0
        %453 = vmatpush.msra.mxu0 0.0
        %454 = vmatpush.msra.mxu0 0.0
        %455 = vmatpush.msra.mxu0 0.0
        %456 = vmatpush.msra.mxu0 0.0
        %457 = vmatpush.msra.mxu0 0.0
        %458 = vmatpush.msra.mxu0 0.0
        %459 = vmatpush.msra.mxu0 0.0
        %460 = vmatpush.msra.mxu0 0.0
        %461 = vmatpush.msra.mxu0 %v223
        %462 = vmatpush.msra.mxu0 %v222
        %463 = vmatmul.f32.gmra.mxu0 %v445
        %v464 = vpop.f32.mrf.mxu0
        %v465 = vadd.f32 %v442, %v464
        %466 = vdwg.mxu0
        %v467 = vadd.f32 %v465, %v394
        %v469 = vrot.slane %v467, 1
        %v470 = vrot.slane %v467, 2
        %v471 = vrot.slane %v467, 3
        %v472 = vrot.slane %v467, 4
        %v473 = vrot.slane %v467, 5
        %v474 = vrot.slane %v467, 6
        %v475 = vrot.slane %v467, 7
        %483 = vst.msk [vmem:[%s208 + $0x1] sm:$0x1] %vm412, %v467
        %484 = vst.msk [vmem:[%s208 + $0x21] sm:$0x1] %vm412, %v469
        %485 = vst.msk [vmem:[%s208 + $0x41] sm:$0x1] %vm412, %v470
        %486 = vst.msk [vmem:[%s208 + $0x61] sm:$0x1] %vm412, %v471
        %487 = vst.msk [vmem:[%s208 + $0x81] sm:$0x1] %vm412, %v472
        %488 = vst.msk [vmem:[%s208 + $0xa1] sm:$0x1] %vm412, %v473
        %489 = vst.msk [vmem:[%s208 + $0xc1] sm:$0x1] %vm412, %v474
        %490 = vst.msk [vmem:[%s208 + $0xe1] sm:$0x1] %vm412, %v475
        %v491 = vld [vmem:[%s185 + $0x1] sm:$0x1]
        %v492 = vperm.slane %v491, 0
        %v493 = vmul.f32 %v240, %v492
        %v494 = vmul.f32 %v245, %v492
        %v495 = vmul.f32 %v250, %v492
        %v496 = vmul.f32 %v255, %v492
        %v497 = vld [vmem:[%s311 + $0x1] sm:$0x1]
        %v498 = vperm.slane %v497, 0
        %v499 = vmul.f32 %v259, %v498
        %v500 = vmul.f32 %v263, %v498
        %v501 = vmul.f32 %v267, %v498
        %v502 = vmul.f32 %v271, %v498
        %v503 = vadd.f32 %v493, %v499
        %v504 = vadd.f32 %v494, %v500
        %v505 = vadd.f32 %v495, %v501
        %v506 = vadd.f32 %v496, %v502
        %v507 = vld [vmem:[%s322 + $0x1] sm:$0x1]
        %v508 = vperm.slane %v507, 0
        %v509 = vmul.f32 %v275, %v508
        %v510 = vmul.f32 %v279, %v508
        %v511 = vmul.f32 %v283, %v508
        %v512 = vmul.f32 %v287, %v508
        %v513 = vadd.f32 %v503, %v509
        %v514 = vadd.f32 %v504, %v510
        %v515 = vadd.f32 %v505, %v511
        %v516 = vadd.f32 %v506, %v512
        %v517 = vld [vmem:[%s333 + $0x1] sm:$0x1]
        %v518 = vperm.slane %v517, 0
        %v519 = vmul.f32 %v291, %v518
        %v520 = vmul.f32 %v295, %v518
        %v521 = vmul.f32 %v299, %v518
        %v522 = vmul.f32 %v303, %v518
        %v523 = vadd.f32 %v513, %v519
        %v524 = vadd.f32 %v514, %v520
        %v525 = vadd.f32 %v515, %v521
        %v526 = vadd.f32 %v516, %v522
        %v528 = vsel %vm344, %v524, 0
        %530 = vmatpush.msra.mxu0 0.0
        %531 = vmatpush.msra.mxu0 0.0
        %532 = vmatpush.msra.mxu0 0.0
        %533 = vmatpush.msra.mxu0 0.0
        %534 = vmatpush.msra.mxu0 0.0
        %535 = vmatpush.msra.mxu0 0.0
        %536 = vmatpush.msra.mxu0 0.0
        %537 = vmatpush.msra.mxu0 0.0
        %538 = vmatpush.msra.mxu0 0.0
        %539 = vmatpush.msra.mxu0 0.0
        %540 = vmatpush.msra.mxu0 0.0
        %541 = vmatpush.msra.mxu0 0.0
        %542 = vmatpush.msra.mxu0 0.0
        %543 = vmatpush.msra.mxu0 0.0
        %544 = vmatpush.msra.mxu0 %v231
        %545 = vmatpush.msra.mxu0 %v230
        %546 = vmatmul.f32.gmra.mxu0 %v528
        %v547 = vpop.f32.mrf.mxu0
        %v548 = vadd.f32 0.0, %v547
        %549 = vdwg.mxu0
        %v551 = vsel %vm344, %v523, 0
        %553 = vmatpush.msra.mxu0 0.0
        %554 = vmatpush.msra.mxu0 0.0
        %555 = vmatpush.msra.mxu0 0.0
        %556 = vmatpush.msra.mxu0 0.0
        %557 = vmatpush.msra.mxu0 0.0
        %558 = vmatpush.msra.mxu0 0.0
        %559 = vmatpush.msra.mxu0 0.0
        %560 = vmatpush.msra.mxu0 0.0
        %561 = vmatpush.msra.mxu0 0.0
        %562 = vmatpush.msra.mxu0 0.0
        %563 = vmatpush.msra.mxu0 0.0
        %564 = vmatpush.msra.mxu0 0.0
        %565 = vmatpush.msra.mxu0 0.0
        %566 = vmatpush.msra.mxu0 0.0
        %567 = vmatpush.msra.mxu0 %v223
        %568 = vmatpush.msra.mxu0 %v222
        %569 = vmatmul.f32.gmra.mxu0 %v551
        %v570 = vpop.f32.mrf.mxu0
        %v571 = vadd.f32 %v548, %v570
        %572 = vdwg.mxu0
        %v573 = vadd.f32 %v571, %v394
        %v575 = vrot.slane %v573, 1
        %v576 = vrot.slane %v573, 2
        %v577 = vrot.slane %v573, 3
        %v578 = vrot.slane %v573, 4
        %v579 = vrot.slane %v573, 5
        %v580 = vrot.slane %v573, 6
        %v581 = vrot.slane %v573, 7
        %589 = vst.msk [vmem:[%s208 + $0x2] sm:$0x1] %vm412, %v573
        %590 = vst.msk [vmem:[%s208 + $0x22] sm:$0x1] %vm412, %v575
        %591 = vst.msk [vmem:[%s208 + $0x42] sm:$0x1] %vm412, %v576
        %592 = vst.msk [vmem:[%s208 + $0x62] sm:$0x1] %vm412, %v577
        %593 = vst.msk [vmem:[%s208 + $0x82] sm:$0x1] %vm412, %v578
        %594 = vst.msk [vmem:[%s208 + $0xa2] sm:$0x1] %vm412, %v579
        %595 = vst.msk [vmem:[%s208 + $0xc2] sm:$0x1] %vm412, %v580
        %596 = vst.msk [vmem:[%s208 + $0xe2] sm:$0x1] %vm412, %v581
        %v598 = vsel %vm344, %v526, 0
        %600 = vmatpush.msra.mxu0 0.0
        %601 = vmatpush.msra.mxu0 0.0
        %602 = vmatpush.msra.mxu0 0.0
        %603 = vmatpush.msra.mxu0 0.0
        %604 = vmatpush.msra.mxu0 0.0
        %605 = vmatpush.msra.mxu0 0.0
        %606 = vmatpush.msra.mxu0 0.0
        %607 = vmatpush.msra.mxu0 0.0
        %608 = vmatpush.msra.mxu0 0.0
        %609 = vmatpush.msra.mxu0 0.0
        %610 = vmatpush.msra.mxu0 0.0
        %611 = vmatpush.msra.mxu0 0.0
        %612 = vmatpush.msra.mxu0 0.0
        %613 = vmatpush.msra.mxu0 0.0
        %614 = vmatpush.msra.mxu0 %v231
        %615 = vmatpush.msra.mxu0 %v230
        %616 = vmatmul.f32.gmra.mxu0 %v598
        %v617 = vpop.f32.mrf.mxu0
        %v618 = vadd.f32 0.0, %v617
        %619 = vdwg.mxu0
        %v621 = vsel %vm344, %v525, 0
        %623 = vmatpush.msra.mxu0 0.0
        %624 = vmatpush.msra.mxu0 0.0
        %625 = vmatpush.msra.mxu0 0.0
        %626 = vmatpush.msra.mxu0 0.0
        %627 = vmatpush.msra.mxu0 0.0
        %628 = vmatpush.msra.mxu0 0.0
        %629 = vmatpush.msra.mxu0 0.0
        %630 = vmatpush.msra.mxu0 0.0
        %631 = vmatpush.msra.mxu0 0.0
        %632 = vmatpush.msra.mxu0 0.0
        %633 = vmatpush.msra.mxu0 0.0
        %634 = vmatpush.msra.mxu0 0.0
        %635 = vmatpush.msra.mxu0 0.0
        %636 = vmatpush.msra.mxu0 0.0
        %637 = vmatpush.msra.mxu0 %v223
        %638 = vmatpush.msra.mxu0 %v222
        %639 = vmatmul.f32.gmra.mxu0 %v621
        %v640 = vpop.f32.mrf.mxu0
        %v641 = vadd.f32 %v618, %v640
        %642 = vdwg.mxu0
        %v643 = vadd.f32 %v641, %v394
        %v645 = vrot.slane %v643, 1
        %v646 = vrot.slane %v643, 2
        %v647 = vrot.slane %v643, 3
        %v648 = vrot.slane %v643, 4
        %v649 = vrot.slane %v643, 5
        %v650 = vrot.slane %v643, 6
        %v651 = vrot.slane %v643, 7
        %659 = vst.msk [vmem:[%s208 + $0x3] sm:$0x1] %vm412, %v643
        %660 = vst.msk [vmem:[%s208 + $0x23] sm:$0x1] %vm412, %v645
        %661 = vst.msk [vmem:[%s208 + $0x43] sm:$0x1] %vm412, %v646
        %662 = vst.msk [vmem:[%s208 + $0x63] sm:$0x1] %vm412, %v647
        %663 = vst.msk [vmem:[%s208 + $0x83] sm:$0x1] %vm412, %v648
        %664 = vst.msk [vmem:[%s208 + $0xa3] sm:$0x1] %vm412, %v649
        %665 = vst.msk [vmem:[%s208 + $0xc3] sm:$0x1] %vm412, %v650
        %666 = vst.msk [vmem:[%s208 + $0xe3] sm:$0x1] %vm412, %v651
        %v667 = vld [vmem:[%s185 + $0x2] sm:$0x1]
        %v668 = vperm.slane %v667, 0
        %v669 = vmul.f32 %v240, %v668
        %v670 = vmul.f32 %v245, %v668
        %v671 = vmul.f32 %v250, %v668
        %v672 = vmul.f32 %v255, %v668
        %v673 = vld [vmem:[%s311 + $0x2] sm:$0x1]
        %v674 = vperm.slane %v673, 0
        %v675 = vmul.f32 %v259, %v674
        %v676 = vmul.f32 %v263, %v674
        %v677 = vmul.f32 %v267, %v674
        %v678 = vmul.f32 %v271, %v674
        %v679 = vadd.f32 %v669, %v675
        %v680 = vadd.f32 %v670, %v676
        %v681 = vadd.f32 %v671, %v677
        %v682 = vadd.f32 %v672, %v678
        %v683 = vld [vmem:[%s322 + $0x2] sm:$0x1]
        %v684 = vperm.slane %v683, 0
        %v685 = vmul.f32 %v275, %v684
        %v686 = vmul.f32 %v279, %v684
        %v687 = vmul.f32 %v283, %v684
        %v688 = vmul.f32 %v287, %v684
        %v689 = vadd.f32 %v679, %v685
        %v690 = vadd.f32 %v680, %v686
        %v691 = vadd.f32 %v681, %v687
        %v692 = vadd.f32 %v682, %v688
        %v693 = vld [vmem:[%s333 + $0x2] sm:$0x1]
        %v694 = vperm.slane %v693, 0
        %v695 = vmul.f32 %v291, %v694
        %v696 = vmul.f32 %v295, %v694
        %v697 = vmul.f32 %v299, %v694
        %v698 = vmul.f32 %v303, %v694
        %v699 = vadd.f32 %v689, %v695
        %v700 = vadd.f32 %v690, %v696
        %v701 = vadd.f32 %v691, %v697
        %v702 = vadd.f32 %v692, %v698
        %v704 = vsel %vm344, %v700, 0
        %706 = vmatpush.msra.mxu0 0.0
        %707 = vmatpush.msra.mxu0 0.0
        %708 = vmatpush.msra.mxu0 0.0
        %709 = vmatpush.msra.mxu0 0.0
        %710 = vmatpush.msra.mxu0 0.0
        %711 = vmatpush.msra.mxu0 0.0
        %712 = vmatpush.msra.mxu0 0.0
        %713 = vmatpush.msra.mxu0 0.0
        %714 = vmatpush.msra.mxu0 0.0
        %715 = vmatpush.msra.mxu0 0.0
        %716 = vmatpush.msra.mxu0 0.0
        %717 = vmatpush.msra.mxu0 0.0
        %718 = vmatpush.msra.mxu0 0.0
        %719 = vmatpush.msra.mxu0 0.0
        %720 = vmatpush.msra.mxu0 %v231
        %721 = vmatpush.msra.mxu0 %v230
        %722 = vmatmul.f32.gmra.mxu0 %v704
        %v723 = vpop.f32.mrf.mxu0
        %v724 = vadd.f32 0.0, %v723
        %725 = vdwg.mxu0
        %v727 = vsel %vm344, %v699, 0
        %729 = vmatpush.msra.mxu0 0.0
        %730 = vmatpush.msra.mxu0 0.0
        %731 = vmatpush.msra.mxu0 0.0
        %732 = vmatpush.msra.mxu0 0.0
        %733 = vmatpush.msra.mxu0 0.0
        %734 = vmatpush.msra.mxu0 0.0
        %735 = vmatpush.msra.mxu0 0.0
        %736 = vmatpush.msra.mxu0 0.0
        %737 = vmatpush.msra.mxu0 0.0
        %738 = vmatpush.msra.mxu0 0.0
        %739 = vmatpush.msra.mxu0 0.0
        %740 = vmatpush.msra.mxu0 0.0
        %741 = vmatpush.msra.mxu0 0.0
        %742 = vmatpush.msra.mxu0 0.0
        %743 = vmatpush.msra.mxu0 %v223
        %744 = vmatpush.msra.mxu0 %v222
        %745 = vmatmul.f32.gmra.mxu0 %v727
        %v746 = vpop.f32.mrf.mxu0
        %v747 = vadd.f32 %v724, %v746
        %748 = vdwg.mxu0
        %v749 = vadd.f32 %v747, %v394
        %v751 = vrot.slane %v749, 1
        %v752 = vrot.slane %v749, 2
        %v753 = vrot.slane %v749, 3
        %v754 = vrot.slane %v749, 4
        %v755 = vrot.slane %v749, 5
        %v756 = vrot.slane %v749, 6
        %v757 = vrot.slane %v749, 7
        %765 = vst.msk [vmem:[%s208 + $0x4] sm:$0x1] %vm412, %v749
        %766 = vst.msk [vmem:[%s208 + $0x24] sm:$0x1] %vm412, %v751
        %767 = vst.msk [vmem:[%s208 + $0x44] sm:$0x1] %vm412, %v752
        %768 = vst.msk [vmem:[%s208 + $0x64] sm:$0x1] %vm412, %v753
        %769 = vst.msk [vmem:[%s208 + $0x84] sm:$0x1] %vm412, %v754
        %770 = vst.msk [vmem:[%s208 + $0xa4] sm:$0x1] %vm412, %v755
        %771 = vst.msk [vmem:[%s208 + $0xc4] sm:$0x1] %vm412, %v756
        %772 = vst.msk [vmem:[%s208 + $0xe4] sm:$0x1] %vm412, %v757
        %v774 = vsel %vm344, %v702, 0
        %776 = vmatpush.msra.mxu0 0.0
        %777 = vmatpush.msra.mxu0 0.0
        %778 = vmatpush.msra.mxu0 0.0
        %779 = vmatpush.msra.mxu0 0.0
        %780 = vmatpush.msra.mxu0 0.0
        %781 = vmatpush.msra.mxu0 0.0
        %782 = vmatpush.msra.mxu0 0.0
        %783 = vmatpush.msra.mxu0 0.0
        %784 = vmatpush.msra.mxu0 0.0
        %785 = vmatpush.msra.mxu0 0.0
        %786 = vmatpush.msra.mxu0 0.0
        %787 = vmatpush.msra.mxu0 0.0
        %788 = vmatpush.msra.mxu0 0.0
        %789 = vmatpush.msra.mxu0 0.0
        %790 = vmatpush.msra.mxu0 %v231
        %791 = vmatpush.msra.mxu0 %v230
        %792 = vmatmul.f32.gmra.mxu0 %v774
        %v793 = vpop.f32.mrf.mxu0
        %v794 = vadd.f32 0.0, %v793
        %795 = vdwg.mxu0
        %v797 = vsel %vm344, %v701, 0
        %799 = vmatpush.msra.mxu0 0.0
        %800 = vmatpush.msra.mxu0 0.0
        %801 = vmatpush.msra.mxu0 0.0
        %802 = vmatpush.msra.mxu0 0.0
        %803 = vmatpush.msra.mxu0 0.0
        %804 = vmatpush.msra.mxu0 0.0
        %805 = vmatpush.msra.mxu0 0.0
        %806 = vmatpush.msra.mxu0 0.0
        %807 = vmatpush.msra.mxu0 0.0
        %808 = vmatpush.msra.mxu0 0.0
        %809 = vmatpush.msra.mxu0 0.0
        %810 = vmatpush.msra.mxu0 0.0
        %811 = vmatpush.msra.mxu0 0.0
        %812 = vmatpush.msra.mxu0 0.0
        %813 = vmatpush.msra.mxu0 %v223
        %814 = vmatpush.msra.mxu0 %v222
        %815 = vmatmul.f32.gmra.mxu0 %v797
        %v816 = vpop.f32.mrf.mxu0
        %v817 = vadd.f32 %v794, %v816
        %818 = vdwg.mxu0
        %v819 = vadd.f32 %v817, %v394
        %v821 = vrot.slane %v819, 1
        %v822 = vrot.slane %v819, 2
        %v823 = vrot.slane %v819, 3
        %v824 = vrot.slane %v819, 4
        %v825 = vrot.slane %v819, 5
        %v826 = vrot.slane %v819, 6
        %v827 = vrot.slane %v819, 7
        %835 = vst.msk [vmem:[%s208 + $0x5] sm:$0x1] %vm412, %v819
        %836 = vst.msk [vmem:[%s208 + $0x25] sm:$0x1] %vm412, %v821
        %837 = vst.msk [vmem:[%s208 + $0x45] sm:$0x1] %vm412, %v822
        %838 = vst.msk [vmem:[%s208 + $0x65] sm:$0x1] %vm412, %v823
        %839 = vst.msk [vmem:[%s208 + $0x85] sm:$0x1] %vm412, %v824
        %840 = vst.msk [vmem:[%s208 + $0xa5] sm:$0x1] %vm412, %v825
        %841 = vst.msk [vmem:[%s208 + $0xc5] sm:$0x1] %vm412, %v826
        %842 = vst.msk [vmem:[%s208 + $0xe5] sm:$0x1] %vm412, %v827
        %v843 = vld [vmem:[%s185 + $0x3] sm:$0x1]
        %v844 = vperm.slane %v843, 0
        %v845 = vmul.f32 %v240, %v844
        %v846 = vmul.f32 %v245, %v844
        %v847 = vmul.f32 %v250, %v844
        %v848 = vmul.f32 %v255, %v844
        %v849 = vld [vmem:[%s311 + $0x3] sm:$0x1]
        %v850 = vperm.slane %v849, 0
        %v851 = vmul.f32 %v259, %v850
        %v852 = vmul.f32 %v263, %v850
        %v853 = vmul.f32 %v267, %v850
        %v854 = vmul.f32 %v271, %v850
        %v855 = vadd.f32 %v845, %v851
        %v856 = vadd.f32 %v846, %v852
        %v857 = vadd.f32 %v847, %v853
        %v858 = vadd.f32 %v848, %v854
        %v859 = vld [vmem:[%s322 + $0x3] sm:$0x1]
        %v860 = vperm.slane %v859, 0
        %v861 = vmul.f32 %v275, %v860
        %v862 = vmul.f32 %v279, %v860
        %v863 = vmul.f32 %v283, %v860
        %v864 = vmul.f32 %v287, %v860
        %v865 = vadd.f32 %v855, %v861
        %v866 = vadd.f32 %v856, %v862
        %v867 = vadd.f32 %v857, %v863
        %v868 = vadd.f32 %v858, %v864
        %v869 = vld [vmem:[%s333 + $0x3] sm:$0x1]
        %v870 = vperm.slane %v869, 0
        %v871 = vmul.f32 %v291, %v870
        %v872 = vmul.f32 %v295, %v870
        %v873 = vmul.f32 %v299, %v870
        %v874 = vmul.f32 %v303, %v870
        %v875 = vadd.f32 %v865, %v871
        %v876 = vadd.f32 %v866, %v872
        %v877 = vadd.f32 %v867, %v873
        %v878 = vadd.f32 %v868, %v874
        %v880 = vsel %vm344, %v876, 0
        %882 = vmatpush.msra.mxu0 0.0
        %883 = vmatpush.msra.mxu0 0.0
        %884 = vmatpush.msra.mxu0 0.0
        %885 = vmatpush.msra.mxu0 0.0
        %886 = vmatpush.msra.mxu0 0.0
        %887 = vmatpush.msra.mxu0 0.0
        %888 = vmatpush.msra.mxu0 0.0
        %889 = vmatpush.msra.mxu0 0.0
        %890 = vmatpush.msra.mxu0 0.0
        %891 = vmatpush.msra.mxu0 0.0
        %892 = vmatpush.msra.mxu0 0.0
        %893 = vmatpush.msra.mxu0 0.0
        %894 = vmatpush.msra.mxu0 0.0
        %895 = vmatpush.msra.mxu0 0.0
        %896 = vmatpush.msra.mxu0 %v231
        %897 = vmatpush.msra.mxu0 %v230
        %898 = vmatmul.f32.gmra.mxu0 %v880
        %v899 = vpop.f32.mrf.mxu0
        %v900 = vadd.f32 0.0, %v899
        %901 = vdwg.mxu0
        %v903 = vsel %vm344, %v875, 0
        %905 = vmatpush.msra.mxu0 0.0
        %906 = vmatpush.msra.mxu0 0.0
        %907 = vmatpush.msra.mxu0 0.0
        %908 = vmatpush.msra.mxu0 0.0
        %909 = vmatpush.msra.mxu0 0.0
        %910 = vmatpush.msra.mxu0 0.0
        %911 = vmatpush.msra.mxu0 0.0
        %912 = vmatpush.msra.mxu0 0.0
        %913 = vmatpush.msra.mxu0 0.0
        %914 = vmatpush.msra.mxu0 0.0
        %915 = vmatpush.msra.mxu0 0.0
        %916 = vmatpush.msra.mxu0 0.0
        %917 = vmatpush.msra.mxu0 0.0
        %918 = vmatpush.msra.mxu0 0.0
        %919 = vmatpush.msra.mxu0 %v223
        %920 = vmatpush.msra.mxu0 %v222
        %921 = vmatmul.f32.gmra.mxu0 %v903
        %v922 = vpop.f32.mrf.mxu0
        %v923 = vadd.f32 %v900, %v922
        %924 = vdwg.mxu0
        %v925 = vadd.f32 %v923, %v394
        %v927 = vrot.slane %v925, 1
        %v928 = vrot.slane %v925, 2
        %v929 = vrot.slane %v925, 3
        %v930 = vrot.slane %v925, 4
        %v931 = vrot.slane %v925, 5
        %v932 = vrot.slane %v925, 6
        %v933 = vrot.slane %v925, 7
        %941 = vst.msk [vmem:[%s208 + $0x6] sm:$0x1] %vm412, %v925
        %942 = vst.msk [vmem:[%s208 + $0x26] sm:$0x1] %vm412, %v927
        %943 = vst.msk [vmem:[%s208 + $0x46] sm:$0x1] %vm412, %v928
        %944 = vst.msk [vmem:[%s208 + $0x66] sm:$0x1] %vm412, %v929
        %945 = vst.msk [vmem:[%s208 + $0x86] sm:$0x1] %vm412, %v930
        %946 = vst.msk [vmem:[%s208 + $0xa6] sm:$0x1] %vm412, %v931
        %947 = vst.msk [vmem:[%s208 + $0xc6] sm:$0x1] %vm412, %v932
        %948 = vst.msk [vmem:[%s208 + $0xe6] sm:$0x1] %vm412, %v933
        %v950 = vsel %vm344, %v878, 0
        %952 = vmatpush.msra.mxu0 0.0
        %953 = vmatpush.msra.mxu0 0.0
        %954 = vmatpush.msra.mxu0 0.0
        %955 = vmatpush.msra.mxu0 0.0
        %956 = vmatpush.msra.mxu0 0.0
        %957 = vmatpush.msra.mxu0 0.0
        %958 = vmatpush.msra.mxu0 0.0
        %959 = vmatpush.msra.mxu0 0.0
        %960 = vmatpush.msra.mxu0 0.0
        %961 = vmatpush.msra.mxu0 0.0
        %962 = vmatpush.msra.mxu0 0.0
        %963 = vmatpush.msra.mxu0 0.0
        %964 = vmatpush.msra.mxu0 0.0
        %965 = vmatpush.msra.mxu0 0.0
        %966 = vmatpush.msra.mxu0 %v231
        %967 = vmatpush.msra.mxu0 %v230
        %968 = vmatmul.f32.gmra.mxu0 %v950
        %v969 = vpop.f32.mrf.mxu0
        %v970 = vadd.f32 0.0, %v969
        %971 = vdwg.mxu0
        %v973 = vsel %vm344, %v877, 0
        %975 = vmatpush.msra.mxu0 0.0
        %976 = vmatpush.msra.mxu0 0.0
        %977 = vmatpush.msra.mxu0 0.0
        %978 = vmatpush.msra.mxu0 0.0
        %979 = vmatpush.msra.mxu0 0.0
        %980 = vmatpush.msra.mxu0 0.0
        %981 = vmatpush.msra.mxu0 0.0
        %982 = vmatpush.msra.mxu0 0.0
        %983 = vmatpush.msra.mxu0 0.0
        %984 = vmatpush.msra.mxu0 0.0
        %985 = vmatpush.msra.mxu0 0.0
        %986 = vmatpush.msra.mxu0 0.0
        %987 = vmatpush.msra.mxu0 0.0
        %988 = vmatpush.msra.mxu0 0.0
        %989 = vmatpush.msra.mxu0 %v223
        %990 = vmatpush.msra.mxu0 %v222
        %991 = vmatmul.f32.gmra.mxu0 %v973
        %v992 = vpop.f32.mrf.mxu0
        %v993 = vadd.f32 %v970, %v992
        %994 = vdwg.mxu0
        %v995 = vadd.f32 %v993, %v394
        %v997 = vrot.slane %v995, 1
        %v998 = vrot.slane %v995, 2
        %v999 = vrot.slane %v995, 3
        %v1000 = vrot.slane %v995, 4
        %v1001 = vrot.slane %v995, 5
        %v1002 = vrot.slane %v995, 6
        %v1003 = vrot.slane %v995, 7
        %1011 = vst.msk [vmem:[%s208 + $0x7] sm:$0x1] %vm412, %v995
        %1012 = vst.msk [vmem:[%s208 + $0x27] sm:$0x1] %vm412, %v997
        %1013 = vst.msk [vmem:[%s208 + $0x47] sm:$0x1] %vm412, %v998
        %1014 = vst.msk [vmem:[%s208 + $0x67] sm:$0x1] %vm412, %v999
        %1015 = vst.msk [vmem:[%s208 + $0x87] sm:$0x1] %vm412, %v1000
        %1016 = vst.msk [vmem:[%s208 + $0xa7] sm:$0x1] %vm412, %v1001
        %1017 = vst.msk [vmem:[%s208 + $0xc7] sm:$0x1] %vm412, %v1002
        %1018 = vst.msk [vmem:[%s208 + $0xe7] sm:$0x1] %vm412, %v1003
        %v1019 = vld [vmem:[%s185 + $0x4] sm:$0x1]
        %v1020 = vperm.slane %v1019, 0
        %v1021 = vmul.f32 %v240, %v1020
        %v1022 = vmul.f32 %v245, %v1020
        %v1023 = vmul.f32 %v250, %v1020
        %v1024 = vmul.f32 %v255, %v1020
        %v1025 = vld [vmem:[%s311 + $0x4] sm:$0x1]
        %v1026 = vperm.slane %v1025, 0
        %v1027 = vmul.f32 %v259, %v1026
        %v1028 = vmul.f32 %v263, %v1026
        %v1029 = vmul.f32 %v267, %v1026
        %v1030 = vmul.f32 %v271, %v1026
        %v1031 = vadd.f32 %v1021, %v1027
        %v1032 = vadd.f32 %v1022, %v1028
        %v1033 = vadd.f32 %v1023, %v1029
        %v1034 = vadd.f32 %v1024, %v1030
        %v1035 = vld [vmem:[%s322 + $0x4] sm:$0x1]
        %v1036 = vperm.slane %v1035, 0
        %v1037 = vmul.f32 %v275, %v1036
        %v1038 = vmul.f32 %v279, %v1036
        %v1039 = vmul.f32 %v283, %v1036
        %v1040 = vmul.f32 %v287, %v1036
        %v1041 = vadd.f32 %v1031, %v1037
        %v1042 = vadd.f32 %v1032, %v1038
        %v1043 = vadd.f32 %v1033, %v1039
        %v1044 = vadd.f32 %v1034, %v1040
        %v1045 = vld [vmem:[%s333 + $0x4] sm:$0x1]
        %v1046 = vperm.slane %v1045, 0
        %v1047 = vmul.f32 %v291, %v1046
        %v1048 = vmul.f32 %v295, %v1046
        %v1049 = vmul.f32 %v299, %v1046
        %v1050 = vmul.f32 %v303, %v1046
        %v1051 = vadd.f32 %v1041, %v1047
        %v1052 = vadd.f32 %v1042, %v1048
        %v1053 = vadd.f32 %v1043, %v1049
        %v1054 = vadd.f32 %v1044, %v1050
        %v1056 = vsel %vm344, %v1052, 0
        %1058 = vmatpush.msra.mxu0 0.0
        %1059 = vmatpush.msra.mxu0 0.0
        %1060 = vmatpush.msra.mxu0 0.0
        %1061 = vmatpush.msra.mxu0 0.0
        %1062 = vmatpush.msra.mxu0 0.0
        %1063 = vmatpush.msra.mxu0 0.0
        %1064 = vmatpush.msra.mxu0 0.0
        %1065 = vmatpush.msra.mxu0 0.0
        %1066 = vmatpush.msra.mxu0 0.0
        %1067 = vmatpush.msra.mxu0 0.0
        %1068 = vmatpush.msra.mxu0 0.0
        %1069 = vmatpush.msra.mxu0 0.0
        %1070 = vmatpush.msra.mxu0 0.0
        %1071 = vmatpush.msra.mxu0 0.0
        %1072 = vmatpush.msra.mxu0 %v231
        %1073 = vmatpush.msra.mxu0 %v230
        %1074 = vmatmul.f32.gmra.mxu0 %v1056
        %v1075 = vpop.f32.mrf.mxu0
        %v1076 = vadd.f32 0.0, %v1075
        %1077 = vdwg.mxu0
        %v1079 = vsel %vm344, %v1051, 0
        %1081 = vmatpush.msra.mxu0 0.0
        %1082 = vmatpush.msra.mxu0 0.0
        %1083 = vmatpush.msra.mxu0 0.0
        %1084 = vmatpush.msra.mxu0 0.0
        %1085 = vmatpush.msra.mxu0 0.0
        %1086 = vmatpush.msra.mxu0 0.0
        %1087 = vmatpush.msra.mxu0 0.0
        %1088 = vmatpush.msra.mxu0 0.0
        %1089 = vmatpush.msra.mxu0 0.0
        %1090 = vmatpush.msra.mxu0 0.0
        %1091 = vmatpush.msra.mxu0 0.0
        %1092 = vmatpush.msra.mxu0 0.0
        %1093 = vmatpush.msra.mxu0 0.0
        %1094 = vmatpush.msra.mxu0 0.0
        %1095 = vmatpush.msra.mxu0 %v223
        %1096 = vmatpush.msra.mxu0 %v222
        %1097 = vmatmul.f32.gmra.mxu0 %v1079
        %v1098 = vpop.f32.mrf.mxu0
        %v1099 = vadd.f32 %v1076, %v1098
        %1100 = vdwg.mxu0
        %v1101 = vadd.f32 %v1099, %v394
        %v1103 = vrot.slane %v1101, 1
        %v1104 = vrot.slane %v1101, 2
        %v1105 = vrot.slane %v1101, 3
        %v1106 = vrot.slane %v1101, 4
        %v1107 = vrot.slane %v1101, 5
        %v1108 = vrot.slane %v1101, 6
        %v1109 = vrot.slane %v1101, 7
        %1117 = vst.msk [vmem:[%s208 + $0x8] sm:$0x1] %vm412, %v1101
        %1118 = vst.msk [vmem:[%s208 + $0x28] sm:$0x1] %vm412, %v1103
        %1119 = vst.msk [vmem:[%s208 + $0x48] sm:$0x1] %vm412, %v1104
        %1120 = vst.msk [vmem:[%s208 + $0x68] sm:$0x1] %vm412, %v1105
        %1121 = vst.msk [vmem:[%s208 + $0x88] sm:$0x1] %vm412, %v1106
        %1122 = vst.msk [vmem:[%s208 + $0xa8] sm:$0x1] %vm412, %v1107
        %1123 = vst.msk [vmem:[%s208 + $0xc8] sm:$0x1] %vm412, %v1108
        %1124 = vst.msk [vmem:[%s208 + $0xe8] sm:$0x1] %vm412, %v1109
        %v1126 = vsel %vm344, %v1054, 0
        %1128 = vmatpush.msra.mxu0 0.0
        %1129 = vmatpush.msra.mxu0 0.0
        %1130 = vmatpush.msra.mxu0 0.0
        %1131 = vmatpush.msra.mxu0 0.0
        %1132 = vmatpush.msra.mxu0 0.0
        %1133 = vmatpush.msra.mxu0 0.0
        %1134 = vmatpush.msra.mxu0 0.0
        %1135 = vmatpush.msra.mxu0 0.0
        %1136 = vmatpush.msra.mxu0 0.0
        %1137 = vmatpush.msra.mxu0 0.0
        %1138 = vmatpush.msra.mxu0 0.0
        %1139 = vmatpush.msra.mxu0 0.0
        %1140 = vmatpush.msra.mxu0 0.0
        %1141 = vmatpush.msra.mxu0 0.0
        %1142 = vmatpush.msra.mxu0 %v231
        %1143 = vmatpush.msra.mxu0 %v230
        %1144 = vmatmul.f32.gmra.mxu0 %v1126
        %v1145 = vpop.f32.mrf.mxu0
        %v1146 = vadd.f32 0.0, %v1145
        %1147 = vdwg.mxu0
        %v1149 = vsel %vm344, %v1053, 0
        %1151 = vmatpush.msra.mxu0 0.0
        %1152 = vmatpush.msra.mxu0 0.0
        %1153 = vmatpush.msra.mxu0 0.0
        %1154 = vmatpush.msra.mxu0 0.0
        %1155 = vmatpush.msra.mxu0 0.0
        %1156 = vmatpush.msra.mxu0 0.0
        %1157 = vmatpush.msra.mxu0 0.0
        %1158 = vmatpush.msra.mxu0 0.0
        %1159 = vmatpush.msra.mxu0 0.0
        %1160 = vmatpush.msra.mxu0 0.0
        %1161 = vmatpush.msra.mxu0 0.0
        %1162 = vmatpush.msra.mxu0 0.0
        %1163 = vmatpush.msra.mxu0 0.0
        %1164 = vmatpush.msra.mxu0 0.0
        %1165 = vmatpush.msra.mxu0 %v223
        %1166 = vmatpush.msra.mxu0 %v222
        %1167 = vmatmul.f32.gmra.mxu0 %v1149
        %v1168 = vpop.f32.mrf.mxu0
        %v1169 = vadd.f32 %v1146, %v1168
        %1170 = vdwg.mxu0
        %v1171 = vadd.f32 %v1169, %v394
        %v1173 = vrot.slane %v1171, 1
        %v1174 = vrot.slane %v1171, 2
        %v1175 = vrot.slane %v1171, 3
        %v1176 = vrot.slane %v1171, 4
        %v1177 = vrot.slane %v1171, 5
        %v1178 = vrot.slane %v1171, 6
        %v1179 = vrot.slane %v1171, 7
        %1187 = vst.msk [vmem:[%s208 + $0x9] sm:$0x1] %vm412, %v1171
        %1188 = vst.msk [vmem:[%s208 + $0x29] sm:$0x1] %vm412, %v1173
        %1189 = vst.msk [vmem:[%s208 + $0x49] sm:$0x1] %vm412, %v1174
        %1190 = vst.msk [vmem:[%s208 + $0x69] sm:$0x1] %vm412, %v1175
        %1191 = vst.msk [vmem:[%s208 + $0x89] sm:$0x1] %vm412, %v1176
        %1192 = vst.msk [vmem:[%s208 + $0xa9] sm:$0x1] %vm412, %v1177
        %1193 = vst.msk [vmem:[%s208 + $0xc9] sm:$0x1] %vm412, %v1178
        %1194 = vst.msk [vmem:[%s208 + $0xe9] sm:$0x1] %vm412, %v1179
        %v1195 = vld [vmem:[%s185 + $0x5] sm:$0x1]
        %v1196 = vperm.slane %v1195, 0
        %v1197 = vmul.f32 %v240, %v1196
        %v1198 = vmul.f32 %v245, %v1196
        %v1199 = vmul.f32 %v250, %v1196
        %v1200 = vmul.f32 %v255, %v1196
        %v1201 = vld [vmem:[%s311 + $0x5] sm:$0x1]
        %v1202 = vperm.slane %v1201, 0
        %v1203 = vmul.f32 %v259, %v1202
        %v1204 = vmul.f32 %v263, %v1202
        %v1205 = vmul.f32 %v267, %v1202
        %v1206 = vmul.f32 %v271, %v1202
        %v1207 = vadd.f32 %v1197, %v1203
        %v1208 = vadd.f32 %v1198, %v1204
        %v1209 = vadd.f32 %v1199, %v1205
        %v1210 = vadd.f32 %v1200, %v1206
        %v1211 = vld [vmem:[%s322 + $0x5] sm:$0x1]
        %v1212 = vperm.slane %v1211, 0
        %v1213 = vmul.f32 %v275, %v1212
        %v1214 = vmul.f32 %v279, %v1212
        %v1215 = vmul.f32 %v283, %v1212
        %v1216 = vmul.f32 %v287, %v1212
        %v1217 = vadd.f32 %v1207, %v1213
        %v1218 = vadd.f32 %v1208, %v1214
        %v1219 = vadd.f32 %v1209, %v1215
        %v1220 = vadd.f32 %v1210, %v1216
        %v1221 = vld [vmem:[%s333 + $0x5] sm:$0x1]
        %v1222 = vperm.slane %v1221, 0
        %v1223 = vmul.f32 %v291, %v1222
        %v1224 = vmul.f32 %v295, %v1222
        %v1225 = vmul.f32 %v299, %v1222
        %v1226 = vmul.f32 %v303, %v1222
        %v1227 = vadd.f32 %v1217, %v1223
        %v1228 = vadd.f32 %v1218, %v1224
        %v1229 = vadd.f32 %v1219, %v1225
        %v1230 = vadd.f32 %v1220, %v1226
        %v1232 = vsel %vm344, %v1228, 0
        %1234 = vmatpush.msra.mxu0 0.0
        %1235 = vmatpush.msra.mxu0 0.0
        %1236 = vmatpush.msra.mxu0 0.0
        %1237 = vmatpush.msra.mxu0 0.0
        %1238 = vmatpush.msra.mxu0 0.0
        %1239 = vmatpush.msra.mxu0 0.0
        %1240 = vmatpush.msra.mxu0 0.0
        %1241 = vmatpush.msra.mxu0 0.0
        %1242 = vmatpush.msra.mxu0 0.0
        %1243 = vmatpush.msra.mxu0 0.0
        %1244 = vmatpush.msra.mxu0 0.0
        %1245 = vmatpush.msra.mxu0 0.0
        %1246 = vmatpush.msra.mxu0 0.0
        %1247 = vmatpush.msra.mxu0 0.0
        %1248 = vmatpush.msra.mxu0 %v231
        %1249 = vmatpush.msra.mxu0 %v230
        %1250 = vmatmul.f32.gmra.mxu0 %v1232
        %v1251 = vpop.f32.mrf.mxu0
        %v1252 = vadd.f32 0.0, %v1251
        %1253 = vdwg.mxu0
        %v1255 = vsel %vm344, %v1227, 0
        %1257 = vmatpush.msra.mxu0 0.0
        %1258 = vmatpush.msra.mxu0 0.0
        %1259 = vmatpush.msra.mxu0 0.0
        %1260 = vmatpush.msra.mxu0 0.0
        %1261 = vmatpush.msra.mxu0 0.0
        %1262 = vmatpush.msra.mxu0 0.0
        %1263 = vmatpush.msra.mxu0 0.0
        %1264 = vmatpush.msra.mxu0 0.0
        %1265 = vmatpush.msra.mxu0 0.0
        %1266 = vmatpush.msra.mxu0 0.0
        %1267 = vmatpush.msra.mxu0 0.0
        %1268 = vmatpush.msra.mxu0 0.0
        %1269 = vmatpush.msra.mxu0 0.0
        %1270 = vmatpush.msra.mxu0 0.0
        %1271 = vmatpush.msra.mxu0 %v223
        %1272 = vmatpush.msra.mxu0 %v222
        %1273 = vmatmul.f32.gmra.mxu0 %v1255
        %v1274 = vpop.f32.mrf.mxu0
        %v1275 = vadd.f32 %v1252, %v1274
        %1276 = vdwg.mxu0
        %v1277 = vadd.f32 %v1275, %v394
        %v1279 = vrot.slane %v1277, 1
        %v1280 = vrot.slane %v1277, 2
        %v1281 = vrot.slane %v1277, 3
        %v1282 = vrot.slane %v1277, 4
        %v1283 = vrot.slane %v1277, 5
        %v1284 = vrot.slane %v1277, 6
        %v1285 = vrot.slane %v1277, 7
        %1293 = vst.msk [vmem:[%s208 + $0xa] sm:$0x1] %vm412, %v1277
        %1294 = vst.msk [vmem:[%s208 + $0x2a] sm:$0x1] %vm412, %v1279
        %1295 = vst.msk [vmem:[%s208 + $0x4a] sm:$0x1] %vm412, %v1280
        %1296 = vst.msk [vmem:[%s208 + $0x6a] sm:$0x1] %vm412, %v1281
        %1297 = vst.msk [vmem:[%s208 + $0x8a] sm:$0x1] %vm412, %v1282
        %1298 = vst.msk [vmem:[%s208 + $0xaa] sm:$0x1] %vm412, %v1283
        %1299 = vst.msk [vmem:[%s208 + $0xca] sm:$0x1] %vm412, %v1284
        %1300 = vst.msk [vmem:[%s208 + $0xea] sm:$0x1] %vm412, %v1285
        %v1302 = vsel %vm344, %v1230, 0
        %1304 = vmatpush.msra.mxu0 0.0
        %1305 = vmatpush.msra.mxu0 0.0
        %1306 = vmatpush.msra.mxu0 0.0
        %1307 = vmatpush.msra.mxu0 0.0
        %1308 = vmatpush.msra.mxu0 0.0
        %1309 = vmatpush.msra.mxu0 0.0
        %1310 = vmatpush.msra.mxu0 0.0
        %1311 = vmatpush.msra.mxu0 0.0
        %1312 = vmatpush.msra.mxu0 0.0
        %1313 = vmatpush.msra.mxu0 0.0
        %1314 = vmatpush.msra.mxu0 0.0
        %1315 = vmatpush.msra.mxu0 0.0
        %1316 = vmatpush.msra.mxu0 0.0
        %1317 = vmatpush.msra.mxu0 0.0
        %1318 = vmatpush.msra.mxu0 %v231
        %1319 = vmatpush.msra.mxu0 %v230
        %1320 = vmatmul.f32.gmra.mxu0 %v1302
        %v1321 = vpop.f32.mrf.mxu0
        %v1322 = vadd.f32 0.0, %v1321
        %1323 = vdwg.mxu0
        %v1325 = vsel %vm344, %v1229, 0
        %1327 = vmatpush.msra.mxu0 0.0
        %1328 = vmatpush.msra.mxu0 0.0
        %1329 = vmatpush.msra.mxu0 0.0
        %1330 = vmatpush.msra.mxu0 0.0
        %1331 = vmatpush.msra.mxu0 0.0
        %1332 = vmatpush.msra.mxu0 0.0
        %1333 = vmatpush.msra.mxu0 0.0
        %1334 = vmatpush.msra.mxu0 0.0
        %1335 = vmatpush.msra.mxu0 0.0
        %1336 = vmatpush.msra.mxu0 0.0
        %1337 = vmatpush.msra.mxu0 0.0
        %1338 = vmatpush.msra.mxu0 0.0
        %1339 = vmatpush.msra.mxu0 0.0
        %1340 = vmatpush.msra.mxu0 0.0
        %1341 = vmatpush.msra.mxu0 %v223
        %1342 = vmatpush.msra.mxu0 %v222
        %1343 = vmatmul.f32.gmra.mxu0 %v1325
        %v1344 = vpop.f32.mrf.mxu0
        %v1345 = vadd.f32 %v1322, %v1344
        %1346 = vdwg.mxu0
        %v1347 = vadd.f32 %v1345, %v394
        %v1349 = vrot.slane %v1347, 1
        %v1350 = vrot.slane %v1347, 2
        %v1351 = vrot.slane %v1347, 3
        %v1352 = vrot.slane %v1347, 4
        %v1353 = vrot.slane %v1347, 5
        %v1354 = vrot.slane %v1347, 6
        %v1355 = vrot.slane %v1347, 7
        %1363 = vst.msk [vmem:[%s208 + $0xb] sm:$0x1] %vm412, %v1347
        %1364 = vst.msk [vmem:[%s208 + $0x2b] sm:$0x1] %vm412, %v1349
        %1365 = vst.msk [vmem:[%s208 + $0x4b] sm:$0x1] %vm412, %v1350
        %1366 = vst.msk [vmem:[%s208 + $0x6b] sm:$0x1] %vm412, %v1351
        %1367 = vst.msk [vmem:[%s208 + $0x8b] sm:$0x1] %vm412, %v1352
        %1368 = vst.msk [vmem:[%s208 + $0xab] sm:$0x1] %vm412, %v1353
        %1369 = vst.msk [vmem:[%s208 + $0xcb] sm:$0x1] %vm412, %v1354
        %1370 = vst.msk [vmem:[%s208 + $0xeb] sm:$0x1] %vm412, %v1355
        %v1371 = vld [vmem:[%s185 + $0x6] sm:$0x1]
        %v1372 = vperm.slane %v1371, 0
        %v1373 = vmul.f32 %v240, %v1372
        %v1374 = vmul.f32 %v245, %v1372
        %v1375 = vmul.f32 %v250, %v1372
        %v1376 = vmul.f32 %v255, %v1372
        %v1377 = vld [vmem:[%s311 + $0x6] sm:$0x1]
        %v1378 = vperm.slane %v1377, 0
        %v1379 = vmul.f32 %v259, %v1378
        %v1380 = vmul.f32 %v263, %v1378
        %v1381 = vmul.f32 %v267, %v1378
        %v1382 = vmul.f32 %v271, %v1378
        %v1383 = vadd.f32 %v1373, %v1379
        %v1384 = vadd.f32 %v1374, %v1380
        %v1385 = vadd.f32 %v1375, %v1381
        %v1386 = vadd.f32 %v1376, %v1382
        %v1387 = vld [vmem:[%s322 + $0x6] sm:$0x1]
        %v1388 = vperm.slane %v1387, 0
        %v1389 = vmul.f32 %v275, %v1388
        %v1390 = vmul.f32 %v279, %v1388
        %v1391 = vmul.f32 %v283, %v1388
        %v1392 = vmul.f32 %v287, %v1388
        %v1393 = vadd.f32 %v1383, %v1389
        %v1394 = vadd.f32 %v1384, %v1390
        %v1395 = vadd.f32 %v1385, %v1391
        %v1396 = vadd.f32 %v1386, %v1392
        %v1397 = vld [vmem:[%s333 + $0x6] sm:$0x1]
        %v1398 = vperm.slane %v1397, 0
        %v1399 = vmul.f32 %v291, %v1398
        %v1400 = vmul.f32 %v295, %v1398
        %v1401 = vmul.f32 %v299, %v1398
        %v1402 = vmul.f32 %v303, %v1398
        %v1403 = vadd.f32 %v1393, %v1399
        %v1404 = vadd.f32 %v1394, %v1400
        %v1405 = vadd.f32 %v1395, %v1401
        %v1406 = vadd.f32 %v1396, %v1402
        %v1408 = vsel %vm344, %v1404, 0
        %1410 = vmatpush.msra.mxu0 0.0
        %1411 = vmatpush.msra.mxu0 0.0
        %1412 = vmatpush.msra.mxu0 0.0
        %1413 = vmatpush.msra.mxu0 0.0
        %1414 = vmatpush.msra.mxu0 0.0
        %1415 = vmatpush.msra.mxu0 0.0
        %1416 = vmatpush.msra.mxu0 0.0
        %1417 = vmatpush.msra.mxu0 0.0
        %1418 = vmatpush.msra.mxu0 0.0
        %1419 = vmatpush.msra.mxu0 0.0
        %1420 = vmatpush.msra.mxu0 0.0
        %1421 = vmatpush.msra.mxu0 0.0
        %1422 = vmatpush.msra.mxu0 0.0
        %1423 = vmatpush.msra.mxu0 0.0
        %1424 = vmatpush.msra.mxu0 %v231
        %1425 = vmatpush.msra.mxu0 %v230
        %1426 = vmatmul.f32.gmra.mxu0 %v1408
        %v1427 = vpop.f32.mrf.mxu0
        %v1428 = vadd.f32 0.0, %v1427
        %1429 = vdwg.mxu0
        %v1431 = vsel %vm344, %v1403, 0
        %1433 = vmatpush.msra.mxu0 0.0
        %1434 = vmatpush.msra.mxu0 0.0
        %1435 = vmatpush.msra.mxu0 0.0
        %1436 = vmatpush.msra.mxu0 0.0
        %1437 = vmatpush.msra.mxu0 0.0
        %1438 = vmatpush.msra.mxu0 0.0
        %1439 = vmatpush.msra.mxu0 0.0
        %1440 = vmatpush.msra.mxu0 0.0
        %1441 = vmatpush.msra.mxu0 0.0
        %1442 = vmatpush.msra.mxu0 0.0
        %1443 = vmatpush.msra.mxu0 0.0
        %1444 = vmatpush.msra.mxu0 0.0
        %1445 = vmatpush.msra.mxu0 0.0
        %1446 = vmatpush.msra.mxu0 0.0
        %1447 = vmatpush.msra.mxu0 %v223
        %1448 = vmatpush.msra.mxu0 %v222
        %1449 = vmatmul.f32.gmra.mxu0 %v1431
        %v1450 = vpop.f32.mrf.mxu0
        %v1451 = vadd.f32 %v1428, %v1450
        %1452 = vdwg.mxu0
        %v1453 = vadd.f32 %v1451, %v394
        %v1455 = vrot.slane %v1453, 1
        %v1456 = vrot.slane %v1453, 2
        %v1457 = vrot.slane %v1453, 3
        %v1458 = vrot.slane %v1453, 4
        %v1459 = vrot.slane %v1453, 5
        %v1460 = vrot.slane %v1453, 6
        %v1461 = vrot.slane %v1453, 7
        %1469 = vst.msk [vmem:[%s208 + $0xc] sm:$0x1] %vm412, %v1453
        %1470 = vst.msk [vmem:[%s208 + $0x2c] sm:$0x1] %vm412, %v1455
        %1471 = vst.msk [vmem:[%s208 + $0x4c] sm:$0x1] %vm412, %v1456
        %1472 = vst.msk [vmem:[%s208 + $0x6c] sm:$0x1] %vm412, %v1457
        %1473 = vst.msk [vmem:[%s208 + $0x8c] sm:$0x1] %vm412, %v1458
        %1474 = vst.msk [vmem:[%s208 + $0xac] sm:$0x1] %vm412, %v1459
        %1475 = vst.msk [vmem:[%s208 + $0xcc] sm:$0x1] %vm412, %v1460
        %1476 = vst.msk [vmem:[%s208 + $0xec] sm:$0x1] %vm412, %v1461
        %v1478 = vsel %vm344, %v1406, 0
        %1480 = vmatpush.msra.mxu0 0.0
        %1481 = vmatpush.msra.mxu0 0.0
        %1482 = vmatpush.msra.mxu0 0.0
        %1483 = vmatpush.msra.mxu0 0.0
        %1484 = vmatpush.msra.mxu0 0.0
        %1485 = vmatpush.msra.mxu0 0.0
        %1486 = vmatpush.msra.mxu0 0.0
        %1487 = vmatpush.msra.mxu0 0.0
        %1488 = vmatpush.msra.mxu0 0.0
        %1489 = vmatpush.msra.mxu0 0.0
        %1490 = vmatpush.msra.mxu0 0.0
        %1491 = vmatpush.msra.mxu0 0.0
        %1492 = vmatpush.msra.mxu0 0.0
        %1493 = vmatpush.msra.mxu0 0.0
        %1494 = vmatpush.msra.mxu0 %v231
        %1495 = vmatpush.msra.mxu0 %v230
        %1496 = vmatmul.f32.gmra.mxu0 %v1478
        %v1497 = vpop.f32.mrf.mxu0
        %v1498 = vadd.f32 0.0, %v1497
        %1499 = vdwg.mxu0
        %v1501 = vsel %vm344, %v1405, 0
        %1503 = vmatpush.msra.mxu0 0.0
        %1504 = vmatpush.msra.mxu0 0.0
        %1505 = vmatpush.msra.mxu0 0.0
        %1506 = vmatpush.msra.mxu0 0.0
        %1507 = vmatpush.msra.mxu0 0.0
        %1508 = vmatpush.msra.mxu0 0.0
        %1509 = vmatpush.msra.mxu0 0.0
        %1510 = vmatpush.msra.mxu0 0.0
        %1511 = vmatpush.msra.mxu0 0.0
        %1512 = vmatpush.msra.mxu0 0.0
        %1513 = vmatpush.msra.mxu0 0.0
        %1514 = vmatpush.msra.mxu0 0.0
        %1515 = vmatpush.msra.mxu0 0.0
        %1516 = vmatpush.msra.mxu0 0.0
        %1517 = vmatpush.msra.mxu0 %v223
        %1518 = vmatpush.msra.mxu0 %v222
        %1519 = vmatmul.f32.gmra.mxu0 %v1501
        %v1520 = vpop.f32.mrf.mxu0
        %v1521 = vadd.f32 %v1498, %v1520
        %1522 = vdwg.mxu0
        %v1523 = vadd.f32 %v1521, %v394
        %v1525 = vrot.slane %v1523, 1
        %v1526 = vrot.slane %v1523, 2
        %v1527 = vrot.slane %v1523, 3
        %v1528 = vrot.slane %v1523, 4
        %v1529 = vrot.slane %v1523, 5
        %v1530 = vrot.slane %v1523, 6
        %v1531 = vrot.slane %v1523, 7
        %1539 = vst.msk [vmem:[%s208 + $0xd] sm:$0x1] %vm412, %v1523
        %1540 = vst.msk [vmem:[%s208 + $0x2d] sm:$0x1] %vm412, %v1525
        %1541 = vst.msk [vmem:[%s208 + $0x4d] sm:$0x1] %vm412, %v1526
        %1542 = vst.msk [vmem:[%s208 + $0x6d] sm:$0x1] %vm412, %v1527
        %1543 = vst.msk [vmem:[%s208 + $0x8d] sm:$0x1] %vm412, %v1528
        %1544 = vst.msk [vmem:[%s208 + $0xad] sm:$0x1] %vm412, %v1529
        %1545 = vst.msk [vmem:[%s208 + $0xcd] sm:$0x1] %vm412, %v1530
        %1546 = vst.msk [vmem:[%s208 + $0xed] sm:$0x1] %vm412, %v1531
        %v1547 = vld [vmem:[%s185 + $0x7] sm:$0x1]
        %v1548 = vperm.slane %v1547, 0
        %v1549 = vmul.f32 %v240, %v1548
        %v1550 = vmul.f32 %v245, %v1548
        %v1551 = vmul.f32 %v250, %v1548
        %v1552 = vmul.f32 %v255, %v1548
        %v1553 = vld [vmem:[%s311 + $0x7] sm:$0x1]
        %v1554 = vperm.slane %v1553, 0
        %v1555 = vmul.f32 %v259, %v1554
        %v1556 = vmul.f32 %v263, %v1554
        %v1557 = vmul.f32 %v267, %v1554
        %v1558 = vmul.f32 %v271, %v1554
        %v1559 = vadd.f32 %v1549, %v1555
        %v1560 = vadd.f32 %v1550, %v1556
        %v1561 = vadd.f32 %v1551, %v1557
        %v1562 = vadd.f32 %v1552, %v1558
        %v1563 = vld [vmem:[%s322 + $0x7] sm:$0x1]
        %v1564 = vperm.slane %v1563, 0
        %v1565 = vmul.f32 %v275, %v1564
        %v1566 = vmul.f32 %v279, %v1564
        %v1567 = vmul.f32 %v283, %v1564
        %v1568 = vmul.f32 %v287, %v1564
        %v1569 = vadd.f32 %v1559, %v1565
        %v1570 = vadd.f32 %v1560, %v1566
        %v1571 = vadd.f32 %v1561, %v1567
        %v1572 = vadd.f32 %v1562, %v1568
        %v1573 = vld [vmem:[%s333 + $0x7] sm:$0x1]
        %v1574 = vperm.slane %v1573, 0
        %v1575 = vmul.f32 %v291, %v1574
        %v1576 = vmul.f32 %v295, %v1574
        %v1577 = vmul.f32 %v299, %v1574
        %v1578 = vmul.f32 %v303, %v1574
        %v1579 = vadd.f32 %v1569, %v1575
        %v1580 = vadd.f32 %v1570, %v1576
        %v1581 = vadd.f32 %v1571, %v1577
        %v1582 = vadd.f32 %v1572, %v1578
        %v1584 = vsel %vm344, %v1580, 0
        %1586 = vmatpush.msra.mxu0 0.0
        %1587 = vmatpush.msra.mxu0 0.0
        %1588 = vmatpush.msra.mxu0 0.0
        %1589 = vmatpush.msra.mxu0 0.0
        %1590 = vmatpush.msra.mxu0 0.0
        %1591 = vmatpush.msra.mxu0 0.0
        %1592 = vmatpush.msra.mxu0 0.0
        %1593 = vmatpush.msra.mxu0 0.0
        %1594 = vmatpush.msra.mxu0 0.0
        %1595 = vmatpush.msra.mxu0 0.0
        %1596 = vmatpush.msra.mxu0 0.0
        %1597 = vmatpush.msra.mxu0 0.0
        %1598 = vmatpush.msra.mxu0 0.0
        %1599 = vmatpush.msra.mxu0 0.0
        %1600 = vmatpush.msra.mxu0 %v231
        %1601 = vmatpush.msra.mxu0 %v230
        %1602 = vmatmul.f32.gmra.mxu0 %v1584
        %v1603 = vpop.f32.mrf.mxu0
        %v1604 = vadd.f32 0.0, %v1603
        %1605 = vdwg.mxu0
        %v1607 = vsel %vm344, %v1579, 0
        %1609 = vmatpush.msra.mxu0 0.0
        %1610 = vmatpush.msra.mxu0 0.0
        %1611 = vmatpush.msra.mxu0 0.0
        %1612 = vmatpush.msra.mxu0 0.0
        %1613 = vmatpush.msra.mxu0 0.0
        %1614 = vmatpush.msra.mxu0 0.0
        %1615 = vmatpush.msra.mxu0 0.0
        %1616 = vmatpush.msra.mxu0 0.0
        %1617 = vmatpush.msra.mxu0 0.0
        %1618 = vmatpush.msra.mxu0 0.0
        %1619 = vmatpush.msra.mxu0 0.0
        %1620 = vmatpush.msra.mxu0 0.0
        %1621 = vmatpush.msra.mxu0 0.0
        %1622 = vmatpush.msra.mxu0 0.0
        %1623 = vmatpush.msra.mxu0 %v223
        %1624 = vmatpush.msra.mxu0 %v222
        %1625 = vmatmul.f32.gmra.mxu0 %v1607
        %v1626 = vpop.f32.mrf.mxu0
        %v1627 = vadd.f32 %v1604, %v1626
        %1628 = vdwg.mxu0
        %v1629 = vadd.f32 %v1627, %v394
        %v1631 = vrot.slane %v1629, 1
        %v1632 = vrot.slane %v1629, 2
        %v1633 = vrot.slane %v1629, 3
        %v1634 = vrot.slane %v1629, 4
        %v1635 = vrot.slane %v1629, 5
        %v1636 = vrot.slane %v1629, 6
        %v1637 = vrot.slane %v1629, 7
        %1645 = vst.msk [vmem:[%s208 + $0xe] sm:$0x1] %vm412, %v1629
        %1646 = vst.msk [vmem:[%s208 + $0x2e] sm:$0x1] %vm412, %v1631
        %1647 = vst.msk [vmem:[%s208 + $0x4e] sm:$0x1] %vm412, %v1632
        %1648 = vst.msk [vmem:[%s208 + $0x6e] sm:$0x1] %vm412, %v1633
        %1649 = vst.msk [vmem:[%s208 + $0x8e] sm:$0x1] %vm412, %v1634
        %1650 = vst.msk [vmem:[%s208 + $0xae] sm:$0x1] %vm412, %v1635
        %1651 = vst.msk [vmem:[%s208 + $0xce] sm:$0x1] %vm412, %v1636
        %1652 = vst.msk [vmem:[%s208 + $0xee] sm:$0x1] %vm412, %v1637
        %v1654 = vsel %vm344, %v1582, 0
        %1656 = vmatpush.msra.mxu0 0.0
        %1657 = vmatpush.msra.mxu0 0.0
        %1658 = vmatpush.msra.mxu0 0.0
        %1659 = vmatpush.msra.mxu0 0.0
        %1660 = vmatpush.msra.mxu0 0.0
        %1661 = vmatpush.msra.mxu0 0.0
        %1662 = vmatpush.msra.mxu0 0.0
        %1663 = vmatpush.msra.mxu0 0.0
        %1664 = vmatpush.msra.mxu0 0.0
        %1665 = vmatpush.msra.mxu0 0.0
        %1666 = vmatpush.msra.mxu0 0.0
        %1667 = vmatpush.msra.mxu0 0.0
        %1668 = vmatpush.msra.mxu0 0.0
        %1669 = vmatpush.msra.mxu0 0.0
        %1670 = vmatpush.msra.mxu0 %v231
        %1671 = vmatpush.msra.mxu0 %v230
        %1672 = vmatmul.f32.gmra.mxu0 %v1654
        %v1673 = vpop.f32.mrf.mxu0
        %v1674 = vadd.f32 0.0, %v1673
        %1675 = vdwg.mxu0
        %v1677 = vsel %vm344, %v1581, 0
        %1679 = vmatpush.msra.mxu0 0.0
        %1680 = vmatpush.msra.mxu0 0.0
        %1681 = vmatpush.msra.mxu0 0.0
        %1682 = vmatpush.msra.mxu0 0.0
        %1683 = vmatpush.msra.mxu0 0.0
        %1684 = vmatpush.msra.mxu0 0.0
        %1685 = vmatpush.msra.mxu0 0.0
        %1686 = vmatpush.msra.mxu0 0.0
        %1687 = vmatpush.msra.mxu0 0.0
        %1688 = vmatpush.msra.mxu0 0.0
        %1689 = vmatpush.msra.mxu0 0.0
        %1690 = vmatpush.msra.mxu0 0.0
        %1691 = vmatpush.msra.mxu0 0.0
        %1692 = vmatpush.msra.mxu0 0.0
        %1693 = vmatpush.msra.mxu0 %v223
        %1694 = vmatpush.msra.mxu0 %v222
        %1695 = vmatmul.f32.gmra.mxu0 %v1677
        %v1696 = vpop.f32.mrf.mxu0
        %v1697 = vadd.f32 %v1674, %v1696
        %1698 = vdwg.mxu0
        %v1699 = vadd.f32 %v1697, %v394
        %v1701 = vrot.slane %v1699, 1
        %v1702 = vrot.slane %v1699, 2
        %v1703 = vrot.slane %v1699, 3
        %v1704 = vrot.slane %v1699, 4
        %v1705 = vrot.slane %v1699, 5
        %v1706 = vrot.slane %v1699, 6
        %v1707 = vrot.slane %v1699, 7
        %1715 = vst.msk [vmem:[%s208 + $0xf] sm:$0x1] %vm412, %v1699
        %1716 = vst.msk [vmem:[%s208 + $0x2f] sm:$0x1] %vm412, %v1701
        %1717 = vst.msk [vmem:[%s208 + $0x4f] sm:$0x1] %vm412, %v1702
        %1718 = vst.msk [vmem:[%s208 + $0x6f] sm:$0x1] %vm412, %v1703
        %1719 = vst.msk [vmem:[%s208 + $0x8f] sm:$0x1] %vm412, %v1704
        %1720 = vst.msk [vmem:[%s208 + $0xaf] sm:$0x1] %vm412, %v1705
        %1721 = vst.msk [vmem:[%s208 + $0xcf] sm:$0x1] %vm412, %v1706
        %1722 = vst.msk [vmem:[%s208 + $0xef] sm:$0x1] %vm412, %v1707
        %v1723 = vld [vmem:[%s185 + $0x8] sm:$0x1]
        %v1724 = vperm.slane %v1723, 0
        %v1725 = vmul.f32 %v240, %v1724
        %v1726 = vmul.f32 %v245, %v1724
        %v1727 = vmul.f32 %v250, %v1724
        %v1728 = vmul.f32 %v255, %v1724
        %v1729 = vld [vmem:[%s311 + $0x8] sm:$0x1]
        %v1730 = vperm.slane %v1729, 0
        %v1731 = vmul.f32 %v259, %v1730
        %v1732 = vmul.f32 %v263, %v1730
        %v1733 = vmul.f32 %v267, %v1730
        %v1734 = vmul.f32 %v271, %v1730
        %v1735 = vadd.f32 %v1725, %v1731
        %v1736 = vadd.f32 %v1726, %v1732
        %v1737 = vadd.f32 %v1727, %v1733
        %v1738 = vadd.f32 %v1728, %v1734
        %v1739 = vld [vmem:[%s322 + $0x8] sm:$0x1]
        %v1740 = vperm.slane %v1739, 0
        %v1741 = vmul.f32 %v275, %v1740
        %v1742 = vmul.f32 %v279, %v1740
        %v1743 = vmul.f32 %v283, %v1740
        %v1744 = vmul.f32 %v287, %v1740
        %v1745 = vadd.f32 %v1735, %v1741
        %v1746 = vadd.f32 %v1736, %v1742
        %v1747 = vadd.f32 %v1737, %v1743
        %v1748 = vadd.f32 %v1738, %v1744
        %v1749 = vld [vmem:[%s333 + $0x8] sm:$0x1]
        %v1750 = vperm.slane %v1749, 0
        %v1751 = vmul.f32 %v291, %v1750
        %v1752 = vmul.f32 %v295, %v1750
        %v1753 = vmul.f32 %v299, %v1750
        %v1754 = vmul.f32 %v303, %v1750
        %v1755 = vadd.f32 %v1745, %v1751
        %v1756 = vadd.f32 %v1746, %v1752
        %v1757 = vadd.f32 %v1747, %v1753
        %v1758 = vadd.f32 %v1748, %v1754
        %v1760 = vsel %vm344, %v1756, 0
        %1762 = vmatpush.msra.mxu0 0.0
        %1763 = vmatpush.msra.mxu0 0.0
        %1764 = vmatpush.msra.mxu0 0.0
        %1765 = vmatpush.msra.mxu0 0.0
        %1766 = vmatpush.msra.mxu0 0.0
        %1767 = vmatpush.msra.mxu0 0.0
        %1768 = vmatpush.msra.mxu0 0.0
        %1769 = vmatpush.msra.mxu0 0.0
        %1770 = vmatpush.msra.mxu0 0.0
        %1771 = vmatpush.msra.mxu0 0.0
        %1772 = vmatpush.msra.mxu0 0.0
        %1773 = vmatpush.msra.mxu0 0.0
        %1774 = vmatpush.msra.mxu0 0.0
        %1775 = vmatpush.msra.mxu0 0.0
        %1776 = vmatpush.msra.mxu0 %v231
        %1777 = vmatpush.msra.mxu0 %v230
        %1778 = vmatmul.f32.gmra.mxu0 %v1760
        %v1779 = vpop.f32.mrf.mxu0
        %v1780 = vadd.f32 0.0, %v1779
        %1781 = vdwg.mxu0
        %v1783 = vsel %vm344, %v1755, 0
        %1785 = vmatpush.msra.mxu0 0.0
        %1786 = vmatpush.msra.mxu0 0.0
        %1787 = vmatpush.msra.mxu0 0.0
        %1788 = vmatpush.msra.mxu0 0.0
        %1789 = vmatpush.msra.mxu0 0.0
        %1790 = vmatpush.msra.mxu0 0.0
        %1791 = vmatpush.msra.mxu0 0.0
        %1792 = vmatpush.msra.mxu0 0.0
        %1793 = vmatpush.msra.mxu0 0.0
        %1794 = vmatpush.msra.mxu0 0.0
        %1795 = vmatpush.msra.mxu0 0.0
        %1796 = vmatpush.msra.mxu0 0.0
        %1797 = vmatpush.msra.mxu0 0.0
        %1798 = vmatpush.msra.mxu0 0.0
        %1799 = vmatpush.msra.mxu0 %v223
        %1800 = vmatpush.msra.mxu0 %v222
        %1801 = vmatmul.f32.gmra.mxu0 %v1783
        %v1802 = vpop.f32.mrf.mxu0
        %v1803 = vadd.f32 %v1780, %v1802
        %1804 = vdwg.mxu0
        %v1805 = vadd.f32 %v1803, %v394
        %v1807 = vrot.slane %v1805, 1
        %v1808 = vrot.slane %v1805, 2
        %v1809 = vrot.slane %v1805, 3
        %v1810 = vrot.slane %v1805, 4
        %v1811 = vrot.slane %v1805, 5
        %v1812 = vrot.slane %v1805, 6
        %v1813 = vrot.slane %v1805, 7
        %1821 = vst.msk [vmem:[%s208 + $0x10] sm:$0x1] %vm412, %v1805
        %1822 = vst.msk [vmem:[%s208 + $0x30] sm:$0x1] %vm412, %v1807
        %1823 = vst.msk [vmem:[%s208 + $0x50] sm:$0x1] %vm412, %v1808
        %1824 = vst.msk [vmem:[%s208 + $0x70] sm:$0x1] %vm412, %v1809
        %1825 = vst.msk [vmem:[%s208 + $0x90] sm:$0x1] %vm412, %v1810
        %1826 = vst.msk [vmem:[%s208 + $0xb0] sm:$0x1] %vm412, %v1811
        %1827 = vst.msk [vmem:[%s208 + $0xd0] sm:$0x1] %vm412, %v1812
        %1828 = vst.msk [vmem:[%s208 + $0xf0] sm:$0x1] %vm412, %v1813
        %v1830 = vsel %vm344, %v1758, 0
        %1832 = vmatpush.msra.mxu0 0.0
        %1833 = vmatpush.msra.mxu0 0.0
        %1834 = vmatpush.msra.mxu0 0.0
        %1835 = vmatpush.msra.mxu0 0.0
        %1836 = vmatpush.msra.mxu0 0.0
        %1837 = vmatpush.msra.mxu0 0.0
        %1838 = vmatpush.msra.mxu0 0.0
        %1839 = vmatpush.msra.mxu0 0.0
        %1840 = vmatpush.msra.mxu0 0.0
        %1841 = vmatpush.msra.mxu0 0.0
        %1842 = vmatpush.msra.mxu0 0.0
        %1843 = vmatpush.msra.mxu0 0.0
        %1844 = vmatpush.msra.mxu0 0.0
        %1845 = vmatpush.msra.mxu0 0.0
        %1846 = vmatpush.msra.mxu0 %v231
        %1847 = vmatpush.msra.mxu0 %v230
        %1848 = vmatmul.f32.gmra.mxu0 %v1830
        %v1849 = vpop.f32.mrf.mxu0
        %v1850 = vadd.f32 0.0, %v1849
        %1851 = vdwg.mxu0
        %v1853 = vsel %vm344, %v1757, 0
        %1855 = vmatpush.msra.mxu0 0.0
        %1856 = vmatpush.msra.mxu0 0.0
        %1857 = vmatpush.msra.mxu0 0.0
        %1858 = vmatpush.msra.mxu0 0.0
        %1859 = vmatpush.msra.mxu0 0.0
        %1860 = vmatpush.msra.mxu0 0.0
        %1861 = vmatpush.msra.mxu0 0.0
        %1862 = vmatpush.msra.mxu0 0.0
        %1863 = vmatpush.msra.mxu0 0.0
        %1864 = vmatpush.msra.mxu0 0.0
        %1865 = vmatpush.msra.mxu0 0.0
        %1866 = vmatpush.msra.mxu0 0.0
        %1867 = vmatpush.msra.mxu0 0.0
        %1868 = vmatpush.msra.mxu0 0.0
        %1869 = vmatpush.msra.mxu0 %v223
        %1870 = vmatpush.msra.mxu0 %v222
        %1871 = vmatmul.f32.gmra.mxu0 %v1853
        %v1872 = vpop.f32.mrf.mxu0
        %v1873 = vadd.f32 %v1850, %v1872
        %1874 = vdwg.mxu0
        %v1875 = vadd.f32 %v1873, %v394
        %v1877 = vrot.slane %v1875, 1
        %v1878 = vrot.slane %v1875, 2
        %v1879 = vrot.slane %v1875, 3
        %v1880 = vrot.slane %v1875, 4
        %v1881 = vrot.slane %v1875, 5
        %v1882 = vrot.slane %v1875, 6
        %v1883 = vrot.slane %v1875, 7
        %1891 = vst.msk [vmem:[%s208 + $0x11] sm:$0x1] %vm412, %v1875
        %1892 = vst.msk [vmem:[%s208 + $0x31] sm:$0x1] %vm412, %v1877
        %1893 = vst.msk [vmem:[%s208 + $0x51] sm:$0x1] %vm412, %v1878
        %1894 = vst.msk [vmem:[%s208 + $0x71] sm:$0x1] %vm412, %v1879
        %1895 = vst.msk [vmem:[%s208 + $0x91] sm:$0x1] %vm412, %v1880
        %1896 = vst.msk [vmem:[%s208 + $0xb1] sm:$0x1] %vm412, %v1881
        %1897 = vst.msk [vmem:[%s208 + $0xd1] sm:$0x1] %vm412, %v1882
        %1898 = vst.msk [vmem:[%s208 + $0xf1] sm:$0x1] %vm412, %v1883
        %v1899 = vld [vmem:[%s185 + $0x9] sm:$0x1]
        %v1900 = vperm.slane %v1899, 0
        %v1901 = vmul.f32 %v240, %v1900
        %v1902 = vmul.f32 %v245, %v1900
        %v1903 = vmul.f32 %v250, %v1900
        %v1904 = vmul.f32 %v255, %v1900
        %v1905 = vld [vmem:[%s311 + $0x9] sm:$0x1]
        %v1906 = vperm.slane %v1905, 0
        %v1907 = vmul.f32 %v259, %v1906
        %v1908 = vmul.f32 %v263, %v1906
        %v1909 = vmul.f32 %v267, %v1906
        %v1910 = vmul.f32 %v271, %v1906
        %v1911 = vadd.f32 %v1901, %v1907
        %v1912 = vadd.f32 %v1902, %v1908
        %v1913 = vadd.f32 %v1903, %v1909
        %v1914 = vadd.f32 %v1904, %v1910
        %v1915 = vld [vmem:[%s322 + $0x9] sm:$0x1]
        %v1916 = vperm.slane %v1915, 0
        %v1917 = vmul.f32 %v275, %v1916
        %v1918 = vmul.f32 %v279, %v1916
        %v1919 = vmul.f32 %v283, %v1916
        %v1920 = vmul.f32 %v287, %v1916
        %v1921 = vadd.f32 %v1911, %v1917
        %v1922 = vadd.f32 %v1912, %v1918
        %v1923 = vadd.f32 %v1913, %v1919
        %v1924 = vadd.f32 %v1914, %v1920
        %v1925 = vld [vmem:[%s333 + $0x9] sm:$0x1]
        %v1926 = vperm.slane %v1925, 0
        %v1927 = vmul.f32 %v291, %v1926
        %v1928 = vmul.f32 %v295, %v1926
        %v1929 = vmul.f32 %v299, %v1926
        %v1930 = vmul.f32 %v303, %v1926
        %v1931 = vadd.f32 %v1921, %v1927
        %v1932 = vadd.f32 %v1922, %v1928
        %v1933 = vadd.f32 %v1923, %v1929
        %v1934 = vadd.f32 %v1924, %v1930
        %v1936 = vsel %vm344, %v1932, 0
        %1938 = vmatpush.msra.mxu0 0.0
        %1939 = vmatpush.msra.mxu0 0.0
        %1940 = vmatpush.msra.mxu0 0.0
        %1941 = vmatpush.msra.mxu0 0.0
        %1942 = vmatpush.msra.mxu0 0.0
        %1943 = vmatpush.msra.mxu0 0.0
        %1944 = vmatpush.msra.mxu0 0.0
        %1945 = vmatpush.msra.mxu0 0.0
        %1946 = vmatpush.msra.mxu0 0.0
        %1947 = vmatpush.msra.mxu0 0.0
        %1948 = vmatpush.msra.mxu0 0.0
        %1949 = vmatpush.msra.mxu0 0.0
        %1950 = vmatpush.msra.mxu0 0.0
        %1951 = vmatpush.msra.mxu0 0.0
        %1952 = vmatpush.msra.mxu0 %v231
        %1953 = vmatpush.msra.mxu0 %v230
        %1954 = vmatmul.f32.gmra.mxu0 %v1936
        %v1955 = vpop.f32.mrf.mxu0
        %v1956 = vadd.f32 0.0, %v1955
        %1957 = vdwg.mxu0
        %v1959 = vsel %vm344, %v1931, 0
        %1961 = vmatpush.msra.mxu0 0.0
        %1962 = vmatpush.msra.mxu0 0.0
        %1963 = vmatpush.msra.mxu0 0.0
        %1964 = vmatpush.msra.mxu0 0.0
        %1965 = vmatpush.msra.mxu0 0.0
        %1966 = vmatpush.msra.mxu0 0.0
        %1967 = vmatpush.msra.mxu0 0.0
        %1968 = vmatpush.msra.mxu0 0.0
        %1969 = vmatpush.msra.mxu0 0.0
        %1970 = vmatpush.msra.mxu0 0.0
        %1971 = vmatpush.msra.mxu0 0.0
        %1972 = vmatpush.msra.mxu0 0.0
        %1973 = vmatpush.msra.mxu0 0.0
        %1974 = vmatpush.msra.mxu0 0.0
        %1975 = vmatpush.msra.mxu0 %v223
        %1976 = vmatpush.msra.mxu0 %v222
        %1977 = vmatmul.f32.gmra.mxu0 %v1959
        %v1978 = vpop.f32.mrf.mxu0
        %v1979 = vadd.f32 %v1956, %v1978
        %1980 = vdwg.mxu0
        %v1981 = vadd.f32 %v1979, %v394
        %v1983 = vrot.slane %v1981, 1
        %v1984 = vrot.slane %v1981, 2
        %v1985 = vrot.slane %v1981, 3
        %v1986 = vrot.slane %v1981, 4
        %v1987 = vrot.slane %v1981, 5
        %v1988 = vrot.slane %v1981, 6
        %v1989 = vrot.slane %v1981, 7
        %1997 = vst.msk [vmem:[%s208 + $0x12] sm:$0x1] %vm412, %v1981
        %1998 = vst.msk [vmem:[%s208 + $0x32] sm:$0x1] %vm412, %v1983
        %1999 = vst.msk [vmem:[%s208 + $0x52] sm:$0x1] %vm412, %v1984
        %2000 = vst.msk [vmem:[%s208 + $0x72] sm:$0x1] %vm412, %v1985
        %2001 = vst.msk [vmem:[%s208 + $0x92] sm:$0x1] %vm412, %v1986
        %2002 = vst.msk [vmem:[%s208 + $0xb2] sm:$0x1] %vm412, %v1987
        %2003 = vst.msk [vmem:[%s208 + $0xd2] sm:$0x1] %vm412, %v1988
        %2004 = vst.msk [vmem:[%s208 + $0xf2] sm:$0x1] %vm412, %v1989
        %v2006 = vsel %vm344, %v1934, 0
        %2008 = vmatpush.msra.mxu0 0.0
        %2009 = vmatpush.msra.mxu0 0.0
        %2010 = vmatpush.msra.mxu0 0.0
        %2011 = vmatpush.msra.mxu0 0.0
        %2012 = vmatpush.msra.mxu0 0.0
        %2013 = vmatpush.msra.mxu0 0.0
        %2014 = vmatpush.msra.mxu0 0.0
        %2015 = vmatpush.msra.mxu0 0.0
        %2016 = vmatpush.msra.mxu0 0.0
        %2017 = vmatpush.msra.mxu0 0.0
        %2018 = vmatpush.msra.mxu0 0.0
        %2019 = vmatpush.msra.mxu0 0.0
        %2020 = vmatpush.msra.mxu0 0.0
        %2021 = vmatpush.msra.mxu0 0.0
        %2022 = vmatpush.msra.mxu0 %v231
        %2023 = vmatpush.msra.mxu0 %v230
        %2024 = vmatmul.f32.gmra.mxu0 %v2006
        %v2025 = vpop.f32.mrf.mxu0
        %v2026 = vadd.f32 0.0, %v2025
        %2027 = vdwg.mxu0
        %v2029 = vsel %vm344, %v1933, 0
        %2031 = vmatpush.msra.mxu0 0.0
        %2032 = vmatpush.msra.mxu0 0.0
        %2033 = vmatpush.msra.mxu0 0.0
        %2034 = vmatpush.msra.mxu0 0.0
        %2035 = vmatpush.msra.mxu0 0.0
        %2036 = vmatpush.msra.mxu0 0.0
        %2037 = vmatpush.msra.mxu0 0.0
        %2038 = vmatpush.msra.mxu0 0.0
        %2039 = vmatpush.msra.mxu0 0.0
        %2040 = vmatpush.msra.mxu0 0.0
        %2041 = vmatpush.msra.mxu0 0.0
        %2042 = vmatpush.msra.mxu0 0.0
        %2043 = vmatpush.msra.mxu0 0.0
        %2044 = vmatpush.msra.mxu0 0.0
        %2045 = vmatpush.msra.mxu0 %v223
        %2046 = vmatpush.msra.mxu0 %v222
        %2047 = vmatmul.f32.gmra.mxu0 %v2029
        %v2048 = vpop.f32.mrf.mxu0
        %v2049 = vadd.f32 %v2026, %v2048
        %2050 = vdwg.mxu0
        %v2051 = vadd.f32 %v2049, %v394
        %v2053 = vrot.slane %v2051, 1
        %v2054 = vrot.slane %v2051, 2
        %v2055 = vrot.slane %v2051, 3
        %v2056 = vrot.slane %v2051, 4
        %v2057 = vrot.slane %v2051, 5
        %v2058 = vrot.slane %v2051, 6
        %v2059 = vrot.slane %v2051, 7
        %2067 = vst.msk [vmem:[%s208 + $0x13] sm:$0x1] %vm412, %v2051
        %2068 = vst.msk [vmem:[%s208 + $0x33] sm:$0x1] %vm412, %v2053
        %2069 = vst.msk [vmem:[%s208 + $0x53] sm:$0x1] %vm412, %v2054
        %2070 = vst.msk [vmem:[%s208 + $0x73] sm:$0x1] %vm412, %v2055
        %2071 = vst.msk [vmem:[%s208 + $0x93] sm:$0x1] %vm412, %v2056
        %2072 = vst.msk [vmem:[%s208 + $0xb3] sm:$0x1] %vm412, %v2057
        %2073 = vst.msk [vmem:[%s208 + $0xd3] sm:$0x1] %vm412, %v2058
        %2074 = vst.msk [vmem:[%s208 + $0xf3] sm:$0x1] %vm412, %v2059
        %v2075 = vld [vmem:[%s185 + $0xa] sm:$0x1]
        %v2076 = vperm.slane %v2075, 0
        %v2077 = vmul.f32 %v240, %v2076
        %v2078 = vmul.f32 %v245, %v2076
        %v2079 = vmul.f32 %v250, %v2076
        %v2080 = vmul.f32 %v255, %v2076
        %v2081 = vld [vmem:[%s311 + $0xa] sm:$0x1]
        %v2082 = vperm.slane %v2081, 0
        %v2083 = vmul.f32 %v259, %v2082
        %v2084 = vmul.f32 %v263, %v2082
        %v2085 = vmul.f32 %v267, %v2082
        %v2086 = vmul.f32 %v271, %v2082
        %v2087 = vadd.f32 %v2077, %v2083
        %v2088 = vadd.f32 %v2078, %v2084
        %v2089 = vadd.f32 %v2079, %v2085
        %v2090 = vadd.f32 %v2080, %v2086
        %v2091 = vld [vmem:[%s322 + $0xa] sm:$0x1]
        %v2092 = vperm.slane %v2091, 0
        %v2093 = vmul.f32 %v275, %v2092
        %v2094 = vmul.f32 %v279, %v2092
        %v2095 = vmul.f32 %v283, %v2092
        %v2096 = vmul.f32 %v287, %v2092
        %v2097 = vadd.f32 %v2087, %v2093
        %v2098 = vadd.f32 %v2088, %v2094
        %v2099 = vadd.f32 %v2089, %v2095
        %v2100 = vadd.f32 %v2090, %v2096
        %v2101 = vld [vmem:[%s333 + $0xa] sm:$0x1]
        %v2102 = vperm.slane %v2101, 0
        %v2103 = vmul.f32 %v291, %v2102
        %v2104 = vmul.f32 %v295, %v2102
        %v2105 = vmul.f32 %v299, %v2102
        %v2106 = vmul.f32 %v303, %v2102
        %v2107 = vadd.f32 %v2097, %v2103
        %v2108 = vadd.f32 %v2098, %v2104
        %v2109 = vadd.f32 %v2099, %v2105
        %v2110 = vadd.f32 %v2100, %v2106
        %v2112 = vsel %vm344, %v2108, 0
        %2114 = vmatpush.msra.mxu0 0.0
        %2115 = vmatpush.msra.mxu0 0.0
        %2116 = vmatpush.msra.mxu0 0.0
        %2117 = vmatpush.msra.mxu0 0.0
        %2118 = vmatpush.msra.mxu0 0.0
        %2119 = vmatpush.msra.mxu0 0.0
        %2120 = vmatpush.msra.mxu0 0.0
        %2121 = vmatpush.msra.mxu0 0.0
        %2122 = vmatpush.msra.mxu0 0.0
        %2123 = vmatpush.msra.mxu0 0.0
        %2124 = vmatpush.msra.mxu0 0.0
        %2125 = vmatpush.msra.mxu0 0.0
        %2126 = vmatpush.msra.mxu0 0.0
        %2127 = vmatpush.msra.mxu0 0.0
        %2128 = vmatpush.msra.mxu0 %v231
        %2129 = vmatpush.msra.mxu0 %v230
        %2130 = vmatmul.f32.gmra.mxu0 %v2112
        %v2131 = vpop.f32.mrf.mxu0
        %v2132 = vadd.f32 0.0, %v2131
        %2133 = vdwg.mxu0
        %v2135 = vsel %vm344, %v2107, 0
        %2137 = vmatpush.msra.mxu0 0.0
        %2138 = vmatpush.msra.mxu0 0.0
        %2139 = vmatpush.msra.mxu0 0.0
        %2140 = vmatpush.msra.mxu0 0.0
        %2141 = vmatpush.msra.mxu0 0.0
        %2142 = vmatpush.msra.mxu0 0.0
        %2143 = vmatpush.msra.mxu0 0.0
        %2144 = vmatpush.msra.mxu0 0.0
        %2145 = vmatpush.msra.mxu0 0.0
        %2146 = vmatpush.msra.mxu0 0.0
        %2147 = vmatpush.msra.mxu0 0.0
        %2148 = vmatpush.msra.mxu0 0.0
        %2149 = vmatpush.msra.mxu0 0.0
        %2150 = vmatpush.msra.mxu0 0.0
        %2151 = vmatpush.msra.mxu0 %v223
        %2152 = vmatpush.msra.mxu0 %v222
        %2153 = vmatmul.f32.gmra.mxu0 %v2135
        %v2154 = vpop.f32.mrf.mxu0
        %v2155 = vadd.f32 %v2132, %v2154
        %2156 = vdwg.mxu0
        %v2157 = vadd.f32 %v2155, %v394
        %v2159 = vrot.slane %v2157, 1
        %v2160 = vrot.slane %v2157, 2
        %v2161 = vrot.slane %v2157, 3
        %v2162 = vrot.slane %v2157, 4
        %v2163 = vrot.slane %v2157, 5
        %v2164 = vrot.slane %v2157, 6
        %v2165 = vrot.slane %v2157, 7
        %2173 = vst.msk [vmem:[%s208 + $0x14] sm:$0x1] %vm412, %v2157
        %2174 = vst.msk [vmem:[%s208 + $0x34] sm:$0x1] %vm412, %v2159
        %2175 = vst.msk [vmem:[%s208 + $0x54] sm:$0x1] %vm412, %v2160
        %2176 = vst.msk [vmem:[%s208 + $0x74] sm:$0x1] %vm412, %v2161
        %2177 = vst.msk [vmem:[%s208 + $0x94] sm:$0x1] %vm412, %v2162
        %2178 = vst.msk [vmem:[%s208 + $0xb4] sm:$0x1] %vm412, %v2163
        %2179 = vst.msk [vmem:[%s208 + $0xd4] sm:$0x1] %vm412, %v2164
        %2180 = vst.msk [vmem:[%s208 + $0xf4] sm:$0x1] %vm412, %v2165
        %v2182 = vsel %vm344, %v2110, 0
        %2184 = vmatpush.msra.mxu0 0.0
        %2185 = vmatpush.msra.mxu0 0.0
        %2186 = vmatpush.msra.mxu0 0.0
        %2187 = vmatpush.msra.mxu0 0.0
        %2188 = vmatpush.msra.mxu0 0.0
        %2189 = vmatpush.msra.mxu0 0.0
        %2190 = vmatpush.msra.mxu0 0.0
        %2191 = vmatpush.msra.mxu0 0.0
        %2192 = vmatpush.msra.mxu0 0.0
        %2193 = vmatpush.msra.mxu0 0.0
        %2194 = vmatpush.msra.mxu0 0.0
        %2195 = vmatpush.msra.mxu0 0.0
        %2196 = vmatpush.msra.mxu0 0.0
        %2197 = vmatpush.msra.mxu0 0.0
        %2198 = vmatpush.msra.mxu0 %v231
        %2199 = vmatpush.msra.mxu0 %v230
        %2200 = vmatmul.f32.gmra.mxu0 %v2182
        %v2201 = vpop.f32.mrf.mxu0
        %v2202 = vadd.f32 0.0, %v2201
        %2203 = vdwg.mxu0
        %v2205 = vsel %vm344, %v2109, 0
        %2207 = vmatpush.msra.mxu0 0.0
        %2208 = vmatpush.msra.mxu0 0.0
        %2209 = vmatpush.msra.mxu0 0.0
        %2210 = vmatpush.msra.mxu0 0.0
        %2211 = vmatpush.msra.mxu0 0.0
        %2212 = vmatpush.msra.mxu0 0.0
        %2213 = vmatpush.msra.mxu0 0.0
        %2214 = vmatpush.msra.mxu0 0.0
        %2215 = vmatpush.msra.mxu0 0.0
        %2216 = vmatpush.msra.mxu0 0.0
        %2217 = vmatpush.msra.mxu0 0.0
        %2218 = vmatpush.msra.mxu0 0.0
        %2219 = vmatpush.msra.mxu0 0.0
        %2220 = vmatpush.msra.mxu0 0.0
        %2221 = vmatpush.msra.mxu0 %v223
        %2222 = vmatpush.msra.mxu0 %v222
        %2223 = vmatmul.f32.gmra.mxu0 %v2205
        %v2224 = vpop.f32.mrf.mxu0
        %v2225 = vadd.f32 %v2202, %v2224
        %2226 = vdwg.mxu0
        %v2227 = vadd.f32 %v2225, %v394
        %v2229 = vrot.slane %v2227, 1
        %v2230 = vrot.slane %v2227, 2
        %v2231 = vrot.slane %v2227, 3
        %v2232 = vrot.slane %v2227, 4
        %v2233 = vrot.slane %v2227, 5
        %v2234 = vrot.slane %v2227, 6
        %v2235 = vrot.slane %v2227, 7
        %2243 = vst.msk [vmem:[%s208 + $0x15] sm:$0x1] %vm412, %v2227
        %2244 = vst.msk [vmem:[%s208 + $0x35] sm:$0x1] %vm412, %v2229
        %2245 = vst.msk [vmem:[%s208 + $0x55] sm:$0x1] %vm412, %v2230
        %2246 = vst.msk [vmem:[%s208 + $0x75] sm:$0x1] %vm412, %v2231
        %2247 = vst.msk [vmem:[%s208 + $0x95] sm:$0x1] %vm412, %v2232
        %2248 = vst.msk [vmem:[%s208 + $0xb5] sm:$0x1] %vm412, %v2233
        %2249 = vst.msk [vmem:[%s208 + $0xd5] sm:$0x1] %vm412, %v2234
        %2250 = vst.msk [vmem:[%s208 + $0xf5] sm:$0x1] %vm412, %v2235
        %v2251 = vld [vmem:[%s185 + $0xb] sm:$0x1]
        %v2252 = vperm.slane %v2251, 0
        %v2253 = vmul.f32 %v240, %v2252
        %v2254 = vmul.f32 %v245, %v2252
        %v2255 = vmul.f32 %v250, %v2252
        %v2256 = vmul.f32 %v255, %v2252
        %v2257 = vld [vmem:[%s311 + $0xb] sm:$0x1]
        %v2258 = vperm.slane %v2257, 0
        %v2259 = vmul.f32 %v259, %v2258
        %v2260 = vmul.f32 %v263, %v2258
        %v2261 = vmul.f32 %v267, %v2258
        %v2262 = vmul.f32 %v271, %v2258
        %v2263 = vadd.f32 %v2253, %v2259
        %v2264 = vadd.f32 %v2254, %v2260
        %v2265 = vadd.f32 %v2255, %v2261
        %v2266 = vadd.f32 %v2256, %v2262
        %v2267 = vld [vmem:[%s322 + $0xb] sm:$0x1]
        %v2268 = vperm.slane %v2267, 0
        %v2269 = vmul.f32 %v275, %v2268
        %v2270 = vmul.f32 %v279, %v2268
        %v2271 = vmul.f32 %v283, %v2268
        %v2272 = vmul.f32 %v287, %v2268
        %v2273 = vadd.f32 %v2263, %v2269
        %v2274 = vadd.f32 %v2264, %v2270
        %v2275 = vadd.f32 %v2265, %v2271
        %v2276 = vadd.f32 %v2266, %v2272
        %v2277 = vld [vmem:[%s333 + $0xb] sm:$0x1]
        %v2278 = vperm.slane %v2277, 0
        %v2279 = vmul.f32 %v291, %v2278
        %v2280 = vmul.f32 %v295, %v2278
        %v2281 = vmul.f32 %v299, %v2278
        %v2282 = vmul.f32 %v303, %v2278
        %v2283 = vadd.f32 %v2273, %v2279
        %v2284 = vadd.f32 %v2274, %v2280
        %v2285 = vadd.f32 %v2275, %v2281
        %v2286 = vadd.f32 %v2276, %v2282
        %v2288 = vsel %vm344, %v2284, 0
        %2290 = vmatpush.msra.mxu0 0.0
        %2291 = vmatpush.msra.mxu0 0.0
        %2292 = vmatpush.msra.mxu0 0.0
        %2293 = vmatpush.msra.mxu0 0.0
        %2294 = vmatpush.msra.mxu0 0.0
        %2295 = vmatpush.msra.mxu0 0.0
        %2296 = vmatpush.msra.mxu0 0.0
        %2297 = vmatpush.msra.mxu0 0.0
        %2298 = vmatpush.msra.mxu0 0.0
        %2299 = vmatpush.msra.mxu0 0.0
        %2300 = vmatpush.msra.mxu0 0.0
        %2301 = vmatpush.msra.mxu0 0.0
        %2302 = vmatpush.msra.mxu0 0.0
        %2303 = vmatpush.msra.mxu0 0.0
        %2304 = vmatpush.msra.mxu0 %v231
        %2305 = vmatpush.msra.mxu0 %v230
        %2306 = vmatmul.f32.gmra.mxu0 %v2288
        %v2307 = vpop.f32.mrf.mxu0
        %v2308 = vadd.f32 0.0, %v2307
        %2309 = vdwg.mxu0
        %v2311 = vsel %vm344, %v2283, 0
        %2313 = vmatpush.msra.mxu0 0.0
        %2314 = vmatpush.msra.mxu0 0.0
        %2315 = vmatpush.msra.mxu0 0.0
        %2316 = vmatpush.msra.mxu0 0.0
        %2317 = vmatpush.msra.mxu0 0.0
        %2318 = vmatpush.msra.mxu0 0.0
        %2319 = vmatpush.msra.mxu0 0.0
        %2320 = vmatpush.msra.mxu0 0.0
        %2321 = vmatpush.msra.mxu0 0.0
        %2322 = vmatpush.msra.mxu0 0.0
        %2323 = vmatpush.msra.mxu0 0.0
        %2324 = vmatpush.msra.mxu0 0.0
        %2325 = vmatpush.msra.mxu0 0.0
        %2326 = vmatpush.msra.mxu0 0.0
        %2327 = vmatpush.msra.mxu0 %v223
        %2328 = vmatpush.msra.mxu0 %v222
        %2329 = vmatmul.f32.gmra.mxu0 %v2311
        %v2330 = vpop.f32.mrf.mxu0
        %v2331 = vadd.f32 %v2308, %v2330
        %2332 = vdwg.mxu0
        %v2333 = vadd.f32 %v2331, %v394
        %v2335 = vrot.slane %v2333, 1
        %v2336 = vrot.slane %v2333, 2
        %v2337 = vrot.slane %v2333, 3
        %v2338 = vrot.slane %v2333, 4
        %v2339 = vrot.slane %v2333, 5
        %v2340 = vrot.slane %v2333, 6
        %v2341 = vrot.slane %v2333, 7
        %2349 = vst.msk [vmem:[%s208 + $0x16] sm:$0x1] %vm412, %v2333
        %2350 = vst.msk [vmem:[%s208 + $0x36] sm:$0x1] %vm412, %v2335
        %2351 = vst.msk [vmem:[%s208 + $0x56] sm:$0x1] %vm412, %v2336
        %2352 = vst.msk [vmem:[%s208 + $0x76] sm:$0x1] %vm412, %v2337
        %2353 = vst.msk [vmem:[%s208 + $0x96] sm:$0x1] %vm412, %v2338
        %2354 = vst.msk [vmem:[%s208 + $0xb6] sm:$0x1] %vm412, %v2339
        %2355 = vst.msk [vmem:[%s208 + $0xd6] sm:$0x1] %vm412, %v2340
        %2356 = vst.msk [vmem:[%s208 + $0xf6] sm:$0x1] %vm412, %v2341
        %v2358 = vsel %vm344, %v2286, 0
        %2360 = vmatpush.msra.mxu0 0.0
        %2361 = vmatpush.msra.mxu0 0.0
        %2362 = vmatpush.msra.mxu0 0.0
        %2363 = vmatpush.msra.mxu0 0.0
        %2364 = vmatpush.msra.mxu0 0.0
        %2365 = vmatpush.msra.mxu0 0.0
        %2366 = vmatpush.msra.mxu0 0.0
        %2367 = vmatpush.msra.mxu0 0.0
        %2368 = vmatpush.msra.mxu0 0.0
        %2369 = vmatpush.msra.mxu0 0.0
        %2370 = vmatpush.msra.mxu0 0.0
        %2371 = vmatpush.msra.mxu0 0.0
        %2372 = vmatpush.msra.mxu0 0.0
        %2373 = vmatpush.msra.mxu0 0.0
        %2374 = vmatpush.msra.mxu0 %v231
        %2375 = vmatpush.msra.mxu0 %v230
        %2376 = vmatmul.f32.gmra.mxu0 %v2358
        %v2377 = vpop.f32.mrf.mxu0
        %v2378 = vadd.f32 0.0, %v2377
        %2379 = vdwg.mxu0
        %v2381 = vsel %vm344, %v2285, 0
        %2383 = vmatpush.msra.mxu0 0.0
        %2384 = vmatpush.msra.mxu0 0.0
        %2385 = vmatpush.msra.mxu0 0.0
        %2386 = vmatpush.msra.mxu0 0.0
        %2387 = vmatpush.msra.mxu0 0.0
        %2388 = vmatpush.msra.mxu0 0.0
        %2389 = vmatpush.msra.mxu0 0.0
        %2390 = vmatpush.msra.mxu0 0.0
        %2391 = vmatpush.msra.mxu0 0.0
        %2392 = vmatpush.msra.mxu0 0.0
        %2393 = vmatpush.msra.mxu0 0.0
        %2394 = vmatpush.msra.mxu0 0.0
        %2395 = vmatpush.msra.mxu0 0.0
        %2396 = vmatpush.msra.mxu0 0.0
        %2397 = vmatpush.msra.mxu0 %v223
        %2398 = vmatpush.msra.mxu0 %v222
        %2399 = vmatmul.f32.gmra.mxu0 %v2381
        %v2400 = vpop.f32.mrf.mxu0
        %v2401 = vadd.f32 %v2378, %v2400
        %2402 = vdwg.mxu0
        %v2403 = vadd.f32 %v2401, %v394
        %v2405 = vrot.slane %v2403, 1
        %v2406 = vrot.slane %v2403, 2
        %v2407 = vrot.slane %v2403, 3
        %v2408 = vrot.slane %v2403, 4
        %v2409 = vrot.slane %v2403, 5
        %v2410 = vrot.slane %v2403, 6
        %v2411 = vrot.slane %v2403, 7
        %2419 = vst.msk [vmem:[%s208 + $0x17] sm:$0x1] %vm412, %v2403
        %2420 = vst.msk [vmem:[%s208 + $0x37] sm:$0x1] %vm412, %v2405
        %2421 = vst.msk [vmem:[%s208 + $0x57] sm:$0x1] %vm412, %v2406
        %2422 = vst.msk [vmem:[%s208 + $0x77] sm:$0x1] %vm412, %v2407
        %2423 = vst.msk [vmem:[%s208 + $0x97] sm:$0x1] %vm412, %v2408
        %2424 = vst.msk [vmem:[%s208 + $0xb7] sm:$0x1] %vm412, %v2409
        %2425 = vst.msk [vmem:[%s208 + $0xd7] sm:$0x1] %vm412, %v2410
        %2426 = vst.msk [vmem:[%s208 + $0xf7] sm:$0x1] %vm412, %v2411
        %v2427 = vld [vmem:[%s185 + $0xc] sm:$0x1]
        %v2428 = vperm.slane %v2427, 0
        %v2429 = vmul.f32 %v240, %v2428
        %v2430 = vmul.f32 %v245, %v2428
        %v2431 = vmul.f32 %v250, %v2428
        %v2432 = vmul.f32 %v255, %v2428
        %v2433 = vld [vmem:[%s311 + $0xc] sm:$0x1]
        %v2434 = vperm.slane %v2433, 0
        %v2435 = vmul.f32 %v259, %v2434
        %v2436 = vmul.f32 %v263, %v2434
        %v2437 = vmul.f32 %v267, %v2434
        %v2438 = vmul.f32 %v271, %v2434
        %v2439 = vadd.f32 %v2429, %v2435
        %v2440 = vadd.f32 %v2430, %v2436
        %v2441 = vadd.f32 %v2431, %v2437
        %v2442 = vadd.f32 %v2432, %v2438
        %v2443 = vld [vmem:[%s322 + $0xc] sm:$0x1]
        %v2444 = vperm.slane %v2443, 0
        %v2445 = vmul.f32 %v275, %v2444
        %v2446 = vmul.f32 %v279, %v2444
        %v2447 = vmul.f32 %v283, %v2444
        %v2448 = vmul.f32 %v287, %v2444
        %v2449 = vadd.f32 %v2439, %v2445
        %v2450 = vadd.f32 %v2440, %v2446
        %v2451 = vadd.f32 %v2441, %v2447
        %v2452 = vadd.f32 %v2442, %v2448
        %v2453 = vld [vmem:[%s333 + $0xc] sm:$0x1]
        %v2454 = vperm.slane %v2453, 0
        %v2455 = vmul.f32 %v291, %v2454
        %v2456 = vmul.f32 %v295, %v2454
        %v2457 = vmul.f32 %v299, %v2454
        %v2458 = vmul.f32 %v303, %v2454
        %v2459 = vadd.f32 %v2449, %v2455
        %v2460 = vadd.f32 %v2450, %v2456
        %v2461 = vadd.f32 %v2451, %v2457
        %v2462 = vadd.f32 %v2452, %v2458
        %v2464 = vsel %vm344, %v2460, 0
        %2466 = vmatpush.msra.mxu0 0.0
        %2467 = vmatpush.msra.mxu0 0.0
        %2468 = vmatpush.msra.mxu0 0.0
        %2469 = vmatpush.msra.mxu0 0.0
        %2470 = vmatpush.msra.mxu0 0.0
        %2471 = vmatpush.msra.mxu0 0.0
        %2472 = vmatpush.msra.mxu0 0.0
        %2473 = vmatpush.msra.mxu0 0.0
        %2474 = vmatpush.msra.mxu0 0.0
        %2475 = vmatpush.msra.mxu0 0.0
        %2476 = vmatpush.msra.mxu0 0.0
        %2477 = vmatpush.msra.mxu0 0.0
        %2478 = vmatpush.msra.mxu0 0.0
        %2479 = vmatpush.msra.mxu0 0.0
        %2480 = vmatpush.msra.mxu0 %v231
        %2481 = vmatpush.msra.mxu0 %v230
        %2482 = vmatmul.f32.gmra.mxu0 %v2464
        %v2483 = vpop.f32.mrf.mxu0
        %v2484 = vadd.f32 0.0, %v2483
        %2485 = vdwg.mxu0
        %v2487 = vsel %vm344, %v2459, 0
        %2489 = vmatpush.msra.mxu0 0.0
        %2490 = vmatpush.msra.mxu0 0.0
        %2491 = vmatpush.msra.mxu0 0.0
        %2492 = vmatpush.msra.mxu0 0.0
        %2493 = vmatpush.msra.mxu0 0.0
        %2494 = vmatpush.msra.mxu0 0.0
        %2495 = vmatpush.msra.mxu0 0.0
        %2496 = vmatpush.msra.mxu0 0.0
        %2497 = vmatpush.msra.mxu0 0.0
        %2498 = vmatpush.msra.mxu0 0.0
        %2499 = vmatpush.msra.mxu0 0.0
        %2500 = vmatpush.msra.mxu0 0.0
        %2501 = vmatpush.msra.mxu0 0.0
        %2502 = vmatpush.msra.mxu0 0.0
        %2503 = vmatpush.msra.mxu0 %v223
        %2504 = vmatpush.msra.mxu0 %v222
        %2505 = vmatmul.f32.gmra.mxu0 %v2487
        %v2506 = vpop.f32.mrf.mxu0
        %v2507 = vadd.f32 %v2484, %v2506
        %2508 = vdwg.mxu0
        %v2509 = vadd.f32 %v2507, %v394
        %v2511 = vrot.slane %v2509, 1
        %v2512 = vrot.slane %v2509, 2
        %v2513 = vrot.slane %v2509, 3
        %v2514 = vrot.slane %v2509, 4
        %v2515 = vrot.slane %v2509, 5
        %v2516 = vrot.slane %v2509, 6
        %v2517 = vrot.slane %v2509, 7
        %2525 = vst.msk [vmem:[%s208 + $0x18] sm:$0x1] %vm412, %v2509
        %2526 = vst.msk [vmem:[%s208 + $0x38] sm:$0x1] %vm412, %v2511
        %2527 = vst.msk [vmem:[%s208 + $0x58] sm:$0x1] %vm412, %v2512
        %2528 = vst.msk [vmem:[%s208 + $0x78] sm:$0x1] %vm412, %v2513
        %2529 = vst.msk [vmem:[%s208 + $0x98] sm:$0x1] %vm412, %v2514
        %2530 = vst.msk [vmem:[%s208 + $0xb8] sm:$0x1] %vm412, %v2515
        %2531 = vst.msk [vmem:[%s208 + $0xd8] sm:$0x1] %vm412, %v2516
        %2532 = vst.msk [vmem:[%s208 + $0xf8] sm:$0x1] %vm412, %v2517
        %v2534 = vsel %vm344, %v2462, 0
        %2536 = vmatpush.msra.mxu0 0.0
        %2537 = vmatpush.msra.mxu0 0.0
        %2538 = vmatpush.msra.mxu0 0.0
        %2539 = vmatpush.msra.mxu0 0.0
        %2540 = vmatpush.msra.mxu0 0.0
        %2541 = vmatpush.msra.mxu0 0.0
        %2542 = vmatpush.msra.mxu0 0.0
        %2543 = vmatpush.msra.mxu0 0.0
        %2544 = vmatpush.msra.mxu0 0.0
        %2545 = vmatpush.msra.mxu0 0.0
        %2546 = vmatpush.msra.mxu0 0.0
        %2547 = vmatpush.msra.mxu0 0.0
        %2548 = vmatpush.msra.mxu0 0.0
        %2549 = vmatpush.msra.mxu0 0.0
        %2550 = vmatpush.msra.mxu0 %v231
        %2551 = vmatpush.msra.mxu0 %v230
        %2552 = vmatmul.f32.gmra.mxu0 %v2534
        %v2553 = vpop.f32.mrf.mxu0
        %v2554 = vadd.f32 0.0, %v2553
        %2555 = vdwg.mxu0
        %v2557 = vsel %vm344, %v2461, 0
        %2559 = vmatpush.msra.mxu0 0.0
        %2560 = vmatpush.msra.mxu0 0.0
        %2561 = vmatpush.msra.mxu0 0.0
        %2562 = vmatpush.msra.mxu0 0.0
        %2563 = vmatpush.msra.mxu0 0.0
        %2564 = vmatpush.msra.mxu0 0.0
        %2565 = vmatpush.msra.mxu0 0.0
        %2566 = vmatpush.msra.mxu0 0.0
        %2567 = vmatpush.msra.mxu0 0.0
        %2568 = vmatpush.msra.mxu0 0.0
        %2569 = vmatpush.msra.mxu0 0.0
        %2570 = vmatpush.msra.mxu0 0.0
        %2571 = vmatpush.msra.mxu0 0.0
        %2572 = vmatpush.msra.mxu0 0.0
        %2573 = vmatpush.msra.mxu0 %v223
        %2574 = vmatpush.msra.mxu0 %v222
        %2575 = vmatmul.f32.gmra.mxu0 %v2557
        %v2576 = vpop.f32.mrf.mxu0
        %v2577 = vadd.f32 %v2554, %v2576
        %2578 = vdwg.mxu0
        %v2579 = vadd.f32 %v2577, %v394
        %v2581 = vrot.slane %v2579, 1
        %v2582 = vrot.slane %v2579, 2
        %v2583 = vrot.slane %v2579, 3
        %v2584 = vrot.slane %v2579, 4
        %v2585 = vrot.slane %v2579, 5
        %v2586 = vrot.slane %v2579, 6
        %v2587 = vrot.slane %v2579, 7
        %2595 = vst.msk [vmem:[%s208 + $0x19] sm:$0x1] %vm412, %v2579
        %2596 = vst.msk [vmem:[%s208 + $0x39] sm:$0x1] %vm412, %v2581
        %2597 = vst.msk [vmem:[%s208 + $0x59] sm:$0x1] %vm412, %v2582
        %2598 = vst.msk [vmem:[%s208 + $0x79] sm:$0x1] %vm412, %v2583
        %2599 = vst.msk [vmem:[%s208 + $0x99] sm:$0x1] %vm412, %v2584
        %2600 = vst.msk [vmem:[%s208 + $0xb9] sm:$0x1] %vm412, %v2585
        %2601 = vst.msk [vmem:[%s208 + $0xd9] sm:$0x1] %vm412, %v2586
        %2602 = vst.msk [vmem:[%s208 + $0xf9] sm:$0x1] %vm412, %v2587
        %v2603 = vld [vmem:[%s185 + $0xd] sm:$0x1]
        %v2604 = vperm.slane %v2603, 0
        %v2605 = vmul.f32 %v240, %v2604
        %v2606 = vmul.f32 %v245, %v2604
        %v2607 = vmul.f32 %v250, %v2604
        %v2608 = vmul.f32 %v255, %v2604
        %v2609 = vld [vmem:[%s311 + $0xd] sm:$0x1]
        %v2610 = vperm.slane %v2609, 0
        %v2611 = vmul.f32 %v259, %v2610
        %v2612 = vmul.f32 %v263, %v2610
        %v2613 = vmul.f32 %v267, %v2610
        %v2614 = vmul.f32 %v271, %v2610
        %v2615 = vadd.f32 %v2605, %v2611
        %v2616 = vadd.f32 %v2606, %v2612
        %v2617 = vadd.f32 %v2607, %v2613
        %v2618 = vadd.f32 %v2608, %v2614
        %v2619 = vld [vmem:[%s322 + $0xd] sm:$0x1]
        %v2620 = vperm.slane %v2619, 0
        %v2621 = vmul.f32 %v275, %v2620
        %v2622 = vmul.f32 %v279, %v2620
        %v2623 = vmul.f32 %v283, %v2620
        %v2624 = vmul.f32 %v287, %v2620
        %v2625 = vadd.f32 %v2615, %v2621
        %v2626 = vadd.f32 %v2616, %v2622
        %v2627 = vadd.f32 %v2617, %v2623
        %v2628 = vadd.f32 %v2618, %v2624
        %v2629 = vld [vmem:[%s333 + $0xd] sm:$0x1]
        %v2630 = vperm.slane %v2629, 0
        %v2631 = vmul.f32 %v291, %v2630
        %v2632 = vmul.f32 %v295, %v2630
        %v2633 = vmul.f32 %v299, %v2630
        %v2634 = vmul.f32 %v303, %v2630
        %v2635 = vadd.f32 %v2625, %v2631
        %v2636 = vadd.f32 %v2626, %v2632
        %v2637 = vadd.f32 %v2627, %v2633
        %v2638 = vadd.f32 %v2628, %v2634
        %v2640 = vsel %vm344, %v2636, 0
        %2642 = vmatpush.msra.mxu0 0.0
        %2643 = vmatpush.msra.mxu0 0.0
        %2644 = vmatpush.msra.mxu0 0.0
        %2645 = vmatpush.msra.mxu0 0.0
        %2646 = vmatpush.msra.mxu0 0.0
        %2647 = vmatpush.msra.mxu0 0.0
        %2648 = vmatpush.msra.mxu0 0.0
        %2649 = vmatpush.msra.mxu0 0.0
        %2650 = vmatpush.msra.mxu0 0.0
        %2651 = vmatpush.msra.mxu0 0.0
        %2652 = vmatpush.msra.mxu0 0.0
        %2653 = vmatpush.msra.mxu0 0.0
        %2654 = vmatpush.msra.mxu0 0.0
        %2655 = vmatpush.msra.mxu0 0.0
        %2656 = vmatpush.msra.mxu0 %v231
        %2657 = vmatpush.msra.mxu0 %v230
        %2658 = vmatmul.f32.gmra.mxu0 %v2640
        %v2659 = vpop.f32.mrf.mxu0
        %v2660 = vadd.f32 0.0, %v2659
        %2661 = vdwg.mxu0
        %v2663 = vsel %vm344, %v2635, 0
        %2665 = vmatpush.msra.mxu0 0.0
        %2666 = vmatpush.msra.mxu0 0.0
        %2667 = vmatpush.msra.mxu0 0.0
        %2668 = vmatpush.msra.mxu0 0.0
        %2669 = vmatpush.msra.mxu0 0.0
        %2670 = vmatpush.msra.mxu0 0.0
        %2671 = vmatpush.msra.mxu0 0.0
        %2672 = vmatpush.msra.mxu0 0.0
        %2673 = vmatpush.msra.mxu0 0.0
        %2674 = vmatpush.msra.mxu0 0.0
        %2675 = vmatpush.msra.mxu0 0.0
        %2676 = vmatpush.msra.mxu0 0.0
        %2677 = vmatpush.msra.mxu0 0.0
        %2678 = vmatpush.msra.mxu0 0.0
        %2679 = vmatpush.msra.mxu0 %v223
        %2680 = vmatpush.msra.mxu0 %v222
        %2681 = vmatmul.f32.gmra.mxu0 %v2663
        %v2682 = vpop.f32.mrf.mxu0
        %v2683 = vadd.f32 %v2660, %v2682
        %2684 = vdwg.mxu0
        %v2685 = vadd.f32 %v2683, %v394
        %v2687 = vrot.slane %v2685, 1
        %v2688 = vrot.slane %v2685, 2
        %v2689 = vrot.slane %v2685, 3
        %v2690 = vrot.slane %v2685, 4
        %v2691 = vrot.slane %v2685, 5
        %v2692 = vrot.slane %v2685, 6
        %v2693 = vrot.slane %v2685, 7
        %2701 = vst.msk [vmem:[%s208 + $0x1a] sm:$0x1] %vm412, %v2685
        %2702 = vst.msk [vmem:[%s208 + $0x3a] sm:$0x1] %vm412, %v2687
        %2703 = vst.msk [vmem:[%s208 + $0x5a] sm:$0x1] %vm412, %v2688
        %2704 = vst.msk [vmem:[%s208 + $0x7a] sm:$0x1] %vm412, %v2689
        %2705 = vst.msk [vmem:[%s208 + $0x9a] sm:$0x1] %vm412, %v2690
        %2706 = vst.msk [vmem:[%s208 + $0xba] sm:$0x1] %vm412, %v2691
        %2707 = vst.msk [vmem:[%s208 + $0xda] sm:$0x1] %vm412, %v2692
        %2708 = vst.msk [vmem:[%s208 + $0xfa] sm:$0x1] %vm412, %v2693
        %v2710 = vsel %vm344, %v2638, 0
        %2712 = vmatpush.msra.mxu0 0.0
        %2713 = vmatpush.msra.mxu0 0.0
        %2714 = vmatpush.msra.mxu0 0.0
        %2715 = vmatpush.msra.mxu0 0.0
        %2716 = vmatpush.msra.mxu0 0.0
        %2717 = vmatpush.msra.mxu0 0.0
        %2718 = vmatpush.msra.mxu0 0.0
        %2719 = vmatpush.msra.mxu0 0.0
        %2720 = vmatpush.msra.mxu0 0.0
        %2721 = vmatpush.msra.mxu0 0.0
        %2722 = vmatpush.msra.mxu0 0.0
        %2723 = vmatpush.msra.mxu0 0.0
        %2724 = vmatpush.msra.mxu0 0.0
        %2725 = vmatpush.msra.mxu0 0.0
        %2726 = vmatpush.msra.mxu0 %v231
        %2727 = vmatpush.msra.mxu0 %v230
        %2728 = vmatmul.f32.gmra.mxu0 %v2710
        %v2729 = vpop.f32.mrf.mxu0
        %v2730 = vadd.f32 0.0, %v2729
        %2731 = vdwg.mxu0
        %v2733 = vsel %vm344, %v2637, 0
        %2735 = vmatpush.msra.mxu0 0.0
        %2736 = vmatpush.msra.mxu0 0.0
        %2737 = vmatpush.msra.mxu0 0.0
        %2738 = vmatpush.msra.mxu0 0.0
        %2739 = vmatpush.msra.mxu0 0.0
        %2740 = vmatpush.msra.mxu0 0.0
        %2741 = vmatpush.msra.mxu0 0.0
        %2742 = vmatpush.msra.mxu0 0.0
        %2743 = vmatpush.msra.mxu0 0.0
        %2744 = vmatpush.msra.mxu0 0.0
        %2745 = vmatpush.msra.mxu0 0.0
        %2746 = vmatpush.msra.mxu0 0.0
        %2747 = vmatpush.msra.mxu0 0.0
        %2748 = vmatpush.msra.mxu0 0.0
        %2749 = vmatpush.msra.mxu0 %v223
        %2750 = vmatpush.msra.mxu0 %v222
        %2751 = vmatmul.f32.gmra.mxu0 %v2733
        %v2752 = vpop.f32.mrf.mxu0
        %v2753 = vadd.f32 %v2730, %v2752
        %2754 = vdwg.mxu0
        %v2755 = vadd.f32 %v2753, %v394
        %v2757 = vrot.slane %v2755, 1
        %v2758 = vrot.slane %v2755, 2
        %v2759 = vrot.slane %v2755, 3
        %v2760 = vrot.slane %v2755, 4
        %v2761 = vrot.slane %v2755, 5
        %v2762 = vrot.slane %v2755, 6
        %v2763 = vrot.slane %v2755, 7
        %2771 = vst.msk [vmem:[%s208 + $0x1b] sm:$0x1] %vm412, %v2755
        %2772 = vst.msk [vmem:[%s208 + $0x3b] sm:$0x1] %vm412, %v2757
        %2773 = vst.msk [vmem:[%s208 + $0x5b] sm:$0x1] %vm412, %v2758
        %2774 = vst.msk [vmem:[%s208 + $0x7b] sm:$0x1] %vm412, %v2759
        %2775 = vst.msk [vmem:[%s208 + $0x9b] sm:$0x1] %vm412, %v2760
        %2776 = vst.msk [vmem:[%s208 + $0xbb] sm:$0x1] %vm412, %v2761
        %2777 = vst.msk [vmem:[%s208 + $0xdb] sm:$0x1] %vm412, %v2762
        %2778 = vst.msk [vmem:[%s208 + $0xfb] sm:$0x1] %vm412, %v2763
        %v2779 = vld [vmem:[%s185 + $0xe] sm:$0x1]
        %v2780 = vperm.slane %v2779, 0
        %v2781 = vmul.f32 %v240, %v2780
        %v2782 = vmul.f32 %v245, %v2780
        %v2783 = vmul.f32 %v250, %v2780
        %v2784 = vmul.f32 %v255, %v2780
        %v2785 = vld [vmem:[%s311 + $0xe] sm:$0x1]
        %v2786 = vperm.slane %v2785, 0
        %v2787 = vmul.f32 %v259, %v2786
        %v2788 = vmul.f32 %v263, %v2786
        %v2789 = vmul.f32 %v267, %v2786
        %v2790 = vmul.f32 %v271, %v2786
        %v2791 = vadd.f32 %v2781, %v2787
        %v2792 = vadd.f32 %v2782, %v2788
        %v2793 = vadd.f32 %v2783, %v2789
        %v2794 = vadd.f32 %v2784, %v2790
        %v2795 = vld [vmem:[%s322 + $0xe] sm:$0x1]
        %v2796 = vperm.slane %v2795, 0
        %v2797 = vmul.f32 %v275, %v2796
        %v2798 = vmul.f32 %v279, %v2796
        %v2799 = vmul.f32 %v283, %v2796
        %v2800 = vmul.f32 %v287, %v2796
        %v2801 = vadd.f32 %v2791, %v2797
        %v2802 = vadd.f32 %v2792, %v2798
        %v2803 = vadd.f32 %v2793, %v2799
        %v2804 = vadd.f32 %v2794, %v2800
        %v2805 = vld [vmem:[%s333 + $0xe] sm:$0x1]
        %v2806 = vperm.slane %v2805, 0
        %v2807 = vmul.f32 %v291, %v2806
        %v2808 = vmul.f32 %v295, %v2806
        %v2809 = vmul.f32 %v299, %v2806
        %v2810 = vmul.f32 %v303, %v2806
        %v2811 = vadd.f32 %v2801, %v2807
        %v2812 = vadd.f32 %v2802, %v2808
        %v2813 = vadd.f32 %v2803, %v2809
        %v2814 = vadd.f32 %v2804, %v2810
        %v2816 = vsel %vm344, %v2812, 0
        %2818 = vmatpush.msra.mxu0 0.0
        %2819 = vmatpush.msra.mxu0 0.0
        %2820 = vmatpush.msra.mxu0 0.0
        %2821 = vmatpush.msra.mxu0 0.0
        %2822 = vmatpush.msra.mxu0 0.0
        %2823 = vmatpush.msra.mxu0 0.0
        %2824 = vmatpush.msra.mxu0 0.0
        %2825 = vmatpush.msra.mxu0 0.0
        %2826 = vmatpush.msra.mxu0 0.0
        %2827 = vmatpush.msra.mxu0 0.0
        %2828 = vmatpush.msra.mxu0 0.0
        %2829 = vmatpush.msra.mxu0 0.0
        %2830 = vmatpush.msra.mxu0 0.0
        %2831 = vmatpush.msra.mxu0 0.0
        %2832 = vmatpush.msra.mxu0 %v231
        %2833 = vmatpush.msra.mxu0 %v230
        %2834 = vmatmul.f32.gmra.mxu0 %v2816
        %v2835 = vpop.f32.mrf.mxu0
        %v2836 = vadd.f32 0.0, %v2835
        %2837 = vdwg.mxu0
        %v2839 = vsel %vm344, %v2811, 0
        %2841 = vmatpush.msra.mxu0 0.0
        %2842 = vmatpush.msra.mxu0 0.0
        %2843 = vmatpush.msra.mxu0 0.0
        %2844 = vmatpush.msra.mxu0 0.0
        %2845 = vmatpush.msra.mxu0 0.0
        %2846 = vmatpush.msra.mxu0 0.0
        %2847 = vmatpush.msra.mxu0 0.0
        %2848 = vmatpush.msra.mxu0 0.0
        %2849 = vmatpush.msra.mxu0 0.0
        %2850 = vmatpush.msra.mxu0 0.0
        %2851 = vmatpush.msra.mxu0 0.0
        %2852 = vmatpush.msra.mxu0 0.0
        %2853 = vmatpush.msra.mxu0 0.0
        %2854 = vmatpush.msra.mxu0 0.0
        %2855 = vmatpush.msra.mxu0 %v223
        %2856 = vmatpush.msra.mxu0 %v222
        %2857 = vmatmul.f32.gmra.mxu0 %v2839
        %v2858 = vpop.f32.mrf.mxu0
        %v2859 = vadd.f32 %v2836, %v2858
        %2860 = vdwg.mxu0
        %v2861 = vadd.f32 %v2859, %v394
        %v2863 = vrot.slane %v2861, 1
        %v2864 = vrot.slane %v2861, 2
        %v2865 = vrot.slane %v2861, 3
        %v2866 = vrot.slane %v2861, 4
        %v2867 = vrot.slane %v2861, 5
        %v2868 = vrot.slane %v2861, 6
        %v2869 = vrot.slane %v2861, 7
        %2877 = vst.msk [vmem:[%s208 + $0x1c] sm:$0x1] %vm412, %v2861
        %2878 = vst.msk [vmem:[%s208 + $0x3c] sm:$0x1] %vm412, %v2863
        %2879 = vst.msk [vmem:[%s208 + $0x5c] sm:$0x1] %vm412, %v2864
        %2880 = vst.msk [vmem:[%s208 + $0x7c] sm:$0x1] %vm412, %v2865
        %2881 = vst.msk [vmem:[%s208 + $0x9c] sm:$0x1] %vm412, %v2866
        %2882 = vst.msk [vmem:[%s208 + $0xbc] sm:$0x1] %vm412, %v2867
        %2883 = vst.msk [vmem:[%s208 + $0xdc] sm:$0x1] %vm412, %v2868
        %2884 = vst.msk [vmem:[%s208 + $0xfc] sm:$0x1] %vm412, %v2869
        %v2886 = vsel %vm344, %v2814, 0
        %2888 = vmatpush.msra.mxu0 0.0
        %2889 = vmatpush.msra.mxu0 0.0
        %2890 = vmatpush.msra.mxu0 0.0
        %2891 = vmatpush.msra.mxu0 0.0
        %2892 = vmatpush.msra.mxu0 0.0
        %2893 = vmatpush.msra.mxu0 0.0
        %2894 = vmatpush.msra.mxu0 0.0
        %2895 = vmatpush.msra.mxu0 0.0
        %2896 = vmatpush.msra.mxu0 0.0
        %2897 = vmatpush.msra.mxu0 0.0
        %2898 = vmatpush.msra.mxu0 0.0
        %2899 = vmatpush.msra.mxu0 0.0
        %2900 = vmatpush.msra.mxu0 0.0
        %2901 = vmatpush.msra.mxu0 0.0
        %2902 = vmatpush.msra.mxu0 %v231
        %2903 = vmatpush.msra.mxu0 %v230
        %2904 = vmatmul.f32.gmra.mxu0 %v2886
        %v2905 = vpop.f32.mrf.mxu0
        %v2906 = vadd.f32 0.0, %v2905
        %2907 = vdwg.mxu0
        %v2909 = vsel %vm344, %v2813, 0
        %2911 = vmatpush.msra.mxu0 0.0
        %2912 = vmatpush.msra.mxu0 0.0
        %2913 = vmatpush.msra.mxu0 0.0
        %2914 = vmatpush.msra.mxu0 0.0
        %2915 = vmatpush.msra.mxu0 0.0
        %2916 = vmatpush.msra.mxu0 0.0
        %2917 = vmatpush.msra.mxu0 0.0
        %2918 = vmatpush.msra.mxu0 0.0
        %2919 = vmatpush.msra.mxu0 0.0
        %2920 = vmatpush.msra.mxu0 0.0
        %2921 = vmatpush.msra.mxu0 0.0
        %2922 = vmatpush.msra.mxu0 0.0
        %2923 = vmatpush.msra.mxu0 0.0
        %2924 = vmatpush.msra.mxu0 0.0
        %2925 = vmatpush.msra.mxu0 %v223
        %2926 = vmatpush.msra.mxu0 %v222
        %2927 = vmatmul.f32.gmra.mxu0 %v2909
        %v2928 = vpop.f32.mrf.mxu0
        %v2929 = vadd.f32 %v2906, %v2928
        %2930 = vdwg.mxu0
        %v2931 = vadd.f32 %v2929, %v394
        %v2933 = vrot.slane %v2931, 1
        %v2934 = vrot.slane %v2931, 2
        %v2935 = vrot.slane %v2931, 3
        %v2936 = vrot.slane %v2931, 4
        %v2937 = vrot.slane %v2931, 5
        %v2938 = vrot.slane %v2931, 6
        %v2939 = vrot.slane %v2931, 7
        %2947 = vst.msk [vmem:[%s208 + $0x1d] sm:$0x1] %vm412, %v2931
        %2948 = vst.msk [vmem:[%s208 + $0x3d] sm:$0x1] %vm412, %v2933
        %2949 = vst.msk [vmem:[%s208 + $0x5d] sm:$0x1] %vm412, %v2934
        %2950 = vst.msk [vmem:[%s208 + $0x7d] sm:$0x1] %vm412, %v2935
        %2951 = vst.msk [vmem:[%s208 + $0x9d] sm:$0x1] %vm412, %v2936
        %2952 = vst.msk [vmem:[%s208 + $0xbd] sm:$0x1] %vm412, %v2937
        %2953 = vst.msk [vmem:[%s208 + $0xdd] sm:$0x1] %vm412, %v2938
        %2954 = vst.msk [vmem:[%s208 + $0xfd] sm:$0x1] %vm412, %v2939
        %v2955 = vld [vmem:[%s185 + $0xf] sm:$0x1]
        %v2956 = vperm.slane %v2955, 0
        %v2957 = vmul.f32 %v240, %v2956
        %v2958 = vmul.f32 %v245, %v2956
        %v2959 = vmul.f32 %v250, %v2956
        %v2960 = vmul.f32 %v255, %v2956
        %v2961 = vld [vmem:[%s311 + $0xf] sm:$0x1]
        %v2962 = vperm.slane %v2961, 0
        %v2963 = vmul.f32 %v259, %v2962
        %v2964 = vmul.f32 %v263, %v2962
        %v2965 = vmul.f32 %v267, %v2962
        %v2966 = vmul.f32 %v271, %v2962
        %v2967 = vadd.f32 %v2957, %v2963
        %v2968 = vadd.f32 %v2958, %v2964
        %v2969 = vadd.f32 %v2959, %v2965
        %v2970 = vadd.f32 %v2960, %v2966
        %v2971 = vld [vmem:[%s322 + $0xf] sm:$0x1]
        %v2972 = vperm.slane %v2971, 0
        %v2973 = vmul.f32 %v275, %v2972
        %v2974 = vmul.f32 %v279, %v2972
        %v2975 = vmul.f32 %v283, %v2972
        %v2976 = vmul.f32 %v287, %v2972
        %v2977 = vadd.f32 %v2967, %v2973
        %v2978 = vadd.f32 %v2968, %v2974
        %v2979 = vadd.f32 %v2969, %v2975
        %v2980 = vadd.f32 %v2970, %v2976
        %v2981 = vld [vmem:[%s333 + $0xf] sm:$0x1]
        %v2982 = vperm.slane %v2981, 0
        %v2983 = vmul.f32 %v291, %v2982
        %v2984 = vmul.f32 %v295, %v2982
        %v2985 = vmul.f32 %v299, %v2982
        %v2986 = vmul.f32 %v303, %v2982
        %v2987 = vadd.f32 %v2977, %v2983
        %v2988 = vadd.f32 %v2978, %v2984
        %v2989 = vadd.f32 %v2979, %v2985
        %v2990 = vadd.f32 %v2980, %v2986
        %v2992 = vsel %vm344, %v2988, 0
        %2994 = vmatpush.msra.mxu0 0.0
        %2995 = vmatpush.msra.mxu0 0.0
        %2996 = vmatpush.msra.mxu0 0.0
        %2997 = vmatpush.msra.mxu0 0.0
        %2998 = vmatpush.msra.mxu0 0.0
        %2999 = vmatpush.msra.mxu0 0.0
        %3000 = vmatpush.msra.mxu0 0.0
        %3001 = vmatpush.msra.mxu0 0.0
        %3002 = vmatpush.msra.mxu0 0.0
        %3003 = vmatpush.msra.mxu0 0.0
        %3004 = vmatpush.msra.mxu0 0.0
        %3005 = vmatpush.msra.mxu0 0.0
        %3006 = vmatpush.msra.mxu0 0.0
        %3007 = vmatpush.msra.mxu0 0.0
        %3008 = vmatpush.msra.mxu0 %v231
        %3009 = vmatpush.msra.mxu0 %v230
        %3010 = vmatmul.f32.gmra.mxu0 %v2992
        %v3011 = vpop.f32.mrf.mxu0
        %v3012 = vadd.f32 0.0, %v3011
        %3013 = vdwg.mxu0
        %v3015 = vsel %vm344, %v2987, 0
        %3017 = vmatpush.msra.mxu0 0.0
        %3018 = vmatpush.msra.mxu0 0.0
        %3019 = vmatpush.msra.mxu0 0.0
        %3020 = vmatpush.msra.mxu0 0.0
        %3021 = vmatpush.msra.mxu0 0.0
        %3022 = vmatpush.msra.mxu0 0.0
        %3023 = vmatpush.msra.mxu0 0.0
        %3024 = vmatpush.msra.mxu0 0.0
        %3025 = vmatpush.msra.mxu0 0.0
        %3026 = vmatpush.msra.mxu0 0.0
        %3027 = vmatpush.msra.mxu0 0.0
        %3028 = vmatpush.msra.mxu0 0.0
        %3029 = vmatpush.msra.mxu0 0.0
        %3030 = vmatpush.msra.mxu0 0.0
        %3031 = vmatpush.msra.mxu0 %v223
        %3032 = vmatpush.msra.mxu0 %v222
        %3033 = vmatmul.f32.gmra.mxu0 %v3015
        %v3034 = vpop.f32.mrf.mxu0
        %v3035 = vadd.f32 %v3012, %v3034
        %3036 = vdwg.mxu0
        %v3037 = vadd.f32 %v3035, %v394
        %v3039 = vrot.slane %v3037, 1
        %v3040 = vrot.slane %v3037, 2
        %v3041 = vrot.slane %v3037, 3
        %v3042 = vrot.slane %v3037, 4
        %v3043 = vrot.slane %v3037, 5
        %v3044 = vrot.slane %v3037, 6
        %v3045 = vrot.slane %v3037, 7
        %3053 = vst.msk [vmem:[%s208 + $0x1e] sm:$0x1] %vm412, %v3037
        %3054 = vst.msk [vmem:[%s208 + $0x3e] sm:$0x1] %vm412, %v3039
        %3055 = vst.msk [vmem:[%s208 + $0x5e] sm:$0x1] %vm412, %v3040
        %3056 = vst.msk [vmem:[%s208 + $0x7e] sm:$0x1] %vm412, %v3041
        %3057 = vst.msk [vmem:[%s208 + $0x9e] sm:$0x1] %vm412, %v3042
        %3058 = vst.msk [vmem:[%s208 + $0xbe] sm:$0x1] %vm412, %v3043
        %3059 = vst.msk [vmem:[%s208 + $0xde] sm:$0x1] %vm412, %v3044
        %3060 = vst.msk [vmem:[%s208 + $0xfe] sm:$0x1] %vm412, %v3045
        %v3062 = vsel %vm344, %v2990, 0
        %3064 = vmatpush.msra.mxu0 0.0
        %3065 = vmatpush.msra.mxu0 0.0
        %3066 = vmatpush.msra.mxu0 0.0
        %3067 = vmatpush.msra.mxu0 0.0
        %3068 = vmatpush.msra.mxu0 0.0
        %3069 = vmatpush.msra.mxu0 0.0
        %3070 = vmatpush.msra.mxu0 0.0
        %3071 = vmatpush.msra.mxu0 0.0
        %3072 = vmatpush.msra.mxu0 0.0
        %3073 = vmatpush.msra.mxu0 0.0
        %3074 = vmatpush.msra.mxu0 0.0
        %3075 = vmatpush.msra.mxu0 0.0
        %3076 = vmatpush.msra.mxu0 0.0
        %3077 = vmatpush.msra.mxu0 0.0
        %3078 = vmatpush.msra.mxu0 %v231
        %3079 = vmatpush.msra.mxu0 %v230
        %3080 = vmatmul.f32.gmra.mxu0 %v3062
        %v3081 = vpop.f32.mrf.mxu0
        %v3082 = vadd.f32 0.0, %v3081
        %3083 = vdwg.mxu0
        %v3085 = vsel %vm344, %v2989, 0
        %3087 = vmatpush.msra.mxu0 0.0
        %3088 = vmatpush.msra.mxu0 0.0
        %3089 = vmatpush.msra.mxu0 0.0
        %3090 = vmatpush.msra.mxu0 0.0
        %3091 = vmatpush.msra.mxu0 0.0
        %3092 = vmatpush.msra.mxu0 0.0
        %3093 = vmatpush.msra.mxu0 0.0
        %3094 = vmatpush.msra.mxu0 0.0
        %3095 = vmatpush.msra.mxu0 0.0
        %3096 = vmatpush.msra.mxu0 0.0
        %3097 = vmatpush.msra.mxu0 0.0
        %3098 = vmatpush.msra.mxu0 0.0
        %3099 = vmatpush.msra.mxu0 0.0
        %3100 = vmatpush.msra.mxu0 0.0
        %3101 = vmatpush.msra.mxu0 %v223
        %3102 = vmatpush.msra.mxu0 %v222
        %3103 = vmatmul.f32.gmra.mxu0 %v3085
        %v3104 = vpop.f32.mrf.mxu0
        %v3105 = vadd.f32 %v3082, %v3104
        %3106 = vdwg.mxu0
        %v3107 = vadd.f32 %v3105, %v394
        %v3109 = vrot.slane %v3107, 1
        %v3110 = vrot.slane %v3107, 2
        %v3111 = vrot.slane %v3107, 3
        %v3112 = vrot.slane %v3107, 4
        %v3113 = vrot.slane %v3107, 5
        %v3114 = vrot.slane %v3107, 6
        %v3115 = vrot.slane %v3107, 7
        %3123 = vst.msk [vmem:[%s208 + $0x1f] sm:$0x1] %vm412, %v3107
        %3124 = vst.msk [vmem:[%s208 + $0x3f] sm:$0x1] %vm412, %v3109
        %3125 = vst.msk [vmem:[%s208 + $0x5f] sm:$0x1] %vm412, %v3110
        %3126 = vst.msk [vmem:[%s208 + $0x7f] sm:$0x1] %vm412, %v3111
        %3127 = vst.msk [vmem:[%s208 + $0x9f] sm:$0x1] %vm412, %v3112
        %3128 = vst.msk [vmem:[%s208 + $0xbf] sm:$0x1] %vm412, %v3113
        %3129 = vst.msk [vmem:[%s208 + $0xdf] sm:$0x1] %vm412, %v3114
        %3130 = vst.msk [vmem:[%s208 + $0xff] sm:$0x1] %vm412, %v3115
        %s3131 = sand.u32 %s112, 1
        %s3132 = scalar_lea.sflag [#allocation4], %s3131
        %s3133 = sand.u32 %s112, 1
        %s3134 = smul.addr %s3133, 256
        %s3135 = scalar_lea.vmem [#allocation5], %s3134
        // Predicated region
        $region37: #{tpu_custom_call.1} parent=31 // pred_check
          %p3136 = pneg %p122
        $region38: #{tpu_custom_call.1} parent=31 // pred_check_branch
          %3138 = sbr.rel (%p3136) target = $region40
        $region39: #{tpu_custom_call.1} parent=31 // pred_region
          %s3139 = smul.u32 4, %s25
          %3141 = vsyncadd %s3132, 0
          %s3142 = smul.addr %s24, 32
          %s3143 = sadd.s32 %s3139, %s3142
          %s3144 = smul.addr %s3143, 8
          %s3145 = scalar_lea.hbm %s3, %s3144
          %s3146 = sshll.u32 %s3135, 4
          %s3147 = int_to_ptr.vmem [resolvable:$true] %s3146
          %s3148 = sshll.u32 %s3145, 4
          %s3149 = int_to_ptr.hbm [resolvable:$true] %s3148
          %3154 = dma.vmem_to_hbm [thread:$0]  %s3147, 4096, %s3149, %s3132, 128, 128, 8
        $region40: #{tpu_custom_call.1} parent=31 // pred_fallthru
          _
      $region32: #{tpu_custom_call.1} parent=5 // pred_fallthru
        _
      %p3155 = scmp.le.s32.totalorder 2, %s15
      // Predicated region
      $region41: #{tpu_custom_call.1} parent=5 // pred_check
        %p3156 = pneg %p3155
      $region42: #{tpu_custom_call.1} parent=5 // pred_check_branch
        %3158 = sbr.rel (%p3156) target = $region44
      $region43: #{tpu_custom_call.1} parent=5 // pred_region
        %s3159 = ssub.s32 %s15, 2
        // Predicated region
        $region45: #{tpu_custom_call.1} parent=43 // pred_check
          %p3160 = pneg %p128
        $region46: #{tpu_custom_call.1} parent=43 // pred_check_branch
          %3162 = sbr.rel (%p3160) target = $region48
        $region47: #{tpu_custom_call.1} parent=43 // pred_region
          %s3163 = sand.u32 %s113, 1
          %s3164 = scalar_lea.sflag [#allocation4], %s3163
          %s3165 = sand.u32 %s113, 1
          %s3166 = smul.addr %s3165, 256
          %s3167 = scalar_lea.vmem [#allocation5], %s3166
          %3169 = dma.done %s3164, 4096
        $region48: #{tpu_custom_call.1} parent=43 // pred_fallthru
          _
      $region44: #{tpu_custom_call.1} parent=5 // pred_fallthru
        _
    $region6: #{tpu_custom_call.1} parent=1 // loop_footer
      %s19 = sadd.s32 1, %s15
    $region7: #{tpu_custom_call.1} parent=1 // loop_footer_branch
      %14 = sbr.rel target = $region3
    $region8: #{tpu_custom_call.1} parent=1 // loop_exit
      _
    %3170 = vsyncpa [#allocation3], 1
    %s3171 = scalar_lea.sflag [#allocation3], 1
    %3172 = vsyncpa %s3171, 1
    %3173 = vsyncpa [#allocation4], 1
    %s3174 = scalar_lea.sflag [#allocation4], 1
    %3175 = vsyncpa %s3174, 1

// kernel: tpu_custom_call.1
$region0: #{tpu_custom_call.1}
  #allocation0 [shape = 'u32[]', space=smem, size = 0x4, offset = 0x4, fixed_abs, tag = 'smem constant byte address 0x4 - core index']
  #allocation1 [shape = 'u32[72,128]{1,0:T(1,128)}', space=vmem, size = 0x9000, scoped, tag = 'internal scratch']
  %s0 = inlined_call_operand.hbm [shape: f32[2,4,16,16], index: 0, kind: input, shape index: {}]
  %s1 = inlined_call_operand.vmem [shape: f32[32,4], index: 1, kind: input, shape index: {}]
  %s2 = inlined_call_operand.vmem [shape: f32[8,1], index: 2, kind: input, shape index: {}]
  %s3 = inlined_call_operand.hbm [shape: f32[2,8,32,32], index: 3, kind: output, shape index: {}]
  %s4 = sld [smem:[#allocation0]]
  $region49: #{tpu_custom_call.1} parent=0
    _
  %s6 = ssub.s32 1, %s4
  %s7 = scalar_select 0, %s6, %s4
  $region1: #{tpu_custom_call.1} parent=0
    #allocation2 [shape = 'u8[65536]{0}', space=vmem, size = 0x10000, scoped, tag = 'input window, operand 0']
    #allocation3 [shape = 's32[2]{0}', space=sflag, size = 0x8, scoped, tag = 'scoped memory for tpu_custom_call.1']
    #allocation4 [shape = 's32[2]{0}', space=sflag, size = 0x8, scoped, tag = 'scoped memory for tpu_custom_call.1']
    #allocation5 [shape = 'u8[262144]{0}', space=vmem, size = 0x40000, scoped, tag = 'output window, operand 0']
    %8 = vsyncpa [#allocation3], 0
    %s9 = scalar_lea.sflag [#allocation3], 1
    %10 = vsyncpa %s9, 0
    %11 = vsyncpa [#allocation4], 0
    %s12 = scalar_lea.sflag [#allocation4], 1
    %13 = vsyncpa %s12, 0
    loop: start=0, step=1, limit=4
    $region2: #{tpu_custom_call.1} parent=1 // loop_pre_header
      _
    $region3: #{tpu_custom_call.1} parent=1 // loop_header
      %s15 = sphi 0, %s19
      %p16 = scmp.ge.s32.totalorder %s15, 4
      %s22 = sphi 0, %s34
      %s23 = sphi 0, %s30
      %s24 = sphi 0, %s22
      %s25 = sphi 0, %s23
      %s26 = sphi 0, %s24
      %s27 = sphi 0, %s25
      %s39 = sphi 0, %s41
      %s42 = sphi 0, %s39
      %s43 = sphi 0, %s42
      %s59 = sphi 0, %s43
      %s63 = sphi 0, %s63
      %s65 = sphi 0, %s63
      %s66 = sphi 0, %s65
      %s80 = sphi 0, %s66
      %s84 = sphi 0, %s84
      %s86 = sphi 0, %s84
      %s87 = sphi 0, %s86
      %s101 = sphi 0, %s87
      %s109 = sphi 0, %s111
      %s112 = sphi 0, %s109
      %s113 = sphi 0, %s112
      %s129 = sphi 0, %s113
    $region4: #{tpu_custom_call.1} parent=1 // loop_header_branch
      %18 = sbr.rel (%p16) target = $region8
    $region5: #{tpu_custom_call.1} parent=1 // loop_body
      %s20 = ssub.s32 %s15, 1
      %s21 = ssub.s32 %s15, 2
      %s28 = sadd.s32 1, %s23
      %p29 = scmp.ge.s32.totalorder %s28, 1
      %s30 = scalar_select %p29, 0, %s28
      %s31 = sadd.s32 1, %s22
      %s32 = scalar_select %p29, %s31, %s22
      %p33 = scmp.ge.s32.totalorder %s32, 2
      %s34 = scalar_select %p33, 0, %s32
      %s35 = ssub.s32 %s22, %s34
      %s36 = ssub.s32 %s23, %s30
      %s37 = sor.u32 %s35, %s36
      %p38 = scmp.eq.s32.totalorder %s37, 0
      %s40 = sadd.s32 %s39, 1
      %s41 = scalar_select %p38, %s39, %s40
      %p44 = pneg %p38
      %p45 = scmp.eq.s32.totalorder %s15, 1
      %p46 = por %p44, %p45
      %p47 = scmp.ne.s32.totalorder %s39, %s42
      %p48 = scmp.eq.s32.totalorder %s15, 0
      %p49 = por %p47, %p48
      %p50 = scmp.ne.s32.totalorder %s39, %s42
      %p51 = scmp.eq.s32.totalorder %s20, 1
      %p52 = por %p50, %p51
      %p53 = scmp.ne.s32.totalorder %s42, %s43
      %p54 = scmp.eq.s32.totalorder %s20, 0
      %p55 = por %p53, %p54
      %p56 = scmp.ne.s32.totalorder %s42, %s43
      %p57 = scmp.eq.s32.totalorder %s21, 1
      %p58 = por %p56, %p57
      %p60 = scmp.ne.s32.totalorder %s43, %s59
      %p61 = scmp.eq.s32.totalorder %s21, 0
      %p62 = por %p60, %p61
      %s64 = sadd.s32 %s63, 1
      %p67 = scmp.eq.s32.totalorder %s15, 1
      %p68 = scmp.ne.s32.totalorder %s63, %s65
      %p69 = scmp.eq.s32.totalorder %s15, 0
      %p70 = por %p68, %p69
      %p71 = scmp.ne.s32.totalorder %s63, %s65
      %p72 = scmp.eq.s32.totalorder %s20, 1
      %p73 = por %p71, %p72
      %p74 = scmp.ne.s32.totalorder %s65, %s66
      %p75 = scmp.eq.s32.totalorder %s20, 0
      %p76 = por %p74, %p75
      %p77 = scmp.ne.s32.totalorder %s65, %s66
      %p78 = scmp.eq.s32.totalorder %s21, 1
      %p79 = por %p77, %p78
      %p81 = scmp.ne.s32.totalorder %s66, %s80
      %p82 = scmp.eq.s32.totalorder %s21, 0
      %p83 = por %p81, %p82
      %s85 = sadd.s32 %s84, 1
      %p88 = scmp.eq.s32.totalorder %s15, 1
      %p89 = scmp.ne.s32.totalorder %s84, %s86
      %p90 = scmp.eq.s32.totalorder %s15, 0
      %p91 = por %p89, %p90
      %p92 = scmp.ne.s32.totalorder %s84, %s86
      %p93 = scmp.eq.s32.totalorder %s20, 1
      %p94 = por %p92, %p93
      %p95 = scmp.ne.s32.totalorder %s86, %s87
      %p96 = scmp.eq.s32.totalorder %s20, 0
      %p97 = por %p95, %p96
      %p98 = scmp.ne.s32.totalorder %s86, %s87
      %p99 = scmp.eq.s32.totalorder %s21, 1
      %p100 = por %p98, %p99
      %p102 = scmp.ne.s32.totalorder %s87, %s101
      %p103 = scmp.eq.s32.totalorder %s21, 0
      %p104 = por %p102, %p103
      %s105 = ssub.s32 %s22, %s34
      %s106 = ssub.s32 %s23, %s30
      %s107 = sor.u32 %s105, %s106
      %p108 = scmp.eq.s32.totalorder %s107, 0
      %s110 = sadd.s32 %s109, 1
      %s111 = scalar_select %p108, %s109, %s110
      %p114 = pneg %p108
      %p115 = scmp.eq.s32.totalorder %s15, 1
      %p116 = por %p114, %p115
      %p117 = scmp.ne.s32.totalorder %s109, %s112
      %p118 = scmp.eq.s32.totalorder %s15, 0
      %p119 = por %p117, %p118
      %p120 = scmp.ne.s32.totalorder %s109, %s112
      %p121 = scmp.eq.s32.totalorder %s20, 1
      %p122 = por %p120, %p121
      %p123 = scmp.ne.s32.totalorder %s112, %s113
      %p124 = scmp.eq.s32.totalorder %s20, 0
      %p125 = por %p123, %p124
      %p126 = scmp.ne.s32.totalorder %s112, %s113
      %p127 = scmp.eq.s32.totalorder %s21, 1
      %p128 = por %p126, %p127
      %p130 = scmp.ne.s32.totalorder %s113, %s129
      %p131 = scmp.eq.s32.totalorder %s21, 0
      %p132 = por %p130, %p131
      %p133 = scmp.le.s32.totalorder 1, %s15
      %p134 = scmp.lt.s32.totalorder %s15, 3
      %p135 = pnand %p133, %p134
      %p136 = pneg %p135
      // Predicated region
      $region9: #{tpu_custom_call.1} parent=5 // pred_check
        _
      $region10: #{tpu_custom_call.1} parent=5 // pred_check_branch
        %138 = sbr.rel (%p135) target = $region12
      $region11: #{tpu_custom_call.1} parent=5 // pred_region
        %s139 = ssub.s32 %s15, 1
        // Predicated region
        $region13: #{tpu_custom_call.1} parent=11 // pred_check
          %p140 = pneg %p76
        $region14: #{tpu_custom_call.1} parent=11 // pred_check_branch
          %142 = sbr.rel (%p140) target = $region16
        $region15: #{tpu_custom_call.1} parent=11 // pred_region
          _
        $region16: #{tpu_custom_call.1} parent=11 // pred_fallthru
          _
        // Predicated region
        $region17: #{tpu_custom_call.1} parent=11 // pred_check
          %p143 = pneg %p97
        $region18: #{tpu_custom_call.1} parent=11 // pred_check_branch
          %145 = sbr.rel (%p143) target = $region20
        $region19: #{tpu_custom_call.1} parent=11 // pred_region
          _
        $region20: #{tpu_custom_call.1} parent=11 // pred_fallthru
          _
      $region12: #{tpu_custom_call.1} parent=5 // pred_fallthru
        _
      %p146 = scmp.lt.s32.totalorder %s15, 2
      // Predicated region
      $region21: #{tpu_custom_call.1} parent=5 // pred_check
        %p147 = pneg %p146
      $region22: #{tpu_custom_call.1} parent=5 // pred_check_branch
        %149 = sbr.rel (%p147) target = $region24
      $region23: #{tpu_custom_call.1} parent=5 // pred_region
        // Predicated region
        $region25: #{tpu_custom_call.1} parent=23 // pred_check
          %p150 = pneg %p49
        $region26: #{tpu_custom_call.1} parent=23 // pred_check_branch
          %152 = sbr.rel (%p150) target = $region28
        $region27: #{tpu_custom_call.1} parent=23 // pred_region
          %s153 = sand.u32 %s39, 1
          %s154 = scalar_lea.sflag [#allocation3], %s153
          %s155 = sand.u32 %s39, 1
          %s156 = smul.addr %s155, 64
          %s157 = scalar_lea.vmem [#allocation2], %s156
          %s158 = smul.u32 2, %s23
          %160 = vsyncadd %s154, 0
          %s161 = smul.addr %s22, 8
          %s162 = sadd.s32 %s158, %s161
          %s163 = smul.addr %s162, 8
          %s164 = scalar_lea.hbm %s0, %s163
          %s165 = sshll.u32 %s164, 4
          %s166 = int_to_ptr.hbm [resolvable:$true] %s165
          %s167 = sshll.u32 %s157, 4
          %s168 = int_to_ptr.vmem [resolvable:$true] %s167
          %173 = dma.hbm_to_vmem [thread:$0]  %s166, 1024, %s168, %s154, 128, 128, 8
        $region28: #{tpu_custom_call.1} parent=23 // pred_fallthru
          _
      $region24: #{tpu_custom_call.1} parent=5 // pred_fallthru
        _
      %p174 = scmp.le.s32.totalorder 1, %s15
      %p175 = scmp.lt.s32.totalorder %s15, 3
      %p176 = pnand %p174, %p175
      %p177 = pneg %p176
      // Predicated region
      $region29: #{tpu_custom_call.1} parent=5 // pred_check
        _
      $region30: #{tpu_custom_call.1} parent=5 // pred_check_branch
        %179 = sbr.rel (%p176) target = $region32
      $region31: #{tpu_custom_call.1} parent=5 // pred_region
        %s180 = ssub.s32 %s15, 1
        %s181 = sand.u32 %s42, 1
        %s182 = scalar_lea.sflag [#allocation3], %s181
        %s183 = sand.u32 %s42, 1
        %s184 = smul.addr %s183, 64
        %s185 = scalar_lea.vmem [#allocation2], %s184
        // Predicated region
        $region33: #{tpu_custom_call.1} parent=31 // pred_check
          %p186 = pneg %p55
        $region34: #{tpu_custom_call.1} parent=31 // pred_check_branch
          %188 = sbr.rel (%p186) target = $region36
        $region35: #{tpu_custom_call.1} parent=31 // pred_region
          %190 = dma.done %s182, 1024
        $region36: #{tpu_custom_call.1} parent=31 // pred_fallthru
          _
        %s191 = sand.u32 %s42, 1
        %s192 = scalar_lea.sflag [#allocation3], %s191
        %s193 = sand.u32 %s42, 1
        %s194 = smul.addr %s193, 64
        %s195 = scalar_lea.vmem [#allocation2], %s194
        %p196 = pneg %p55
        %p197 = pneg %p52
        %p198 = pneg %p76
        %p199 = pneg %p73
        %p200 = pneg %p97
        %p201 = pneg %p94
        %p202 = pneg %p125
        %p203 = pneg %p122
        %s204 = sand.u32 %s112, 1
        %s205 = scalar_lea.sflag [#allocation4], %s204
        %s206 = sand.u32 %s112, 1
        %s207 = smul.addr %s206, 256
        %s208 = scalar_lea.vmem [#allocation5], %s207
        %s209 = smul.u32 2, %s25
        %s210 = smul.u32 4, %s25
        %v211 = vlaneseq
        %v212 = vand.u32 %v211, 127
        %v213 = vlaneseq
        %v214 = vshrl.u32 %v213, 7
        %v215 = vadd.s32 %v214, 8
        %v216 = vmul.u32 %v214, 2
        %v217 = vmul.u32 %v215, 2
        %vm218 = vcmp.eq.s32.totalorder %v212, %v216
        %vm219 = vcmp.eq.s32.totalorder %v212, %v217
        %v220 = vsel %vm218, 1, 0
        %v221 = vsel %vm219, 1, 0
        %v222 = vcvt.s32.f32 %v220
        %v223 = vcvt.s32.f32 %v221
        %v224 = vadd.s32 %v216, 1
        %v225 = vadd.s32 %v217, 1
        %vm226 = vcmp.eq.s32.totalorder %v212, %v224
        %vm227 = vcmp.eq.s32.totalorder %v212, %v225
        %v228 = vsel %vm226, 1, 0
        %v229 = vsel %vm227, 1, 0
        %v230 = vcvt.s32.f32 %v228
        %v231 = vcvt.s32.f32 %v229
        %v232 = vld [vmem:[%s2] sm:$0xff]
        %v233 = vld [vmem:[%s1] sm:$0xff]
        %v234 = vld [vmem:[%s1 + $0x8] sm:$0xff]
        %v235 = vld [vmem:[%s1 + $0x10] sm:$0xff]
        %v236 = vld [vmem:[%s1 + $0x18] sm:$0xff]
        %238 = vset.pattern.permute.xlu0 0
        %239 = vperm.xlu0 %238, %v233
        %v240 = vpop.permute.xlu0 %239
        %243 = vset.pattern.permute.xlu0 0
        %244 = vperm.xlu0 %243, %v234
        %v245 = vpop.permute.xlu0 %244
        %248 = vset.pattern.permute.xlu0 0
        %249 = vperm.xlu0 %248, %v235
        %v250 = vpop.permute.xlu0 %249
        %253 = vset.pattern.permute.xlu0 0
        %254 = vperm.xlu0 %253, %v236
        %v255 = vpop.permute.xlu0 %254
        %257 = vset.pattern.permute.xlu0 1
        %258 = vperm.xlu0 %257, %v233
        %v259 = vpop.permute.xlu0 %258
        %261 = vset.pattern.permute.xlu0 1
        %262 = vperm.xlu0 %261, %v234
        %v263 = vpop.permute.xlu0 %262
        %265 = vset.pattern.permute.xlu0 1
        %266 = vperm.xlu0 %265, %v235
        %v267 = vpop.permute.xlu0 %266
        %269 = vset.pattern.permute.xlu0 1
        %270 = vperm.xlu0 %269, %v236
        %v271 = vpop.permute.xlu0 %270
        %273 = vset.pattern.permute.xlu0 2
        %274 = vperm.xlu0 %273, %v233
        %v275 = vpop.permute.xlu0 %274
        %277 = vset.pattern.permute.xlu0 2
        %278 = vperm.xlu0 %277, %v234
        %v279 = vpop.permute.xlu0 %278
        %281 = vset.pattern.permute.xlu0 2
        %282 = vperm.xlu0 %281, %v235
        %v283 = vpop.permute.xlu0 %282
        %285 = vset.pattern.permute.xlu0 2
        %286 = vperm.xlu0 %285, %v236
        %v287 = vpop.permute.xlu0 %286
        %289 = vset.pattern.permute.xlu0 3
        %290 = vperm.xlu0 %289, %v233
        %v291 = vpop.permute.xlu0 %290
        %293 = vset.pattern.permute.xlu0 3
        %294 = vperm.xlu0 %293, %v234
        %v295 = vpop.permute.xlu0 %294
        %297 = vset.pattern.permute.xlu0 3
        %298 = vperm.xlu0 %297, %v235
        %v299 = vpop.permute.xlu0 %298
        %301 = vset.pattern.permute.xlu0 3
        %302 = vperm.xlu0 %301, %v236
        %v303 = vpop.permute.xlu0 %302
        %v305 = vld [vmem:[%s185] sm:$0x1]
        %v306 = vperm.slane %v305, 0
        %v307 = vmul.f32 %v240, %v306
        %v308 = vmul.f32 %v245, %v306
        %v309 = vmul.f32 %v250, %v306
        %v310 = vmul.f32 %v255, %v306
        %s311 = scalar_lea.vmem %s185, 16 [#allocation2]
        %v312 = vld [vmem:[%s311] sm:$0x1]
        %v313 = vperm.slane %v312, 0
        %v314 = vmul.f32 %v259, %v313
        %v315 = vmul.f32 %v263, %v313
        %v316 = vmul.f32 %v267, %v313
        %v317 = vmul.f32 %v271, %v313
        %v318 = vadd.f32 %v307, %v314
        %v319 = vadd.f32 %v308, %v315
        %v320 = vadd.f32 %v309, %v316
        %v321 = vadd.f32 %v310, %v317
        %s322 = scalar_lea.vmem %s185, 32 [#allocation2]
        %v323 = vld [vmem:[%s322] sm:$0x1]
        %v324 = vperm.slane %v323, 0
        %v325 = vmul.f32 %v275, %v324
        %v326 = vmul.f32 %v279, %v324
        %v327 = vmul.f32 %v283, %v324
        %v328 = vmul.f32 %v287, %v324
        %v329 = vadd.f32 %v318, %v325
        %v330 = vadd.f32 %v319, %v326
        %v331 = vadd.f32 %v320, %v327
        %v332 = vadd.f32 %v321, %v328
        %s333 = scalar_lea.vmem %s185, 48 [#allocation2]
        %v334 = vld [vmem:[%s333] sm:$0x1]
        %v335 = vperm.slane %v334, 0
        %v336 = vmul.f32 %v291, %v335
        %v337 = vmul.f32 %v295, %v335
        %v338 = vmul.f32 %v299, %v335
        %v339 = vmul.f32 %v303, %v335
        %v340 = vadd.f32 %v329, %v336
        %v341 = vadd.f32 %v330, %v337
        %v342 = vadd.f32 %v331, %v338
        %v343 = vadd.f32 %v332, %v339
        %vm344 = vcmask 130048
        %v346 = vsel %vm344, %v341, 0
        %348 = vmatpush.msra.mxu0 0.0
        %349 = vmatpush.msra.mxu0 0.0
        %350 = vmatpush.msra.mxu0 0.0
        %351 = vmatpush.msra.mxu0 0.0
        %352 = vmatpush.msra.mxu0 0.0
        %353 = vmatpush.msra.mxu0 0.0
        %354 = vmatpush.msra.mxu0 0.0
        %355 = vmatpush.msra.mxu0 0.0
        %356 = vmatpush.msra.mxu0 0.0
        %357 = vmatpush.msra.mxu0 0.0
        %358 = vmatpush.msra.mxu0 0.0
        %359 = vmatpush.msra.mxu0 0.0
        %360 = vmatpush.msra.mxu0 0.0
        %361 = vmatpush.msra.mxu0 0.0
        %362 = vmatpush.msra.mxu0 %v231
        %363 = vmatpush.msra.mxu0 %v230
        %364 = vmatmul.f32.gmra.mxu0 %v346
        %v365 = vpop.f32.mrf.mxu0
        %v366 = vadd.f32 0.0, %v365
        %367 = vdwg.mxu0
        %v369 = vsel %vm344, %v340, 0
        %371 = vmatpush.msra.mxu0 0.0
        %372 = vmatpush.msra.mxu0 0.0
        %373 = vmatpush.msra.mxu0 0.0
        %374 = vmatpush.msra.mxu0 0.0
        %375 = vmatpush.msra.mxu0 0.0
        %376 = vmatpush.msra.mxu0 0.0
        %377 = vmatpush.msra.mxu0 0.0
        %378 = vmatpush.msra.mxu0 0.0
        %379 = vmatpush.msra.mxu0 0.0
        %380 = vmatpush.msra.mxu0 0.0
        %381 = vmatpush.msra.mxu0 0.0
        %382 = vmatpush.msra.mxu0 0.0
        %383 = vmatpush.msra.mxu0 0.0
        %384 = vmatpush.msra.mxu0 0.0
        %385 = vmatpush.msra.mxu0 %v223
        %386 = vmatpush.msra.mxu0 %v222
        %387 = vmatmul.f32.gmra.mxu0 %v369
        %v388 = vpop.f32.mrf.mxu0
        %v389 = vadd.f32 %v366, %v388
        %390 = vdwg.mxu0
        %392 = vset.pattern.permute.xlu0 0
        %393 = vperm.xlu0 %392, %v232
        %v394 = vpop.permute.xlu0 %393
        %v396 = vadd.f32 %v389, %v394
        %v398 = vrot.slane %v396, 1
        %v399 = vrot.slane %v396, 2
        %v400 = vrot.slane %v396, 3
        %v401 = vrot.slane %v396, 4
        %v402 = vrot.slane %v396, 5
        %v403 = vrot.slane %v396, 6
        %v404 = vrot.slane %v396, 7
        %vm412 = vcmask 253952
        %413 = vst.msk [vmem:[%s208] sm:$0x1] %vm412, %v396
        %414 = vst.msk [vmem:[%s208 + $0x20] sm:$0x1] %vm412, %v398
        %415 = vst.msk [vmem:[%s208 + $0x40] sm:$0x1] %vm412, %v399
        %416 = vst.msk [vmem:[%s208 + $0x60] sm:$0x1] %vm412, %v400
        %417 = vst.msk [vmem:[%s208 + $0x80] sm:$0x1] %vm412, %v401
        %418 = vst.msk [vmem:[%s208 + $0xa0] sm:$0x1] %vm412, %v402
        %419 = vst.msk [vmem:[%s208 + $0xc0] sm:$0x1] %vm412, %v403
        %420 = vst.msk [vmem:[%s208 + $0xe0] sm:$0x1] %vm412, %v404
        %v422 = vsel %vm344, %v343, 0
        %424 = vmatpush.msra.mxu0 0.0
        %425 = vmatpush.msra.mxu0 0.0
        %426 = vmatpush.msra.mxu0 0.0
        %427 = vmatpush.msra.mxu0 0.0
        %428 = vmatpush.msra.mxu0 0.0
        %429 = vmatpush.msra.mxu0 0.0
        %430 = vmatpush.msra.mxu0 0.0
        %431 = vmatpush.msra.mxu0 0.0
        %432 = vmatpush.msra.mxu0 0.0
        %433 = vmatpush.msra.mxu0 0.0
        %434 = vmatpush.msra.mxu0 0.0
        %435 = vmatpush.msra.mxu0 0.0
        %436 = vmatpush.msra.mxu0 0.0
        %437 = vmatpush.msra.mxu0 0.0
        %438 = vmatpush.msra.mxu0 %v231
        %439 = vmatpush.msra.mxu0 %v230
        %440 = vmatmul.f32.gmra.mxu0 %v422
        %v441 = vpop.f32.mrf.mxu0
        %v442 = vadd.f32 0.0, %v441
        %443 = vdwg.mxu0
        %v445 = vsel %vm344, %v342, 0
        %447 = vmatpush.msra.mxu0 0.0
        %448 = vmatpush.msra.mxu0 0.0
        %449 = vmatpush.msra.mxu0 0.0
        %450 = vmatpush.msra.mxu0 0.0
        %451 = vmatpush.msra.mxu0 0.0
        %452 = vmatpush.msra.mxu0 0.0
        %453 = vmatpush.msra.mxu0 0.0
        %454 = vmatpush.msra.mxu0 0.0
        %455 = vmatpush.msra.mxu0 0.0
        %456 = vmatpush.msra.mxu0 0.0
        %457 = vmatpush.msra.mxu0 0.0
        %458 = vmatpush.msra.mxu0 0.0
        %459 = vmatpush.msra.mxu0 0.0
        %460 = vmatpush.msra.mxu0 0.0
        %461 = vmatpush.msra.mxu0 %v223
        %462 = vmatpush.msra.mxu0 %v222
        %463 = vmatmul.f32.gmra.mxu0 %v445
        %v464 = vpop.f32.mrf.mxu0
        %v465 = vadd.f32 %v442, %v464
        %466 = vdwg.mxu0
        %v467 = vadd.f32 %v465, %v394
        %v469 = vrot.slane %v467, 1
        %v470 = vrot.slane %v467, 2
        %v471 = vrot.slane %v467, 3
        %v472 = vrot.slane %v467, 4
        %v473 = vrot.slane %v467, 5
        %v474 = vrot.slane %v467, 6
        %v475 = vrot.slane %v467, 7
        %483 = vst.msk [vmem:[%s208 + $0x1] sm:$0x1] %vm412, %v467
        %484 = vst.msk [vmem:[%s208 + $0x21] sm:$0x1] %vm412, %v469
        %485 = vst.msk [vmem:[%s208 + $0x41] sm:$0x1] %vm412, %v470
        %486 = vst.msk [vmem:[%s208 + $0x61] sm:$0x1] %vm412, %v471
        %487 = vst.msk [vmem:[%s208 + $0x81] sm:$0x1] %vm412, %v472
        %488 = vst.msk [vmem:[%s208 + $0xa1] sm:$0x1] %vm412, %v473
        %489 = vst.msk [vmem:[%s208 + $0xc1] sm:$0x1] %vm412, %v474
        %490 = vst.msk [vmem:[%s208 + $0xe1] sm:$0x1] %vm412, %v475
        %v491 = vld [vmem:[%s185 + $0x1] sm:$0x1]
        %v492 = vperm.slane %v491, 0
        %v493 = vmul.f32 %v240, %v492
        %v494 = vmul.f32 %v245, %v492
        %v495 = vmul.f32 %v250, %v492
        %v496 = vmul.f32 %v255, %v492
        %v497 = vld [vmem:[%s311 + $0x1] sm:$0x1]
        %v498 = vperm.slane %v497, 0
        %v499 = vmul.f32 %v259, %v498
        %v500 = vmul.f32 %v263, %v498
        %v501 = vmul.f32 %v267, %v498
        %v502 = vmul.f32 %v271, %v498
        %v503 = vadd.f32 %v493, %v499
        %v504 = vadd.f32 %v494, %v500
        %v505 = vadd.f32 %v495, %v501
        %v506 = vadd.f32 %v496, %v502
        %v507 = vld [vmem:[%s322 + $0x1] sm:$0x1]
        %v508 = vperm.slane %v507, 0
        %v509 = vmul.f32 %v275, %v508
        %v510 = vmul.f32 %v279, %v508
        %v511 = vmul.f32 %v283, %v508
        %v512 = vmul.f32 %v287, %v508
        %v513 = vadd.f32 %v503, %v509
        %v514 = vadd.f32 %v504, %v510
        %v515 = vadd.f32 %v505, %v511
        %v516 = vadd.f32 %v506, %v512
        %v517 = vld [vmem:[%s333 + $0x1] sm:$0x1]
        %v518 = vperm.slane %v517, 0
        %v519 = vmul.f32 %v291, %v518
        %v520 = vmul.f32 %v295, %v518
        %v521 = vmul.f32 %v299, %v518
        %v522 = vmul.f32 %v303, %v518
        %v523 = vadd.f32 %v513, %v519
        %v524 = vadd.f32 %v514, %v520
        %v525 = vadd.f32 %v515, %v521
        %v526 = vadd.f32 %v516, %v522
        %v528 = vsel %vm344, %v524, 0
        %530 = vmatpush.msra.mxu0 0.0
        %531 = vmatpush.msra.mxu0 0.0
        %532 = vmatpush.msra.mxu0 0.0
        %533 = vmatpush.msra.mxu0 0.0
        %534 = vmatpush.msra.mxu0 0.0
        %535 = vmatpush.msra.mxu0 0.0
        %536 = vmatpush.msra.mxu0 0.0
        %537 = vmatpush.msra.mxu0 0.0
        %538 = vmatpush.msra.mxu0 0.0
        %539 = vmatpush.msra.mxu0 0.0
        %540 = vmatpush.msra.mxu0 0.0
        %541 = vmatpush.msra.mxu0 0.0
        %542 = vmatpush.msra.mxu0 0.0
        %543 = vmatpush.msra.mxu0 0.0
        %544 = vmatpush.msra.mxu0 %v231
        %545 = vmatpush.msra.mxu0 %v230
        %546 = vmatmul.f32.gmra.mxu0 %v528
        %v547 = vpop.f32.mrf.mxu0
        %v548 = vadd.f32 0.0, %v547
        %549 = vdwg.mxu0
        %v551 = vsel %vm344, %v523, 0
        %553 = vmatpush.msra.mxu0 0.0
        %554 = vmatpush.msra.mxu0 0.0
        %555 = vmatpush.msra.mxu0 0.0
        %556 = vmatpush.msra.mxu0 0.0
        %557 = vmatpush.msra.mxu0 0.0
        %558 = vmatpush.msra.mxu0 0.0
        %559 = vmatpush.msra.mxu0 0.0
        %560 = vmatpush.msra.mxu0 0.0
        %561 = vmatpush.msra.mxu0 0.0
        %562 = vmatpush.msra.mxu0 0.0
        %563 = vmatpush.msra.mxu0 0.0
        %564 = vmatpush.msra.mxu0 0.0
        %565 = vmatpush.msra.mxu0 0.0
        %566 = vmatpush.msra.mxu0 0.0
        %567 = vmatpush.msra.mxu0 %v223
        %568 = vmatpush.msra.mxu0 %v222
        %569 = vmatmul.f32.gmra.mxu0 %v551
        %v570 = vpop.f32.mrf.mxu0
        %v571 = vadd.f32 %v548, %v570
        %572 = vdwg.mxu0
        %v573 = vadd.f32 %v571, %v394
        %v575 = vrot.slane %v573, 1
        %v576 = vrot.slane %v573, 2
        %v577 = vrot.slane %v573, 3
        %v578 = vrot.slane %v573, 4
        %v579 = vrot.slane %v573, 5
        %v580 = vrot.slane %v573, 6
        %v581 = vrot.slane %v573, 7
        %589 = vst.msk [vmem:[%s208 + $0x2] sm:$0x1] %vm412, %v573
        %590 = vst.msk [vmem:[%s208 + $0x22] sm:$0x1] %vm412, %v575
        %591 = vst.msk [vmem:[%s208 + $0x42] sm:$0x1] %vm412, %v576
        %592 = vst.msk [vmem:[%s208 + $0x62] sm:$0x1] %vm412, %v577
        %593 = vst.msk [vmem:[%s208 + $0x82] sm:$0x1] %vm412, %v578
        %594 = vst.msk [vmem:[%s208 + $0xa2] sm:$0x1] %vm412, %v579
        %595 = vst.msk [vmem:[%s208 + $0xc2] sm:$0x1] %vm412, %v580
        %596 = vst.msk [vmem:[%s208 + $0xe2] sm:$0x1] %vm412, %v581
        %v598 = vsel %vm344, %v526, 0
        %600 = vmatpush.msra.mxu0 0.0
        %601 = vmatpush.msra.mxu0 0.0
        %602 = vmatpush.msra.mxu0 0.0
        %603 = vmatpush.msra.mxu0 0.0
        %604 = vmatpush.msra.mxu0 0.0
        %605 = vmatpush.msra.mxu0 0.0
        %606 = vmatpush.msra.mxu0 0.0
        %607 = vmatpush.msra.mxu0 0.0
        %608 = vmatpush.msra.mxu0 0.0
        %609 = vmatpush.msra.mxu0 0.0
        %610 = vmatpush.msra.mxu0 0.0
        %611 = vmatpush.msra.mxu0 0.0
        %612 = vmatpush.msra.mxu0 0.0
        %613 = vmatpush.msra.mxu0 0.0
        %614 = vmatpush.msra.mxu0 %v231
        %615 = vmatpush.msra.mxu0 %v230
        %616 = vmatmul.f32.gmra.mxu0 %v598
        %v617 = vpop.f32.mrf.mxu0
        %v618 = vadd.f32 0.0, %v617
        %619 = vdwg.mxu0
        %v621 = vsel %vm344, %v525, 0
        %623 = vmatpush.msra.mxu0 0.0
        %624 = vmatpush.msra.mxu0 0.0
        %625 = vmatpush.msra.mxu0 0.0
        %626 = vmatpush.msra.mxu0 0.0
        %627 = vmatpush.msra.mxu0 0.0
        %628 = vmatpush.msra.mxu0 0.0
        %629 = vmatpush.msra.mxu0 0.0
        %630 = vmatpush.msra.mxu0 0.0
        %631 = vmatpush.msra.mxu0 0.0
        %632 = vmatpush.msra.mxu0 0.0
        %633 = vmatpush.msra.mxu0 0.0
        %634 = vmatpush.msra.mxu0 0.0
        %635 = vmatpush.msra.mxu0 0.0
        %636 = vmatpush.msra.mxu0 0.0
        %637 = vmatpush.msra.mxu0 %v223
        %638 = vmatpush.msra.mxu0 %v222
        %639 = vmatmul.f32.gmra.mxu0 %v621
        %v640 = vpop.f32.mrf.mxu0
        %v641 = vadd.f32 %v618, %v640
        %642 = vdwg.mxu0
        %v643 = vadd.f32 %v641, %v394
        %v645 = vrot.slane %v643, 1
        %v646 = vrot.slane %v643, 2
        %v647 = vrot.slane %v643, 3
        %v648 = vrot.slane %v643, 4
        %v649 = vrot.slane %v643, 5
        %v650 = vrot.slane %v643, 6
        %v651 = vrot.slane %v643, 7
        %659 = vst.msk [vmem:[%s208 + $0x3] sm:$0x1] %vm412, %v643
        %660 = vst.msk [vmem:[%s208 + $0x23] sm:$0x1] %vm412, %v645
        %661 = vst.msk [vmem:[%s208 + $0x43] sm:$0x1] %vm412, %v646
        %662 = vst.msk [vmem:[%s208 + $0x63] sm:$0x1] %vm412, %v647
        %663 = vst.msk [vmem:[%s208 + $0x83] sm:$0x1] %vm412, %v648
        %664 = vst.msk [vmem:[%s208 + $0xa3] sm:$0x1] %vm412, %v649
        %665 = vst.msk [vmem:[%s208 + $0xc3] sm:$0x1] %vm412, %v650
        %666 = vst.msk [vmem:[%s208 + $0xe3] sm:$0x1] %vm412, %v651
        %v667 = vld [vmem:[%s185 + $0x2] sm:$0x1]
        %v668 = vperm.slane %v667, 0
        %v669 = vmul.f32 %v240, %v668
        %v670 = vmul.f32 %v245, %v668
        %v671 = vmul.f32 %v250, %v668
        %v672 = vmul.f32 %v255, %v668
        %v673 = vld [vmem:[%s311 + $0x2] sm:$0x1]
        %v674 = vperm.slane %v673, 0
        %v675 = vmul.f32 %v259, %v674
        %v676 = vmul.f32 %v263, %v674
        %v677 = vmul.f32 %v267, %v674
        %v678 = vmul.f32 %v271, %v674
        %v679 = vadd.f32 %v669, %v675
        %v680 = vadd.f32 %v670, %v676
        %v681 = vadd.f32 %v671, %v677
        %v682 = vadd.f32 %v672, %v678
        %v683 = vld [vmem:[%s322 + $0x2] sm:$0x1]
        %v684 = vperm.slane %v683, 0
        %v685 = vmul.f32 %v275, %v684
        %v686 = vmul.f32 %v279, %v684
        %v687 = vmul.f32 %v283, %v684
        %v688 = vmul.f32 %v287, %v684
        %v689 = vadd.f32 %v679, %v685
        %v690 = vadd.f32 %v680, %v686
        %v691 = vadd.f32 %v681, %v687
        %v692 = vadd.f32 %v682, %v688
        %v693 = vld [vmem:[%s333 + $0x2] sm:$0x1]
        %v694 = vperm.slane %v693, 0
        %v695 = vmul.f32 %v291, %v694
        %v696 = vmul.f32 %v295, %v694
        %v697 = vmul.f32 %v299, %v694
        %v698 = vmul.f32 %v303, %v694
        %v699 = vadd.f32 %v689, %v695
        %v700 = vadd.f32 %v690, %v696
        %v701 = vadd.f32 %v691, %v697
        %v702 = vadd.f32 %v692, %v698
        %v704 = vsel %vm344, %v700, 0
        %706 = vmatpush.msra.mxu0 0.0
        %707 = vmatpush.msra.mxu0 0.0
        %708 = vmatpush.msra.mxu0 0.0
        %709 = vmatpush.msra.mxu0 0.0
        %710 = vmatpush.msra.mxu0 0.0
        %711 = vmatpush.msra.mxu0 0.0
        %712 = vmatpush.msra.mxu0 0.0
        %713 = vmatpush.msra.mxu0 0.0
        %714 = vmatpush.msra.mxu0 0.0
        %715 = vmatpush.msra.mxu0 0.0
        %716 = vmatpush.msra.mxu0 0.0
        %717 = vmatpush.msra.mxu0 0.0
        %718 = vmatpush.msra.mxu0 0.0
        %719 = vmatpush.msra.mxu0 0.0
        %720 = vmatpush.msra.mxu0 %v231
        %721 = vmatpush.msra.mxu0 %v230
        %722 = vmatmul.f32.gmra.mxu0 %v704
        %v723 = vpop.f32.mrf.mxu0
        %v724 = vadd.f32 0.0, %v723
        %725 = vdwg.mxu0
        %v727 = vsel %vm344, %v699, 0
        %729 = vmatpush.msra.mxu0 0.0
        %730 = vmatpush.msra.mxu0 0.0
        %731 = vmatpush.msra.mxu0 0.0
        %732 = vmatpush.msra.mxu0 0.0
        %733 = vmatpush.msra.mxu0 0.0
        %734 = vmatpush.msra.mxu0 0.0
        %735 = vmatpush.msra.mxu0 0.0
        %736 = vmatpush.msra.mxu0 0.0
        %737 = vmatpush.msra.mxu0 0.0
        %738 = vmatpush.msra.mxu0 0.0
        %739 = vmatpush.msra.mxu0 0.0
        %740 = vmatpush.msra.mxu0 0.0
        %741 = vmatpush.msra.mxu0 0.0
        %742 = vmatpush.msra.mxu0 0.0
        %743 = vmatpush.msra.mxu0 %v223
        %744 = vmatpush.msra.mxu0 %v222
        %745 = vmatmul.f32.gmra.mxu0 %v727
        %v746 = vpop.f32.mrf.mxu0
        %v747 = vadd.f32 %v724, %v746
        %748 = vdwg.mxu0
        %v749 = vadd.f32 %v747, %v394
        %v751 = vrot.slane %v749, 1
        %v752 = vrot.slane %v749, 2
        %v753 = vrot.slane %v749, 3
        %v754 = vrot.slane %v749, 4
        %v755 = vrot.slane %v749, 5
        %v756 = vrot.slane %v749, 6
        %v757 = vrot.slane %v749, 7
        %765 = vst.msk [vmem:[%s208 + $0x4] sm:$0x1] %vm412, %v749
        %766 = vst.msk [vmem:[%s208 + $0x24] sm:$0x1] %vm412, %v751
        %767 = vst.msk [vmem:[%s208 + $0x44] sm:$0x1] %vm412, %v752
        %768 = vst.msk [vmem:[%s208 + $0x64] sm:$0x1] %vm412, %v753
        %769 = vst.msk [vmem:[%s208 + $0x84] sm:$0x1] %vm412, %v754
        %770 = vst.msk [vmem:[%s208 + $0xa4] sm:$0x1] %vm412, %v755
        %771 = vst.msk [vmem:[%s208 + $0xc4] sm:$0x1] %vm412, %v756
        %772 = vst.msk [vmem:[%s208 + $0xe4] sm:$0x1] %vm412, %v757
        %v774 = vsel %vm344, %v702, 0
        %776 = vmatpush.msra.mxu0 0.0
        %777 = vmatpush.msra.mxu0 0.0
        %778 = vmatpush.msra.mxu0 0.0
        %779 = vmatpush.msra.mxu0 0.0
        %780 = vmatpush.msra.mxu0 0.0
        %781 = vmatpush.msra.mxu0 0.0
        %782 = vmatpush.msra.mxu0 0.0
        %783 = vmatpush.msra.mxu0 0.0
        %784 = vmatpush.msra.mxu0 0.0
        %785 = vmatpush.msra.mxu0 0.0
        %786 = vmatpush.msra.mxu0 0.0
        %787 = vmatpush.msra.mxu0 0.0
        %788 = vmatpush.msra.mxu0 0.0
        %789 = vmatpush.msra.mxu0 0.0
        %790 = vmatpush.msra.mxu0 %v231
        %791 = vmatpush.msra.mxu0 %v230
        %792 = vmatmul.f32.gmra.mxu0 %v774
        %v793 = vpop.f32.mrf.mxu0
        %v794 = vadd.f32 0.0, %v793
        %795 = vdwg.mxu0
        %v797 = vsel %vm344, %v701, 0
        %799 = vmatpush.msra.mxu0 0.0
        %800 = vmatpush.msra.mxu0 0.0
        %801 = vmatpush.msra.mxu0 0.0
        %802 = vmatpush.msra.mxu0 0.0
        %803 = vmatpush.msra.mxu0 0.0
        %804 = vmatpush.msra.mxu0 0.0
        %805 = vmatpush.msra.mxu0 0.0
        %806 = vmatpush.msra.mxu0 0.0
        %807 = vmatpush.msra.mxu0 0.0
        %808 = vmatpush.msra.mxu0 0.0
        %809 = vmatpush.msra.mxu0 0.0
        %810 = vmatpush.msra.mxu0 0.0
        %811 = vmatpush.msra.mxu0 0.0
        %812 = vmatpush.msra.mxu0 0.0
        %813 = vmatpush.msra.mxu0 %v223
        %814 = vmatpush.msra.mxu0 %v222
        %815 = vmatmul.f32.gmra.mxu0 %v797
        %v816 = vpop.f32.mrf.mxu0
        %v817 = vadd.f32 %v794, %v816
        %818 = vdwg.mxu0
        %v819 = vadd.f32 %v817, %v394
        %v821 = vrot.slane %v819, 1
        %v822 = vrot.slane %v819, 2
        %v823 = vrot.slane %v819, 3
        %v824 = vrot.slane %v819, 4
        %v825 = vrot.slane %v819, 5
        %v826 = vrot.slane %v819, 6
        %v827 = vrot.slane %v819, 7
        %835 = vst.msk [vmem:[%s208 + $0x5] sm:$0x1] %vm412, %v819
        %836 = vst.msk [vmem:[%s208 + $0x25] sm:$0x1] %vm412, %v821
        %837 = vst.msk [vmem:[%s208 + $0x45] sm:$0x1] %vm412, %v822
        %838 = vst.msk [vmem:[%s208 + $0x65] sm:$0x1] %vm412, %v823
        %839 = vst.msk [vmem:[%s208 + $0x85] sm:$0x1] %vm412, %v824
        %840 = vst.msk [vmem:[%s208 + $0xa5] sm:$0x1] %vm412, %v825
        %841 = vst.msk [vmem:[%s208 + $0xc5] sm:$0x1] %vm412, %v826
        %842 = vst.msk [vmem:[%s208 + $0xe5] sm:$0x1] %vm412, %v827
        %v843 = vld [vmem:[%s185 + $0x3] sm:$0x1]
        %v844 = vperm.slane %v843, 0
        %v845 = vmul.f32 %v240, %v844
        %v846 = vmul.f32 %v245, %v844
        %v847 = vmul.f32 %v250, %v844
        %v848 = vmul.f32 %v255, %v844
        %v849 = vld [vmem:[%s311 + $0x3] sm:$0x1]
        %v850 = vperm.slane %v849, 0
        %v851 = vmul.f32 %v259, %v850
        %v852 = vmul.f32 %v263, %v850
        %v853 = vmul.f32 %v267, %v850
        %v854 = vmul.f32 %v271, %v850
        %v855 = vadd.f32 %v845, %v851
        %v856 = vadd.f32 %v846, %v852
        %v857 = vadd.f32 %v847, %v853
        %v858 = vadd.f32 %v848, %v854
        %v859 = vld [vmem:[%s322 + $0x3] sm:$0x1]
        %v860 = vperm.slane %v859, 0
        %v861 = vmul.f32 %v275, %v860
        %v862 = vmul.f32 %v279, %v860
        %v863 = vmul.f32 %v283, %v860
        %v864 = vmul.f32 %v287, %v860
        %v865 = vadd.f32 %v855, %v861
        %v866 = vadd.f32 %v856, %v862
        %v867 = vadd.f32 %v857, %v863
        %v868 = vadd.f32 %v858, %v864
        %v869 = vld [vmem:[%s333 + $0x3] sm:$0x1]
        %v870 = vperm.slane %v869, 0
        %v871 = vmul.f32 %v291, %v870
        %v872 = vmul.f32 %v295, %v870
        %v873 = vmul.f32 %v299, %v870
        %v874 = vmul.f32 %v303, %v870
        %v875 = vadd.f32 %v865, %v871
        %v876 = vadd.f32 %v866, %v872
        %v877 = vadd.f32 %v867, %v873
        %v878 = vadd.f32 %v868, %v874
        %v880 = vsel %vm344, %v876, 0
        %882 = vmatpush.msra.mxu0 0.0
        %883 = vmatpush.msra.mxu0 0.0
        %884 = vmatpush.msra.mxu0 0.0
        %885 = vmatpush.msra.mxu0 0.0
        %886 = vmatpush.msra.mxu0 0.0
        %887 = vmatpush.msra.mxu0 0.0
        %888 = vmatpush.msra.mxu0 0.0
        %889 = vmatpush.msra.mxu0 0.0
        %890 = vmatpush.msra.mxu0 0.0
        %891 = vmatpush.msra.mxu0 0.0
        %892 = vmatpush.msra.mxu0 0.0
        %893 = vmatpush.msra.mxu0 0.0
        %894 = vmatpush.msra.mxu0 0.0
        %895 = vmatpush.msra.mxu0 0.0
        %896 = vmatpush.msra.mxu0 %v231
        %897 = vmatpush.msra.mxu0 %v230
        %898 = vmatmul.f32.gmra.mxu0 %v880
        %v899 = vpop.f32.mrf.mxu0
        %v900 = vadd.f32 0.0, %v899
        %901 = vdwg.mxu0
        %v903 = vsel %vm344, %v875, 0
        %905 = vmatpush.msra.mxu0 0.0
        %906 = vmatpush.msra.mxu0 0.0
        %907 = vmatpush.msra.mxu0 0.0
        %908 = vmatpush.msra.mxu0 0.0
        %909 = vmatpush.msra.mxu0 0.0
        %910 = vmatpush.msra.mxu0 0.0
        %911 = vmatpush.msra.mxu0 0.0
        %912 = vmatpush.msra.mxu0 0.0
        %913 = vmatpush.msra.mxu0 0.0
        %914 = vmatpush.msra.mxu0 0.0
        %915 = vmatpush.msra.mxu0 0.0
        %916 = vmatpush.msra.mxu0 0.0
        %917 = vmatpush.msra.mxu0 0.0
        %918 = vmatpush.msra.mxu0 0.0
        %919 = vmatpush.msra.mxu0 %v223
        %920 = vmatpush.msra.mxu0 %v222
        %921 = vmatmul.f32.gmra.mxu0 %v903
        %v922 = vpop.f32.mrf.mxu0
        %v923 = vadd.f32 %v900, %v922
        %924 = vdwg.mxu0
        %v925 = vadd.f32 %v923, %v394
        %v927 = vrot.slane %v925, 1
        %v928 = vrot.slane %v925, 2
        %v929 = vrot.slane %v925, 3
        %v930 = vrot.slane %v925, 4
        %v931 = vrot.slane %v925, 5
        %v932 = vrot.slane %v925, 6
        %v933 = vrot.slane %v925, 7
        %941 = vst.msk [vmem:[%s208 + $0x6] sm:$0x1] %vm412, %v925
        %942 = vst.msk [vmem:[%s208 + $0x26] sm:$0x1] %vm412, %v927
        %943 = vst.msk [vmem:[%s208 + $0x46] sm:$0x1] %vm412, %v928
        %944 = vst.msk [vmem:[%s208 + $0x66] sm:$0x1] %vm412, %v929
        %945 = vst.msk [vmem:[%s208 + $0x86] sm:$0x1] %vm412, %v930
        %946 = vst.msk [vmem:[%s208 + $0xa6] sm:$0x1] %vm412, %v931
        %947 = vst.msk [vmem:[%s208 + $0xc6] sm:$0x1] %vm412, %v932
        %948 = vst.msk [vmem:[%s208 + $0xe6] sm:$0x1] %vm412, %v933
        %v950 = vsel %vm344, %v878, 0
        %952 = vmatpush.msra.mxu0 0.0
        %953 = vmatpush.msra.mxu0 0.0
        %954 = vmatpush.msra.mxu0 0.0
        %955 = vmatpush.msra.mxu0 0.0
        %956 = vmatpush.msra.mxu0 0.0
        %957 = vmatpush.msra.mxu0 0.0
        %958 = vmatpush.msra.mxu0 0.0
        %959 = vmatpush.msra.mxu0 0.0
        %960 = vmatpush.msra.mxu0 0.0
        %961 = vmatpush.msra.mxu0 0.0
        %962 = vmatpush.msra.mxu0 0.0
        %963 = vmatpush.msra.mxu0 0.0
        %964 = vmatpush.msra.mxu0 0.0
        %965 = vmatpush.msra.mxu0 0.0
        %966 = vmatpush.msra.mxu0 %v231
        %967 = vmatpush.msra.mxu0 %v230
        %968 = vmatmul.f32.gmra.mxu0 %v950
        %v969 = vpop.f32.mrf.mxu0
        %v970 = vadd.f32 0.0, %v969
        %971 = vdwg.mxu0
        %v973 = vsel %vm344, %v877, 0
        %975 = vmatpush.msra.mxu0 0.0
        %976 = vmatpush.msra.mxu0 0.0
        %977 = vmatpush.msra.mxu0 0.0
        %978 = vmatpush.msra.mxu0 0.0
        %979 = vmatpush.msra.mxu0 0.0
        %980 = vmatpush.msra.mxu0 0.0
        %981 = vmatpush.msra.mxu0 0.0
        %982 = vmatpush.msra.mxu0 0.0
        %983 = vmatpush.msra.mxu0 0.0
        %984 = vmatpush.msra.mxu0 0.0
        %985 = vmatpush.msra.mxu0 0.0
        %986 = vmatpush.msra.mxu0 0.0
        %987 = vmatpush.msra.mxu0 0.0
        %988 = vmatpush.msra.mxu0 0.0
        %989 = vmatpush.msra.mxu0 %v223
        %990 = vmatpush.msra.mxu0 %v222
        %991 = vmatmul.f32.gmra.mxu0 %v973
        %v992 = vpop.f32.mrf.mxu0
        %v993 = vadd.f32 %v970, %v992
        %994 = vdwg.mxu0
        %v995 = vadd.f32 %v993, %v394
        %v997 = vrot.slane %v995, 1
        %v998 = vrot.slane %v995, 2
        %v999 = vrot.slane %v995, 3
        %v1000 = vrot.slane %v995, 4
        %v1001 = vrot.slane %v995, 5
        %v1002 = vrot.slane %v995, 6
        %v1003 = vrot.slane %v995, 7
        %1011 = vst.msk [vmem:[%s208 + $0x7] sm:$0x1] %vm412, %v995
        %1012 = vst.msk [vmem:[%s208 + $0x27] sm:$0x1] %vm412, %v997
        %1013 = vst.msk [vmem:[%s208 + $0x47] sm:$0x1] %vm412, %v998
        %1014 = vst.msk [vmem:[%s208 + $0x67] sm:$0x1] %vm412, %v999
        %1015 = vst.msk [vmem:[%s208 + $0x87] sm:$0x1] %vm412, %v1000
        %1016 = vst.msk [vmem:[%s208 + $0xa7] sm:$0x1] %vm412, %v1001
        %1017 = vst.msk [vmem:[%s208 + $0xc7] sm:$0x1] %vm412, %v1002
        %1018 = vst.msk [vmem:[%s208 + $0xe7] sm:$0x1] %vm412, %v1003
        %v1019 = vld [vmem:[%s185 + $0x4] sm:$0x1]
        %v1020 = vperm.slane %v1019, 0
        %v1021 = vmul.f32 %v240, %v1020
        %v1022 = vmul.f32 %v245, %v1020
        %v1023 = vmul.f32 %v250, %v1020
        %v1024 = vmul.f32 %v255, %v1020
        %v1025 = vld [vmem:[%s311 + $0x4] sm:$0x1]
        %v1026 = vperm.slane %v1025, 0
        %v1027 = vmul.f32 %v259, %v1026
        %v1028 = vmul.f32 %v263, %v1026
        %v1029 = vmul.f32 %v267, %v1026
        %v1030 = vmul.f32 %v271, %v1026
        %v1031 = vadd.f32 %v1021, %v1027
        %v1032 = vadd.f32 %v1022, %v1028
        %v1033 = vadd.f32 %v1023, %v1029
        %v1034 = vadd.f32 %v1024, %v1030
        %v1035 = vld [vmem:[%s322 + $0x4] sm:$0x1]
        %v1036 = vperm.slane %v1035, 0
        %v1037 = vmul.f32 %v275, %v1036
        %v1038 = vmul.f32 %v279, %v1036
        %v1039 = vmul.f32 %v283, %v1036
        %v1040 = vmul.f32 %v287, %v1036
        %v1041 = vadd.f32 %v1031, %v1037
        %v1042 = vadd.f32 %v1032, %v1038
        %v1043 = vadd.f32 %v1033, %v1039
        %v1044 = vadd.f32 %v1034, %v1040
        %v1045 = vld [vmem:[%s333 + $0x4] sm:$0x1]
        %v1046 = vperm.slane %v1045, 0
        %v1047 = vmul.f32 %v291, %v1046
        %v1048 = vmul.f32 %v295, %v1046
        %v1049 = vmul.f32 %v299, %v1046
        %v1050 = vmul.f32 %v303, %v1046
        %v1051 = vadd.f32 %v1041, %v1047
        %v1052 = vadd.f32 %v1042, %v1048
        %v1053 = vadd.f32 %v1043, %v1049
        %v1054 = vadd.f32 %v1044, %v1050
        %v1056 = vsel %vm344, %v1052, 0
        %1058 = vmatpush.msra.mxu0 0.0
        %1059 = vmatpush.msra.mxu0 0.0
        %1060 = vmatpush.msra.mxu0 0.0
        %1061 = vmatpush.msra.mxu0 0.0
        %1062 = vmatpush.msra.mxu0 0.0
        %1063 = vmatpush.msra.mxu0 0.0
        %1064 = vmatpush.msra.mxu0 0.0
        %1065 = vmatpush.msra.mxu0 0.0
        %1066 = vmatpush.msra.mxu0 0.0
        %1067 = vmatpush.msra.mxu0 0.0
        %1068 = vmatpush.msra.mxu0 0.0
        %1069 = vmatpush.msra.mxu0 0.0
        %1070 = vmatpush.msra.mxu0 0.0
        %1071 = vmatpush.msra.mxu0 0.0
        %1072 = vmatpush.msra.mxu0 %v231
        %1073 = vmatpush.msra.mxu0 %v230
        %1074 = vmatmul.f32.gmra.mxu0 %v1056
        %v1075 = vpop.f32.mrf.mxu0
        %v1076 = vadd.f32 0.0, %v1075
        %1077 = vdwg.mxu0
        %v1079 = vsel %vm344, %v1051, 0
        %1081 = vmatpush.msra.mxu0 0.0
        %1082 = vmatpush.msra.mxu0 0.0
        %1083 = vmatpush.msra.mxu0 0.0
        %1084 = vmatpush.msra.mxu0 0.0
        %1085 = vmatpush.msra.mxu0 0.0
        %1086 = vmatpush.msra.mxu0 0.0
        %1087 = vmatpush.msra.mxu0 0.0
        %1088 = vmatpush.msra.mxu0 0.0
        %1089 = vmatpush.msra.mxu0 0.0
        %1090 = vmatpush.msra.mxu0 0.0
        %1091 = vmatpush.msra.mxu0 0.0
        %1092 = vmatpush.msra.mxu0 0.0
        %1093 = vmatpush.msra.mxu0 0.0
        %1094 = vmatpush.msra.mxu0 0.0
        %1095 = vmatpush.msra.mxu0 %v223
        %1096 = vmatpush.msra.mxu0 %v222
        %1097 = vmatmul.f32.gmra.mxu0 %v1079
        %v1098 = vpop.f32.mrf.mxu0
        %v1099 = vadd.f32 %v1076, %v1098
        %1100 = vdwg.mxu0
        %v1101 = vadd.f32 %v1099, %v394
        %v1103 = vrot.slane %v1101, 1
        %v1104 = vrot.slane %v1101, 2
        %v1105 = vrot.slane %v1101, 3
        %v1106 = vrot.slane %v1101, 4
        %v1107 = vrot.slane %v1101, 5
        %v1108 = vrot.slane %v1101, 6
        %v1109 = vrot.slane %v1101, 7
        %1117 = vst.msk [vmem:[%s208 + $0x8] sm:$0x1] %vm412, %v1101
        %1118 = vst.msk [vmem:[%s208 + $0x28] sm:$0x1] %vm412, %v1103
        %1119 = vst.msk [vmem:[%s208 + $0x48] sm:$0x1] %vm412, %v1104
        %1120 = vst.msk [vmem:[%s208 + $0x68] sm:$0x1] %vm412, %v1105
        %1121 = vst.msk [vmem:[%s208 + $0x88] sm:$0x1] %vm412, %v1106
        %1122 = vst.msk [vmem:[%s208 + $0xa8] sm:$0x1] %vm412, %v1107
        %1123 = vst.msk [vmem:[%s208 + $0xc8] sm:$0x1] %vm412, %v1108
        %1124 = vst.msk [vmem:[%s208 + $0xe8] sm:$0x1] %vm412, %v1109
        %v1126 = vsel %vm344, %v1054, 0
        %1128 = vmatpush.msra.mxu0 0.0
        %1129 = vmatpush.msra.mxu0 0.0
        %1130 = vmatpush.msra.mxu0 0.0
        %1131 = vmatpush.msra.mxu0 0.0
        %1132 = vmatpush.msra.mxu0 0.0
        %1133 = vmatpush.msra.mxu0 0.0
        %1134 = vmatpush.msra.mxu0 0.0
        %1135 = vmatpush.msra.mxu0 0.0
        %1136 = vmatpush.msra.mxu0 0.0
        %1137 = vmatpush.msra.mxu0 0.0
        %1138 = vmatpush.msra.mxu0 0.0
        %1139 = vmatpush.msra.mxu0 0.0
        %1140 = vmatpush.msra.mxu0 0.0
        %1141 = vmatpush.msra.mxu0 0.0
        %1142 = vmatpush.msra.mxu0 %v231
        %1143 = vmatpush.msra.mxu0 %v230
        %1144 = vmatmul.f32.gmra.mxu0 %v1126
        %v1145 = vpop.f32.mrf.mxu0
        %v1146 = vadd.f32 0.0, %v1145
        %1147 = vdwg.mxu0
        %v1149 = vsel %vm344, %v1053, 0
        %1151 = vmatpush.msra.mxu0 0.0
        %1152 = vmatpush.msra.mxu0 0.0
        %1153 = vmatpush.msra.mxu0 0.0
        %1154 = vmatpush.msra.mxu0 0.0
        %1155 = vmatpush.msra.mxu0 0.0
        %1156 = vmatpush.msra.mxu0 0.0
        %1157 = vmatpush.msra.mxu0 0.0
        %1158 = vmatpush.msra.mxu0 0.0
        %1159 = vmatpush.msra.mxu0 0.0
        %1160 = vmatpush.msra.mxu0 0.0
        %1161 = vmatpush.msra.mxu0 0.0
        %1162 = vmatpush.msra.mxu0 0.0
        %1163 = vmatpush.msra.mxu0 0.0
        %1164 = vmatpush.msra.mxu0 0.0
        %1165 = vmatpush.msra.mxu0 %v223
        %1166 = vmatpush.msra.mxu0 %v222
        %1167 = vmatmul.f32.gmra.mxu0 %v1149
        %v1168 = vpop.f32.mrf.mxu0
        %v1169 = vadd.f32 %v1146, %v1168
        %1170 = vdwg.mxu0
        %v1171 = vadd.f32 %v1169, %v394
        %v1173 = vrot.slane %v1171, 1
        %v1174 = vrot.slane %v1171, 2
        %v1175 = vrot.slane %v1171, 3
        %v1176 = vrot.slane %v1171, 4
        %v1177 = vrot.slane %v1171, 5
        %v1178 = vrot.slane %v1171, 6
        %v1179 = vrot.slane %v1171, 7
        %1187 = vst.msk [vmem:[%s208 + $0x9] sm:$0x1] %vm412, %v1171
        %1188 = vst.msk [vmem:[%s208 + $0x29] sm:$0x1] %vm412, %v1173
        %1189 = vst.msk [vmem:[%s208 + $0x49] sm:$0x1] %vm412, %v1174
        %1190 = vst.msk [vmem:[%s208 + $0x69] sm:$0x1] %vm412, %v1175
        %1191 = vst.msk [vmem:[%s208 + $0x89] sm:$0x1] %vm412, %v1176
        %1192 = vst.msk [vmem:[%s208 + $0xa9] sm:$0x1] %vm412, %v1177
        %1193 = vst.msk [vmem:[%s208 + $0xc9] sm:$0x1] %vm412, %v1178
        %1194 = vst.msk [vmem:[%s208 + $0xe9] sm:$0x1] %vm412, %v1179
        %v1195 = vld [vmem:[%s185 + $0x5] sm:$0x1]
        %v1196 = vperm.slane %v1195, 0
        %v1197 = vmul.f32 %v240, %v1196
        %v1198 = vmul.f32 %v245, %v1196
        %v1199 = vmul.f32 %v250, %v1196
        %v1200 = vmul.f32 %v255, %v1196
        %v1201 = vld [vmem:[%s311 + $0x5] sm:$0x1]
        %v1202 = vperm.slane %v1201, 0
        %v1203 = vmul.f32 %v259, %v1202
        %v1204 = vmul.f32 %v263, %v1202
        %v1205 = vmul.f32 %v267, %v1202
        %v1206 = vmul.f32 %v271, %v1202
        %v1207 = vadd.f32 %v1197, %v1203
        %v1208 = vadd.f32 %v1198, %v1204
        %v1209 = vadd.f32 %v1199, %v1205
        %v1210 = vadd.f32 %v1200, %v1206
        %v1211 = vld [vmem:[%s322 + $0x5] sm:$0x1]
        %v1212 = vperm.slane %v1211, 0
        %v1213 = vmul.f32 %v275, %v1212
        %v1214 = vmul.f32 %v279, %v1212
        %v1215 = vmul.f32 %v283, %v1212
        %v1216 = vmul.f32 %v287, %v1212
        %v1217 = vadd.f32 %v1207, %v1213
        %v1218 = vadd.f32 %v1208, %v1214
        %v1219 = vadd.f32 %v1209, %v1215
        %v1220 = vadd.f32 %v1210, %v1216
        %v1221 = vld [vmem:[%s333 + $0x5] sm:$0x1]
        %v1222 = vperm.slane %v1221, 0
        %v1223 = vmul.f32 %v291, %v1222
        %v1224 = vmul.f32 %v295, %v1222
        %v1225 = vmul.f32 %v299, %v1222
        %v1226 = vmul.f32 %v303, %v1222
        %v1227 = vadd.f32 %v1217, %v1223
        %v1228 = vadd.f32 %v1218, %v1224
        %v1229 = vadd.f32 %v1219, %v1225
        %v1230 = vadd.f32 %v1220, %v1226
        %v1232 = vsel %vm344, %v1228, 0
        %1234 = vmatpush.msra.mxu0 0.0
        %1235 = vmatpush.msra.mxu0 0.0
        %1236 = vmatpush.msra.mxu0 0.0
        %1237 = vmatpush.msra.mxu0 0.0
        %1238 = vmatpush.msra.mxu0 0.0
        %1239 = vmatpush.msra.mxu0 0.0
        %1240 = vmatpush.msra.mxu0 0.0
        %1241 = vmatpush.msra.mxu0 0.0
        %1242 = vmatpush.msra.mxu0 0.0
        %1243 = vmatpush.msra.mxu0 0.0
        %1244 = vmatpush.msra.mxu0 0.0
        %1245 = vmatpush.msra.mxu0 0.0
        %1246 = vmatpush.msra.mxu0 0.0
        %1247 = vmatpush.msra.mxu0 0.0
        %1248 = vmatpush.msra.mxu0 %v231
        %1249 = vmatpush.msra.mxu0 %v230
        %1250 = vmatmul.f32.gmra.mxu0 %v1232
        %v1251 = vpop.f32.mrf.mxu0
        %v1252 = vadd.f32 0.0, %v1251
        %1253 = vdwg.mxu0
        %v1255 = vsel %vm344, %v1227, 0
        %1257 = vmatpush.msra.mxu0 0.0
        %1258 = vmatpush.msra.mxu0 0.0
        %1259 = vmatpush.msra.mxu0 0.0
        %1260 = vmatpush.msra.mxu0 0.0
        %1261 = vmatpush.msra.mxu0 0.0
        %1262 = vmatpush.msra.mxu0 0.0
        %1263 = vmatpush.msra.mxu0 0.0
        %1264 = vmatpush.msra.mxu0 0.0
        %1265 = vmatpush.msra.mxu0 0.0
        %1266 = vmatpush.msra.mxu0 0.0
        %1267 = vmatpush.msra.mxu0 0.0
        %1268 = vmatpush.msra.mxu0 0.0
        %1269 = vmatpush.msra.mxu0 0.0
        %1270 = vmatpush.msra.mxu0 0.0
        %1271 = vmatpush.msra.mxu0 %v223
        %1272 = vmatpush.msra.mxu0 %v222
        %1273 = vmatmul.f32.gmra.mxu0 %v1255
        %v1274 = vpop.f32.mrf.mxu0
        %v1275 = vadd.f32 %v1252, %v1274
        %1276 = vdwg.mxu0
        %v1277 = vadd.f32 %v1275, %v394
        %v1279 = vrot.slane %v1277, 1
        %v1280 = vrot.slane %v1277, 2
        %v1281 = vrot.slane %v1277, 3
        %v1282 = vrot.slane %v1277, 4
        %v1283 = vrot.slane %v1277, 5
        %v1284 = vrot.slane %v1277, 6
        %v1285 = vrot.slane %v1277, 7
        %1293 = vst.msk [vmem:[%s208 + $0xa] sm:$0x1] %vm412, %v1277
        %1294 = vst.msk [vmem:[%s208 + $0x2a] sm:$0x1] %vm412, %v1279
        %1295 = vst.msk [vmem:[%s208 + $0x4a] sm:$0x1] %vm412, %v1280
        %1296 = vst.msk [vmem:[%s208 + $0x6a] sm:$0x1] %vm412, %v1281
        %1297 = vst.msk [vmem:[%s208 + $0x8a] sm:$0x1] %vm412, %v1282
        %1298 = vst.msk [vmem:[%s208 + $0xaa] sm:$0x1] %vm412, %v1283
        %1299 = vst.msk [vmem:[%s208 + $0xca] sm:$0x1] %vm412, %v1284
        %1300 = vst.msk [vmem:[%s208 + $0xea] sm:$0x1] %vm412, %v1285
        %v1302 = vsel %vm344, %v1230, 0
        %1304 = vmatpush.msra.mxu0 0.0
        %1305 = vmatpush.msra.mxu0 0.0
        %1306 = vmatpush.msra.mxu0 0.0
        %1307 = vmatpush.msra.mxu0 0.0
        %1308 = vmatpush.msra.mxu0 0.0
        %1309 = vmatpush.msra.mxu0 0.0
        %1310 = vmatpush.msra.mxu0 0.0
        %1311 = vmatpush.msra.mxu0 0.0
        %1312 = vmatpush.msra.mxu0 0.0
        %1313 = vmatpush.msra.mxu0 0.0
        %1314 = vmatpush.msra.mxu0 0.0
        %1315 = vmatpush.msra.mxu0 0.0
        %1316 = vmatpush.msra.mxu0 0.0
        %1317 = vmatpush.msra.mxu0 0.0
        %1318 = vmatpush.msra.mxu0 %v231
        %1319 = vmatpush.msra.mxu0 %v230
        %1320 = vmatmul.f32.gmra.mxu0 %v1302
        %v1321 = vpop.f32.mrf.mxu0
        %v1322 = vadd.f32 0.0, %v1321
        %1323 = vdwg.mxu0
        %v1325 = vsel %vm344, %v1229, 0
        %1327 = vmatpush.msra.mxu0 0.0
        %1328 = vmatpush.msra.mxu0 0.0
        %1329 = vmatpush.msra.mxu0 0.0
        %1330 = vmatpush.msra.mxu0 0.0
        %1331 = vmatpush.msra.mxu0 0.0
        %1332 = vmatpush.msra.mxu0 0.0
        %1333 = vmatpush.msra.mxu0 0.0
        %1334 = vmatpush.msra.mxu0 0.0
        %1335 = vmatpush.msra.mxu0 0.0
        %1336 = vmatpush.msra.mxu0 0.0
        %1337 = vmatpush.msra.mxu0 0.0
        %1338 = vmatpush.msra.mxu0 0.0
        %1339 = vmatpush.msra.mxu0 0.0
        %1340 = vmatpush.msra.mxu0 0.0
        %1341 = vmatpush.msra.mxu0 %v223
        %1342 = vmatpush.msra.mxu0 %v222
        %1343 = vmatmul.f32.gmra.mxu0 %v1325
        %v1344 = vpop.f32.mrf.mxu0
        %v1345 = vadd.f32 %v1322, %v1344
        %1346 = vdwg.mxu0
        %v1347 = vadd.f32 %v1345, %v394
        %v1349 = vrot.slane %v1347, 1
        %v1350 = vrot.slane %v1347, 2
        %v1351 = vrot.slane %v1347, 3
        %v1352 = vrot.slane %v1347, 4
        %v1353 = vrot.slane %v1347, 5
        %v1354 = vrot.slane %v1347, 6
        %v1355 = vrot.slane %v1347, 7
        %1363 = vst.msk [vmem:[%s208 + $0xb] sm:$0x1] %vm412, %v1347
        %1364 = vst.msk [vmem:[%s208 + $0x2b] sm:$0x1] %vm412, %v1349
        %1365 = vst.msk [vmem:[%s208 + $0x4b] sm:$0x1] %vm412, %v1350
        %1366 = vst.msk [vmem:[%s208 + $0x6b] sm:$0x1] %vm412, %v1351
        %1367 = vst.msk [vmem:[%s208 + $0x8b] sm:$0x1] %vm412, %v1352
        %1368 = vst.msk [vmem:[%s208 + $0xab] sm:$0x1] %vm412, %v1353
        %1369 = vst.msk [vmem:[%s208 + $0xcb] sm:$0x1] %vm412, %v1354
        %1370 = vst.msk [vmem:[%s208 + $0xeb] sm:$0x1] %vm412, %v1355
        %v1371 = vld [vmem:[%s185 + $0x6] sm:$0x1]
        %v1372 = vperm.slane %v1371, 0
        %v1373 = vmul.f32 %v240, %v1372
        %v1374 = vmul.f32 %v245, %v1372
        %v1375 = vmul.f32 %v250, %v1372
        %v1376 = vmul.f32 %v255, %v1372
        %v1377 = vld [vmem:[%s311 + $0x6] sm:$0x1]
        %v1378 = vperm.slane %v1377, 0
        %v1379 = vmul.f32 %v259, %v1378
        %v1380 = vmul.f32 %v263, %v1378
        %v1381 = vmul.f32 %v267, %v1378
        %v1382 = vmul.f32 %v271, %v1378
        %v1383 = vadd.f32 %v1373, %v1379
        %v1384 = vadd.f32 %v1374, %v1380
        %v1385 = vadd.f32 %v1375, %v1381
        %v1386 = vadd.f32 %v1376, %v1382
        %v1387 = vld [vmem:[%s322 + $0x6] sm:$0x1]
        %v1388 = vperm.slane %v1387, 0
        %v1389 = vmul.f32 %v275, %v1388
        %v1390 = vmul.f32 %v279, %v1388
        %v1391 = vmul.f32 %v283, %v1388
        %v1392 = vmul.f32 %v287, %v1388
        %v1393 = vadd.f32 %v1383, %v1389
        %v1394 = vadd.f32 %v1384, %v1390
        %v1395 = vadd.f32 %v1385, %v1391
        %v1396 = vadd.f32 %v1386, %v1392
        %v1397 = vld [vmem:[%s333 + $0x6] sm:$0x1]
        %v1398 = vperm.slane %v1397, 0
        %v1399 = vmul.f32 %v291, %v1398
        %v1400 = vmul.f32 %v295, %v1398
        %v1401 = vmul.f32 %v299, %v1398
        %v1402 = vmul.f32 %v303, %v1398
        %v1403 = vadd.f32 %v1393, %v1399
        %v1404 = vadd.f32 %v1394, %v1400
        %v1405 = vadd.f32 %v1395, %v1401
        %v1406 = vadd.f32 %v1396, %v1402
        %v1408 = vsel %vm344, %v1404, 0
        %1410 = vmatpush.msra.mxu0 0.0
        %1411 = vmatpush.msra.mxu0 0.0
        %1412 = vmatpush.msra.mxu0 0.0
        %1413 = vmatpush.msra.mxu0 0.0
        %1414 = vmatpush.msra.mxu0 0.0
        %1415 = vmatpush.msra.mxu0 0.0
        %1416 = vmatpush.msra.mxu0 0.0
        %1417 = vmatpush.msra.mxu0 0.0
        %1418 = vmatpush.msra.mxu0 0.0
        %1419 = vmatpush.msra.mxu0 0.0
        %1420 = vmatpush.msra.mxu0 0.0
        %1421 = vmatpush.msra.mxu0 0.0
        %1422 = vmatpush.msra.mxu0 0.0
        %1423 = vmatpush.msra.mxu0 0.0
        %1424 = vmatpush.msra.mxu0 %v231
        %1425 = vmatpush.msra.mxu0 %v230
        %1426 = vmatmul.f32.gmra.mxu0 %v1408
        %v1427 = vpop.f32.mrf.mxu0
        %v1428 = vadd.f32 0.0, %v1427
        %1429 = vdwg.mxu0
        %v1431 = vsel %vm344, %v1403, 0
        %1433 = vmatpush.msra.mxu0 0.0
        %1434 = vmatpush.msra.mxu0 0.0
        %1435 = vmatpush.msra.mxu0 0.0
        %1436 = vmatpush.msra.mxu0 0.0
        %1437 = vmatpush.msra.mxu0 0.0
        %1438 = vmatpush.msra.mxu0 0.0
        %1439 = vmatpush.msra.mxu0 0.0
        %1440 = vmatpush.msra.mxu0 0.0
        %1441 = vmatpush.msra.mxu0 0.0
        %1442 = vmatpush.msra.mxu0 0.0
        %1443 = vmatpush.msra.mxu0 0.0
        %1444 = vmatpush.msra.mxu0 0.0
        %1445 = vmatpush.msra.mxu0 0.0
        %1446 = vmatpush.msra.mxu0 0.0
        %1447 = vmatpush.msra.mxu0 %v223
        %1448 = vmatpush.msra.mxu0 %v222
        %1449 = vmatmul.f32.gmra.mxu0 %v1431
        %v1450 = vpop.f32.mrf.mxu0
        %v1451 = vadd.f32 %v1428, %v1450
        %1452 = vdwg.mxu0
        %v1453 = vadd.f32 %v1451, %v394
        %v1455 = vrot.slane %v1453, 1
        %v1456 = vrot.slane %v1453, 2
        %v1457 = vrot.slane %v1453, 3
        %v1458 = vrot.slane %v1453, 4
        %v1459 = vrot.slane %v1453, 5
        %v1460 = vrot.slane %v1453, 6
        %v1461 = vrot.slane %v1453, 7
        %1469 = vst.msk [vmem:[%s208 + $0xc] sm:$0x1] %vm412, %v1453
        %1470 = vst.msk [vmem:[%s208 + $0x2c] sm:$0x1] %vm412, %v1455
        %1471 = vst.msk [vmem:[%s208 + $0x4c] sm:$0x1] %vm412, %v1456
        %1472 = vst.msk [vmem:[%s208 + $0x6c] sm:$0x1] %vm412, %v1457
        %1473 = vst.msk [vmem:[%s208 + $0x8c] sm:$0x1] %vm412, %v1458
        %1474 = vst.msk [vmem:[%s208 + $0xac] sm:$0x1] %vm412, %v1459
        %1475 = vst.msk [vmem:[%s208 + $0xcc] sm:$0x1] %vm412, %v1460
        %1476 = vst.msk [vmem:[%s208 + $0xec] sm:$0x1] %vm412, %v1461
        %v1478 = vsel %vm344, %v1406, 0
        %1480 = vmatpush.msra.mxu0 0.0
        %1481 = vmatpush.msra.mxu0 0.0
        %1482 = vmatpush.msra.mxu0 0.0
        %1483 = vmatpush.msra.mxu0 0.0
        %1484 = vmatpush.msra.mxu0 0.0
        %1485 = vmatpush.msra.mxu0 0.0
        %1486 = vmatpush.msra.mxu0 0.0
        %1487 = vmatpush.msra.mxu0 0.0
        %1488 = vmatpush.msra.mxu0 0.0
        %1489 = vmatpush.msra.mxu0 0.0
        %1490 = vmatpush.msra.mxu0 0.0
        %1491 = vmatpush.msra.mxu0 0.0
        %1492 = vmatpush.msra.mxu0 0.0
        %1493 = vmatpush.msra.mxu0 0.0
        %1494 = vmatpush.msra.mxu0 %v231
        %1495 = vmatpush.msra.mxu0 %v230
        %1496 = vmatmul.f32.gmra.mxu0 %v1478
        %v1497 = vpop.f32.mrf.mxu0
        %v1498 = vadd.f32 0.0, %v1497
        %1499 = vdwg.mxu0
        %v1501 = vsel %vm344, %v1405, 0
        %1503 = vmatpush.msra.mxu0 0.0
        %1504 = vmatpush.msra.mxu0 0.0
        %1505 = vmatpush.msra.mxu0 0.0
        %1506 = vmatpush.msra.mxu0 0.0
        %1507 = vmatpush.msra.mxu0 0.0
        %1508 = vmatpush.msra.mxu0 0.0
        %1509 = vmatpush.msra.mxu0 0.0
        %1510 = vmatpush.msra.mxu0 0.0
        %1511 = vmatpush.msra.mxu0 0.0
        %1512 = vmatpush.msra.mxu0 0.0
        %1513 = vmatpush.msra.mxu0 0.0
        %1514 = vmatpush.msra.mxu0 0.0
        %1515 = vmatpush.msra.mxu0 0.0
        %1516 = vmatpush.msra.mxu0 0.0
        %1517 = vmatpush.msra.mxu0 %v223
        %1518 = vmatpush.msra.mxu0 %v222
        %1519 = vmatmul.f32.gmra.mxu0 %v1501
        %v1520 = vpop.f32.mrf.mxu0
        %v1521 = vadd.f32 %v1498, %v1520
        %1522 = vdwg.mxu0
        %v1523 = vadd.f32 %v1521, %v394
        %v1525 = vrot.slane %v1523, 1
        %v1526 = vrot.slane %v1523, 2
        %v1527 = vrot.slane %v1523, 3
        %v1528 = vrot.slane %v1523, 4
        %v1529 = vrot.slane %v1523, 5
        %v1530 = vrot.slane %v1523, 6
        %v1531 = vrot.slane %v1523, 7
        %1539 = vst.msk [vmem:[%s208 + $0xd] sm:$0x1] %vm412, %v1523
        %1540 = vst.msk [vmem:[%s208 + $0x2d] sm:$0x1] %vm412, %v1525
        %1541 = vst.msk [vmem:[%s208 + $0x4d] sm:$0x1] %vm412, %v1526
        %1542 = vst.msk [vmem:[%s208 + $0x6d] sm:$0x1] %vm412, %v1527
        %1543 = vst.msk [vmem:[%s208 + $0x8d] sm:$0x1] %vm412, %v1528
        %1544 = vst.msk [vmem:[%s208 + $0xad] sm:$0x1] %vm412, %v1529
        %1545 = vst.msk [vmem:[%s208 + $0xcd] sm:$0x1] %vm412, %v1530
        %1546 = vst.msk [vmem:[%s208 + $0xed] sm:$0x1] %vm412, %v1531
        %v1547 = vld [vmem:[%s185 + $0x7] sm:$0x1]
        %v1548 = vperm.slane %v1547, 0
        %v1549 = vmul.f32 %v240, %v1548
        %v1550 = vmul.f32 %v245, %v1548
        %v1551 = vmul.f32 %v250, %v1548
        %v1552 = vmul.f32 %v255, %v1548
        %v1553 = vld [vmem:[%s311 + $0x7] sm:$0x1]
        %v1554 = vperm.slane %v1553, 0
        %v1555 = vmul.f32 %v259, %v1554
        %v1556 = vmul.f32 %v263, %v1554
        %v1557 = vmul.f32 %v267, %v1554
        %v1558 = vmul.f32 %v271, %v1554
        %v1559 = vadd.f32 %v1549, %v1555
        %v1560 = vadd.f32 %v1550, %v1556
        %v1561 = vadd.f32 %v1551, %v1557
        %v1562 = vadd.f32 %v1552, %v1558
        %v1563 = vld [vmem:[%s322 + $0x7] sm:$0x1]
        %v1564 = vperm.slane %v1563, 0
        %v1565 = vmul.f32 %v275, %v1564
        %v1566 = vmul.f32 %v279, %v1564
        %v1567 = vmul.f32 %v283, %v1564
        %v1568 = vmul.f32 %v287, %v1564
        %v1569 = vadd.f32 %v1559, %v1565
        %v1570 = vadd.f32 %v1560, %v1566
        %v1571 = vadd.f32 %v1561, %v1567
        %v1572 = vadd.f32 %v1562, %v1568
        %v1573 = vld [vmem:[%s333 + $0x7] sm:$0x1]
        %v1574 = vperm.slane %v1573, 0
        %v1575 = vmul.f32 %v291, %v1574
        %v1576 = vmul.f32 %v295, %v1574
        %v1577 = vmul.f32 %v299, %v1574
        %v1578 = vmul.f32 %v303, %v1574
        %v1579 = vadd.f32 %v1569, %v1575
        %v1580 = vadd.f32 %v1570, %v1576
        %v1581 = vadd.f32 %v1571, %v1577
        %v1582 = vadd.f32 %v1572, %v1578
        %v1584 = vsel %vm344, %v1580, 0
        %1586 = vmatpush.msra.mxu0 0.0
        %1587 = vmatpush.msra.mxu0 0.0
        %1588 = vmatpush.msra.mxu0 0.0
        %1589 = vmatpush.msra.mxu0 0.0
        %1590 = vmatpush.msra.mxu0 0.0
        %1591 = vmatpush.msra.mxu0 0.0
        %1592 = vmatpush.msra.mxu0 0.0
        %1593 = vmatpush.msra.mxu0 0.0
        %1594 = vmatpush.msra.mxu0 0.0
        %1595 = vmatpush.msra.mxu0 0.0
        %1596 = vmatpush.msra.mxu0 0.0
        %1597 = vmatpush.msra.mxu0 0.0
        %1598 = vmatpush.msra.mxu0 0.0
        %1599 = vmatpush.msra.mxu0 0.0
        %1600 = vmatpush.msra.mxu0 %v231
        %1601 = vmatpush.msra.mxu0 %v230
        %1602 = vmatmul.f32.gmra.mxu0 %v1584
        %v1603 = vpop.f32.mrf.mxu0
        %v1604 = vadd.f32 0.0, %v1603
        %1605 = vdwg.mxu0
        %v1607 = vsel %vm344, %v1579, 0
        %1609 = vmatpush.msra.mxu0 0.0
        %1610 = vmatpush.msra.mxu0 0.0
        %1611 = vmatpush.msra.mxu0 0.0
        %1612 = vmatpush.msra.mxu0 0.0
        %1613 = vmatpush.msra.mxu0 0.0
        %1614 = vmatpush.msra.mxu0 0.0
        %1615 = vmatpush.msra.mxu0 0.0
        %1616 = vmatpush.msra.mxu0 0.0
        %1617 = vmatpush.msra.mxu0 0.0
        %1618 = vmatpush.msra.mxu0 0.0
        %1619 = vmatpush.msra.mxu0 0.0
        %1620 = vmatpush.msra.mxu0 0.0
        %1621 = vmatpush.msra.mxu0 0.0
        %1622 = vmatpush.msra.mxu0 0.0
        %1623 = vmatpush.msra.mxu0 %v223
        %1624 = vmatpush.msra.mxu0 %v222
        %1625 = vmatmul.f32.gmra.mxu0 %v1607
        %v1626 = vpop.f32.mrf.mxu0
        %v1627 = vadd.f32 %v1604, %v1626
        %1628 = vdwg.mxu0
        %v1629 = vadd.f32 %v1627, %v394
        %v1631 = vrot.slane %v1629, 1
        %v1632 = vrot.slane %v1629, 2
        %v1633 = vrot.slane %v1629, 3
        %v1634 = vrot.slane %v1629, 4
        %v1635 = vrot.slane %v1629, 5
        %v1636 = vrot.slane %v1629, 6
        %v1637 = vrot.slane %v1629, 7
        %1645 = vst.msk [vmem:[%s208 + $0xe] sm:$0x1] %vm412, %v1629
        %1646 = vst.msk [vmem:[%s208 + $0x2e] sm:$0x1] %vm412, %v1631
        %1647 = vst.msk [vmem:[%s208 + $0x4e] sm:$0x1] %vm412, %v1632
        %1648 = vst.msk [vmem:[%s208 + $0x6e] sm:$0x1] %vm412, %v1633
        %1649 = vst.msk [vmem:[%s208 + $0x8e] sm:$0x1] %vm412, %v1634
        %1650 = vst.msk [vmem:[%s208 + $0xae] sm:$0x1] %vm412, %v1635
        %1651 = vst.msk [vmem:[%s208 + $0xce] sm:$0x1] %vm412, %v1636
        %1652 = vst.msk [vmem:[%s208 + $0xee] sm:$0x1] %vm412, %v1637
        %v1654 = vsel %vm344, %v1582, 0
        %1656 = vmatpush.msra.mxu0 0.0
        %1657 = vmatpush.msra.mxu0 0.0
        %1658 = vmatpush.msra.mxu0 0.0
        %1659 = vmatpush.msra.mxu0 0.0
        %1660 = vmatpush.msra.mxu0 0.0
        %1661 = vmatpush.msra.mxu0 0.0
        %1662 = vmatpush.msra.mxu0 0.0
        %1663 = vmatpush.msra.mxu0 0.0
        %1664 = vmatpush.msra.mxu0 0.0
        %1665 = vmatpush.msra.mxu0 0.0
        %1666 = vmatpush.msra.mxu0 0.0
        %1667 = vmatpush.msra.mxu0 0.0
        %1668 = vmatpush.msra.mxu0 0.0
        %1669 = vmatpush.msra.mxu0 0.0
        %1670 = vmatpush.msra.mxu0 %v231
        %1671 = vmatpush.msra.mxu0 %v230
        %1672 = vmatmul.f32.gmra.mxu0 %v1654
        %v1673 = vpop.f32.mrf.mxu0
        %v1674 = vadd.f32 0.0, %v1673
        %1675 = vdwg.mxu0
        %v1677 = vsel %vm344, %v1581, 0
        %1679 = vmatpush.msra.mxu0 0.0
        %1680 = vmatpush.msra.mxu0 0.0
        %1681 = vmatpush.msra.mxu0 0.0
        %1682 = vmatpush.msra.mxu0 0.0
        %1683 = vmatpush.msra.mxu0 0.0
        %1684 = vmatpush.msra.mxu0 0.0
        %1685 = vmatpush.msra.mxu0 0.0
        %1686 = vmatpush.msra.mxu0 0.0
        %1687 = vmatpush.msra.mxu0 0.0
        %1688 = vmatpush.msra.mxu0 0.0
        %1689 = vmatpush.msra.mxu0 0.0
        %1690 = vmatpush.msra.mxu0 0.0
        %1691 = vmatpush.msra.mxu0 0.0
        %1692 = vmatpush.msra.mxu0 0.0
        %1693 = vmatpush.msra.mxu0 %v223
        %1694 = vmatpush.msra.mxu0 %v222
        %1695 = vmatmul.f32.gmra.mxu0 %v1677
        %v1696 = vpop.f32.mrf.mxu0
        %v1697 = vadd.f32 %v1674, %v1696
        %1698 = vdwg.mxu0
        %v1699 = vadd.f32 %v1697, %v394
        %v1701 = vrot.slane %v1699, 1
        %v1702 = vrot.slane %v1699, 2
        %v1703 = vrot.slane %v1699, 3
        %v1704 = vrot.slane %v1699, 4
        %v1705 = vrot.slane %v1699, 5
        %v1706 = vrot.slane %v1699, 6
        %v1707 = vrot.slane %v1699, 7
        %1715 = vst.msk [vmem:[%s208 + $0xf] sm:$0x1] %vm412, %v1699
        %1716 = vst.msk [vmem:[%s208 + $0x2f] sm:$0x1] %vm412, %v1701
        %1717 = vst.msk [vmem:[%s208 + $0x4f] sm:$0x1] %vm412, %v1702
        %1718 = vst.msk [vmem:[%s208 + $0x6f] sm:$0x1] %vm412, %v1703
        %1719 = vst.msk [vmem:[%s208 + $0x8f] sm:$0x1] %vm412, %v1704
        %1720 = vst.msk [vmem:[%s208 + $0xaf] sm:$0x1] %vm412, %v1705
        %1721 = vst.msk [vmem:[%s208 + $0xcf] sm:$0x1] %vm412, %v1706
        %1722 = vst.msk [vmem:[%s208 + $0xef] sm:$0x1] %vm412, %v1707
        %v1723 = vld [vmem:[%s185 + $0x8] sm:$0x1]
        %v1724 = vperm.slane %v1723, 0
        %v1725 = vmul.f32 %v240, %v1724
        %v1726 = vmul.f32 %v245, %v1724
        %v1727 = vmul.f32 %v250, %v1724
        %v1728 = vmul.f32 %v255, %v1724
        %v1729 = vld [vmem:[%s311 + $0x8] sm:$0x1]
        %v1730 = vperm.slane %v1729, 0
        %v1731 = vmul.f32 %v259, %v1730
        %v1732 = vmul.f32 %v263, %v1730
        %v1733 = vmul.f32 %v267, %v1730
        %v1734 = vmul.f32 %v271, %v1730
        %v1735 = vadd.f32 %v1725, %v1731
        %v1736 = vadd.f32 %v1726, %v1732
        %v1737 = vadd.f32 %v1727, %v1733
        %v1738 = vadd.f32 %v1728, %v1734
        %v1739 = vld [vmem:[%s322 + $0x8] sm:$0x1]
        %v1740 = vperm.slane %v1739, 0
        %v1741 = vmul.f32 %v275, %v1740
        %v1742 = vmul.f32 %v279, %v1740
        %v1743 = vmul.f32 %v283, %v1740
        %v1744 = vmul.f32 %v287, %v1740
        %v1745 = vadd.f32 %v1735, %v1741
        %v1746 = vadd.f32 %v1736, %v1742
        %v1747 = vadd.f32 %v1737, %v1743
        %v1748 = vadd.f32 %v1738, %v1744
        %v1749 = vld [vmem:[%s333 + $0x8] sm:$0x1]
        %v1750 = vperm.slane %v1749, 0
        %v1751 = vmul.f32 %v291, %v1750
        %v1752 = vmul.f32 %v295, %v1750
        %v1753 = vmul.f32 %v299, %v1750
        %v1754 = vmul.f32 %v303, %v1750
        %v1755 = vadd.f32 %v1745, %v1751
        %v1756 = vadd.f32 %v1746, %v1752
        %v1757 = vadd.f32 %v1747, %v1753
        %v1758 = vadd.f32 %v1748, %v1754
        %v1760 = vsel %vm344, %v1756, 0
        %1762 = vmatpush.msra.mxu0 0.0
        %1763 = vmatpush.msra.mxu0 0.0
        %1764 = vmatpush.msra.mxu0 0.0
        %1765 = vmatpush.msra.mxu0 0.0
        %1766 = vmatpush.msra.mxu0 0.0
        %1767 = vmatpush.msra.mxu0 0.0
        %1768 = vmatpush.msra.mxu0 0.0
        %1769 = vmatpush.msra.mxu0 0.0
        %1770 = vmatpush.msra.mxu0 0.0
        %1771 = vmatpush.msra.mxu0 0.0
        %1772 = vmatpush.msra.mxu0 0.0
        %1773 = vmatpush.msra.mxu0 0.0
        %1774 = vmatpush.msra.mxu0 0.0
        %1775 = vmatpush.msra.mxu0 0.0
        %1776 = vmatpush.msra.mxu0 %v231
        %1777 = vmatpush.msra.mxu0 %v230
        %1778 = vmatmul.f32.gmra.mxu0 %v1760
        %v1779 = vpop.f32.mrf.mxu0
        %v1780 = vadd.f32 0.0, %v1779
        %1781 = vdwg.mxu0
        %v1783 = vsel %vm344, %v1755, 0
        %1785 = vmatpush.msra.mxu0 0.0
        %1786 = vmatpush.msra.mxu0 0.0
        %1787 = vmatpush.msra.mxu0 0.0
        %1788 = vmatpush.msra.mxu0 0.0
        %1789 = vmatpush.msra.mxu0 0.0
        %1790 = vmatpush.msra.mxu0 0.0
        %1791 = vmatpush.msra.mxu0 0.0
        %1792 = vmatpush.msra.mxu0 0.0
        %1793 = vmatpush.msra.mxu0 0.0
        %1794 = vmatpush.msra.mxu0 0.0
        %1795 = vmatpush.msra.mxu0 0.0
        %1796 = vmatpush.msra.mxu0 0.0
        %1797 = vmatpush.msra.mxu0 0.0
        %1798 = vmatpush.msra.mxu0 0.0
        %1799 = vmatpush.msra.mxu0 %v223
        %1800 = vmatpush.msra.mxu0 %v222
        %1801 = vmatmul.f32.gmra.mxu0 %v1783
        %v1802 = vpop.f32.mrf.mxu0
        %v1803 = vadd.f32 %v1780, %v1802
        %1804 = vdwg.mxu0
        %v1805 = vadd.f32 %v1803, %v394
        %v1807 = vrot.slane %v1805, 1
        %v1808 = vrot.slane %v1805, 2
        %v1809 = vrot.slane %v1805, 3
        %v1810 = vrot.slane %v1805, 4
        %v1811 = vrot.slane %v1805, 5
        %v1812 = vrot.slane %v1805, 6
        %v1813 = vrot.slane %v1805, 7
        %1821 = vst.msk [vmem:[%s208 + $0x10] sm:$0x1] %vm412, %v1805
        %1822 = vst.msk [vmem:[%s208 + $0x30] sm:$0x1] %vm412, %v1807
        %1823 = vst.msk [vmem:[%s208 + $0x50] sm:$0x1] %vm412, %v1808
        %1824 = vst.msk [vmem:[%s208 + $0x70] sm:$0x1] %vm412, %v1809
        %1825 = vst.msk [vmem:[%s208 + $0x90] sm:$0x1] %vm412, %v1810
        %1826 = vst.msk [vmem:[%s208 + $0xb0] sm:$0x1] %vm412, %v1811
        %1827 = vst.msk [vmem:[%s208 + $0xd0] sm:$0x1] %vm412, %v1812
        %1828 = vst.msk [vmem:[%s208 + $0xf0] sm:$0x1] %vm412, %v1813
        %v1830 = vsel %vm344, %v1758, 0
        %1832 = vmatpush.msra.mxu0 0.0
        %1833 = vmatpush.msra.mxu0 0.0
        %1834 = vmatpush.msra.mxu0 0.0
        %1835 = vmatpush.msra.mxu0 0.0
        %1836 = vmatpush.msra.mxu0 0.0
        %1837 = vmatpush.msra.mxu0 0.0
        %1838 = vmatpush.msra.mxu0 0.0
        %1839 = vmatpush.msra.mxu0 0.0
        %1840 = vmatpush.msra.mxu0 0.0
        %1841 = vmatpush.msra.mxu0 0.0
        %1842 = vmatpush.msra.mxu0 0.0
        %1843 = vmatpush.msra.mxu0 0.0
        %1844 = vmatpush.msra.mxu0 0.0
        %1845 = vmatpush.msra.mxu0 0.0
        %1846 = vmatpush.msra.mxu0 %v231
        %1847 = vmatpush.msra.mxu0 %v230
        %1848 = vmatmul.f32.gmra.mxu0 %v1830
        %v1849 = vpop.f32.mrf.mxu0
        %v1850 = vadd.f32 0.0, %v1849
        %1851 = vdwg.mxu0
        %v1853 = vsel %vm344, %v1757, 0
        %1855 = vmatpush.msra.mxu0 0.0
        %1856 = vmatpush.msra.mxu0 0.0
        %1857 = vmatpush.msra.mxu0 0.0
        %1858 = vmatpush.msra.mxu0 0.0
        %1859 = vmatpush.msra.mxu0 0.0
        %1860 = vmatpush.msra.mxu0 0.0
        %1861 = vmatpush.msra.mxu0 0.0
        %1862 = vmatpush.msra.mxu0 0.0
        %1863 = vmatpush.msra.mxu0 0.0
        %1864 = vmatpush.msra.mxu0 0.0
        %1865 = vmatpush.msra.mxu0 0.0
        %1866 = vmatpush.msra.mxu0 0.0
        %1867 = vmatpush.msra.mxu0 0.0
        %1868 = vmatpush.msra.mxu0 0.0
        %1869 = vmatpush.msra.mxu0 %v223
        %1870 = vmatpush.msra.mxu0 %v222
        %1871 = vmatmul.f32.gmra.mxu0 %v1853
        %v1872 = vpop.f32.mrf.mxu0
        %v1873 = vadd.f32 %v1850, %v1872
        %1874 = vdwg.mxu0
        %v1875 = vadd.f32 %v1873, %v394
        %v1877 = vrot.slane %v1875, 1
        %v1878 = vrot.slane %v1875, 2
        %v1879 = vrot.slane %v1875, 3
        %v1880 = vrot.slane %v1875, 4
        %v1881 = vrot.slane %v1875, 5
        %v1882 = vrot.slane %v1875, 6
        %v1883 = vrot.slane %v1875, 7
        %1891 = vst.msk [vmem:[%s208 + $0x11] sm:$0x1] %vm412, %v1875
        %1892 = vst.msk [vmem:[%s208 + $0x31] sm:$0x1] %vm412, %v1877
        %1893 = vst.msk [vmem:[%s208 + $0x51] sm:$0x1] %vm412, %v1878
        %1894 = vst.msk [vmem:[%s208 + $0x71] sm:$0x1] %vm412, %v1879
        %1895 = vst.msk [vmem:[%s208 + $0x91] sm:$0x1] %vm412, %v1880
        %1896 = vst.msk [vmem:[%s208 + $0xb1] sm:$0x1] %vm412, %v1881
        %1897 = vst.msk [vmem:[%s208 + $0xd1] sm:$0x1] %vm412, %v1882
        %1898 = vst.msk [vmem:[%s208 + $0xf1] sm:$0x1] %vm412, %v1883
        %v1899 = vld [vmem:[%s185 + $0x9] sm:$0x1]
        %v1900 = vperm.slane %v1899, 0
        %v1901 = vmul.f32 %v240, %v1900
        %v1902 = vmul.f32 %v245, %v1900
        %v1903 = vmul.f32 %v250, %v1900
        %v1904 = vmul.f32 %v255, %v1900
        %v1905 = vld [vmem:[%s311 + $0x9] sm:$0x1]
        %v1906 = vperm.slane %v1905, 0
        %v1907 = vmul.f32 %v259, %v1906
        %v1908 = vmul.f32 %v263, %v1906
        %v1909 = vmul.f32 %v267, %v1906
        %v1910 = vmul.f32 %v271, %v1906
        %v1911 = vadd.f32 %v1901, %v1907
        %v1912 = vadd.f32 %v1902, %v1908
        %v1913 = vadd.f32 %v1903, %v1909
        %v1914 = vadd.f32 %v1904, %v1910
        %v1915 = vld [vmem:[%s322 + $0x9] sm:$0x1]
        %v1916 = vperm.slane %v1915, 0
        %v1917 = vmul.f32 %v275, %v1916
        %v1918 = vmul.f32 %v279, %v1916
        %v1919 = vmul.f32 %v283, %v1916
        %v1920 = vmul.f32 %v287, %v1916
        %v1921 = vadd.f32 %v1911, %v1917
        %v1922 = vadd.f32 %v1912, %v1918
        %v1923 = vadd.f32 %v1913, %v1919
        %v1924 = vadd.f32 %v1914, %v1920
        %v1925 = vld [vmem:[%s333 + $0x9] sm:$0x1]
        %v1926 = vperm.slane %v1925, 0
        %v1927 = vmul.f32 %v291, %v1926
        %v1928 = vmul.f32 %v295, %v1926
        %v1929 = vmul.f32 %v299, %v1926
        %v1930 = vmul.f32 %v303, %v1926
        %v1931 = vadd.f32 %v1921, %v1927
        %v1932 = vadd.f32 %v1922, %v1928
        %v1933 = vadd.f32 %v1923, %v1929
        %v1934 = vadd.f32 %v1924, %v1930
        %v1936 = vsel %vm344, %v1932, 0
        %1938 = vmatpush.msra.mxu0 0.0
        %1939 = vmatpush.msra.mxu0 0.0
        %1940 = vmatpush.msra.mxu0 0.0
        %1941 = vmatpush.msra.mxu0 0.0
        %1942 = vmatpush.msra.mxu0 0.0
        %1943 = vmatpush.msra.mxu0 0.0
        %1944 = vmatpush.msra.mxu0 0.0
        %1945 = vmatpush.msra.mxu0 0.0
        %1946 = vmatpush.msra.mxu0 0.0
        %1947 = vmatpush.msra.mxu0 0.0
        %1948 = vmatpush.msra.mxu0 0.0
        %1949 = vmatpush.msra.mxu0 0.0
        %1950 = vmatpush.msra.mxu0 0.0
        %1951 = vmatpush.msra.mxu0 0.0
        %1952 = vmatpush.msra.mxu0 %v231
        %1953 = vmatpush.msra.mxu0 %v230
        %1954 = vmatmul.f32.gmra.mxu0 %v1936
        %v1955 = vpop.f32.mrf.mxu0
        %v1956 = vadd.f32 0.0, %v1955
        %1957 = vdwg.mxu0
        %v1959 = vsel %vm344, %v1931, 0
        %1961 = vmatpush.msra.mxu0 0.0
        %1962 = vmatpush.msra.mxu0 0.0
        %1963 = vmatpush.msra.mxu0 0.0
        %1964 = vmatpush.msra.mxu0 0.0
        %1965 = vmatpush.msra.mxu0 0.0
        %1966 = vmatpush.msra.mxu0 0.0
        %1967 = vmatpush.msra.mxu0 0.0
        %1968 = vmatpush.msra.mxu0 0.0
        %1969 = vmatpush.msra.mxu0 0.0
        %1970 = vmatpush.msra.mxu0 0.0
        %1971 = vmatpush.msra.mxu0 0.0
        %1972 = vmatpush.msra.mxu0 0.0
        %1973 = vmatpush.msra.mxu0 0.0
        %1974 = vmatpush.msra.mxu0 0.0
        %1975 = vmatpush.msra.mxu0 %v223
        %1976 = vmatpush.msra.mxu0 %v222
        %1977 = vmatmul.f32.gmra.mxu0 %v1959
        %v1978 = vpop.f32.mrf.mxu0
        %v1979 = vadd.f32 %v1956, %v1978
        %1980 = vdwg.mxu0
        %v1981 = vadd.f32 %v1979, %v394
        %v1983 = vrot.slane %v1981, 1
        %v1984 = vrot.slane %v1981, 2
        %v1985 = vrot.slane %v1981, 3
        %v1986 = vrot.slane %v1981, 4
        %v1987 = vrot.slane %v1981, 5
        %v1988 = vrot.slane %v1981, 6
        %v1989 = vrot.slane %v1981, 7
        %1997 = vst.msk [vmem:[%s208 + $0x12] sm:$0x1] %vm412, %v1981
        %1998 = vst.msk [vmem:[%s208 + $0x32] sm:$0x1] %vm412, %v1983
        %1999 = vst.msk [vmem:[%s208 + $0x52] sm:$0x1] %vm412, %v1984
        %2000 = vst.msk [vmem:[%s208 + $0x72] sm:$0x1] %vm412, %v1985
        %2001 = vst.msk [vmem:[%s208 + $0x92] sm:$0x1] %vm412, %v1986
        %2002 = vst.msk [vmem:[%s208 + $0xb2] sm:$0x1] %vm412, %v1987
        %2003 = vst.msk [vmem:[%s208 + $0xd2] sm:$0x1] %vm412, %v1988
        %2004 = vst.msk [vmem:[%s208 + $0xf2] sm:$0x1] %vm412, %v1989
        %v2006 = vsel %vm344, %v1934, 0
        %2008 = vmatpush.msra.mxu0 0.0
        %2009 = vmatpush.msra.mxu0 0.0
        %2010 = vmatpush.msra.mxu0 0.0
        %2011 = vmatpush.msra.mxu0 0.0
        %2012 = vmatpush.msra.mxu0 0.0
        %2013 = vmatpush.msra.mxu0 0.0
        %2014 = vmatpush.msra.mxu0 0.0
        %2015 = vmatpush.msra.mxu0 0.0
        %2016 = vmatpush.msra.mxu0 0.0
        %2017 = vmatpush.msra.mxu0 0.0
        %2018 = vmatpush.msra.mxu0 0.0
        %2019 = vmatpush.msra.mxu0 0.0
        %2020 = vmatpush.msra.mxu0 0.0
        %2021 = vmatpush.msra.mxu0 0.0
        %2022 = vmatpush.msra.mxu0 %v231
        %2023 = vmatpush.msra.mxu0 %v230
        %2024 = vmatmul.f32.gmra.mxu0 %v2006
        %v2025 = vpop.f32.mrf.mxu0
        %v2026 = vadd.f32 0.0, %v2025
        %2027 = vdwg.mxu0
        %v2029 = vsel %vm344, %v1933, 0
        %2031 = vmatpush.msra.mxu0 0.0
        %2032 = vmatpush.msra.mxu0 0.0
        %2033 = vmatpush.msra.mxu0 0.0
        %2034 = vmatpush.msra.mxu0 0.0
        %2035 = vmatpush.msra.mxu0 0.0
        %2036 = vmatpush.msra.mxu0 0.0
        %2037 = vmatpush.msra.mxu0 0.0
        %2038 = vmatpush.msra.mxu0 0.0
        %2039 = vmatpush.msra.mxu0 0.0
        %2040 = vmatpush.msra.mxu0 0.0
        %2041 = vmatpush.msra.mxu0 0.0
        %2042 = vmatpush.msra.mxu0 0.0
        %2043 = vmatpush.msra.mxu0 0.0
        %2044 = vmatpush.msra.mxu0 0.0
        %2045 = vmatpush.msra.mxu0 %v223
        %2046 = vmatpush.msra.mxu0 %v222
        %2047 = vmatmul.f32.gmra.mxu0 %v2029
        %v2048 = vpop.f32.mrf.mxu0
        %v2049 = vadd.f32 %v2026, %v2048
        %2050 = vdwg.mxu0
        %v2051 = vadd.f32 %v2049, %v394
        %v2053 = vrot.slane %v2051, 1
        %v2054 = vrot.slane %v2051, 2
        %v2055 = vrot.slane %v2051, 3
        %v2056 = vrot.slane %v2051, 4
        %v2057 = vrot.slane %v2051, 5
        %v2058 = vrot.slane %v2051, 6
        %v2059 = vrot.slane %v2051, 7
        %2067 = vst.msk [vmem:[%s208 + $0x13] sm:$0x1] %vm412, %v2051
        %2068 = vst.msk [vmem:[%s208 + $0x33] sm:$0x1] %vm412, %v2053
        %2069 = vst.msk [vmem:[%s208 + $0x53] sm:$0x1] %vm412, %v2054
        %2070 = vst.msk [vmem:[%s208 + $0x73] sm:$0x1] %vm412, %v2055
        %2071 = vst.msk [vmem:[%s208 + $0x93] sm:$0x1] %vm412, %v2056
        %2072 = vst.msk [vmem:[%s208 + $0xb3] sm:$0x1] %vm412, %v2057
        %2073 = vst.msk [vmem:[%s208 + $0xd3] sm:$0x1] %vm412, %v2058
        %2074 = vst.msk [vmem:[%s208 + $0xf3] sm:$0x1] %vm412, %v2059
        %v2075 = vld [vmem:[%s185 + $0xa] sm:$0x1]
        %v2076 = vperm.slane %v2075, 0
        %v2077 = vmul.f32 %v240, %v2076
        %v2078 = vmul.f32 %v245, %v2076
        %v2079 = vmul.f32 %v250, %v2076
        %v2080 = vmul.f32 %v255, %v2076
        %v2081 = vld [vmem:[%s311 + $0xa] sm:$0x1]
        %v2082 = vperm.slane %v2081, 0
        %v2083 = vmul.f32 %v259, %v2082
        %v2084 = vmul.f32 %v263, %v2082
        %v2085 = vmul.f32 %v267, %v2082
        %v2086 = vmul.f32 %v271, %v2082
        %v2087 = vadd.f32 %v2077, %v2083
        %v2088 = vadd.f32 %v2078, %v2084
        %v2089 = vadd.f32 %v2079, %v2085
        %v2090 = vadd.f32 %v2080, %v2086
        %v2091 = vld [vmem:[%s322 + $0xa] sm:$0x1]
        %v2092 = vperm.slane %v2091, 0
        %v2093 = vmul.f32 %v275, %v2092
        %v2094 = vmul.f32 %v279, %v2092
        %v2095 = vmul.f32 %v283, %v2092
        %v2096 = vmul.f32 %v287, %v2092
        %v2097 = vadd.f32 %v2087, %v2093
        %v2098 = vadd.f32 %v2088, %v2094
        %v2099 = vadd.f32 %v2089, %v2095
        %v2100 = vadd.f32 %v2090, %v2096
        %v2101 = vld [vmem:[%s333 + $0xa] sm:$0x1]
        %v2102 = vperm.slane %v2101, 0
        %v2103 = vmul.f32 %v291, %v2102
        %v2104 = vmul.f32 %v295, %v2102
        %v2105 = vmul.f32 %v299, %v2102
        %v2106 = vmul.f32 %v303, %v2102
        %v2107 = vadd.f32 %v2097, %v2103
        %v2108 = vadd.f32 %v2098, %v2104
        %v2109 = vadd.f32 %v2099, %v2105
        %v2110 = vadd.f32 %v2100, %v2106
        %v2112 = vsel %vm344, %v2108, 0
        %2114 = vmatpush.msra.mxu0 0.0
        %2115 = vmatpush.msra.mxu0 0.0
        %2116 = vmatpush.msra.mxu0 0.0
        %2117 = vmatpush.msra.mxu0 0.0
        %2118 = vmatpush.msra.mxu0 0.0
        %2119 = vmatpush.msra.mxu0 0.0
        %2120 = vmatpush.msra.mxu0 0.0
        %2121 = vmatpush.msra.mxu0 0.0
        %2122 = vmatpush.msra.mxu0 0.0
        %2123 = vmatpush.msra.mxu0 0.0
        %2124 = vmatpush.msra.mxu0 0.0
        %2125 = vmatpush.msra.mxu0 0.0
        %2126 = vmatpush.msra.mxu0 0.0
        %2127 = vmatpush.msra.mxu0 0.0
        %2128 = vmatpush.msra.mxu0 %v231
        %2129 = vmatpush.msra.mxu0 %v230
        %2130 = vmatmul.f32.gmra.mxu0 %v2112
        %v2131 = vpop.f32.mrf.mxu0
        %v2132 = vadd.f32 0.0, %v2131
        %2133 = vdwg.mxu0
        %v2135 = vsel %vm344, %v2107, 0
        %2137 = vmatpush.msra.mxu0 0.0
        %2138 = vmatpush.msra.mxu0 0.0
        %2139 = vmatpush.msra.mxu0 0.0
        %2140 = vmatpush.msra.mxu0 0.0
        %2141 = vmatpush.msra.mxu0 0.0
        %2142 = vmatpush.msra.mxu0 0.0
        %2143 = vmatpush.msra.mxu0 0.0
        %2144 = vmatpush.msra.mxu0 0.0
        %2145 = vmatpush.msra.mxu0 0.0
        %2146 = vmatpush.msra.mxu0 0.0
        %2147 = vmatpush.msra.mxu0 0.0
        %2148 = vmatpush.msra.mxu0 0.0
        %2149 = vmatpush.msra.mxu0 0.0
        %2150 = vmatpush.msra.mxu0 0.0
        %2151 = vmatpush.msra.mxu0 %v223
        %2152 = vmatpush.msra.mxu0 %v222
        %2153 = vmatmul.f32.gmra.mxu0 %v2135
        %v2154 = vpop.f32.mrf.mxu0
        %v2155 = vadd.f32 %v2132, %v2154
        %2156 = vdwg.mxu0
        %v2157 = vadd.f32 %v2155, %v394
        %v2159 = vrot.slane %v2157, 1
        %v2160 = vrot.slane %v2157, 2
        %v2161 = vrot.slane %v2157, 3
        %v2162 = vrot.slane %v2157, 4
        %v2163 = vrot.slane %v2157, 5
        %v2164 = vrot.slane %v2157, 6
        %v2165 = vrot.slane %v2157, 7
        %2173 = vst.msk [vmem:[%s208 + $0x14] sm:$0x1] %vm412, %v2157
        %2174 = vst.msk [vmem:[%s208 + $0x34] sm:$0x1] %vm412, %v2159
        %2175 = vst.msk [vmem:[%s208 + $0x54] sm:$0x1] %vm412, %v2160
        %2176 = vst.msk [vmem:[%s208 + $0x74] sm:$0x1] %vm412, %v2161
        %2177 = vst.msk [vmem:[%s208 + $0x94] sm:$0x1] %vm412, %v2162
        %2178 = vst.msk [vmem:[%s208 + $0xb4] sm:$0x1] %vm412, %v2163
        %2179 = vst.msk [vmem:[%s208 + $0xd4] sm:$0x1] %vm412, %v2164
        %2180 = vst.msk [vmem:[%s208 + $0xf4] sm:$0x1] %vm412, %v2165
        %v2182 = vsel %vm344, %v2110, 0
        %2184 = vmatpush.msra.mxu0 0.0
        %2185 = vmatpush.msra.mxu0 0.0
        %2186 = vmatpush.msra.mxu0 0.0
        %2187 = vmatpush.msra.mxu0 0.0
        %2188 = vmatpush.msra.mxu0 0.0
        %2189 = vmatpush.msra.mxu0 0.0
        %2190 = vmatpush.msra.mxu0 0.0
        %2191 = vmatpush.msra.mxu0 0.0
        %2192 = vmatpush.msra.mxu0 0.0
        %2193 = vmatpush.msra.mxu0 0.0
        %2194 = vmatpush.msra.mxu0 0.0
        %2195 = vmatpush.msra.mxu0 0.0
        %2196 = vmatpush.msra.mxu0 0.0
        %2197 = vmatpush.msra.mxu0 0.0
        %2198 = vmatpush.msra.mxu0 %v231
        %2199 = vmatpush.msra.mxu0 %v230
        %2200 = vmatmul.f32.gmra.mxu0 %v2182
        %v2201 = vpop.f32.mrf.mxu0
        %v2202 = vadd.f32 0.0, %v2201
        %2203 = vdwg.mxu0
        %v2205 = vsel %vm344, %v2109, 0
        %2207 = vmatpush.msra.mxu0 0.0
        %2208 = vmatpush.msra.mxu0 0.0
        %2209 = vmatpush.msra.mxu0 0.0
        %2210 = vmatpush.msra.mxu0 0.0
        %2211 = vmatpush.msra.mxu0 0.0
        %2212 = vmatpush.msra.mxu0 0.0
        %2213 = vmatpush.msra.mxu0 0.0
        %2214 = vmatpush.msra.mxu0 0.0
        %2215 = vmatpush.msra.mxu0 0.0
        %2216 = vmatpush.msra.mxu0 0.0
        %2217 = vmatpush.msra.mxu0 0.0
        %2218 = vmatpush.msra.mxu0 0.0
        %2219 = vmatpush.msra.mxu0 0.0
        %2220 = vmatpush.msra.mxu0 0.0
        %2221 = vmatpush.msra.mxu0 %v223
        %2222 = vmatpush.msra.mxu0 %v222
        %2223 = vmatmul.f32.gmra.mxu0 %v2205
        %v2224 = vpop.f32.mrf.mxu0
        %v2225 = vadd.f32 %v2202, %v2224
        %2226 = vdwg.mxu0
        %v2227 = vadd.f32 %v2225, %v394
        %v2229 = vrot.slane %v2227, 1
        %v2230 = vrot.slane %v2227, 2
        %v2231 = vrot.slane %v2227, 3
        %v2232 = vrot.slane %v2227, 4
        %v2233 = vrot.slane %v2227, 5
        %v2234 = vrot.slane %v2227, 6
        %v2235 = vrot.slane %v2227, 7
        %2243 = vst.msk [vmem:[%s208 + $0x15] sm:$0x1] %vm412, %v2227
        %2244 = vst.msk [vmem:[%s208 + $0x35] sm:$0x1] %vm412, %v2229
        %2245 = vst.msk [vmem:[%s208 + $0x55] sm:$0x1] %vm412, %v2230
        %2246 = vst.msk [vmem:[%s208 + $0x75] sm:$0x1] %vm412, %v2231
        %2247 = vst.msk [vmem:[%s208 + $0x95] sm:$0x1] %vm412, %v2232
        %2248 = vst.msk [vmem:[%s208 + $0xb5] sm:$0x1] %vm412, %v2233
        %2249 = vst.msk [vmem:[%s208 + $0xd5] sm:$0x1] %vm412, %v2234
        %2250 = vst.msk [vmem:[%s208 + $0xf5] sm:$0x1] %vm412, %v2235
        %v2251 = vld [vmem:[%s185 + $0xb] sm:$0x1]
        %v2252 = vperm.slane %v2251, 0
        %v2253 = vmul.f32 %v240, %v2252
        %v2254 = vmul.f32 %v245, %v2252
        %v2255 = vmul.f32 %v250, %v2252
        %v2256 = vmul.f32 %v255, %v2252
        %v2257 = vld [vmem:[%s311 + $0xb] sm:$0x1]
        %v2258 = vperm.slane %v2257, 0
        %v2259 = vmul.f32 %v259, %v2258
        %v2260 = vmul.f32 %v263, %v2258
        %v2261 = vmul.f32 %v267, %v2258
        %v2262 = vmul.f32 %v271, %v2258
        %v2263 = vadd.f32 %v2253, %v2259
        %v2264 = vadd.f32 %v2254, %v2260
        %v2265 = vadd.f32 %v2255, %v2261
        %v2266 = vadd.f32 %v2256, %v2262
        %v2267 = vld [vmem:[%s322 + $0xb] sm:$0x1]
        %v2268 = vperm.slane %v2267, 0
        %v2269 = vmul.f32 %v275, %v2268
        %v2270 = vmul.f32 %v279, %v2268
        %v2271 = vmul.f32 %v283, %v2268
        %v2272 = vmul.f32 %v287, %v2268
        %v2273 = vadd.f32 %v2263, %v2269
        %v2274 = vadd.f32 %v2264, %v2270
        %v2275 = vadd.f32 %v2265, %v2271
        %v2276 = vadd.f32 %v2266, %v2272
        %v2277 = vld [vmem:[%s333 + $0xb] sm:$0x1]
        %v2278 = vperm.slane %v2277, 0
        %v2279 = vmul.f32 %v291, %v2278
        %v2280 = vmul.f32 %v295, %v2278
        %v2281 = vmul.f32 %v299, %v2278
        %v2282 = vmul.f32 %v303, %v2278
        %v2283 = vadd.f32 %v2273, %v2279
        %v2284 = vadd.f32 %v2274, %v2280
        %v2285 = vadd.f32 %v2275, %v2281
        %v2286 = vadd.f32 %v2276, %v2282
        %v2288 = vsel %vm344, %v2284, 0
        %2290 = vmatpush.msra.mxu0 0.0
        %2291 = vmatpush.msra.mxu0 0.0
        %2292 = vmatpush.msra.mxu0 0.0
        %2293 = vmatpush.msra.mxu0 0.0
        %2294 = vmatpush.msra.mxu0 0.0
        %2295 = vmatpush.msra.mxu0 0.0
        %2296 = vmatpush.msra.mxu0 0.0
        %2297 = vmatpush.msra.mxu0 0.0
        %2298 = vmatpush.msra.mxu0 0.0
        %2299 = vmatpush.msra.mxu0 0.0
        %2300 = vmatpush.msra.mxu0 0.0
        %2301 = vmatpush.msra.mxu0 0.0
        %2302 = vmatpush.msra.mxu0 0.0
        %2303 = vmatpush.msra.mxu0 0.0
        %2304 = vmatpush.msra.mxu0 %v231
        %2305 = vmatpush.msra.mxu0 %v230
        %2306 = vmatmul.f32.gmra.mxu0 %v2288
        %v2307 = vpop.f32.mrf.mxu0
        %v2308 = vadd.f32 0.0, %v2307
        %2309 = vdwg.mxu0
        %v2311 = vsel %vm344, %v2283, 0
        %2313 = vmatpush.msra.mxu0 0.0
        %2314 = vmatpush.msra.mxu0 0.0
        %2315 = vmatpush.msra.mxu0 0.0
        %2316 = vmatpush.msra.mxu0 0.0
        %2317 = vmatpush.msra.mxu0 0.0
        %2318 = vmatpush.msra.mxu0 0.0
        %2319 = vmatpush.msra.mxu0 0.0
        %2320 = vmatpush.msra.mxu0 0.0
        %2321 = vmatpush.msra.mxu0 0.0
        %2322 = vmatpush.msra.mxu0 0.0
        %2323 = vmatpush.msra.mxu0 0.0
        %2324 = vmatpush.msra.mxu0 0.0
        %2325 = vmatpush.msra.mxu0 0.0
        %2326 = vmatpush.msra.mxu0 0.0
        %2327 = vmatpush.msra.mxu0 %v223
        %2328 = vmatpush.msra.mxu0 %v222
        %2329 = vmatmul.f32.gmra.mxu0 %v2311
        %v2330 = vpop.f32.mrf.mxu0
        %v2331 = vadd.f32 %v2308, %v2330
        %2332 = vdwg.mxu0
        %v2333 = vadd.f32 %v2331, %v394
        %v2335 = vrot.slane %v2333, 1
        %v2336 = vrot.slane %v2333, 2
        %v2337 = vrot.slane %v2333, 3
        %v2338 = vrot.slane %v2333, 4
        %v2339 = vrot.slane %v2333, 5
        %v2340 = vrot.slane %v2333, 6
        %v2341 = vrot.slane %v2333, 7
        %2349 = vst.msk [vmem:[%s208 + $0x16] sm:$0x1] %vm412, %v2333
        %2350 = vst.msk [vmem:[%s208 + $0x36] sm:$0x1] %vm412, %v2335
        %2351 = vst.msk [vmem:[%s208 + $0x56] sm:$0x1] %vm412, %v2336
        %2352 = vst.msk [vmem:[%s208 + $0x76] sm:$0x1] %vm412, %v2337
        %2353 = vst.msk [vmem:[%s208 + $0x96] sm:$0x1] %vm412, %v2338
        %2354 = vst.msk [vmem:[%s208 + $0xb6] sm:$0x1] %vm412, %v2339
        %2355 = vst.msk [vmem:[%s208 + $0xd6] sm:$0x1] %vm412, %v2340
        %2356 = vst.msk [vmem:[%s208 + $0xf6] sm:$0x1] %vm412, %v2341
        %v2358 = vsel %vm344, %v2286, 0
        %2360 = vmatpush.msra.mxu0 0.0
        %2361 = vmatpush.msra.mxu0 0.0
        %2362 = vmatpush.msra.mxu0 0.0
        %2363 = vmatpush.msra.mxu0 0.0
        %2364 = vmatpush.msra.mxu0 0.0
        %2365 = vmatpush.msra.mxu0 0.0
        %2366 = vmatpush.msra.mxu0 0.0
        %2367 = vmatpush.msra.mxu0 0.0
        %2368 = vmatpush.msra.mxu0 0.0
        %2369 = vmatpush.msra.mxu0 0.0
        %2370 = vmatpush.msra.mxu0 0.0
        %2371 = vmatpush.msra.mxu0 0.0
        %2372 = vmatpush.msra.mxu0 0.0
        %2373 = vmatpush.msra.mxu0 0.0
        %2374 = vmatpush.msra.mxu0 %v231
        %2375 = vmatpush.msra.mxu0 %v230
        %2376 = vmatmul.f32.gmra.mxu0 %v2358
        %v2377 = vpop.f32.mrf.mxu0
        %v2378 = vadd.f32 0.0, %v2377
        %2379 = vdwg.mxu0
        %v2381 = vsel %vm344, %v2285, 0
        %2383 = vmatpush.msra.mxu0 0.0
        %2384 = vmatpush.msra.mxu0 0.0
        %2385 = vmatpush.msra.mxu0 0.0
        %2386 = vmatpush.msra.mxu0 0.0
        %2387 = vmatpush.msra.mxu0 0.0
        %2388 = vmatpush.msra.mxu0 0.0
        %2389 = vmatpush.msra.mxu0 0.0
        %2390 = vmatpush.msra.mxu0 0.0
        %2391 = vmatpush.msra.mxu0 0.0
        %2392 = vmatpush.msra.mxu0 0.0
        %2393 = vmatpush.msra.mxu0 0.0
        %2394 = vmatpush.msra.mxu0 0.0
        %2395 = vmatpush.msra.mxu0 0.0
        %2396 = vmatpush.msra.mxu0 0.0
        %2397 = vmatpush.msra.mxu0 %v223
        %2398 = vmatpush.msra.mxu0 %v222
        %2399 = vmatmul.f32.gmra.mxu0 %v2381
        %v2400 = vpop.f32.mrf.mxu0
        %v2401 = vadd.f32 %v2378, %v2400
        %2402 = vdwg.mxu0
        %v2403 = vadd.f32 %v2401, %v394
        %v2405 = vrot.slane %v2403, 1
        %v2406 = vrot.slane %v2403, 2
        %v2407 = vrot.slane %v2403, 3
        %v2408 = vrot.slane %v2403, 4
        %v2409 = vrot.slane %v2403, 5
        %v2410 = vrot.slane %v2403, 6
        %v2411 = vrot.slane %v2403, 7
        %2419 = vst.msk [vmem:[%s208 + $0x17] sm:$0x1] %vm412, %v2403
        %2420 = vst.msk [vmem:[%s208 + $0x37] sm:$0x1] %vm412, %v2405
        %2421 = vst.msk [vmem:[%s208 + $0x57] sm:$0x1] %vm412, %v2406
        %2422 = vst.msk [vmem:[%s208 + $0x77] sm:$0x1] %vm412, %v2407
        %2423 = vst.msk [vmem:[%s208 + $0x97] sm:$0x1] %vm412, %v2408
        %2424 = vst.msk [vmem:[%s208 + $0xb7] sm:$0x1] %vm412, %v2409
        %2425 = vst.msk [vmem:[%s208 + $0xd7] sm:$0x1] %vm412, %v2410
        %2426 = vst.msk [vmem:[%s208 + $0xf7] sm:$0x1] %vm412, %v2411
        %v2427 = vld [vmem:[%s185 + $0xc] sm:$0x1]
        %v2428 = vperm.slane %v2427, 0
        %v2429 = vmul.f32 %v240, %v2428
        %v2430 = vmul.f32 %v245, %v2428
        %v2431 = vmul.f32 %v250, %v2428
        %v2432 = vmul.f32 %v255, %v2428
        %v2433 = vld [vmem:[%s311 + $0xc] sm:$0x1]
        %v2434 = vperm.slane %v2433, 0
        %v2435 = vmul.f32 %v259, %v2434
        %v2436 = vmul.f32 %v263, %v2434
        %v2437 = vmul.f32 %v267, %v2434
        %v2438 = vmul.f32 %v271, %v2434
        %v2439 = vadd.f32 %v2429, %v2435
        %v2440 = vadd.f32 %v2430, %v2436
        %v2441 = vadd.f32 %v2431, %v2437
        %v2442 = vadd.f32 %v2432, %v2438
        %v2443 = vld [vmem:[%s322 + $0xc] sm:$0x1]
        %v2444 = vperm.slane %v2443, 0
        %v2445 = vmul.f32 %v275, %v2444
        %v2446 = vmul.f32 %v279, %v2444
        %v2447 = vmul.f32 %v283, %v2444
        %v2448 = vmul.f32 %v287, %v2444
        %v2449 = vadd.f32 %v2439, %v2445
        %v2450 = vadd.f32 %v2440, %v2446
        %v2451 = vadd.f32 %v2441, %v2447
        %v2452 = vadd.f32 %v2442, %v2448
        %v2453 = vld [vmem:[%s333 + $0xc] sm:$0x1]
        %v2454 = vperm.slane %v2453, 0
        %v2455 = vmul.f32 %v291, %v2454
        %v2456 = vmul.f32 %v295, %v2454
        %v2457 = vmul.f32 %v299, %v2454
        %v2458 = vmul.f32 %v303, %v2454
        %v2459 = vadd.f32 %v2449, %v2455
        %v2460 = vadd.f32 %v2450, %v2456
        %v2461 = vadd.f32 %v2451, %v2457
        %v2462 = vadd.f32 %v2452, %v2458
        %v2464 = vsel %vm344, %v2460, 0
        %2466 = vmatpush.msra.mxu0 0.0
        %2467 = vmatpush.msra.mxu0 0.0
        %2468 = vmatpush.msra.mxu0 0.0
        %2469 = vmatpush.msra.mxu0 0.0
        %2470 = vmatpush.msra.mxu0 0.0
        %2471 = vmatpush.msra.mxu0 0.0
        %2472 = vmatpush.msra.mxu0 0.0
        %2473 = vmatpush.msra.mxu0 0.0
        %2474 = vmatpush.msra.mxu0 0.0
        %2475 = vmatpush.msra.mxu0 0.0
        %2476 = vmatpush.msra.mxu0 0.0
        %2477 = vmatpush.msra.mxu0 0.0
        %2478 = vmatpush.msra.mxu0 0.0
        %2479 = vmatpush.msra.mxu0 0.0
        %2480 = vmatpush.msra.mxu0 %v231
        %2481 = vmatpush.msra.mxu0 %v230
        %2482 = vmatmul.f32.gmra.mxu0 %v2464
        %v2483 = vpop.f32.mrf.mxu0
        %v2484 = vadd.f32 0.0, %v2483
        %2485 = vdwg.mxu0
        %v2487 = vsel %vm344, %v2459, 0
        %2489 = vmatpush.msra.mxu0 0.0
        %2490 = vmatpush.msra.mxu0 0.0
        %2491 = vmatpush.msra.mxu0 0.0
        %2492 = vmatpush.msra.mxu0 0.0
        %2493 = vmatpush.msra.mxu0 0.0
        %2494 = vmatpush.msra.mxu0 0.0
        %2495 = vmatpush.msra.mxu0 0.0
        %2496 = vmatpush.msra.mxu0 0.0
        %2497 = vmatpush.msra.mxu0 0.0
        %2498 = vmatpush.msra.mxu0 0.0
        %2499 = vmatpush.msra.mxu0 0.0
        %2500 = vmatpush.msra.mxu0 0.0
        %2501 = vmatpush.msra.mxu0 0.0
        %2502 = vmatpush.msra.mxu0 0.0
        %2503 = vmatpush.msra.mxu0 %v223
        %2504 = vmatpush.msra.mxu0 %v222
        %2505 = vmatmul.f32.gmra.mxu0 %v2487
        %v2506 = vpop.f32.mrf.mxu0
        %v2507 = vadd.f32 %v2484, %v2506
        %2508 = vdwg.mxu0
        %v2509 = vadd.f32 %v2507, %v394
        %v2511 = vrot.slane %v2509, 1
        %v2512 = vrot.slane %v2509, 2
        %v2513 = vrot.slane %v2509, 3
        %v2514 = vrot.slane %v2509, 4
        %v2515 = vrot.slane %v2509, 5
        %v2516 = vrot.slane %v2509, 6
        %v2517 = vrot.slane %v2509, 7
        %2525 = vst.msk [vmem:[%s208 + $0x18] sm:$0x1] %vm412, %v2509
        %2526 = vst.msk [vmem:[%s208 + $0x38] sm:$0x1] %vm412, %v2511
        %2527 = vst.msk [vmem:[%s208 + $0x58] sm:$0x1] %vm412, %v2512
        %2528 = vst.msk [vmem:[%s208 + $0x78] sm:$0x1] %vm412, %v2513
        %2529 = vst.msk [vmem:[%s208 + $0x98] sm:$0x1] %vm412, %v2514
        %2530 = vst.msk [vmem:[%s208 + $0xb8] sm:$0x1] %vm412, %v2515
        %2531 = vst.msk [vmem:[%s208 + $0xd8] sm:$0x1] %vm412, %v2516
        %2532 = vst.msk [vmem:[%s208 + $0xf8] sm:$0x1] %vm412, %v2517
        %v2534 = vsel %vm344, %v2462, 0
        %2536 = vmatpush.msra.mxu0 0.0
        %2537 = vmatpush.msra.mxu0 0.0
        %2538 = vmatpush.msra.mxu0 0.0
        %2539 = vmatpush.msra.mxu0 0.0
        %2540 = vmatpush.msra.mxu0 0.0
        %2541 = vmatpush.msra.mxu0 0.0
        %2542 = vmatpush.msra.mxu0 0.0
        %2543 = vmatpush.msra.mxu0 0.0
        %2544 = vmatpush.msra.mxu0 0.0
        %2545 = vmatpush.msra.mxu0 0.0
        %2546 = vmatpush.msra.mxu0 0.0
        %2547 = vmatpush.msra.mxu0 0.0
        %2548 = vmatpush.msra.mxu0 0.0
        %2549 = vmatpush.msra.mxu0 0.0
        %2550 = vmatpush.msra.mxu0 %v231
        %2551 = vmatpush.msra.mxu0 %v230
        %2552 = vmatmul.f32.gmra.mxu0 %v2534
        %v2553 = vpop.f32.mrf.mxu0
        %v2554 = vadd.f32 0.0, %v2553
        %2555 = vdwg.mxu0
        %v2557 = vsel %vm344, %v2461, 0
        %2559 = vmatpush.msra.mxu0 0.0
        %2560 = vmatpush.msra.mxu0 0.0
        %2561 = vmatpush.msra.mxu0 0.0
        %2562 = vmatpush.msra.mxu0 0.0
        %2563 = vmatpush.msra.mxu0 0.0
        %2564 = vmatpush.msra.mxu0 0.0
        %2565 = vmatpush.msra.mxu0 0.0
        %2566 = vmatpush.msra.mxu0 0.0
        %2567 = vmatpush.msra.mxu0 0.0
        %2568 = vmatpush.msra.mxu0 0.0
        %2569 = vmatpush.msra.mxu0 0.0
        %2570 = vmatpush.msra.mxu0 0.0
        %2571 = vmatpush.msra.mxu0 0.0
        %2572 = vmatpush.msra.mxu0 0.0
        %2573 = vmatpush.msra.mxu0 %v223
        %2574 = vmatpush.msra.mxu0 %v222
        %2575 = vmatmul.f32.gmra.mxu0 %v2557
        %v2576 = vpop.f32.mrf.mxu0
        %v2577 = vadd.f32 %v2554, %v2576
        %2578 = vdwg.mxu0
        %v2579 = vadd.f32 %v2577, %v394
        %v2581 = vrot.slane %v2579, 1
        %v2582 = vrot.slane %v2579, 2
        %v2583 = vrot.slane %v2579, 3
        %v2584 = vrot.slane %v2579, 4
        %v2585 = vrot.slane %v2579, 5
        %v2586 = vrot.slane %v2579, 6
        %v2587 = vrot.slane %v2579, 7
        %2595 = vst.msk [vmem:[%s208 + $0x19] sm:$0x1] %vm412, %v2579
        %2596 = vst.msk [vmem:[%s208 + $0x39] sm:$0x1] %vm412, %v2581
        %2597 = vst.msk [vmem:[%s208 + $0x59] sm:$0x1] %vm412, %v2582
        %2598 = vst.msk [vmem:[%s208 + $0x79] sm:$0x1] %vm412, %v2583
        %2599 = vst.msk [vmem:[%s208 + $0x99] sm:$0x1] %vm412, %v2584
        %2600 = vst.msk [vmem:[%s208 + $0xb9] sm:$0x1] %vm412, %v2585
        %2601 = vst.msk [vmem:[%s208 + $0xd9] sm:$0x1] %vm412, %v2586
        %2602 = vst.msk [vmem:[%s208 + $0xf9] sm:$0x1] %vm412, %v2587
        %v2603 = vld [vmem:[%s185 + $0xd] sm:$0x1]
        %v2604 = vperm.slane %v2603, 0
        %v2605 = vmul.f32 %v240, %v2604
        %v2606 = vmul.f32 %v245, %v2604
        %v2607 = vmul.f32 %v250, %v2604
        %v2608 = vmul.f32 %v255, %v2604
        %v2609 = vld [vmem:[%s311 + $0xd] sm:$0x1]
        %v2610 = vperm.slane %v2609, 0
        %v2611 = vmul.f32 %v259, %v2610
        %v2612 = vmul.f32 %v263, %v2610
        %v2613 = vmul.f32 %v267, %v2610
        %v2614 = vmul.f32 %v271, %v2610
        %v2615 = vadd.f32 %v2605, %v2611
        %v2616 = vadd.f32 %v2606, %v2612
        %v2617 = vadd.f32 %v2607, %v2613
        %v2618 = vadd.f32 %v2608, %v2614
        %v2619 = vld [vmem:[%s322 + $0xd] sm:$0x1]
        %v2620 = vperm.slane %v2619, 0
        %v2621 = vmul.f32 %v275, %v2620
        %v2622 = vmul.f32 %v279, %v2620
        %v2623 = vmul.f32 %v283, %v2620
        %v2624 = vmul.f32 %v287, %v2620
        %v2625 = vadd.f32 %v2615, %v2621
        %v2626 = vadd.f32 %v2616, %v2622
        %v2627 = vadd.f32 %v2617, %v2623
        %v2628 = vadd.f32 %v2618, %v2624
        %v2629 = vld [vmem:[%s333 + $0xd] sm:$0x1]
        %v2630 = vperm.slane %v2629, 0
        %v2631 = vmul.f32 %v291, %v2630
        %v2632 = vmul.f32 %v295, %v2630
        %v2633 = vmul.f32 %v299, %v2630
        %v2634 = vmul.f32 %v303, %v2630
        %v2635 = vadd.f32 %v2625, %v2631
        %v2636 = vadd.f32 %v2626, %v2632
        %v2637 = vadd.f32 %v2627, %v2633
        %v2638 = vadd.f32 %v2628, %v2634
        %v2640 = vsel %vm344, %v2636, 0
        %2642 = vmatpush.msra.mxu0 0.0
        %2643 = vmatpush.msra.mxu0 0.0
        %2644 = vmatpush.msra.mxu0 0.0
        %2645 = vmatpush.msra.mxu0 0.0
        %2646 = vmatpush.msra.mxu0 0.0
        %2647 = vmatpush.msra.mxu0 0.0
        %2648 = vmatpush.msra.mxu0 0.0
        %2649 = vmatpush.msra.mxu0 0.0
        %2650 = vmatpush.msra.mxu0 0.0
        %2651 = vmatpush.msra.mxu0 0.0
        %2652 = vmatpush.msra.mxu0 0.0
        %2653 = vmatpush.msra.mxu0 0.0
        %2654 = vmatpush.msra.mxu0 0.0
        %2655 = vmatpush.msra.mxu0 0.0
        %2656 = vmatpush.msra.mxu0 %v231
        %2657 = vmatpush.msra.mxu0 %v230
        %2658 = vmatmul.f32.gmra.mxu0 %v2640
        %v2659 = vpop.f32.mrf.mxu0
        %v2660 = vadd.f32 0.0, %v2659
        %2661 = vdwg.mxu0
        %v2663 = vsel %vm344, %v2635, 0
        %2665 = vmatpush.msra.mxu0 0.0
        %2666 = vmatpush.msra.mxu0 0.0
        %2667 = vmatpush.msra.mxu0 0.0
        %2668 = vmatpush.msra.mxu0 0.0
        %2669 = vmatpush.msra.mxu0 0.0
        %2670 = vmatpush.msra.mxu0 0.0
        %2671 = vmatpush.msra.mxu0 0.0
        %2672 = vmatpush.msra.mxu0 0.0
        %2673 = vmatpush.msra.mxu0 0.0
        %2674 = vmatpush.msra.mxu0 0.0
        %2675 = vmatpush.msra.mxu0 0.0
        %2676 = vmatpush.msra.mxu0 0.0
        %2677 = vmatpush.msra.mxu0 0.0
        %2678 = vmatpush.msra.mxu0 0.0
        %2679 = vmatpush.msra.mxu0 %v223
        %2680 = vmatpush.msra.mxu0 %v222
        %2681 = vmatmul.f32.gmra.mxu0 %v2663
        %v2682 = vpop.f32.mrf.mxu0
        %v2683 = vadd.f32 %v2660, %v2682
        %2684 = vdwg.mxu0
        %v2685 = vadd.f32 %v2683, %v394
        %v2687 = vrot.slane %v2685, 1
        %v2688 = vrot.slane %v2685, 2
        %v2689 = vrot.slane %v2685, 3
        %v2690 = vrot.slane %v2685, 4
        %v2691 = vrot.slane %v2685, 5
        %v2692 = vrot.slane %v2685, 6
        %v2693 = vrot.slane %v2685, 7
        %2701 = vst.msk [vmem:[%s208 + $0x1a] sm:$0x1] %vm412, %v2685
        %2702 = vst.msk [vmem:[%s208 + $0x3a] sm:$0x1] %vm412, %v2687
        %2703 = vst.msk [vmem:[%s208 + $0x5a] sm:$0x1] %vm412, %v2688
        %2704 = vst.msk [vmem:[%s208 + $0x7a] sm:$0x1] %vm412, %v2689
        %2705 = vst.msk [vmem:[%s208 + $0x9a] sm:$0x1] %vm412, %v2690
        %2706 = vst.msk [vmem:[%s208 + $0xba] sm:$0x1] %vm412, %v2691
        %2707 = vst.msk [vmem:[%s208 + $0xda] sm:$0x1] %vm412, %v2692
        %2708 = vst.msk [vmem:[%s208 + $0xfa] sm:$0x1] %vm412, %v2693
        %v2710 = vsel %vm344, %v2638, 0
        %2712 = vmatpush.msra.mxu0 0.0
        %2713 = vmatpush.msra.mxu0 0.0
        %2714 = vmatpush.msra.mxu0 0.0
        %2715 = vmatpush.msra.mxu0 0.0
        %2716 = vmatpush.msra.mxu0 0.0
        %2717 = vmatpush.msra.mxu0 0.0
        %2718 = vmatpush.msra.mxu0 0.0
        %2719 = vmatpush.msra.mxu0 0.0
        %2720 = vmatpush.msra.mxu0 0.0
        %2721 = vmatpush.msra.mxu0 0.0
        %2722 = vmatpush.msra.mxu0 0.0
        %2723 = vmatpush.msra.mxu0 0.0
        %2724 = vmatpush.msra.mxu0 0.0
        %2725 = vmatpush.msra.mxu0 0.0
        %2726 = vmatpush.msra.mxu0 %v231
        %2727 = vmatpush.msra.mxu0 %v230
        %2728 = vmatmul.f32.gmra.mxu0 %v2710
        %v2729 = vpop.f32.mrf.mxu0
        %v2730 = vadd.f32 0.0, %v2729
        %2731 = vdwg.mxu0
        %v2733 = vsel %vm344, %v2637, 0
        %2735 = vmatpush.msra.mxu0 0.0
        %2736 = vmatpush.msra.mxu0 0.0
        %2737 = vmatpush.msra.mxu0 0.0
        %2738 = vmatpush.msra.mxu0 0.0
        %2739 = vmatpush.msra.mxu0 0.0
        %2740 = vmatpush.msra.mxu0 0.0
        %2741 = vmatpush.msra.mxu0 0.0
        %2742 = vmatpush.msra.mxu0 0.0
        %2743 = vmatpush.msra.mxu0 0.0
        %2744 = vmatpush.msra.mxu0 0.0
        %2745 = vmatpush.msra.mxu0 0.0
        %2746 = vmatpush.msra.mxu0 0.0
        %2747 = vmatpush.msra.mxu0 0.0
        %2748 = vmatpush.msra.mxu0 0.0
        %2749 = vmatpush.msra.mxu0 %v223
        %2750 = vmatpush.msra.mxu0 %v222
        %2751 = vmatmul.f32.gmra.mxu0 %v2733
        %v2752 = vpop.f32.mrf.mxu0
        %v2753 = vadd.f32 %v2730, %v2752
        %2754 = vdwg.mxu0
        %v2755 = vadd.f32 %v2753, %v394
        %v2757 = vrot.slane %v2755, 1
        %v2758 = vrot.slane %v2755, 2
        %v2759 = vrot.slane %v2755, 3
        %v2760 = vrot.slane %v2755, 4
        %v2761 = vrot.slane %v2755, 5
        %v2762 = vrot.slane %v2755, 6
        %v2763 = vrot.slane %v2755, 7
        %2771 = vst.msk [vmem:[%s208 + $0x1b] sm:$0x1] %vm412, %v2755
        %2772 = vst.msk [vmem:[%s208 + $0x3b] sm:$0x1] %vm412, %v2757
        %2773 = vst.msk [vmem:[%s208 + $0x5b] sm:$0x1] %vm412, %v2758
        %2774 = vst.msk [vmem:[%s208 + $0x7b] sm:$0x1] %vm412, %v2759
        %2775 = vst.msk [vmem:[%s208 + $0x9b] sm:$0x1] %vm412, %v2760
        %2776 = vst.msk [vmem:[%s208 + $0xbb] sm:$0x1] %vm412, %v2761
        %2777 = vst.msk [vmem:[%s208 + $0xdb] sm:$0x1] %vm412, %v2762
        %2778 = vst.msk [vmem:[%s208 + $0xfb] sm:$0x1] %vm412, %v2763
        %v2779 = vld [vmem:[%s185 + $0xe] sm:$0x1]
        %v2780 = vperm.slane %v2779, 0
        %v2781 = vmul.f32 %v240, %v2780
        %v2782 = vmul.f32 %v245, %v2780
        %v2783 = vmul.f32 %v250, %v2780
        %v2784 = vmul.f32 %v255, %v2780
        %v2785 = vld [vmem:[%s311 + $0xe] sm:$0x1]
        %v2786 = vperm.slane %v2785, 0
        %v2787 = vmul.f32 %v259, %v2786
        %v2788 = vmul.f32 %v263, %v2786
        %v2789 = vmul.f32 %v267, %v2786
        %v2790 = vmul.f32 %v271, %v2786
        %v2791 = vadd.f32 %v2781, %v2787
        %v2792 = vadd.f32 %v2782, %v2788
        %v2793 = vadd.f32 %v2783, %v2789
        %v2794 = vadd.f32 %v2784, %v2790
        %v2795 = vld [vmem:[%s322 + $0xe] sm:$0x1]
        %v2796 = vperm.slane %v2795, 0
        %v2797 = vmul.f32 %v275, %v2796
        %v2798 = vmul.f32 %v279, %v2796
        %v2799 = vmul.f32 %v283, %v2796
        %v2800 = vmul.f32 %v287, %v2796
        %v2801 = vadd.f32 %v2791, %v2797
        %v2802 = vadd.f32 %v2792, %v2798
        %v2803 = vadd.f32 %v2793, %v2799
        %v2804 = vadd.f32 %v2794, %v2800
        %v2805 = vld [vmem:[%s333 + $0xe] sm:$0x1]
        %v2806 = vperm.slane %v2805, 0
        %v2807 = vmul.f32 %v291, %v2806
        %v2808 = vmul.f32 %v295, %v2806
        %v2809 = vmul.f32 %v299, %v2806
        %v2810 = vmul.f32 %v303, %v2806
        %v2811 = vadd.f32 %v2801, %v2807
        %v2812 = vadd.f32 %v2802, %v2808
        %v2813 = vadd.f32 %v2803, %v2809
        %v2814 = vadd.f32 %v2804, %v2810
        %v2816 = vsel %vm344, %v2812, 0
        %2818 = vmatpush.msra.mxu0 0.0
        %2819 = vmatpush.msra.mxu0 0.0
        %2820 = vmatpush.msra.mxu0 0.0
        %2821 = vmatpush.msra.mxu0 0.0
        %2822 = vmatpush.msra.mxu0 0.0
        %2823 = vmatpush.msra.mxu0 0.0
        %2824 = vmatpush.msra.mxu0 0.0
        %2825 = vmatpush.msra.mxu0 0.0
        %2826 = vmatpush.msra.mxu0 0.0
        %2827 = vmatpush.msra.mxu0 0.0
        %2828 = vmatpush.msra.mxu0 0.0
        %2829 = vmatpush.msra.mxu0 0.0
        %2830 = vmatpush.msra.mxu0 0.0
        %2831 = vmatpush.msra.mxu0 0.0
        %2832 = vmatpush.msra.mxu0 %v231
        %2833 = vmatpush.msra.mxu0 %v230
        %2834 = vmatmul.f32.gmra.mxu0 %v2816
        %v2835 = vpop.f32.mrf.mxu0
        %v2836 = vadd.f32 0.0, %v2835
        %2837 = vdwg.mxu0
        %v2839 = vsel %vm344, %v2811, 0
        %2841 = vmatpush.msra.mxu0 0.0
        %2842 = vmatpush.msra.mxu0 0.0
        %2843 = vmatpush.msra.mxu0 0.0
        %2844 = vmatpush.msra.mxu0 0.0
        %2845 = vmatpush.msra.mxu0 0.0
        %2846 = vmatpush.msra.mxu0 0.0
        %2847 = vmatpush.msra.mxu0 0.0
        %2848 = vmatpush.msra.mxu0 0.0
        %2849 = vmatpush.msra.mxu0 0.0
        %2850 = vmatpush.msra.mxu0 0.0
        %2851 = vmatpush.msra.mxu0 0.0
        %2852 = vmatpush.msra.mxu0 0.0
        %2853 = vmatpush.msra.mxu0 0.0
        %2854 = vmatpush.msra.mxu0 0.0
        %2855 = vmatpush.msra.mxu0 %v223
        %2856 = vmatpush.msra.mxu0 %v222
        %2857 = vmatmul.f32.gmra.mxu0 %v2839
        %v2858 = vpop.f32.mrf.mxu0
        %v2859 = vadd.f32 %v2836, %v2858
        %2860 = vdwg.mxu0
        %v2861 = vadd.f32 %v2859, %v394
        %v2863 = vrot.slane %v2861, 1
        %v2864 = vrot.slane %v2861, 2
        %v2865 = vrot.slane %v2861, 3
        %v2866 = vrot.slane %v2861, 4
        %v2867 = vrot.slane %v2861, 5
        %v2868 = vrot.slane %v2861, 6
        %v2869 = vrot.slane %v2861, 7
        %2877 = vst.msk [vmem:[%s208 + $0x1c] sm:$0x1] %vm412, %v2861
        %2878 = vst.msk [vmem:[%s208 + $0x3c] sm:$0x1] %vm412, %v2863
        %2879 = vst.msk [vmem:[%s208 + $0x5c] sm:$0x1] %vm412, %v2864
        %2880 = vst.msk [vmem:[%s208 + $0x7c] sm:$0x1] %vm412, %v2865
        %2881 = vst.msk [vmem:[%s208 + $0x9c] sm:$0x1] %vm412, %v2866
        %2882 = vst.msk [vmem:[%s208 + $0xbc] sm:$0x1] %vm412, %v2867
        %2883 = vst.msk [vmem:[%s208 + $0xdc] sm:$0x1] %vm412, %v2868
        %2884 = vst.msk [vmem:[%s208 + $0xfc] sm:$0x1] %vm412, %v2869
        %v2886 = vsel %vm344, %v2814, 0
        %2888 = vmatpush.msra.mxu0 0.0
        %2889 = vmatpush.msra.mxu0 0.0
        %2890 = vmatpush.msra.mxu0 0.0
        %2891 = vmatpush.msra.mxu0 0.0
        %2892 = vmatpush.msra.mxu0 0.0
        %2893 = vmatpush.msra.mxu0 0.0
        %2894 = vmatpush.msra.mxu0 0.0
        %2895 = vmatpush.msra.mxu0 0.0
        %2896 = vmatpush.msra.mxu0 0.0
        %2897 = vmatpush.msra.mxu0 0.0
        %2898 = vmatpush.msra.mxu0 0.0
        %2899 = vmatpush.msra.mxu0 0.0
        %2900 = vmatpush.msra.mxu0 0.0
        %2901 = vmatpush.msra.mxu0 0.0
        %2902 = vmatpush.msra.mxu0 %v231
        %2903 = vmatpush.msra.mxu0 %v230
        %2904 = vmatmul.f32.gmra.mxu0 %v2886
        %v2905 = vpop.f32.mrf.mxu0
        %v2906 = vadd.f32 0.0, %v2905
        %2907 = vdwg.mxu0
        %v2909 = vsel %vm344, %v2813, 0
        %2911 = vmatpush.msra.mxu0 0.0
        %2912 = vmatpush.msra.mxu0 0.0
        %2913 = vmatpush.msra.mxu0 0.0
        %2914 = vmatpush.msra.mxu0 0.0
        %2915 = vmatpush.msra.mxu0 0.0
        %2916 = vmatpush.msra.mxu0 0.0
        %2917 = vmatpush.msra.mxu0 0.0
        %2918 = vmatpush.msra.mxu0 0.0
        %2919 = vmatpush.msra.mxu0 0.0
        %2920 = vmatpush.msra.mxu0 0.0
        %2921 = vmatpush.msra.mxu0 0.0
        %2922 = vmatpush.msra.mxu0 0.0
        %2923 = vmatpush.msra.mxu0 0.0
        %2924 = vmatpush.msra.mxu0 0.0
        %2925 = vmatpush.msra.mxu0 %v223
        %2926 = vmatpush.msra.mxu0 %v222
        %2927 = vmatmul.f32.gmra.mxu0 %v2909
        %v2928 = vpop.f32.mrf.mxu0
        %v2929 = vadd.f32 %v2906, %v2928
        %2930 = vdwg.mxu0
        %v2931 = vadd.f32 %v2929, %v394
        %v2933 = vrot.slane %v2931, 1
        %v2934 = vrot.slane %v2931, 2
        %v2935 = vrot.slane %v2931, 3
        %v2936 = vrot.slane %v2931, 4
        %v2937 = vrot.slane %v2931, 5
        %v2938 = vrot.slane %v2931, 6
        %v2939 = vrot.slane %v2931, 7
        %2947 = vst.msk [vmem:[%s208 + $0x1d] sm:$0x1] %vm412, %v2931
        %2948 = vst.msk [vmem:[%s208 + $0x3d] sm:$0x1] %vm412, %v2933
        %2949 = vst.msk [vmem:[%s208 + $0x5d] sm:$0x1] %vm412, %v2934
        %2950 = vst.msk [vmem:[%s208 + $0x7d] sm:$0x1] %vm412, %v2935
        %2951 = vst.msk [vmem:[%s208 + $0x9d] sm:$0x1] %vm412, %v2936
        %2952 = vst.msk [vmem:[%s208 + $0xbd] sm:$0x1] %vm412, %v2937
        %2953 = vst.msk [vmem:[%s208 + $0xdd] sm:$0x1] %vm412, %v2938
        %2954 = vst.msk [vmem:[%s208 + $0xfd] sm:$0x1] %vm412, %v2939
        %v2955 = vld [vmem:[%s185 + $0xf] sm:$0x1]
        %v2956 = vperm.slane %v2955, 0
        %v2957 = vmul.f32 %v240, %v2956
        %v2958 = vmul.f32 %v245, %v2956
        %v2959 = vmul.f32 %v250, %v2956
        %v2960 = vmul.f32 %v255, %v2956
        %v2961 = vld [vmem:[%s311 + $0xf] sm:$0x1]
        %v2962 = vperm.slane %v2961, 0
        %v2963 = vmul.f32 %v259, %v2962
        %v2964 = vmul.f32 %v263, %v2962
        %v2965 = vmul.f32 %v267, %v2962
        %v2966 = vmul.f32 %v271, %v2962
        %v2967 = vadd.f32 %v2957, %v2963
        %v2968 = vadd.f32 %v2958, %v2964
        %v2969 = vadd.f32 %v2959, %v2965
        %v2970 = vadd.f32 %v2960, %v2966
        %v2971 = vld [vmem:[%s322 + $0xf] sm:$0x1]
        %v2972 = vperm.slane %v2971, 0
        %v2973 = vmul.f32 %v275, %v2972
        %v2974 = vmul.f32 %v279, %v2972
        %v2975 = vmul.f32 %v283, %v2972
        %v2976 = vmul.f32 %v287, %v2972
        %v2977 = vadd.f32 %v2967, %v2973
        %v2978 = vadd.f32 %v2968, %v2974
        %v2979 = vadd.f32 %v2969, %v2975
        %v2980 = vadd.f32 %v2970, %v2976
        %v2981 = vld [vmem:[%s333 + $0xf] sm:$0x1]
        %v2982 = vperm.slane %v2981, 0
        %v2983 = vmul.f32 %v291, %v2982
        %v2984 = vmul.f32 %v295, %v2982
        %v2985 = vmul.f32 %v299, %v2982
        %v2986 = vmul.f32 %v303, %v2982
        %v2987 = vadd.f32 %v2977, %v2983
        %v2988 = vadd.f32 %v2978, %v2984
        %v2989 = vadd.f32 %v2979, %v2985
        %v2990 = vadd.f32 %v2980, %v2986
        %v2992 = vsel %vm344, %v2988, 0
        %2994 = vmatpush.msra.mxu0 0.0
        %2995 = vmatpush.msra.mxu0 0.0
        %2996 = vmatpush.msra.mxu0 0.0
        %2997 = vmatpush.msra.mxu0 0.0
        %2998 = vmatpush.msra.mxu0 0.0
        %2999 = vmatpush.msra.mxu0 0.0
        %3000 = vmatpush.msra.mxu0 0.0
        %3001 = vmatpush.msra.mxu0 0.0
        %3002 = vmatpush.msra.mxu0 0.0
        %3003 = vmatpush.msra.mxu0 0.0
        %3004 = vmatpush.msra.mxu0 0.0
        %3005 = vmatpush.msra.mxu0 0.0
        %3006 = vmatpush.msra.mxu0 0.0
        %3007 = vmatpush.msra.mxu0 0.0
        %3008 = vmatpush.msra.mxu0 %v231
        %3009 = vmatpush.msra.mxu0 %v230
        %3010 = vmatmul.f32.gmra.mxu0 %v2992
        %v3011 = vpop.f32.mrf.mxu0
        %v3012 = vadd.f32 0.0, %v3011
        %3013 = vdwg.mxu0
        %v3015 = vsel %vm344, %v2987, 0
        %3017 = vmatpush.msra.mxu0 0.0
        %3018 = vmatpush.msra.mxu0 0.0
        %3019 = vmatpush.msra.mxu0 0.0
        %3020 = vmatpush.msra.mxu0 0.0
        %3021 = vmatpush.msra.mxu0 0.0
        %3022 = vmatpush.msra.mxu0 0.0
        %3023 = vmatpush.msra.mxu0 0.0
        %3024 = vmatpush.msra.mxu0 0.0
        %3025 = vmatpush.msra.mxu0 0.0
        %3026 = vmatpush.msra.mxu0 0.0
        %3027 = vmatpush.msra.mxu0 0.0
        %3028 = vmatpush.msra.mxu0 0.0
        %3029 = vmatpush.msra.mxu0 0.0
        %3030 = vmatpush.msra.mxu0 0.0
        %3031 = vmatpush.msra.mxu0 %v223
        %3032 = vmatpush.msra.mxu0 %v222
        %3033 = vmatmul.f32.gmra.mxu0 %v3015
        %v3034 = vpop.f32.mrf.mxu0
        %v3035 = vadd.f32 %v3012, %v3034
        %3036 = vdwg.mxu0
        %v3037 = vadd.f32 %v3035, %v394
        %v3039 = vrot.slane %v3037, 1
        %v3040 = vrot.slane %v3037, 2
        %v3041 = vrot.slane %v3037, 3
        %v3042 = vrot.slane %v3037, 4
        %v3043 = vrot.slane %v3037, 5
        %v3044 = vrot.slane %v3037, 6
        %v3045 = vrot.slane %v3037, 7
        %3053 = vst.msk [vmem:[%s208 + $0x1e] sm:$0x1] %vm412, %v3037
        %3054 = vst.msk [vmem:[%s208 + $0x3e] sm:$0x1] %vm412, %v3039
        %3055 = vst.msk [vmem:[%s208 + $0x5e] sm:$0x1] %vm412, %v3040
        %3056 = vst.msk [vmem:[%s208 + $0x7e] sm:$0x1] %vm412, %v3041
        %3057 = vst.msk [vmem:[%s208 + $0x9e] sm:$0x1] %vm412, %v3042
        %3058 = vst.msk [vmem:[%s208 + $0xbe] sm:$0x1] %vm412, %v3043
        %3059 = vst.msk [vmem:[%s208 + $0xde] sm:$0x1] %vm412, %v3044
        %3060 = vst.msk [vmem:[%s208 + $0xfe] sm:$0x1] %vm412, %v3045
        %v3062 = vsel %vm344, %v2990, 0
        %3064 = vmatpush.msra.mxu0 0.0
        %3065 = vmatpush.msra.mxu0 0.0
        %3066 = vmatpush.msra.mxu0 0.0
        %3067 = vmatpush.msra.mxu0 0.0
        %3068 = vmatpush.msra.mxu0 0.0
        %3069 = vmatpush.msra.mxu0 0.0
        %3070 = vmatpush.msra.mxu0 0.0
        %3071 = vmatpush.msra.mxu0 0.0
        %3072 = vmatpush.msra.mxu0 0.0
        %3073 = vmatpush.msra.mxu0 0.0
        %3074 = vmatpush.msra.mxu0 0.0
        %3075 = vmatpush.msra.mxu0 0.0
        %3076 = vmatpush.msra.mxu0 0.0
        %3077 = vmatpush.msra.mxu0 0.0
        %3078 = vmatpush.msra.mxu0 %v231
        %3079 = vmatpush.msra.mxu0 %v230
        %3080 = vmatmul.f32.gmra.mxu0 %v3062
        %v3081 = vpop.f32.mrf.mxu0
        %v3082 = vadd.f32 0.0, %v3081
        %3083 = vdwg.mxu0
        %v3085 = vsel %vm344, %v2989, 0
        %3087 = vmatpush.msra.mxu0 0.0
        %3088 = vmatpush.msra.mxu0 0.0
        %3089 = vmatpush.msra.mxu0 0.0
        %3090 = vmatpush.msra.mxu0 0.0
        %3091 = vmatpush.msra.mxu0 0.0
        %3092 = vmatpush.msra.mxu0 0.0
        %3093 = vmatpush.msra.mxu0 0.0
        %3094 = vmatpush.msra.mxu0 0.0
        %3095 = vmatpush.msra.mxu0 0.0
        %3096 = vmatpush.msra.mxu0 0.0
        %3097 = vmatpush.msra.mxu0 0.0
        %3098 = vmatpush.msra.mxu0 0.0
        %3099 = vmatpush.msra.mxu0 0.0
        %3100 = vmatpush.msra.mxu0 0.0
        %3101 = vmatpush.msra.mxu0 %v223
        %3102 = vmatpush.msra.mxu0 %v222
        %3103 = vmatmul.f32.gmra.mxu0 %v3085
        %v3104 = vpop.f32.mrf.mxu0
        %v3105 = vadd.f32 %v3082, %v3104
        %3106 = vdwg.mxu0
        %v3107 = vadd.f32 %v3105, %v394
        %v3109 = vrot.slane %v3107, 1
        %v3110 = vrot.slane %v3107, 2
        %v3111 = vrot.slane %v3107, 3
        %v3112 = vrot.slane %v3107, 4
        %v3113 = vrot.slane %v3107, 5
        %v3114 = vrot.slane %v3107, 6
        %v3115 = vrot.slane %v3107, 7
        %3123 = vst.msk [vmem:[%s208 + $0x1f] sm:$0x1] %vm412, %v3107
        %3124 = vst.msk [vmem:[%s208 + $0x3f] sm:$0x1] %vm412, %v3109
        %3125 = vst.msk [vmem:[%s208 + $0x5f] sm:$0x1] %vm412, %v3110
        %3126 = vst.msk [vmem:[%s208 + $0x7f] sm:$0x1] %vm412, %v3111
        %3127 = vst.msk [vmem:[%s208 + $0x9f] sm:$0x1] %vm412, %v3112
        %3128 = vst.msk [vmem:[%s208 + $0xbf] sm:$0x1] %vm412, %v3113
        %3129 = vst.msk [vmem:[%s208 + $0xdf] sm:$0x1] %vm412, %v3114
        %3130 = vst.msk [vmem:[%s208 + $0xff] sm:$0x1] %vm412, %v3115
        %s3131 = sand.u32 %s112, 1
        %s3132 = scalar_lea.sflag [#allocation4], %s3131
        %s3133 = sand.u32 %s112, 1
        %s3134 = smul.addr %s3133, 256
        %s3135 = scalar_lea.vmem [#allocation5], %s3134
        // Predicated region
        $region37: #{tpu_custom_call.1} parent=31 // pred_check
          %p3136 = pneg %p122
        $region38: #{tpu_custom_call.1} parent=31 // pred_check_branch
          %3138 = sbr.rel (%p3136) target = $region40
        $region39: #{tpu_custom_call.1} parent=31 // pred_region
          %s3139 = smul.u32 4, %s25
          %3141 = vsyncadd %s3132, 0
          %s3142 = smul.addr %s24, 32
          %s3143 = sadd.s32 %s3139, %s3142
          %s3144 = smul.addr %s3143, 8
          %s3145 = scalar_lea.hbm %s3, %s3144
          %s3146 = sshll.u32 %s3135, 4
          %s3147 = int_to_ptr.vmem [resolvable:$true] %s3146
          %s3148 = sshll.u32 %s3145, 4
          %s3149 = int_to_ptr.hbm [resolvable:$true] %s3148
          %3154 = dma.vmem_to_hbm [thread:$0]  %s3147, 4096, %s3149, %s3132, 128, 128, 8
        $region40: #{tpu_custom_call.1} parent=31 // pred_fallthru
          _
      $region32: #{tpu_custom_call.1} parent=5 // pred_fallthru
        _
      %p3155 = scmp.le.s32.totalorder 2, %s15
      // Predicated region
      $region41: #{tpu_custom_call.1} parent=5 // pred_check
        %p3156 = pneg %p3155
      $region42: #{tpu_custom_call.1} parent=5 // pred_check_branch
        %3158 = sbr.rel (%p3156) target = $region44
      $region43: #{tpu_custom_call.1} parent=5 // pred_region
        %s3159 = ssub.s32 %s15, 2
        // Predicated region
        $region45: #{tpu_custom_call.1} parent=43 // pred_check
          %p3160 = pneg %p128
        $region46: #{tpu_custom_call.1} parent=43 // pred_check_branch
          %3162 = sbr.rel (%p3160) target = $region48
        $region47: #{tpu_custom_call.1} parent=43 // pred_region
          %s3163 = sand.u32 %s113, 1
          %s3164 = scalar_lea.sflag [#allocation4], %s3163
          %s3165 = sand.u32 %s113, 1
          %s3166 = smul.addr %s3165, 256
          %s3167 = scalar_lea.vmem [#allocation5], %s3166
          %3169 = dma.done %s3164, 4096
        $region48: #{tpu_custom_call.1} parent=43 // pred_fallthru
          _
      $region44: #{tpu_custom_call.1} parent=5 // pred_fallthru
        _
    $region6: #{tpu_custom_call.1} parent=1 // loop_footer
      %s19 = sadd.s32 1, %s15
    $region7: #{tpu_custom_call.1} parent=1 // loop_footer_branch
      %14 = sbr.rel target = $region3
    $region8: #{tpu_custom_call.1} parent=1 // loop_exit
      _
    %3170 = vsyncpa [#allocation3], 1
    %s3171 = scalar_lea.sflag [#allocation3], 1
    %3172 = vsyncpa %s3171, 1
    %3173 = vsyncpa [#allocation4], 1
    %s3174 = scalar_lea.sflag [#allocation4], 1
    %3175 = vsyncpa %s3174, 1

// kernel: tpu_custom_call.1
$region0: #{tpu_custom_call.1}
  #allocation0 [shape = 'u32[]', space=smem, size = 0x4, offset = 0x4, fixed_abs, tag = 'smem constant byte address 0x4 - core index']
  #allocation1 [shape = 'u32[72,128]{1,0:T(1,128)}', space=vmem, size = 0x9000, scoped, tag = 'internal scratch']
  %s0 = inlined_call_operand.vmem [shape: f32[2,4,256], index: 0, kind: input, shape index: {}]
  %s1 = inlined_call_operand.vmem [shape: f32[32,4], index: 1, kind: input, shape index: {}]
  %s2 = inlined_call_operand.vmem [shape: f32[32,1], index: 2, kind: input, shape index: {}]
  %s3 = inlined_call_operand.hbm [shape: f32[2,32,256], index: 3, kind: output, shape index: {}]
  %s4 = sld [smem:[#allocation0]]
  $region45: #{tpu_custom_call.1} parent=0
    _
  %s6 = ssub.s32 1, %s4
  %s7 = scalar_select 0, %s6, %s4
  $region1: #{tpu_custom_call.1} parent=0
    #allocation2 [shape = 'u8[65536]{0}', space=vmem, size = 0x10000, scoped, tag = 'output window, operand 0']
    #allocation3 [shape = 's32[2]{0}', space=sflag, size = 0x8, scoped, tag = 'scoped memory for tpu_custom_call.1']
    %8 = vsyncpa [#allocation3], 0
    %s9 = scalar_lea.sflag [#allocation3], 1
    %10 = vsyncpa %s9, 0
    loop: start=0, step=1, limit=4
    $region2: #{tpu_custom_call.1} parent=1 // loop_pre_header
      _
    $region3: #{tpu_custom_call.1} parent=1 // loop_header
      %s12 = sphi 0, %s16
      %p13 = scmp.ge.s32.totalorder %s12, 4
      %s19 = sphi 0, %s31
      %s20 = sphi 0, %s27
      %s21 = sphi 0, %s19
      %s22 = sphi 0, %s20
      %s23 = sphi 0, %s21
      %s24 = sphi 0, %s22
      %s36 = sphi 0, %s38
      %s39 = sphi 0, %s36
      %s40 = sphi 0, %s39
      %s56 = sphi 0, %s40
      %s60 = sphi 0, %s60
      %s62 = sphi 0, %s60
      %s63 = sphi 0, %s62
      %s77 = sphi 0, %s63
      %s81 = sphi 0, %s81
      %s83 = sphi 0, %s81
      %s84 = sphi 0, %s83
      %s98 = sphi 0, %s84
      %s106 = sphi 0, %s108
      %s109 = sphi 0, %s106
      %s110 = sphi 0, %s109
      %s126 = sphi 0, %s110
    $region4: #{tpu_custom_call.1} parent=1 // loop_header_branch
      %15 = sbr.rel (%p13) target = $region8
    $region5: #{tpu_custom_call.1} parent=1 // loop_body
      %s17 = ssub.s32 %s12, 1
      %s18 = ssub.s32 %s12, 2
      %s25 = sadd.s32 1, %s20
      %p26 = scmp.ge.s32.totalorder %s25, 1
      %s27 = scalar_select %p26, 0, %s25
      %s28 = sadd.s32 1, %s19
      %s29 = scalar_select %p26, %s28, %s19
      %p30 = scmp.ge.s32.totalorder %s29, 2
      %s31 = scalar_select %p30, 0, %s29
      %s32 = ssub.s32 %s19, %s31
      %s33 = ssub.s32 %s20, %s27
      %s34 = sor.u32 %s32, %s33
      %p35 = scmp.eq.s32.totalorder %s34, 0
      %s37 = sadd.s32 %s36, 1
      %s38 = scalar_select %p35, %s36, %s37
      %p41 = pneg %p35
      %p42 = scmp.eq.s32.totalorder %s12, 1
      %p43 = por %p41, %p42
      %p44 = scmp.ne.s32.totalorder %s36, %s39
      %p45 = scmp.eq.s32.totalorder %s12, 0
      %p46 = por %p44, %p45
      %p47 = scmp.ne.s32.totalorder %s36, %s39
      %p48 = scmp.eq.s32.totalorder %s17, 1
      %p49 = por %p47, %p48
      %p50 = scmp.ne.s32.totalorder %s39, %s40
      %p51 = scmp.eq.s32.totalorder %s17, 0
      %p52 = por %p50, %p51
      %p53 = scmp.ne.s32.totalorder %s39, %s40
      %p54 = scmp.eq.s32.totalorder %s18, 1
      %p55 = por %p53, %p54
      %p57 = scmp.ne.s32.totalorder %s40, %s56
      %p58 = scmp.eq.s32.totalorder %s18, 0
      %p59 = por %p57, %p58
      %s61 = sadd.s32 %s60, 1
      %p64 = scmp.eq.s32.totalorder %s12, 1
      %p65 = scmp.ne.s32.totalorder %s60, %s62
      %p66 = scmp.eq.s32.totalorder %s12, 0
      %p67 = por %p65, %p66
      %p68 = scmp.ne.s32.totalorder %s60, %s62
      %p69 = scmp.eq.s32.totalorder %s17, 1
      %p70 = por %p68, %p69
      %p71 = scmp.ne.s32.totalorder %s62, %s63
      %p72 = scmp.eq.s32.totalorder %s17, 0
      %p73 = por %p71, %p72
      %p74 = scmp.ne.s32.totalorder %s62, %s63
      %p75 = scmp.eq.s32.totalorder %s18, 1
      %p76 = por %p74, %p75
      %p78 = scmp.ne.s32.totalorder %s63, %s77
      %p79 = scmp.eq.s32.totalorder %s18, 0
      %p80 = por %p78, %p79
      %s82 = sadd.s32 %s81, 1
      %p85 = scmp.eq.s32.totalorder %s12, 1
      %p86 = scmp.ne.s32.totalorder %s81, %s83
      %p87 = scmp.eq.s32.totalorder %s12, 0
      %p88 = por %p86, %p87
      %p89 = scmp.ne.s32.totalorder %s81, %s83
      %p90 = scmp.eq.s32.totalorder %s17, 1
      %p91 = por %p89, %p90
      %p92 = scmp.ne.s32.totalorder %s83, %s84
      %p93 = scmp.eq.s32.totalorder %s17, 0
      %p94 = por %p92, %p93
      %p95 = scmp.ne.s32.totalorder %s83, %s84
      %p96 = scmp.eq.s32.totalorder %s18, 1
      %p97 = por %p95, %p96
      %p99 = scmp.ne.s32.totalorder %s84, %s98
      %p100 = scmp.eq.s32.totalorder %s18, 0
      %p101 = por %p99, %p100
      %s102 = ssub.s32 %s19, %s31
      %s103 = ssub.s32 %s20, %s27
      %s104 = sor.u32 %s102, %s103
      %p105 = scmp.eq.s32.totalorder %s104, 0
      %s107 = sadd.s32 %s106, 1
      %s108 = scalar_select %p105, %s106, %s107
      %p111 = pneg %p105
      %p112 = scmp.eq.s32.totalorder %s12, 1
      %p113 = por %p111, %p112
      %p114 = scmp.ne.s32.totalorder %s106, %s109
      %p115 = scmp.eq.s32.totalorder %s12, 0
      %p116 = por %p114, %p115
      %p117 = scmp.ne.s32.totalorder %s106, %s109
      %p118 = scmp.eq.s32.totalorder %s17, 1
      %p119 = por %p117, %p118
      %p120 = scmp.ne.s32.totalorder %s109, %s110
      %p121 = scmp.eq.s32.totalorder %s17, 0
      %p122 = por %p120, %p121
      %p123 = scmp.ne.s32.totalorder %s109, %s110
      %p124 = scmp.eq.s32.totalorder %s18, 1
      %p125 = por %p123, %p124
      %p127 = scmp.ne.s32.totalorder %s110, %s126
      %p128 = scmp.eq.s32.totalorder %s18, 0
      %p129 = por %p127, %p128
      %p130 = scmp.le.s32.totalorder 1, %s12
      %p131 = scmp.lt.s32.totalorder %s12, 3
      %p132 = pnand %p130, %p131
      %p133 = pneg %p132
      // Predicated region
      $region9: #{tpu_custom_call.1} parent=5 // pred_check
        _
      $region10: #{tpu_custom_call.1} parent=5 // pred_check_branch
        %135 = sbr.rel (%p132) target = $region12
      $region11: #{tpu_custom_call.1} parent=5 // pred_region
        %s136 = ssub.s32 %s12, 1
        // Predicated region
        $region13: #{tpu_custom_call.1} parent=11 // pred_check
          %p137 = pneg %p73
        $region14: #{tpu_custom_call.1} parent=11 // pred_check_branch
          %139 = sbr.rel (%p137) target = $region16
        $region15: #{tpu_custom_call.1} parent=11 // pred_region
          _
        $region16: #{tpu_custom_call.1} parent=11 // pred_fallthru
          _
        // Predicated region
        $region17: #{tpu_custom_call.1} parent=11 // pred_check
          %p140 = pneg %p94
        $region18: #{tpu_custom_call.1} parent=11 // pred_check_branch
          %142 = sbr.rel (%p140) target = $region20
        $region19: #{tpu_custom_call.1} parent=11 // pred_region
          _
        $region20: #{tpu_custom_call.1} parent=11 // pred_fallthru
          _
      $region12: #{tpu_custom_call.1} parent=5 // pred_fallthru
        _
      %p143 = scmp.lt.s32.totalorder %s12, 2
      // Predicated region
      $region21: #{tpu_custom_call.1} parent=5 // pred_check
        %p144 = pneg %p143
      $region22: #{tpu_custom_call.1} parent=5 // pred_check_branch
        %146 = sbr.rel (%p144) target = $region24
      $region23: #{tpu_custom_call.1} parent=5 // pred_region
        // Predicated region
        $region25: #{tpu_custom_call.1} parent=23 // pred_check
          %p147 = pneg %p46
        $region26: #{tpu_custom_call.1} parent=23 // pred_check_branch
          %149 = sbr.rel (%p147) target = $region28
        $region27: #{tpu_custom_call.1} parent=23 // pred_region
          %s150 = smul.u32 2, %s20
          %p151 = scmp.lt.s32.totalorder %s19, 1
          %s152 = scalar_select %p151, %s19, 1
          %p153 = scmp.lt.s32.totalorder %s150, 1
          %s154 = scalar_select %p153, %s150, 1
          %s155 = smul.addr %s152, 2
          %s156 = sadd.s32 %s154, %s155
          %s157 = smul.addr %s156, 4
          %s158 = scalar_lea.vmem %s0, %s157
          %s159 = smul.u32 2, %s20
        $region28: #{tpu_custom_call.1} parent=23 // pred_fallthru
          _
      $region24: #{tpu_custom_call.1} parent=5 // pred_fallthru
        _
      %p160 = scmp.le.s32.totalorder 1, %s12
      %p161 = scmp.lt.s32.totalorder %s12, 3
      %p162 = pnand %p160, %p161
      %p163 = pneg %p162
      // Predicated region
      $region29: #{tpu_custom_call.1} parent=5 // pred_check
        _
      $region30: #{tpu_custom_call.1} parent=5 // pred_check_branch
        %165 = sbr.rel (%p162) target = $region32
      $region31: #{tpu_custom_call.1} parent=5 // pred_region
        %s166 = ssub.s32 %s12, 1
        %s167 = smul.u32 2, %s22
        %p168 = scmp.lt.s32.totalorder %s21, 1
        %s169 = scalar_select %p168, %s21, 1
        %p170 = scmp.lt.s32.totalorder %s167, 1
        %s171 = scalar_select %p170, %s167, 1
        %s172 = smul.addr %s169, 2
        %s173 = sadd.s32 %s171, %s172
        %s174 = smul.addr %s173, 4
        %s175 = scalar_lea.vmem %s0, %s174
        %p176 = pneg %p52
        %p177 = pneg %p49
        %p178 = pneg %p73
        %p179 = pneg %p70
        %p180 = pneg %p94
        %p181 = pneg %p91
        %p182 = pneg %p122
        %p183 = pneg %p119
        %s184 = sand.u32 %s109, 1
        %s185 = scalar_lea.sflag [#allocation3], %s184
        %s186 = sand.u32 %s109, 1
        %s187 = smul.addr %s186, 64
        %s188 = scalar_lea.vmem [#allocation2], %s187
        %s189 = smul.u32 2, %s22
        %p190 = scmp.lt.s32.totalorder %s21, 1
        %s191 = scalar_select %p190, %s21, 1
        %p192 = scmp.lt.s32.totalorder %s189, 1
        %s193 = scalar_select %p192, %s189, 1
        %s194 = smul.addr %s191, 2
        %s195 = sadd.s32 %s193, %s194
        %s196 = smul.addr %s195, 4
        %s197 = scalar_lea.vmem %s0, %s196
        %s198 = smul.u32 2, %s22
        %s199 = smul.u32 2, %s22
        %v200 = vld [vmem:[%s1] sm:$0xff]
        %v201 = vld [vmem:[%s1 + $0x8] sm:$0xff]
        %v202 = vld [vmem:[%s1 + $0x10] sm:$0xff]
        %v203 = vld [vmem:[%s1 + $0x18] sm:$0xff]
        %v204 = vld [vmem:[%s197] sm:$0xff]
        %v205 = vld [vmem:[%s2] sm:$0xff]
        %v206 = vld [vmem:[%s2 + $0x8] sm:$0xff]
        %v207 = vld [vmem:[%s2 + $0x10] sm:$0xff]
        %v208 = vld [vmem:[%s2 + $0x18] sm:$0xff]
        %210 = vset.pattern.permute.xlu0 0
        %211 = vperm.xlu0 %210, %v205
        %v212 = vpop.permute.xlu0 %211
        %215 = vset.pattern.permute.xlu0 0
        %216 = vperm.xlu0 %215, %v206
        %v217 = vpop.permute.xlu0 %216
        %220 = vset.pattern.permute.xlu0 0
        %221 = vperm.xlu0 %220, %v207
        %v222 = vpop.permute.xlu0 %221
        %225 = vset.pattern.permute.xlu0 0
        %226 = vperm.xlu0 %225, %v208
        %v227 = vpop.permute.xlu0 %226
        %230 = vst [vmem:[#allocation1] ss:$2 sm:$0xff] %v204
        %v231 = vld.sshfl [vmem:[#allocation1] sm:$0xff pattern:$0x75316420]
        %v232 = vld.sshfl [vmem:[#allocation1 + $0x8] sm:$0xff pattern:$0x75316420]
        %vm233 = vcmask 31744
        %v235 = vsel %vm233, %v200, 0
        %v238 = vsel %vm233, %v201, 0
        %v241 = vsel %vm233, %v202, 0
        %v244 = vsel %vm233, %v203, 0
        %vm246 = vcmask 1043456
        %v247 = vsel %vm246, %v231, 0
        %v249 = vsel %vm246, %v232, 0
        %251 = vmatpush.msra.mxu0 0.0
        %252 = vmatpush.msra.mxu0 0.0
        %253 = vmatpush.msra.mxu0 0.0
        %254 = vmatpush.msra.mxu0 0.0
        %255 = vmatpush.msra.mxu0 0.0
        %256 = vmatpush.msra.mxu0 0.0
        %257 = vmatpush.msra.mxu0 0.0
        %258 = vmatpush.msra.mxu0 0.0
        %259 = vmatpush.msra.mxu0 0.0
        %260 = vmatpush.msra.mxu0 0.0
        %261 = vmatpush.msra.mxu0 0.0
        %262 = vmatpush.msra.mxu0 0.0
        %263 = vmatpush.msra.mxu0 0.0
        %264 = vmatpush.msra.mxu0 0.0
        %265 = vmatpush.msra.mxu0 0.0
        %266 = vmatpush.msra.mxu0 %v247
        %267 = vmatmul.f32.gmra.mxu0 %v235
        %v268 = vpop.f32.mrf.mxu0
        %v269 = vadd.f32 %v212, %v268
        %270 = vmatmul.f32.gmra.mxu0 %v238
        %v271 = vpop.f32.mrf.mxu0
        %v272 = vadd.f32 %v217, %v271
        %273 = vmatmul.f32.gmra.mxu0 %v241
        %v274 = vpop.f32.mrf.mxu0
        %v275 = vadd.f32 %v222, %v274
        %276 = vmatmul.f32.gmra.mxu0 %v244
        %v277 = vpop.f32.mrf.mxu0
        %v278 = vadd.f32 %v227, %v277
        %279 = vdwg.mxu0
        %280 = vmatpush.msra.mxu0 0.0
        %281 = vmatpush.msra.mxu0 0.0
        %282 = vmatpush.msra.mxu0 0.0
        %283 = vmatpush.msra.mxu0 0.0
        %284 = vmatpush.msra.mxu0 0.0
        %285 = vmatpush.msra.mxu0 0.0
        %286 = vmatpush.msra.mxu0 0.0
        %287 = vmatpush.msra.mxu0 0.0
        %288 = vmatpush.msra.mxu0 0.0
        %289 = vmatpush.msra.mxu0 0.0
        %290 = vmatpush.msra.mxu0 0.0
        %291 = vmatpush.msra.mxu0 0.0
        %292 = vmatpush.msra.mxu0 0.0
        %293 = vmatpush.msra.mxu0 0.0
        %294 = vmatpush.msra.mxu0 0.0
        %295 = vmatpush.msra.mxu0 %v249
        %296 = vmatmul.f32.gmra.mxu0 %v235
        %v297 = vpop.f32.mrf.mxu0
        %v298 = vadd.f32 %v212, %v297
        %299 = vmatmul.f32.gmra.mxu0 %v238
        %v300 = vpop.f32.mrf.mxu0
        %v301 = vadd.f32 %v217, %v300
        %302 = vmatmul.f32.gmra.mxu0 %v241
        %v303 = vpop.f32.mrf.mxu0
        %v304 = vadd.f32 %v222, %v303
        %305 = vmatmul.f32.gmra.mxu0 %v244
        %v306 = vpop.f32.mrf.mxu0
        %v307 = vadd.f32 %v227, %v306
        %308 = vdwg.mxu0
        %309 = vst [vmem:[%s188] sm:$0xff] %v269
        %310 = vst [vmem:[%s188 + $0x8] sm:$0xff] %v298
        %311 = vst [vmem:[%s188 + $0x10] sm:$0xff] %v272
        %312 = vst [vmem:[%s188 + $0x18] sm:$0xff] %v301
        %313 = vst [vmem:[%s188 + $0x20] sm:$0xff] %v275
        %314 = vst [vmem:[%s188 + $0x28] sm:$0xff] %v304
        %315 = vst [vmem:[%s188 + $0x30] sm:$0xff] %v278
        %316 = vst [vmem:[%s188 + $0x38] sm:$0xff] %v307
        %s317 = sand.u32 %s109, 1
        %s318 = scalar_lea.sflag [#allocation3], %s317
        %s319 = sand.u32 %s109, 1
        %s320 = smul.addr %s319, 64
        %s321 = scalar_lea.vmem [#allocation2], %s320
        // Predicated region
        $region33: #{tpu_custom_call.1} parent=31 // pred_check
          %p322 = pneg %p119
        $region34: #{tpu_custom_call.1} parent=31 // pred_check_branch
          %324 = sbr.rel (%p322) target = $region36
        $region35: #{tpu_custom_call.1} parent=31 // pred_region
          %s325 = smul.u32 2, %s22
          %327 = vsyncadd %s318, 0
          %s328 = smul.addr %s21, 8
          %s329 = sadd.s32 %s325, %s328
          %s330 = smul.addr %s329, 8
          %s331 = scalar_lea.hbm %s3, %s330
          %s332 = sshll.u32 %s321, 4
          %s333 = int_to_ptr.vmem [resolvable:$true] %s332
          %s334 = sshll.u32 %s331, 4
          %s335 = int_to_ptr.hbm [resolvable:$true] %s334
          %340 = dma.vmem_to_hbm [thread:$0]  %s333, 1024, %s335, %s318, 256, 256, 16
        $region36: #{tpu_custom_call.1} parent=31 // pred_fallthru
          _
      $region32: #{tpu_custom_call.1} parent=5 // pred_fallthru
        _
      %p341 = scmp.le.s32.totalorder 2, %s12
      // Predicated region
      $region37: #{tpu_custom_call.1} parent=5 // pred_check
        %p342 = pneg %p341
      $region38: #{tpu_custom_call.1} parent=5 // pred_check_branch
        %344 = sbr.rel (%p342) target = $region40
      $region39: #{tpu_custom_call.1} parent=5 // pred_region
        %s345 = ssub.s32 %s12, 2
        // Predicated region
        $region41: #{tpu_custom_call.1} parent=39 // pred_check
          %p346 = pneg %p125
        $region42: #{tpu_custom_call.1} parent=39 // pred_check_branch
          %348 = sbr.rel (%p346) target = $region44
        $region43: #{tpu_custom_call.1} parent=39 // pred_region
          %s349 = sand.u32 %s110, 1
          %s350 = scalar_lea.sflag [#allocation3], %s349
          %s351 = sand.u32 %s110, 1
          %s352 = smul.addr %s351, 64
          %s353 = scalar_lea.vmem [#allocation2], %s352
          %355 = dma.done %s350, 1024
        $region44: #{tpu_custom_call.1} parent=39 // pred_fallthru
          _
      $region40: #{tpu_custom_call.1} parent=5 // pred_fallthru
        _
    $region6: #{tpu_custom_call.1} parent=1 // loop_footer
      %s16 = sadd.s32 1, %s12
    $region7: #{tpu_custom_call.1} parent=1 // loop_footer_branch
      %11 = sbr.rel target = $region3
    $region8: #{tpu_custom_call.1} parent=1 // loop_exit
      _
    %356 = vsyncpa [#allocation3], 1
    %s357 = scalar_lea.sflag [#allocation3], 1
    %358 = vsyncpa %s357, 1

</llo_original>
